<compile_context>
chip_gen: v7x
topology: tpu7x:2x2x1
jax: 0.10.0
libtpu: 0.0.40
codegen_flags: <defaults>
</compile_context>

<pallas_src>
import math

import jax
import jax.numpy as jnp
from jax.experimental import pallas as pl
from jax.experimental.pallas import tpu as pltpu

# Scaled-down VGG configuration.
H0, W0, C_IN = 16, 16, 3        # input spatial / channels
C1, C2, C3 = 16, 32, 32         # conv output channels (cfg [16,'M',32,32,'M'])
H1, W1 = H0 // 2, W0 // 2       # after first maxpool  -> (8, 8)
H2, W2 = H1 // 2, W1 // 2       # after second maxpool -> (4, 4)
FLAT = C3 * H2 * W2             # 512 flattened features
HIDDEN = 128                    # stand-in for 4096
NUM_CLASSES = 10                # stand-in for 1000


# ----------------------------------------------------------------------------
# Fused whole-network kernel (one image per grid step, everything in VMEM)
# ----------------------------------------------------------------------------
def vgg_fused_kernel(
    x_ref,                      # (1, 16, 16, 3)  f32
    w1_ref, b1_ref,             # (27, 16)   bf16 / (1, 16)  f32
    w2_ref, b2_ref,             # (144, 32)  bf16 / (1, 32)  f32
    w3_ref, b3_ref,             # (288, 32)  bf16 / (1, 32)  f32
    wf1_ref, bf1_ref,           # (512, 128) bf16 / (1, 128) f32
    wf2_ref, bf2_ref,           # (128, 128) bf16 / (1, 128) f32
    wf3_ref, bf3_ref,           # (128, 10)  bf16 / (1, 10)  f32
    o_ref,                      # (1, 1, 10) f32
    pad1_s, im1_s, pad2_s, im2_s, pad3_s, im3_s, flat_s,
):
    def conv3x3_relu(act_hwc, pad_s, im_s, w_ref, b_ref):
        """act_hwc: (H, W, Cin) f32 value -> (H*W, Cout) f32 value."""
        H, W, Cin = act_hwc.shape
        # In-kernel zero padding (1-pixel halo) into a VMEM scratch.
        pad_s[...] = jnp.zeros(pad_s.shape, pad_s.dtype)
        pad_s[1:H + 1, 1:W + 1, :] = act_hwc
        # im2col: pack the 9 shifted taps along the lane axis -> (H*W, 9*Cin)
        # so the conv becomes one big-K MXU matmul instead of 9 small dots.
        for dh in range(3):
            for dw in range(3):
                tap = dh * 3 + dw
                patch = pad_s[dh:dh + H, dw:dw + W, :].reshape(H * W, Cin)
                im_s[:, tap * Cin:(tap + 1) * Cin] = patch
        lhs = im_s[...].astype(jnp.bfloat16)
        y = jnp.dot(lhs, w_ref[...], preferred_element_type=jnp.float32)
        return jnp.maximum(y + b_ref[...], 0.0)          # f32 epilogue

    def maxpool2x2(y_flat, H, W, C):
        """y_flat: (H*W, C) f32, rows ordered h*W + w -> (H//2, W//2, C)."""
        r = y_flat.reshape(H // 2, 2, W // 2, 2, C)
        return jnp.max(jnp.max(r, axis=3), axis=1)

    # ---- features: conv16 -> pool -> conv32 -> conv32 -> pool ----
    y1 = conv3x3_relu(x_ref[0], pad1_s, im1_s, w1_ref, b1_ref)      # (256, 16)
    p1 = maxpool2x2(y1, H0, W0, C1)                                 # (8, 8, 16)
    y2 = conv3x3_relu(p1, pad2_s, im2_s, w2_ref, b2_ref)            # (64, 32)
    y3 = conv3x3_relu(y2.reshape(H1, W1, C2), pad3_s, im3_s,
                      w3_ref, b3_ref)                               # (64, 32)
    p2 = maxpool2x2(y3, H1, W1, C3)                                 # (4, 4, 32)

    # ---- flatten (HWC order; fc1 rows were permuted at init so this is
    #      numerically equivalent to PyTorch's x.view(N, -1) over NCHW) ----
    for hh in range(H2):
        for ww in range(W2):
            off = (hh * W2 + ww) * C3
            flat_s[0:1, off:off + C3] = p2[hh:hh + 1, ww, :]
    f = flat_s[...].astype(jnp.bfloat16)                            # (1, 512)

    # ---- classifier: Linear-ReLU-(Dropout)-Linear-ReLU-(Dropout)-Linear ----
    # TODO(synk): Dropout is identity here (inference mode); training-mode
    # dropout would need pltpu.prng_seed / prng_random_bits inside this kernel.
    h = jnp.dot(f, wf1_ref[...], preferred_element_type=jnp.float32) + bf1_ref[...]
    h = jnp.maximum(h, 0.0).astype(jnp.bfloat16)
    h = jnp.dot(h, wf2_ref[...], preferred_element_type=jnp.float32) + bf2_ref[...]
    h = jnp.maximum(h, 0.0).astype(jnp.bfloat16)
    logits = jnp.dot(h, wf3_ref[...], preferred_element_type=jnp.float32) + bf3_ref[...]
    o_ref[0] = logits.astype(o_ref.dtype)


# ----------------------------------------------------------------------------
# Wrapper: one pallas_call for the whole forward pass
# ----------------------------------------------------------------------------
def vgg_forward(params, x_nchw):
    """Matches VGG.forward: features -> flatten -> classifier."""
    n = x_nchw.shape[0]
    x = jnp.transpose(x_nchw, (0, 2, 3, 1)).astype(jnp.float32)   # NCHW -> NHWC

    def full_block(shape):
        nd = len(shape)
        return pl.BlockSpec(shape, lambda i, _nd=nd: (0,) * _nd)

    in_specs = [pl.BlockSpec((1, H0, W0, C_IN), lambda i: (i, 0, 0, 0))]
    in_specs += [full_block(p.shape) for p in params]

    out = pl.pallas_call(
        vgg_fused_kernel,
        out_shape=jax.ShapeDtypeStruct((n, 1, NUM_CLASSES), jnp.float32),
        grid=(n,),
        in_specs=in_specs,
        out_specs=pl.BlockSpec((1, 1, NUM_CLASSES), lambda i: (i, 0, 0)),
        scratch_shapes=[
            pltpu.VMEM((H0 + 2, W0 + 2, C_IN), jnp.float32),   # pad halo, conv1
            pltpu.VMEM((H0 * W0, 9 * C_IN), jnp.float32),      # im2col, conv1
            pltpu.VMEM((H1 + 2, W1 + 2, C1), jnp.float32),     # pad halo, conv2
            pltpu.VMEM((H1 * W1, 9 * C1), jnp.float32),        # im2col, conv2
            pltpu.VMEM((H1 + 2, W1 + 2, C2), jnp.float32),     # pad halo, conv3
            pltpu.VMEM((H1 * W1, 9 * C2), jnp.float32),        # im2col, conv3
            pltpu.VMEM((1, FLAT), jnp.float32),                # flatten buffer
        ],
        compiler_params=pltpu.CompilerParams(
            dimension_semantics=("parallel",),   # v7x: one image per TensorCore
            vmem_limit_bytes=32 * 1024 * 1024,
        ),
    )(x, *params)
    return out.reshape(n, NUM_CLASSES)


# ----------------------------------------------------------------------------
# Parameters: deterministic, mirrors torch _initialize_weights; packed ONCE
# into the layouts the fused kernel consumes (no per-forward transposes).
# ----------------------------------------------------------------------------
def init_params(key):
    kc1, kc2, kc3, kf1, kf2, kf3 = jax.random.split(key, 6)

    def conv_w(k, cout, cin):
        n = 3 * 3 * cout
        w = jax.random.normal(k, (cout, cin, 3, 3), jnp.float32) * math.sqrt(2.0 / n)
        # torch (Cout, Cin, kh, kw) -> im2col (kh*kw*Cin, Cout); row order
        # (tap-major, channel-minor) matches the kernel's packing.
        return jnp.transpose(w, (2, 3, 1, 0)).reshape(9 * cin, cout).astype(jnp.bfloat16)

    def fc_w(k, dout, din):
        return jax.random.normal(k, (dout, din), jnp.float32) * 0.01

    w1 = conv_w(kc1, C1, C_IN)
    w2 = conv_w(kc2, C2, C1)
    w3 = conv_w(kc3, C3, C2)
    b1 = jnp.zeros((1, C1), jnp.float32)
    b2 = jnp.zeros((1, C2), jnp.float32)
    b3 = jnp.zeros((1, C3), jnp.float32)

    # fc1: torch weight (HIDDEN, FLAT) with the input dim in CHW-flatten order;
    # permute to the kernel's HWC-flatten order and transpose to (Din, Dout).
    wf1_t = fc_w(kf1, HIDDEN, FLAT)
    wf1 = (wf1_t.reshape(HIDDEN, C3, H2, W2)
                .transpose(2, 3, 1, 0)
                .reshape(FLAT, HIDDEN)
                .astype(jnp.bfloat16))
    wf2 = fc_w(kf2, HIDDEN, HIDDEN).T.astype(jnp.bfloat16)
    wf3 = fc_w(kf3, NUM_CLASSES, HIDDEN).T.astype(jnp.bfloat16)
    bf1 = jnp.zeros((1, HIDDEN), jnp.float32)
    bf2 = jnp.zeros((1, HIDDEN), jnp.float32)
    bf3 = jnp.zeros((1, NUM_CLASSES), jnp.float32)

    return (w1, b1, w2, b2, w3, b3, wf1, bf1, wf2, bf2, wf3, bf3)


if __name__ == "__main__":
    key = jax.random.PRNGKey(0)
    k_x, k_p = jax.random.split(key)
    batch = 2
    x = jax.random.normal(k_x, (batch, C_IN, H0, W0), jnp.float32)
    params = init_params(k_p)

    out = jax.jit(vgg_forward)(params, x)
    out = jax.block_until_ready(out)

    assert out.shape == (batch, NUM_CLASSES), out.shape
    assert bool(jnp.all(jnp.isfinite(out)))
    print("KERNEL_OK")
</pallas_src>

<mosaic_0001>
module attributes {stable_mosaic.version = 11 : i64} {
  func.func @vgg_fused_kernel(%arg0: i32, %arg1: memref<1x16x16x3xf32, #tpu.memory_space<vmem>>, %arg2: memref<27x16xbf16, #tpu.memory_space<vmem>>, %arg3: memref<1x16xf32, #tpu.memory_space<vmem>>, %arg4: memref<144x32xbf16, #tpu.memory_space<vmem>>, %arg5: memref<1x32xf32, #tpu.memory_space<vmem>>, %arg6: memref<288x32xbf16, #tpu.memory_space<vmem>>, %arg7: memref<1x32xf32, #tpu.memory_space<vmem>>, %arg8: memref<512x128xbf16, #tpu.memory_space<vmem>>, %arg9: memref<1x128xf32, #tpu.memory_space<vmem>>, %arg10: memref<128x128xbf16, #tpu.memory_space<vmem>>, %arg11: memref<1x128xf32, #tpu.memory_space<vmem>>, %arg12: memref<128x10xbf16, #tpu.memory_space<vmem>>, %arg13: memref<1x10xf32, #tpu.memory_space<vmem>>, %arg14: memref<1x1x10xf32, #tpu.memory_space<vmem>>, %arg15: memref<18x18x3xf32, #tpu.memory_space<vmem>>, %arg16: memref<256x27xf32, #tpu.memory_space<vmem>>, %arg17: memref<10x10x16xf32, #tpu.memory_space<vmem>>, %arg18: memref<64x144xf32, #tpu.memory_space<vmem>>, %arg19: memref<10x10x32xf32, #tpu.memory_space<vmem>>, %arg20: memref<64x288xf32, #tpu.memory_space<vmem>>, %arg21: memref<1x512xf32, #tpu.memory_space<vmem>>) attributes {dimension_semantics = [#tpu.dimension_semantics<parallel>], iteration_bounds = array<i64: 2>, scalar_prefetch = 0 : i64, scratch_operands = 7 : i64, tpu.core_type = #tpu.core_type<tc>, window_params = [{transform_indices = @transform_0, window_bounds = array<i64: 1, 16, 16, 3>}, {pipeline_mode = #tpu.pipeline_mode<synchronous>, transform_indices = @transform_1, window_bounds = array<i64: 27, 16>}, {pipeline_mode = #tpu.pipeline_mode<synchronous>, transform_indices = @transform_2, window_bounds = array<i64: 1, 16>}, {pipeline_mode = #tpu.pipeline_mode<synchronous>, transform_indices = @transform_3, window_bounds = array<i64: 144, 32>}, {pipeline_mode = #tpu.pipeline_mode<synchronous>, transform_indices = @transform_4, window_bounds = array<i64: 1, 32>}, {pipeline_mode = #tpu.pipeline_mode<synchronous>, transform_indices = @transform_5, window_bounds = array<i64: 288, 32>}, {pipeline_mode = #tpu.pipeline_mode<synchronous>, transform_indices = @transform_6, window_bounds = array<i64: 1, 32>}, {pipeline_mode = #tpu.pipeline_mode<synchronous>, transform_indices = @transform_7, window_bounds = array<i64: 512, 128>}, {pipeline_mode = #tpu.pipeline_mode<synchronous>, transform_indices = @transform_8, window_bounds = array<i64: 1, 128>}, {pipeline_mode = #tpu.pipeline_mode<synchronous>, transform_indices = @transform_9, window_bounds = array<i64: 128, 128>}, {pipeline_mode = #tpu.pipeline_mode<synchronous>, transform_indices = @transform_10, window_bounds = array<i64: 1, 128>}, {pipeline_mode = #tpu.pipeline_mode<synchronous>, transform_indices = @transform_11, window_bounds = array<i64: 128, 10>}, {pipeline_mode = #tpu.pipeline_mode<synchronous>, transform_indices = @transform_12, window_bounds = array<i64: 1, 10>}, {transform_indices = @transform_13, window_bounds = array<i64: 1, 1, 10>}]} {
    %c0 = arith.constant 0 : index
    %c0_0 = arith.constant 0 : index
    %c0_1 = arith.constant 0 : index
    %c0_2 = arith.constant 0 : index
    %0 = vector.load %arg1[%c0, %c0_0, %c0_1, %c0_2] : memref<1x16x16x3xf32, #tpu.memory_space<vmem>>, vector<1x16x16x3xf32>
    %1 = vector.shape_cast %0 : vector<1x16x16x3xf32> to vector<16x16x3xf32>
    %cst = arith.constant 0.000000e+00 : f32
    %2 = vector.broadcast %cst : f32 to vector<18x18x3xf32>
    %c0_3 = arith.constant 0 : index
    %c0_4 = arith.constant 0 : index
    %c0_5 = arith.constant 0 : index
    %3 = vector.load %arg15[%c0_3, %c0_4, %c0_5] : memref<18x18x3xf32, #tpu.memory_space<vmem>>, vector<18x18x3xf32>
    tpu.vector_store %arg15[%c0_3, %c0_4, %c0_5], %2 {strides = array<i32>} : memref<18x18x3xf32, #tpu.memory_space<vmem>>, vector<18x18x3xf32>,
    %c1 = arith.constant 1 : index
    %c1_6 = arith.constant 1 : index
    %c0_7 = arith.constant 0 : index
    %4 = vector.load %arg15[%c1, %c1_6, %c0_7] : memref<18x18x3xf32, #tpu.memory_space<vmem>>, vector<16x16x3xf32>
    tpu.vector_store %arg15[%c1, %c1_6, %c0_7], %1 {strides = array<i32>} : memref<18x18x3xf32, #tpu.memory_space<vmem>>, vector<16x16x3xf32>,
    %c0_8 = arith.constant 0 : index
    %c0_9 = arith.constant 0 : index
    %c0_10 = arith.constant 0 : index
    %5 = vector.load %arg15[%c0_8, %c0_9, %c0_10] : memref<18x18x3xf32, #tpu.memory_space<vmem>>, vector<16x16x3xf32>
    %6 = vector.shape_cast %5 : vector<16x16x3xf32> to vector<256x3xf32>
    %c0_11 = arith.constant 0 : index
    %c0_12 = arith.constant 0 : index
    %7 = vector.load %arg16[%c0_11, %c0_12] : memref<256x27xf32, #tpu.memory_space<vmem>>, vector<256x3xf32>
    tpu.vector_store %arg16[%c0_11, %c0_12], %6 {strides = array<i32>} : memref<256x27xf32, #tpu.memory_space<vmem>>, vector<256x3xf32>,
    %c0_13 = arith.constant 0 : index
    %c1_14 = arith.constant 1 : index
    %c0_15 = arith.constant 0 : index
    %8 = vector.load %arg15[%c0_13, %c1_14, %c0_15] : memref<18x18x3xf32, #tpu.memory_space<vmem>>, vector<16x16x3xf32>
    %9 = vector.shape_cast %8 : vector<16x16x3xf32> to vector<256x3xf32>
    %c0_16 = arith.constant 0 : index
    %c3 = arith.constant 3 : index
    %10 = vector.load %arg16[%c0_16, %c3] : memref<256x27xf32, #tpu.memory_space<vmem>>, vector<256x3xf32>
    tpu.vector_store %arg16[%c0_16, %c3], %9 {strides = array<i32>} : memref<256x27xf32, #tpu.memory_space<vmem>>, vector<256x3xf32>,
    %c0_17 = arith.constant 0 : index
    %c2 = arith.constant 2 : index
    %c0_18 = arith.constant 0 : index
    %11 = vector.load %arg15[%c0_17, %c2, %c0_18] : memref<18x18x3xf32, #tpu.memory_space<vmem>>, vector<16x16x3xf32>
    %12 = vector.shape_cast %11 : vector<16x16x3xf32> to vector<256x3xf32>
    %c0_19 = arith.constant 0 : index
    %c6 = arith.constant 6 : index
    %13 = vector.load %arg16[%c0_19, %c6] : memref<256x27xf32, #tpu.memory_space<vmem>>, vector<256x3xf32>
    tpu.vector_store %arg16[%c0_19, %c6], %12 {strides = array<i32>} : memref<256x27xf32, #tpu.memory_space<vmem>>, vector<256x3xf32>,
    %c1_20 = arith.constant 1 : index
    %c0_21 = arith.constant 0 : index
    %c0_22 = arith.constant 0 : index
    %14 = vector.load %arg15[%c1_20, %c0_21, %c0_22] : memref<18x18x3xf32, #tpu.memory_space<vmem>>, vector<16x16x3xf32>
    %15 = vector.shape_cast %14 : vector<16x16x3xf32> to vector<256x3xf32>
    %c0_23 = arith.constant 0 : index
    %c9 = arith.constant 9 : index
    %16 = vector.load %arg16[%c0_23, %c9] : memref<256x27xf32, #tpu.memory_space<vmem>>, vector<256x3xf32>
    tpu.vector_store %arg16[%c0_23, %c9], %15 {strides = array<i32>} : memref<256x27xf32, #tpu.memory_space<vmem>>, vector<256x3xf32>,
    %c1_24 = arith.constant 1 : index
    %c1_25 = arith.constant 1 : index
    %c0_26 = arith.constant 0 : index
    %17 = vector.load %arg15[%c1_24, %c1_25, %c0_26] : memref<18x18x3xf32, #tpu.memory_space<vmem>>, vector<16x16x3xf32>
    %18 = vector.shape_cast %17 : vector<16x16x3xf32> to vector<256x3xf32>
    %c0_27 = arith.constant 0 : index
    %c12 = arith.constant 12 : index
    %19 = vector.load %arg16[%c0_27, %c12] : memref<256x27xf32, #tpu.memory_space<vmem>>, vector<256x3xf32>
    tpu.vector_store %arg16[%c0_27, %c12], %18 {strides = array<i32>} : memref<256x27xf32, #tpu.memory_space<vmem>>, vector<256x3xf32>,
    %c1_28 = arith.constant 1 : index
    %c2_29 = arith.constant 2 : index
    %c0_30 = arith.constant 0 : index
    %20 = vector.load %arg15[%c1_28, %c2_29, %c0_30] : memref<18x18x3xf32, #tpu.memory_space<vmem>>, vector<16x16x3xf32>
    %21 = vector.shape_cast %20 : vector<16x16x3xf32> to vector<256x3xf32>
    %c0_31 = arith.constant 0 : index
    %c15 = arith.constant 15 : index
    %22 = vector.load %arg16[%c0_31, %c15] : memref<256x27xf32, #tpu.memory_space<vmem>>, vector<256x3xf32>
    tpu.vector_store %arg16[%c0_31, %c15], %21 {strides = array<i32>} : memref<256x27xf32, #tpu.memory_space<vmem>>, vector<256x3xf32>,
    %c2_32 = arith.constant 2 : index
    %c0_33 = arith.constant 0 : index
    %c0_34 = arith.constant 0 : index
    %23 = vector.load %arg15[%c2_32, %c0_33, %c0_34] : memref<18x18x3xf32, #tpu.memory_space<vmem>>, vector<16x16x3xf32>
    %24 = vector.shape_cast %23 : vector<16x16x3xf32> to vector<256x3xf32>
    %c0_35 = arith.constant 0 : index
    %c18 = arith.constant 18 : index
    %25 = vector.load %arg16[%c0_35, %c18] : memref<256x27xf32, #tpu.memory_space<vmem>>, vector<256x3xf32>
    tpu.vector_store %arg16[%c0_35, %c18], %24 {strides = array<i32>} : memref<256x27xf32, #tpu.memory_space<vmem>>, vector<256x3xf32>,
    %c2_36 = arith.constant 2 : index
    %c1_37 = arith.constant 1 : index
    %c0_38 = arith.constant 0 : index
    %26 = vector.load %arg15[%c2_36, %c1_37, %c0_38] : memref<18x18x3xf32, #tpu.memory_space<vmem>>, vector<16x16x3xf32>
    %27 = vector.shape_cast %26 : vector<16x16x3xf32> to vector<256x3xf32>
    %c0_39 = arith.constant 0 : index
    %c21 = arith.constant 21 : index
    %28 = vector.load %arg16[%c0_39, %c21] : memref<256x27xf32, #tpu.memory_space<vmem>>, vector<256x3xf32>
    tpu.vector_store %arg16[%c0_39, %c21], %27 {strides = array<i32>} : memref<256x27xf32, #tpu.memory_space<vmem>>, vector<256x3xf32>,
    %c2_40 = arith.constant 2 : index
    %c2_41 = arith.constant 2 : index
    %c0_42 = arith.constant 0 : index
    %29 = vector.load %arg15[%c2_40, %c2_41, %c0_42] : memref<18x18x3xf32, #tpu.memory_space<vmem>>, vector<16x16x3xf32>
    %30 = vector.shape_cast %29 : vector<16x16x3xf32> to vector<256x3xf32>
    %c0_43 = arith.constant 0 : index
    %c24 = arith.constant 24 : index
    %31 = vector.load %arg16[%c0_43, %c24] : memref<256x27xf32, #tpu.memory_space<vmem>>, vector<256x3xf32>
    tpu.vector_store %arg16[%c0_43, %c24], %30 {strides = array<i32>} : memref<256x27xf32, #tpu.memory_space<vmem>>, vector<256x3xf32>,
    %c0_44 = arith.constant 0 : index
    %c0_45 = arith.constant 0 : index
    %32 = vector.load %arg16[%c0_44, %c0_45] : memref<256x27xf32, #tpu.memory_space<vmem>>, vector<256x27xf32>
    %33 = arith.truncf %32 : vector<256x27xf32> to vector<256x27xbf16>
    %c0_46 = arith.constant 0 : index
    %c0_47 = arith.constant 0 : index
    %34 = vector.load %arg2[%c0_46, %c0_47] : memref<27x16xbf16, #tpu.memory_space<vmem>>, vector<27x16xbf16>
    %cst_48 = arith.constant dense<0.000000e+00> : vector<256x16xf32>
    %35 = tpu.matmul %33, %34, %cst_48 {dimension_numbers = #tpu.dot_dimension_numbers<[1], [0], [0], [1], [0, 0, 1, 1], [], []>} : vector<256x27xbf16>, vector<27x16xbf16>, vector<256x16xf32> -> vector<256x16xf32>
    %c0_49 = arith.constant 0 : index
    %c0_50 = arith.constant 0 : index
    %36 = vector.load %arg3[%c0_49, %c0_50] : memref<1x16xf32, #tpu.memory_space<vmem>>, vector<1x16xf32>
    %37 = vector.broadcast %36 : vector<1x16xf32> to vector<256x16xf32>
    %38 = arith.addf %35, %37 : vector<256x16xf32>
    %cst_51 = arith.constant 0.000000e+00 : f32
    %39 = vector.broadcast %cst_51 : f32 to vector<256x16xf32>
    %40 = arith.maximumf %38, %39 : vector<256x16xf32>
    %41 = vector.shape_cast %40 : vector<256x16xf32> to vector<8x2x8x2x16xf32>
    %cst_52 = arith.constant dense<0xFF800000> : vector<8x2x8x16xf32>
    %42 = vector.multi_reduction <maximumf>, %41, %cst_52 [3] : vector<8x2x8x2x16xf32> to vector<8x2x8x16xf32>
    %cst_53 = arith.constant dense<0xFF800000> : vector<8x8x16xf32>
    %43 = vector.multi_reduction <maximumf>, %42, %cst_53 [1] : vector<8x2x8x16xf32> to vector<8x8x16xf32>
    %cst_54 = arith.constant 0.000000e+00 : f32
    %44 = vector.broadcast %cst_54 : f32 to vector<10x10x16xf32>
    %c0_55 = arith.constant 0 : index
    %c0_56 = arith.constant 0 : index
    %c0_57 = arith.constant 0 : index
    %45 = vector.load %arg17[%c0_55, %c0_56, %c0_57] : memref<10x10x16xf32, #tpu.memory_space<vmem>>, vector<10x10x16xf32>
    tpu.vector_store %arg17[%c0_55, %c0_56, %c0_57], %44 {strides = array<i32>} : memref<10x10x16xf32, #tpu.memory_space<vmem>>, vector<10x10x16xf32>,
    %c1_58 = arith.constant 1 : index
    %c1_59 = arith.constant 1 : index
    %c0_60 = arith.constant 0 : index
    %46 = vector.load %arg17[%c1_58, %c1_59, %c0_60] : memref<10x10x16xf32, #tpu.memory_space<vmem>>, vector<8x8x16xf32>
    tpu.vector_store %arg17[%c1_58, %c1_59, %c0_60], %43 {strides = array<i32>} : memref<10x10x16xf32, #tpu.memory_space<vmem>>, vector<8x8x16xf32>,
    %c0_61 = arith.constant 0 : index
    %c0_62 = arith.constant 0 : index
    %c0_63 = arith.constant 0 : index
    %47 = vector.load %arg17[%c0_61, %c0_62, %c0_63] : memref<10x10x16xf32, #tpu.memory_space<vmem>>, vector<8x8x16xf32>
    %48 = vector.shape_cast %47 : vector<8x8x16xf32> to vector<64x16xf32>
    %c0_64 = arith.constant 0 : index
    %c0_65 = arith.constant 0 : index
    %49 = vector.load %arg18[%c0_64, %c0_65] : memref<64x144xf32, #tpu.memory_space<vmem>>, vector<64x16xf32>
    tpu.vector_store %arg18[%c0_64, %c0_65], %48 {strides = array<i32>} : memref<64x144xf32, #tpu.memory_space<vmem>>, vector<64x16xf32>,
    %c0_66 = arith.constant 0 : index
    %c1_67 = arith.constant 1 : index
    %c0_68 = arith.constant 0 : index
    %50 = vector.load %arg17[%c0_66, %c1_67, %c0_68] : memref<10x10x16xf32, #tpu.memory_space<vmem>>, vector<8x8x16xf32>
    %51 = vector.shape_cast %50 : vector<8x8x16xf32> to vector<64x16xf32>
    %c0_69 = arith.constant 0 : index
    %c16 = arith.constant 16 : index
    %52 = vector.load %arg18[%c0_69, %c16] : memref<64x144xf32, #tpu.memory_space<vmem>>, vector<64x16xf32>
    tpu.vector_store %arg18[%c0_69, %c16], %51 {strides = array<i32>} : memref<64x144xf32, #tpu.memory_space<vmem>>, vector<64x16xf32>,
    %c0_70 = arith.constant 0 : index
    %c2_71 = arith.constant 2 : index
    %c0_72 = arith.constant 0 : index
    %53 = vector.load %arg17[%c0_70, %c2_71, %c0_72] : memref<10x10x16xf32, #tpu.memory_space<vmem>>, vector<8x8x16xf32>
    %54 = vector.shape_cast %53 : vector<8x8x16xf32> to vector<64x16xf32>
    %c0_73 = arith.constant 0 : index
    %c32 = arith.constant 32 : index
    %55 = vector.load %arg18[%c0_73, %c32] : memref<64x144xf32, #tpu.memory_space<vmem>>, vector<64x16xf32>
    tpu.vector_store %arg18[%c0_73, %c32], %54 {strides = array<i32>} : memref<64x144xf32, #tpu.memory_space<vmem>>, vector<64x16xf32>,
    %c1_74 = arith.constant 1 : index
    %c0_75 = arith.constant 0 : index
    %c0_76 = arith.constant 0 : index
    %56 = vector.load %arg17[%c1_74, %c0_75, %c0_76] : memref<10x10x16xf32, #tpu.memory_space<vmem>>, vector<8x8x16xf32>
    %57 = vector.shape_cast %56 : vector<8x8x16xf32> to vector<64x16xf32>
    %c0_77 = arith.constant 0 : index
    %c48 = arith.constant 48 : index
    %58 = vector.load %arg18[%c0_77, %c48] : memref<64x144xf32, #tpu.memory_space<vmem>>, vector<64x16xf32>
    tpu.vector_store %arg18[%c0_77, %c48], %57 {strides = array<i32>} : memref<64x144xf32, #tpu.memory_space<vmem>>, vector<64x16xf32>,
    %c1_78 = arith.constant 1 : index
    %c1_79 = arith.constant 1 : index
    %c0_80 = arith.constant 0 : index
    %59 = vector.load %arg17[%c1_78, %c1_79, %c0_80] : memref<10x10x16xf32, #tpu.memory_space<vmem>>, vector<8x8x16xf32>
    %60 = vector.shape_cast %59 : vector<8x8x16xf32> to vector<64x16xf32>
    %c0_81 = arith.constant 0 : index
    %c64 = arith.constant 64 : index
    %61 = vector.load %arg18[%c0_81, %c64] : memref<64x144xf32, #tpu.memory_space<vmem>>, vector<64x16xf32>
    tpu.vector_store %arg18[%c0_81, %c64], %60 {strides = array<i32>} : memref<64x144xf32, #tpu.memory_space<vmem>>, vector<64x16xf32>,
    %c1_82 = arith.constant 1 : index
    %c2_83 = arith.constant 2 : index
    %c0_84 = arith.constant 0 : index
    %62 = vector.load %arg17[%c1_82, %c2_83, %c0_84] : memref<10x10x16xf32, #tpu.memory_space<vmem>>, vector<8x8x16xf32>
    %63 = vector.shape_cast %62 : vector<8x8x16xf32> to vector<64x16xf32>
    %c0_85 = arith.constant 0 : index
    %c80 = arith.constant 80 : index
    %64 = vector.load %arg18[%c0_85, %c80] : memref<64x144xf32, #tpu.memory_space<vmem>>, vector<64x16xf32>
    tpu.vector_store %arg18[%c0_85, %c80], %63 {strides = array<i32>} : memref<64x144xf32, #tpu.memory_space<vmem>>, vector<64x16xf32>,
    %c2_86 = arith.constant 2 : index
    %c0_87 = arith.constant 0 : index
    %c0_88 = arith.constant 0 : index
    %65 = vector.load %arg17[%c2_86, %c0_87, %c0_88] : memref<10x10x16xf32, #tpu.memory_space<vmem>>, vector<8x8x16xf32>
    %66 = vector.shape_cast %65 : vector<8x8x16xf32> to vector<64x16xf32>
    %c0_89 = arith.constant 0 : index
    %c96 = arith.constant 96 : index
    %67 = vector.load %arg18[%c0_89, %c96] : memref<64x144xf32, #tpu.memory_space<vmem>>, vector<64x16xf32>
    tpu.vector_store %arg18[%c0_89, %c96], %66 {strides = array<i32>} : memref<64x144xf32, #tpu.memory_space<vmem>>, vector<64x16xf32>,
    %c2_90 = arith.constant 2 : index
    %c1_91 = arith.constant 1 : index
    %c0_92 = arith.constant 0 : index
    %68 = vector.load %arg17[%c2_90, %c1_91, %c0_92] : memref<10x10x16xf32, #tpu.memory_space<vmem>>, vector<8x8x16xf32>
    %69 = vector.shape_cast %68 : vector<8x8x16xf32> to vector<64x16xf32>
    %c0_93 = arith.constant 0 : index
    %c112 = arith.constant 112 : index
    %70 = vector.load %arg18[%c0_93, %c112] : memref<64x144xf32, #tpu.memory_space<vmem>>, vector<64x16xf32>
    tpu.vector_store %arg18[%c0_93, %c112], %69 {strides = array<i32>} : memref<64x144xf32, #tpu.memory_space<vmem>>, vector<64x16xf32>,
    %c2_94 = arith.constant 2 : index
    %c2_95 = arith.constant 2 : index
    %c0_96 = arith.constant 0 : index
    %71 = vector.load %arg17[%c2_94, %c2_95, %c0_96] : memref<10x10x16xf32, #tpu.memory_space<vmem>>, vector<8x8x16xf32>
    %72 = vector.shape_cast %71 : vector<8x8x16xf32> to vector<64x16xf32>
    %c0_97 = arith.constant 0 : index
    %c128 = arith.constant 128 : index
    %73 = vector.load %arg18[%c0_97, %c128] : memref<64x144xf32, #tpu.memory_space<vmem>>, vector<64x16xf32>
    tpu.vector_store %arg18[%c0_97, %c128], %72 {strides = array<i32>} : memref<64x144xf32, #tpu.memory_space<vmem>>, vector<64x16xf32>,
    %c0_98 = arith.constant 0 : index
    %c0_99 = arith.constant 0 : index
    %74 = vector.load %arg18[%c0_98, %c0_99] : memref<64x144xf32, #tpu.memory_space<vmem>>, vector<64x144xf32>
    %75 = arith.truncf %74 : vector<64x144xf32> to vector<64x144xbf16>
    %c0_100 = arith.constant 0 : index
    %c0_101 = arith.constant 0 : index
    %76 = vector.load %arg4[%c0_100, %c0_101] : memref<144x32xbf16, #tpu.memory_space<vmem>>, vector<144x32xbf16>
    %cst_102 = arith.constant dense<0.000000e+00> : vector<64x32xf32>
    %77 = tpu.matmul %75, %76, %cst_102 {dimension_numbers = #tpu.dot_dimension_numbers<[1], [0], [0], [1], [0, 0, 1, 1], [], []>} : vector<64x144xbf16>, vector<144x32xbf16>, vector<64x32xf32> -> vector<64x32xf32>
    %c0_103 = arith.constant 0 : index
    %c0_104 = arith.constant 0 : index
    %78 = vector.load %arg5[%c0_103, %c0_104] : memref<1x32xf32, #tpu.memory_space<vmem>>, vector<1x32xf32>
    %79 = vector.broadcast %78 : vector<1x32xf32> to vector<64x32xf32>
    %80 = arith.addf %77, %79 : vector<64x32xf32>
    %cst_105 = arith.constant 0.000000e+00 : f32
    %81 = vector.broadcast %cst_105 : f32 to vector<64x32xf32>
    %82 = arith.maximumf %80, %81 : vector<64x32xf32>
    %83 = vector.shape_cast %82 : vector<64x32xf32> to vector<8x8x32xf32>
    %cst_106 = arith.constant 0.000000e+00 : f32
    %84 = vector.broadcast %cst_106 : f32 to vector<10x10x32xf32>
    %c0_107 = arith.constant 0 : index
    %c0_108 = arith.constant 0 : index
    %c0_109 = arith.constant 0 : index
    %85 = vector.load %arg19[%c0_107, %c0_108, %c0_109] : memref<10x10x32xf32, #tpu.memory_space<vmem>>, vector<10x10x32xf32>
    tpu.vector_store %arg19[%c0_107, %c0_108, %c0_109], %84 {strides = array<i32>} : memref<10x10x32xf32, #tpu.memory_space<vmem>>, vector<10x10x32xf32>,
    %c1_110 = arith.constant 1 : index
    %c1_111 = arith.constant 1 : index
    %c0_112 = arith.constant 0 : index
    %86 = vector.load %arg19[%c1_110, %c1_111, %c0_112] : memref<10x10x32xf32, #tpu.memory_space<vmem>>, vector<8x8x32xf32>
    tpu.vector_store %arg19[%c1_110, %c1_111, %c0_112], %83 {strides = array<i32>} : memref<10x10x32xf32, #tpu.memory_space<vmem>>, vector<8x8x32xf32>,
    %c0_113 = arith.constant 0 : index
    %c0_114 = arith.constant 0 : index
    %c0_115 = arith.constant 0 : index
    %87 = vector.load %arg19[%c0_113, %c0_114, %c0_115] : memref<10x10x32xf32, #tpu.memory_space<vmem>>, vector<8x8x32xf32>
    %88 = vector.shape_cast %87 : vector<8x8x32xf32> to vector<64x32xf32>
    %c0_116 = arith.constant 0 : index
    %c0_117 = arith.constant 0 : index
    %89 = vector.load %arg20[%c0_116, %c0_117] : memref<64x288xf32, #tpu.memory_space<vmem>>, vector<64x32xf32>
    tpu.vector_store %arg20[%c0_116, %c0_117], %88 {strides = array<i32>} : memref<64x288xf32, #tpu.memory_space<vmem>>, vector<64x32xf32>,
    %c0_118 = arith.constant 0 : index
    %c1_119 = arith.constant 1 : index
    %c0_120 = arith.constant 0 : index
    %90 = vector.load %arg19[%c0_118, %c1_119, %c0_120] : memref<10x10x32xf32, #tpu.memory_space<vmem>>, vector<8x8x32xf32>
    %91 = vector.shape_cast %90 : vector<8x8x32xf32> to vector<64x32xf32>
    %c0_121 = arith.constant 0 : index
    %c32_122 = arith.constant 32 : index
    %92 = vector.load %arg20[%c0_121, %c32_122] : memref<64x288xf32, #tpu.memory_space<vmem>>, vector<64x32xf32>
    tpu.vector_store %arg20[%c0_121, %c32_122], %91 {strides = array<i32>} : memref<64x288xf32, #tpu.memory_space<vmem>>, vector<64x32xf32>,
    %c0_123 = arith.constant 0 : index
    %c2_124 = arith.constant 2 : index
    %c0_125 = arith.constant 0 : index
    %93 = vector.load %arg19[%c0_123, %c2_124, %c0_125] : memref<10x10x32xf32, #tpu.memory_space<vmem>>, vector<8x8x32xf32>
    %94 = vector.shape_cast %93 : vector<8x8x32xf32> to vector<64x32xf32>
    %c0_126 = arith.constant 0 : index
    %c64_127 = arith.constant 64 : index
    %95 = vector.load %arg20[%c0_126, %c64_127] : memref<64x288xf32, #tpu.memory_space<vmem>>, vector<64x32xf32>
    tpu.vector_store %arg20[%c0_126, %c64_127], %94 {strides = array<i32>} : memref<64x288xf32, #tpu.memory_space<vmem>>, vector<64x32xf32>,
    %c1_128 = arith.constant 1 : index
    %c0_129 = arith.constant 0 : index
    %c0_130 = arith.constant 0 : index
    %96 = vector.load %arg19[%c1_128, %c0_129, %c0_130] : memref<10x10x32xf32, #tpu.memory_space<vmem>>, vector<8x8x32xf32>
    %97 = vector.shape_cast %96 : vector<8x8x32xf32> to vector<64x32xf32>
    %c0_131 = arith.constant 0 : index
    %c96_132 = arith.constant 96 : index
    %98 = vector.load %arg20[%c0_131, %c96_132] : memref<64x288xf32, #tpu.memory_space<vmem>>, vector<64x32xf32>
    tpu.vector_store %arg20[%c0_131, %c96_132], %97 {strides = array<i32>} : memref<64x288xf32, #tpu.memory_space<vmem>>, vector<64x32xf32>,
    %c1_133 = arith.constant 1 : index
    %c1_134 = arith.constant 1 : index
    %c0_135 = arith.constant 0 : index
    %99 = vector.load %arg19[%c1_133, %c1_134, %c0_135] : memref<10x10x32xf32, #tpu.memory_space<vmem>>, vector<8x8x32xf32>
    %100 = vector.shape_cast %99 : vector<8x8x32xf32> to vector<64x32xf32>
    %c0_136 = arith.constant 0 : index
    %c128_137 = arith.constant 128 : index
    %101 = vector.load %arg20[%c0_136, %c128_137] : memref<64x288xf32, #tpu.memory_space<vmem>>, vector<64x32xf32>
    tpu.vector_store %arg20[%c0_136, %c128_137], %100 {strides = array<i32>} : memref<64x288xf32, #tpu.memory_space<vmem>>, vector<64x32xf32>,
    %c1_138 = arith.constant 1 : index
    %c2_139 = arith.constant 2 : index
    %c0_140 = arith.constant 0 : index
    %102 = vector.load %arg19[%c1_138, %c2_139, %c0_140] : memref<10x10x32xf32, #tpu.memory_space<vmem>>, vector<8x8x32xf32>
    %103 = vector.shape_cast %102 : vector<8x8x32xf32> to vector<64x32xf32>
    %c0_141 = arith.constant 0 : index
    %c160 = arith.constant 160 : index
    %104 = vector.load %arg20[%c0_141, %c160] : memref<64x288xf32, #tpu.memory_space<vmem>>, vector<64x32xf32>
    tpu.vector_store %arg20[%c0_141, %c160], %103 {strides = array<i32>} : memref<64x288xf32, #tpu.memory_space<vmem>>, vector<64x32xf32>,
    %c2_142 = arith.constant 2 : index
    %c0_143 = arith.constant 0 : index
    %c0_144 = arith.constant 0 : index
    %105 = vector.load %arg19[%c2_142, %c0_143, %c0_144] : memref<10x10x32xf32, #tpu.memory_space<vmem>>, vector<8x8x32xf32>
    %106 = vector.shape_cast %105 : vector<8x8x32xf32> to vector<64x32xf32>
    %c0_145 = arith.constant 0 : index
    %c192 = arith.constant 192 : index
    %107 = vector.load %arg20[%c0_145, %c192] : memref<64x288xf32, #tpu.memory_space<vmem>>, vector<64x32xf32>
    tpu.vector_store %arg20[%c0_145, %c192], %106 {strides = array<i32>} : memref<64x288xf32, #tpu.memory_space<vmem>>, vector<64x32xf32>,
    %c2_146 = arith.constant 2 : index
    %c1_147 = arith.constant 1 : index
    %c0_148 = arith.constant 0 : index
    %108 = vector.load %arg19[%c2_146, %c1_147, %c0_148] : memref<10x10x32xf32, #tpu.memory_space<vmem>>, vector<8x8x32xf32>
    %109 = vector.shape_cast %108 : vector<8x8x32xf32> to vector<64x32xf32>
    %c0_149 = arith.constant 0 : index
    %c224 = arith.constant 224 : index
    %110 = vector.load %arg20[%c0_149, %c224] : memref<64x288xf32, #tpu.memory_space<vmem>>, vector<64x32xf32>
    tpu.vector_store %arg20[%c0_149, %c224], %109 {strides = array<i32>} : memref<64x288xf32, #tpu.memory_space<vmem>>, vector<64x32xf32>,
    %c2_150 = arith.constant 2 : index
    %c2_151 = arith.constant 2 : index
    %c0_152 = arith.constant 0 : index
    %111 = vector.load %arg19[%c2_150, %c2_151, %c0_152] : memref<10x10x32xf32, #tpu.memory_space<vmem>>, vector<8x8x32xf32>
    %112 = vector.shape_cast %111 : vector<8x8x32xf32> to vector<64x32xf32>
    %c0_153 = arith.constant 0 : index
    %c256 = arith.constant 256 : index
    %113 = vector.load %arg20[%c0_153, %c256] : memref<64x288xf32, #tpu.memory_space<vmem>>, vector<64x32xf32>
    tpu.vector_store %arg20[%c0_153, %c256], %112 {strides = array<i32>} : memref<64x288xf32, #tpu.memory_space<vmem>>, vector<64x32xf32>,
    %c0_154 = arith.constant 0 : index
    %c0_155 = arith.constant 0 : index
    %114 = vector.load %arg20[%c0_154, %c0_155] : memref<64x288xf32, #tpu.memory_space<vmem>>, vector<64x288xf32>
    %115 = arith.truncf %114 : vector<64x288xf32> to vector<64x288xbf16>
    %c0_156 = arith.constant 0 : index
    %c0_157 = arith.constant 0 : index
    %116 = vector.load %arg6[%c0_156, %c0_157] : memref<288x32xbf16, #tpu.memory_space<vmem>>, vector<288x32xbf16>
    %cst_158 = arith.constant dense<0.000000e+00> : vector<64x32xf32>
    %117 = tpu.matmul %115, %116, %cst_158 {dimension_numbers = #tpu.dot_dimension_numbers<[1], [0], [0], [1], [0, 0, 1, 1], [], []>} : vector<64x288xbf16>, vector<288x32xbf16>, vector<64x32xf32> -> vector<64x32xf32>
    %c0_159 = arith.constant 0 : index
    %c0_160 = arith.constant 0 : index
    %118 = vector.load %arg7[%c0_159, %c0_160] : memref<1x32xf32, #tpu.memory_space<vmem>>, vector<1x32xf32>
    %119 = vector.broadcast %118 : vector<1x32xf32> to vector<64x32xf32>
    %120 = arith.addf %117, %119 : vector<64x32xf32>
    %cst_161 = arith.constant 0.000000e+00 : f32
    %121 = vector.broadcast %cst_161 : f32 to vector<64x32xf32>
    %122 = arith.maximumf %120, %121 : vector<64x32xf32>
    %123 = vector.shape_cast %122 : vector<64x32xf32> to vector<4x2x4x2x32xf32>
    %cst_162 = arith.constant dense<0xFF800000> : vector<4x2x4x32xf32>
    %124 = vector.multi_reduction <maximumf>, %123, %cst_162 [3] : vector<4x2x4x2x32xf32> to vector<4x2x4x32xf32>
    %cst_163 = arith.constant dense<0xFF800000> : vector<4x4x32xf32>
    %125 = vector.multi_reduction <maximumf>, %124, %cst_163 [1] : vector<4x2x4x32xf32> to vector<4x4x32xf32>
    %126 = vector.extract_strided_slice %125 {offsets = [0, 0, 0], sizes = [1, 1, 32], strides = [1, 1, 1]} : vector<4x4x32xf32> to vector<1x1x32xf32>
    %127 = vector.shape_cast %126 : vector<1x1x32xf32> to vector<1x32xf32>
    %c0_164 = arith.constant 0 : index
    %c0_165 = arith.constant 0 : index
    %128 = vector.load %arg21[%c0_164, %c0_165] : memref<1x512xf32, #tpu.memory_space<vmem>>, vector<1x32xf32>
    tpu.vector_store %arg21[%c0_164, %c0_165], %127 {strides = array<i32>} : memref<1x512xf32, #tpu.memory_space<vmem>>, vector<1x32xf32>,
    %129 = vector.extract_strided_slice %125 {offsets = [0, 1, 0], sizes = [1, 1, 32], strides = [1, 1, 1]} : vector<4x4x32xf32> to vector<1x1x32xf32>
    %130 = vector.shape_cast %129 : vector<1x1x32xf32> to vector<1x32xf32>
    %c0_166 = arith.constant 0 : index
    %c32_167 = arith.constant 32 : index
    %131 = vector.load %arg21[%c0_166, %c32_167] : memref<1x512xf32, #tpu.memory_space<vmem>>, vector<1x32xf32>
    tpu.vector_store %arg21[%c0_166, %c32_167], %130 {strides = array<i32>} : memref<1x512xf32, #tpu.memory_space<vmem>>, vector<1x32xf32>,
    %132 = vector.extract_strided_slice %125 {offsets = [0, 2, 0], sizes = [1, 1, 32], strides = [1, 1, 1]} : vector<4x4x32xf32> to vector<1x1x32xf32>
    %133 = vector.shape_cast %132 : vector<1x1x32xf32> to vector<1x32xf32>
    %c0_168 = arith.constant 0 : index
    %c64_169 = arith.constant 64 : index
    %134 = vector.load %arg21[%c0_168, %c64_169] : memref<1x512xf32, #tpu.memory_space<vmem>>, vector<1x32xf32>
    tpu.vector_store %arg21[%c0_168, %c64_169], %133 {strides = array<i32>} : memref<1x512xf32, #tpu.memory_space<vmem>>, vector<1x32xf32>,
    %135 = vector.extract_strided_slice %125 {offsets = [0, 3, 0], sizes = [1, 1, 32], strides = [1, 1, 1]} : vector<4x4x32xf32> to vector<1x1x32xf32>
    %136 = vector.shape_cast %135 : vector<1x1x32xf32> to vector<1x32xf32>
    %c0_170 = arith.constant 0 : index
    %c96_171 = arith.constant 96 : index
    %137 = vector.load %arg21[%c0_170, %c96_171] : memref<1x512xf32, #tpu.memory_space<vmem>>, vector<1x32xf32>
    tpu.vector_store %arg21[%c0_170, %c96_171], %136 {strides = array<i32>} : memref<1x512xf32, #tpu.memory_space<vmem>>, vector<1x32xf32>,
    %138 = vector.extract_strided_slice %125 {offsets = [1, 0, 0], sizes = [1, 1, 32], strides = [1, 1, 1]} : vector<4x4x32xf32> to vector<1x1x32xf32>
    %139 = vector.shape_cast %138 : vector<1x1x32xf32> to vector<1x32xf32>
    %c0_172 = arith.constant 0 : index
    %c128_173 = arith.constant 128 : index
    %140 = vector.load %arg21[%c0_172, %c128_173] : memref<1x512xf32, #tpu.memory_space<vmem>>, vector<1x32xf32>
    tpu.vector_store %arg21[%c0_172, %c128_173], %139 {strides = array<i32>} : memref<1x512xf32, #tpu.memory_space<vmem>>, vector<1x32xf32>,
    %141 = vector.extract_strided_slice %125 {offsets = [1, 1, 0], sizes = [1, 1, 32], strides = [1, 1, 1]} : vector<4x4x32xf32> to vector<1x1x32xf32>
    %142 = vector.shape_cast %141 : vector<1x1x32xf32> to vector<1x32xf32>
    %c0_174 = arith.constant 0 : index
    %c160_175 = arith.constant 160 : index
    %143 = vector.load %arg21[%c0_174, %c160_175] : memref<1x512xf32, #tpu.memory_space<vmem>>, vector<1x32xf32>
    tpu.vector_store %arg21[%c0_174, %c160_175], %142 {strides = array<i32>} : memref<1x512xf32, #tpu.memory_space<vmem>>, vector<1x32xf32>,
    %144 = vector.extract_strided_slice %125 {offsets = [1, 2, 0], sizes = [1, 1, 32], strides = [1, 1, 1]} : vector<4x4x32xf32> to vector<1x1x32xf32>
    %145 = vector.shape_cast %144 : vector<1x1x32xf32> to vector<1x32xf32>
    %c0_176 = arith.constant 0 : index
    %c192_177 = arith.constant 192 : index
    %146 = vector.load %arg21[%c0_176, %c192_177] : memref<1x512xf32, #tpu.memory_space<vmem>>, vector<1x32xf32>
    tpu.vector_store %arg21[%c0_176, %c192_177], %145 {strides = array<i32>} : memref<1x512xf32, #tpu.memory_space<vmem>>, vector<1x32xf32>,
    %147 = vector.extract_strided_slice %125 {offsets = [1, 3, 0], sizes = [1, 1, 32], strides = [1, 1, 1]} : vector<4x4x32xf32> to vector<1x1x32xf32>
    %148 = vector.shape_cast %147 : vector<1x1x32xf32> to vector<1x32xf32>
    %c0_178 = arith.constant 0 : index
    %c224_179 = arith.constant 224 : index
    %149 = vector.load %arg21[%c0_178, %c224_179] : memref<1x512xf32, #tpu.memory_space<vmem>>, vector<1x32xf32>
    tpu.vector_store %arg21[%c0_178, %c224_179], %148 {strides = array<i32>} : memref<1x512xf32, #tpu.memory_space<vmem>>, vector<1x32xf32>,
    %150 = vector.extract_strided_slice %125 {offsets = [2, 0, 0], sizes = [1, 1, 32], strides = [1, 1, 1]} : vector<4x4x32xf32> to vector<1x1x32xf32>
    %151 = vector.shape_cast %150 : vector<1x1x32xf32> to vector<1x32xf32>
    %c0_180 = arith.constant 0 : index
    %c256_181 = arith.constant 256 : index
    %152 = vector.load %arg21[%c0_180, %c256_181] : memref<1x512xf32, #tpu.memory_space<vmem>>, vector<1x32xf32>
    tpu.vector_store %arg21[%c0_180, %c256_181], %151 {strides = array<i32>} : memref<1x512xf32, #tpu.memory_space<vmem>>, vector<1x32xf32>,
    %153 = vector.extract_strided_slice %125 {offsets = [2, 1, 0], sizes = [1, 1, 32], strides = [1, 1, 1]} : vector<4x4x32xf32> to vector<1x1x32xf32>
    %154 = vector.shape_cast %153 : vector<1x1x32xf32> to vector<1x32xf32>
    %c0_182 = arith.constant 0 : index
    %c288 = arith.constant 288 : index
    %155 = vector.load %arg21[%c0_182, %c288] : memref<1x512xf32, #tpu.memory_space<vmem>>, vector<1x32xf32>
    tpu.vector_store %arg21[%c0_182, %c288], %154 {strides = array<i32>} : memref<1x512xf32, #tpu.memory_space<vmem>>, vector<1x32xf32>,
    %156 = vector.extract_strided_slice %125 {offsets = [2, 2, 0], sizes = [1, 1, 32], strides = [1, 1, 1]} : vector<4x4x32xf32> to vector<1x1x32xf32>
    %157 = vector.shape_cast %156 : vector<1x1x32xf32> to vector<1x32xf32>
    %c0_183 = arith.constant 0 : index
    %c320 = arith.constant 320 : index
    %158 = vector.load %arg21[%c0_183, %c320] : memref<1x512xf32, #tpu.memory_space<vmem>>, vector<1x32xf32>
    tpu.vector_store %arg21[%c0_183, %c320], %157 {strides = array<i32>} : memref<1x512xf32, #tpu.memory_space<vmem>>, vector<1x32xf32>,
    %159 = vector.extract_strided_slice %125 {offsets = [2, 3, 0], sizes = [1, 1, 32], strides = [1, 1, 1]} : vector<4x4x32xf32> to vector<1x1x32xf32>
    %160 = vector.shape_cast %159 : vector<1x1x32xf32> to vector<1x32xf32>
    %c0_184 = arith.constant 0 : index
    %c352 = arith.constant 352 : index
    %161 = vector.load %arg21[%c0_184, %c352] : memref<1x512xf32, #tpu.memory_space<vmem>>, vector<1x32xf32>
    tpu.vector_store %arg21[%c0_184, %c352], %160 {strides = array<i32>} : memref<1x512xf32, #tpu.memory_space<vmem>>, vector<1x32xf32>,
    %162 = vector.extract_strided_slice %125 {offsets = [3, 0, 0], sizes = [1, 1, 32], strides = [1, 1, 1]} : vector<4x4x32xf32> to vector<1x1x32xf32>
    %163 = vector.shape_cast %162 : vector<1x1x32xf32> to vector<1x32xf32>
    %c0_185 = arith.constant 0 : index
    %c384 = arith.constant 384 : index
    %164 = vector.load %arg21[%c0_185, %c384] : memref<1x512xf32, #tpu.memory_space<vmem>>, vector<1x32xf32>
    tpu.vector_store %arg21[%c0_185, %c384], %163 {strides = array<i32>} : memref<1x512xf32, #tpu.memory_space<vmem>>, vector<1x32xf32>,
    %165 = vector.extract_strided_slice %125 {offsets = [3, 1, 0], sizes = [1, 1, 32], strides = [1, 1, 1]} : vector<4x4x32xf32> to vector<1x1x32xf32>
    %166 = vector.shape_cast %165 : vector<1x1x32xf32> to vector<1x32xf32>
    %c0_186 = arith.constant 0 : index
    %c416 = arith.constant 416 : index
    %167 = vector.load %arg21[%c0_186, %c416] : memref<1x512xf32, #tpu.memory_space<vmem>>, vector<1x32xf32>
    tpu.vector_store %arg21[%c0_186, %c416], %166 {strides = array<i32>} : memref<1x512xf32, #tpu.memory_space<vmem>>, vector<1x32xf32>,
    %168 = vector.extract_strided_slice %125 {offsets = [3, 2, 0], sizes = [1, 1, 32], strides = [1, 1, 1]} : vector<4x4x32xf32> to vector<1x1x32xf32>
    %169 = vector.shape_cast %168 : vector<1x1x32xf32> to vector<1x32xf32>
    %c0_187 = arith.constant 0 : index
    %c448 = arith.constant 448 : index
    %170 = vector.load %arg21[%c0_187, %c448] : memref<1x512xf32, #tpu.memory_space<vmem>>, vector<1x32xf32>
    tpu.vector_store %arg21[%c0_187, %c448], %169 {strides = array<i32>} : memref<1x512xf32, #tpu.memory_space<vmem>>, vector<1x32xf32>,
    %171 = vector.extract_strided_slice %125 {offsets = [3, 3, 0], sizes = [1, 1, 32], strides = [1, 1, 1]} : vector<4x4x32xf32> to vector<1x1x32xf32>
    %172 = vector.shape_cast %171 : vector<1x1x32xf32> to vector<1x32xf32>
    %c0_188 = arith.constant 0 : index
    %c480 = arith.constant 480 : index
    %173 = vector.load %arg21[%c0_188, %c480] : memref<1x512xf32, #tpu.memory_space<vmem>>, vector<1x32xf32>
    tpu.vector_store %arg21[%c0_188, %c480], %172 {strides = array<i32>} : memref<1x512xf32, #tpu.memory_space<vmem>>, vector<1x32xf32>,
    %c0_189 = arith.constant 0 : index
    %c0_190 = arith.constant 0 : index
    %174 = vector.load %arg21[%c0_189, %c0_190] : memref<1x512xf32, #tpu.memory_space<vmem>>, vector<1x512xf32>
    %175 = arith.truncf %174 : vector<1x512xf32> to vector<1x512xbf16>
    %c0_191 = arith.constant 0 : index
    %c0_192 = arith.constant 0 : index
    %176 = vector.load %arg8[%c0_191, %c0_192] : memref<512x128xbf16, #tpu.memory_space<vmem>>, vector<512x128xbf16>
    %cst_193 = arith.constant dense<0.000000e+00> : vector<1x128xf32>
    %177 = tpu.matmul %175, %176, %cst_193 {dimension_numbers = #tpu.dot_dimension_numbers<[1], [0], [0], [1], [0, 0, 1, 1], [], []>} : vector<1x512xbf16>, vector<512x128xbf16>, vector<1x128xf32> -> vector<1x128xf32>
    %c0_194 = arith.constant 0 : index
    %c0_195 = arith.constant 0 : index
    %178 = vector.load %arg9[%c0_194, %c0_195] : memref<1x128xf32, #tpu.memory_space<vmem>>, vector<1x128xf32>
    %179 = arith.addf %177, %178 : vector<1x128xf32>
    %cst_196 = arith.constant 0.000000e+00 : f32
    %180 = vector.broadcast %cst_196 : f32 to vector<1x128xf32>
    %181 = arith.maximumf %179, %180 : vector<1x128xf32>
    %182 = arith.truncf %181 : vector<1x128xf32> to vector<1x128xbf16>
    %c0_197 = arith.constant 0 : index
    %c0_198 = arith.constant 0 : index
    %183 = vector.load %arg10[%c0_197, %c0_198] : memref<128x128xbf16, #tpu.memory_space<vmem>>, vector<128x128xbf16>
    %cst_199 = arith.constant dense<0.000000e+00> : vector<1x128xf32>
    %184 = tpu.matmul %182, %183, %cst_199 {dimension_numbers = #tpu.dot_dimension_numbers<[1], [0], [0], [1], [0, 0, 1, 1], [], []>} : vector<1x128xbf16>, vector<128x128xbf16>, vector<1x128xf32> -> vector<1x128xf32>
    %c0_200 = arith.constant 0 : index
    %c0_201 = arith.constant 0 : index
    %185 = vector.load %arg11[%c0_200, %c0_201] : memref<1x128xf32, #tpu.memory_space<vmem>>, vector<1x128xf32>
    %186 = arith.addf %184, %185 : vector<1x128xf32>
    %cst_202 = arith.constant 0.000000e+00 : f32
    %187 = vector.broadcast %cst_202 : f32 to vector<1x128xf32>
    %188 = arith.maximumf %186, %187 : vector<1x128xf32>
    %189 = arith.truncf %188 : vector<1x128xf32> to vector<1x128xbf16>
    %c0_203 = arith.constant 0 : index
    %c0_204 = arith.constant 0 : index
    %190 = vector.load %arg12[%c0_203, %c0_204] : memref<128x10xbf16, #tpu.memory_space<vmem>>, vector<128x10xbf16>
    %cst_205 = arith.constant dense<0.000000e+00> : vector<1x10xf32>
    %191 = tpu.matmul %189, %190, %cst_205 {dimension_numbers = #tpu.dot_dimension_numbers<[1], [0], [0], [1], [0, 0, 1, 1], [], []>} : vector<1x128xbf16>, vector<128x10xbf16>, vector<1x10xf32> -> vector<1x10xf32>
    %c0_206 = arith.constant 0 : index
    %c0_207 = arith.constant 0 : index
    %192 = vector.load %arg13[%c0_206, %c0_207] : memref<1x10xf32, #tpu.memory_space<vmem>>, vector<1x10xf32>
    %193 = arith.addf %191, %192 : vector<1x10xf32>
    %c0_208 = arith.constant 0 : index
    %c0_209 = arith.constant 0 : index
    %c0_210 = arith.constant 0 : index
    %194 = vector.load %arg14[%c0_208, %c0_209, %c0_210] : memref<1x1x10xf32, #tpu.memory_space<vmem>>, vector<1x1x10xf32>
    %195 = vector.shape_cast %194 : vector<1x1x10xf32> to vector<1x10xf32>
    %196 = vector.shape_cast %193 : vector<1x10xf32> to vector<1x1x10xf32>
    tpu.vector_store %arg14[%c0_208, %c0_209, %c0_210], %196 {strides = array<i32>} : memref<1x1x10xf32, #tpu.memory_space<vmem>>, vector<1x1x10xf32>,
    return
  }
  func.func @transform_0(%arg0: i32) -> (i32, i32, i32, i32) {
    %c0_i32 = arith.constant 0 : i32
    %c0_i32_0 = arith.constant 0 : i32
    %c0_i32_1 = arith.constant 0 : i32
    %c0_i32_2 = arith.constant 0 : i32
    return %arg0, %c0_i32, %c0_i32_0, %c0_i32_1 : i32, i32, i32, i32
  }
  func.func @transform_1(%arg0: i32) -> (i32, i32) {
    %c0_i32 = arith.constant 0 : i32
    %c0_i32_0 = arith.constant 0 : i32
    %c0_i32_1 = arith.constant 0 : i32
    return %c0_i32, %c0_i32_0 : i32, i32
  }
  func.func @transform_2(%arg0: i32) -> (i32, i32) {
    %c0_i32 = arith.constant 0 : i32
    %c0_i32_0 = arith.constant 0 : i32
    %c0_i32_1 = arith.constant 0 : i32
    return %c0_i32, %c0_i32_0 : i32, i32
  }
  func.func @transform_3(%arg0: i32) -> (i32, i32) {
    %c0_i32 = arith.constant 0 : i32
    %c0_i32_0 = arith.constant 0 : i32
    %c0_i32_1 = arith.constant 0 : i32
    return %c0_i32, %c0_i32_0 : i32, i32
  }
  func.func @transform_4(%arg0: i32) -> (i32, i32) {
    %c0_i32 = arith.constant 0 : i32
    %c0_i32_0 = arith.constant 0 : i32
    %c0_i32_1 = arith.constant 0 : i32
    return %c0_i32, %c0_i32_0 : i32, i32
  }
  func.func @transform_5(%arg0: i32) -> (i32, i32) {
    %c0_i32 = arith.constant 0 : i32
    %c0_i32_0 = arith.constant 0 : i32
    %c0_i32_1 = arith.constant 0 : i32
    return %c0_i32, %c0_i32_0 : i32, i32
  }
  func.func @transform_6(%arg0: i32) -> (i32, i32) {
    %c0_i32 = arith.constant 0 : i32
    %c0_i32_0 = arith.constant 0 : i32
    %c0_i32_1 = arith.constant 0 : i32
    return %c0_i32, %c0_i32_0 : i32, i32
  }
  func.func @transform_7(%arg0: i32) -> (i32, i32) {
    %c0_i32 = arith.constant 0 : i32
    %c0_i32_0 = arith.constant 0 : i32
    %c0_i32_1 = arith.constant 0 : i32
    return %c0_i32, %c0_i32_0 : i32, i32
  }
  func.func @transform_8(%arg0: i32) -> (i32, i32) {
    %c0_i32 = arith.constant 0 : i32
    %c0_i32_0 = arith.constant 0 : i32
    %c0_i32_1 = arith.constant 0 : i32
    return %c0_i32, %c0_i32_0 : i32, i32
  }
  func.func @transform_9(%arg0: i32) -> (i32, i32) {
    %c0_i32 = arith.constant 0 : i32
    %c0_i32_0 = arith.constant 0 : i32
    %c0_i32_1 = arith.constant 0 : i32
    return %c0_i32, %c0_i32_0 : i32, i32
  }
  func.func @transform_10(%arg0: i32) -> (i32, i32) {
    %c0_i32 = arith.constant 0 : i32
    %c0_i32_0 = arith.constant 0 : i32
    %c0_i32_1 = arith.constant 0 : i32
    return %c0_i32, %c0_i32_0 : i32, i32
  }
  func.func @transform_11(%arg0: i32) -> (i32, i32) {
    %c0_i32 = arith.constant 0 : i32
    %c0_i32_0 = arith.constant 0 : i32
    %c0_i32_1 = arith.constant 0 : i32
    return %c0_i32, %c0_i32_0 : i32, i32
  }
  func.func @transform_12(%arg0: i32) -> (i32, i32) {
    %c0_i32 = arith.constant 0 : i32
    %c0_i32_0 = arith.constant 0 : i32
    %c0_i32_1 = arith.constant 0 : i32
    return %c0_i32, %c0_i32_0 : i32, i32
  }
  func.func @transform_13(%arg0: i32) -> (i32, i32, i32) {
    %c0_i32 = arith.constant 0 : i32
    %c0_i32_0 = arith.constant 0 : i32
    %c0_i32_1 = arith.constant 0 : i32
    return %arg0, %c0_i32, %c0_i32_0 : i32, i32, i32
  }
}

</mosaic_0001>

<llo_original>
// kernel: vgg_forward.1
$region0: #{vgg_forward.1}
  #allocation0 [shape = 'u32[]', space=smem, size = 0x4, offset = 0x4, fixed_abs, tag = 'smem constant byte address 0x4 - core index']
  #allocation1 [shape = 'u32[144,128]{1,0:T(1,128)}', space=vmem, size = 0x12000, scoped, tag = 'internal scratch']
  #allocation2 [shape = 'f32[18,18,3]{2,1,0:T(8,128)}', space=vmem, size = 0x36000, scoped, tag = 'scratch operand']
  #allocation3 [shape = 'f32[256,27]{1,0:T(8,128)}', space=vmem, size = 0x20000, scoped, tag = 'scratch operand']
  #allocation4 [shape = 'f32[10,10,16]{2,1,0:T(8,128)}', space=vmem, size = 0x14000, scoped, tag = 'scratch operand']
  #allocation5 [shape = 'f32[64,144]{1,0:T(8,128)}', space=vmem, size = 0x10000, scoped, tag = 'scratch operand']
  #allocation6 [shape = 'f32[10,10,32]{2,1,0:T(8,128)}', space=vmem, size = 0x14000, scoped, tag = 'scratch operand']
  #allocation7 [shape = 'f32[64,288]{1,0:T(8,128)}', space=vmem, size = 0x18000, scoped, tag = 'scratch operand']
  #allocation8 [shape = 'f32[1,512]{1,0:T(1,128)}', space=vmem, size = 0x800, scoped, tag = 'scratch operand']
  %s0 = inlined_call_operand.vmem [shape: f32[2,16,16,3], index: 0, kind: input, shape index: {}]
  %s1 = inlined_call_operand.vmem [shape: bf16[27,16], index: 1, kind: input, shape index: {}]
  %s2 = inlined_call_operand.vmem [shape: f32[1,16], index: 2, kind: input, shape index: {}]
  %s3 = inlined_call_operand.vmem [shape: bf16[144,32], index: 3, kind: input, shape index: {}]
  %s4 = inlined_call_operand.vmem [shape: f32[1,32], index: 4, kind: input, shape index: {}]
  %s5 = inlined_call_operand.vmem [shape: bf16[288,32], index: 5, kind: input, shape index: {}]
  %s6 = inlined_call_operand.vmem [shape: f32[1,32], index: 6, kind: input, shape index: {}]
  %s7 = inlined_call_operand.vmem [shape: bf16[512,128], index: 7, kind: input, shape index: {}]
  %s8 = inlined_call_operand.vmem [shape: f32[1,128], index: 8, kind: input, shape index: {}]
  %s9 = inlined_call_operand.vmem [shape: bf16[128,128], index: 9, kind: input, shape index: {}]
  %s10 = inlined_call_operand.vmem [shape: f32[1,128], index: 10, kind: input, shape index: {}]
  %s11 = inlined_call_operand.vmem [shape: bf16[128,10], index: 11, kind: input, shape index: {}]
  %s12 = inlined_call_operand.vmem [shape: f32[1,10], index: 12, kind: input, shape index: {}]
  %s13 = inlined_call_operand.hbm [shape: f32[2,1,10], index: 13, kind: output, shape index: {}]
  %s14 = sld [smem:[#allocation0]]
  $region85: #{vgg_forward.1} parent=0
    _
  %s16 = ssub.s32 1, %s14
  %s17 = scalar_select 0, %s16, %s14
  $region1: #{vgg_forward.1} parent=0
    #allocation9 [shape = 'u8[1024]{0}', space=vmem, size = 0x400, scoped, tag = 'output window, operand 0']
    #allocation10 [shape = 's32[2]{0}', space=sflag, size = 0x8, scoped, tag = 'scoped memory for vgg_forward.1']
    %18 = vsyncpa [#allocation10], 0
    %s19 = scalar_lea.sflag [#allocation10], 1
    %20 = vsyncpa %s19, 0
    loop: start=0, step=1, limit=4
    $region2: #{vgg_forward.1} parent=1 // loop_pre_header
      _
    $region3: #{vgg_forward.1} parent=1 // loop_header
      %s22 = sphi 0, %s26
      %p23 = scmp.ge.s32.totalorder %s22, 4
      %s32 = sphi 0, %s34
      %s35 = sphi 0, %s32
      %s36 = sphi 0, %s35
      %s52 = sphi 0, %s36
      %s56 = sphi 0, %s56
      %s58 = sphi 0, %s56
      %s59 = sphi 0, %s58
      %s73 = sphi 0, %s59
      %s77 = sphi 0, %s77
      %s79 = sphi 0, %s77
      %s80 = sphi 0, %s79
      %s94 = sphi 0, %s80
      %s98 = sphi 0, %s98
      %s100 = sphi 0, %s98
      %s101 = sphi 0, %s100
      %s115 = sphi 0, %s101
      %s119 = sphi 0, %s119
      %s121 = sphi 0, %s119
      %s122 = sphi 0, %s121
      %s136 = sphi 0, %s122
      %s140 = sphi 0, %s140
      %s142 = sphi 0, %s140
      %s143 = sphi 0, %s142
      %s157 = sphi 0, %s143
      %s161 = sphi 0, %s161
      %s163 = sphi 0, %s161
      %s164 = sphi 0, %s163
      %s178 = sphi 0, %s164
      %s182 = sphi 0, %s182
      %s184 = sphi 0, %s182
      %s185 = sphi 0, %s184
      %s199 = sphi 0, %s185
      %s203 = sphi 0, %s203
      %s205 = sphi 0, %s203
      %s206 = sphi 0, %s205
      %s220 = sphi 0, %s206
      %s224 = sphi 0, %s224
      %s226 = sphi 0, %s224
      %s227 = sphi 0, %s226
      %s241 = sphi 0, %s227
      %s245 = sphi 0, %s245
      %s247 = sphi 0, %s245
      %s248 = sphi 0, %s247
      %s262 = sphi 0, %s248
      %s266 = sphi 0, %s266
      %s268 = sphi 0, %s266
      %s269 = sphi 0, %s268
      %s283 = sphi 0, %s269
      %s287 = sphi 0, %s287
      %s289 = sphi 0, %s287
      %s290 = sphi 0, %s289
      %s304 = sphi 0, %s290
      %s310 = sphi 0, %s312
      %s313 = sphi 0, %s310
      %s314 = sphi 0, %s313
      %s330 = sphi 0, %s314
    $region4: #{vgg_forward.1} parent=1 // loop_header_branch
      %25 = sbr.rel (%p23) target = $region8
    $region5: #{vgg_forward.1} parent=1 // loop_body
      %s27 = ssub.s32 %s22, 1
      %s28 = ssub.s32 %s22, 2
      %s29 = sadd.s32 %s22, 1
      %s30 = ssub.s32 %s22, %s29
      %p31 = scmp.eq.s32.totalorder %s30, 0
      %s33 = sadd.s32 %s32, 1
      %s34 = scalar_select %p31, %s32, %s33
      %p37 = pneg %p31
      %p38 = scmp.eq.s32.totalorder %s22, 1
      %p39 = por %p37, %p38
      %p40 = scmp.ne.s32.totalorder %s32, %s35
      %p41 = scmp.eq.s32.totalorder %s22, 0
      %p42 = por %p40, %p41
      %p43 = scmp.ne.s32.totalorder %s32, %s35
      %p44 = scmp.eq.s32.totalorder %s27, 1
      %p45 = por %p43, %p44
      %p46 = scmp.ne.s32.totalorder %s35, %s36
      %p47 = scmp.eq.s32.totalorder %s27, 0
      %p48 = por %p46, %p47
      %p49 = scmp.ne.s32.totalorder %s35, %s36
      %p50 = scmp.eq.s32.totalorder %s28, 1
      %p51 = por %p49, %p50
      %p53 = scmp.ne.s32.totalorder %s36, %s52
      %p54 = scmp.eq.s32.totalorder %s28, 0
      %p55 = por %p53, %p54
      %s57 = sadd.s32 %s56, 1
      %p60 = scmp.eq.s32.totalorder %s22, 1
      %p61 = scmp.ne.s32.totalorder %s56, %s58
      %p62 = scmp.eq.s32.totalorder %s22, 0
      %p63 = por %p61, %p62
      %p64 = scmp.ne.s32.totalorder %s56, %s58
      %p65 = scmp.eq.s32.totalorder %s27, 1
      %p66 = por %p64, %p65
      %p67 = scmp.ne.s32.totalorder %s58, %s59
      %p68 = scmp.eq.s32.totalorder %s27, 0
      %p69 = por %p67, %p68
      %p70 = scmp.ne.s32.totalorder %s58, %s59
      %p71 = scmp.eq.s32.totalorder %s28, 1
      %p72 = por %p70, %p71
      %p74 = scmp.ne.s32.totalorder %s59, %s73
      %p75 = scmp.eq.s32.totalorder %s28, 0
      %p76 = por %p74, %p75
      %s78 = sadd.s32 %s77, 1
      %p81 = scmp.eq.s32.totalorder %s22, 1
      %p82 = scmp.ne.s32.totalorder %s77, %s79
      %p83 = scmp.eq.s32.totalorder %s22, 0
      %p84 = por %p82, %p83
      %p85 = scmp.ne.s32.totalorder %s77, %s79
      %p86 = scmp.eq.s32.totalorder %s27, 1
      %p87 = por %p85, %p86
      %p88 = scmp.ne.s32.totalorder %s79, %s80
      %p89 = scmp.eq.s32.totalorder %s27, 0
      %p90 = por %p88, %p89
      %p91 = scmp.ne.s32.totalorder %s79, %s80
      %p92 = scmp.eq.s32.totalorder %s28, 1
      %p93 = por %p91, %p92
      %p95 = scmp.ne.s32.totalorder %s80, %s94
      %p96 = scmp.eq.s32.totalorder %s28, 0
      %p97 = por %p95, %p96
      %s99 = sadd.s32 %s98, 1
      %p102 = scmp.eq.s32.totalorder %s22, 1
      %p103 = scmp.ne.s32.totalorder %s98, %s100
      %p104 = scmp.eq.s32.totalorder %s22, 0
      %p105 = por %p103, %p104
      %p106 = scmp.ne.s32.totalorder %s98, %s100
      %p107 = scmp.eq.s32.totalorder %s27, 1
      %p108 = por %p106, %p107
      %p109 = scmp.ne.s32.totalorder %s100, %s101
      %p110 = scmp.eq.s32.totalorder %s27, 0
      %p111 = por %p109, %p110
      %p112 = scmp.ne.s32.totalorder %s100, %s101
      %p113 = scmp.eq.s32.totalorder %s28, 1
      %p114 = por %p112, %p113
      %p116 = scmp.ne.s32.totalorder %s101, %s115
      %p117 = scmp.eq.s32.totalorder %s28, 0
      %p118 = por %p116, %p117
      %s120 = sadd.s32 %s119, 1
      %p123 = scmp.eq.s32.totalorder %s22, 1
      %p124 = scmp.ne.s32.totalorder %s119, %s121
      %p125 = scmp.eq.s32.totalorder %s22, 0
      %p126 = por %p124, %p125
      %p127 = scmp.ne.s32.totalorder %s119, %s121
      %p128 = scmp.eq.s32.totalorder %s27, 1
      %p129 = por %p127, %p128
      %p130 = scmp.ne.s32.totalorder %s121, %s122
      %p131 = scmp.eq.s32.totalorder %s27, 0
      %p132 = por %p130, %p131
      %p133 = scmp.ne.s32.totalorder %s121, %s122
      %p134 = scmp.eq.s32.totalorder %s28, 1
      %p135 = por %p133, %p134
      %p137 = scmp.ne.s32.totalorder %s122, %s136
      %p138 = scmp.eq.s32.totalorder %s28, 0
      %p139 = por %p137, %p138
      %s141 = sadd.s32 %s140, 1
      %p144 = scmp.eq.s32.totalorder %s22, 1
      %p145 = scmp.ne.s32.totalorder %s140, %s142
      %p146 = scmp.eq.s32.totalorder %s22, 0
      %p147 = por %p145, %p146
      %p148 = scmp.ne.s32.totalorder %s140, %s142
      %p149 = scmp.eq.s32.totalorder %s27, 1
      %p150 = por %p148, %p149
      %p151 = scmp.ne.s32.totalorder %s142, %s143
      %p152 = scmp.eq.s32.totalorder %s27, 0
      %p153 = por %p151, %p152
      %p154 = scmp.ne.s32.totalorder %s142, %s143
      %p155 = scmp.eq.s32.totalorder %s28, 1
      %p156 = por %p154, %p155
      %p158 = scmp.ne.s32.totalorder %s143, %s157
      %p159 = scmp.eq.s32.totalorder %s28, 0
      %p160 = por %p158, %p159
      %s162 = sadd.s32 %s161, 1
      %p165 = scmp.eq.s32.totalorder %s22, 1
      %p166 = scmp.ne.s32.totalorder %s161, %s163
      %p167 = scmp.eq.s32.totalorder %s22, 0
      %p168 = por %p166, %p167
      %p169 = scmp.ne.s32.totalorder %s161, %s163
      %p170 = scmp.eq.s32.totalorder %s27, 1
      %p171 = por %p169, %p170
      %p172 = scmp.ne.s32.totalorder %s163, %s164
      %p173 = scmp.eq.s32.totalorder %s27, 0
      %p174 = por %p172, %p173
      %p175 = scmp.ne.s32.totalorder %s163, %s164
      %p176 = scmp.eq.s32.totalorder %s28, 1
      %p177 = por %p175, %p176
      %p179 = scmp.ne.s32.totalorder %s164, %s178
      %p180 = scmp.eq.s32.totalorder %s28, 0
      %p181 = por %p179, %p180
      %s183 = sadd.s32 %s182, 1
      %p186 = scmp.eq.s32.totalorder %s22, 1
      %p187 = scmp.ne.s32.totalorder %s182, %s184
      %p188 = scmp.eq.s32.totalorder %s22, 0
      %p189 = por %p187, %p188
      %p190 = scmp.ne.s32.totalorder %s182, %s184
      %p191 = scmp.eq.s32.totalorder %s27, 1
      %p192 = por %p190, %p191
      %p193 = scmp.ne.s32.totalorder %s184, %s185
      %p194 = scmp.eq.s32.totalorder %s27, 0
      %p195 = por %p193, %p194
      %p196 = scmp.ne.s32.totalorder %s184, %s185
      %p197 = scmp.eq.s32.totalorder %s28, 1
      %p198 = por %p196, %p197
      %p200 = scmp.ne.s32.totalorder %s185, %s199
      %p201 = scmp.eq.s32.totalorder %s28, 0
      %p202 = por %p200, %p201
      %s204 = sadd.s32 %s203, 1
      %p207 = scmp.eq.s32.totalorder %s22, 1
      %p208 = scmp.ne.s32.totalorder %s203, %s205
      %p209 = scmp.eq.s32.totalorder %s22, 0
      %p210 = por %p208, %p209
      %p211 = scmp.ne.s32.totalorder %s203, %s205
      %p212 = scmp.eq.s32.totalorder %s27, 1
      %p213 = por %p211, %p212
      %p214 = scmp.ne.s32.totalorder %s205, %s206
      %p215 = scmp.eq.s32.totalorder %s27, 0
      %p216 = por %p214, %p215
      %p217 = scmp.ne.s32.totalorder %s205, %s206
      %p218 = scmp.eq.s32.totalorder %s28, 1
      %p219 = por %p217, %p218
      %p221 = scmp.ne.s32.totalorder %s206, %s220
      %p222 = scmp.eq.s32.totalorder %s28, 0
      %p223 = por %p221, %p222
      %s225 = sadd.s32 %s224, 1
      %p228 = scmp.eq.s32.totalorder %s22, 1
      %p229 = scmp.ne.s32.totalorder %s224, %s226
      %p230 = scmp.eq.s32.totalorder %s22, 0
      %p231 = por %p229, %p230
      %p232 = scmp.ne.s32.totalorder %s224, %s226
      %p233 = scmp.eq.s32.totalorder %s27, 1
      %p234 = por %p232, %p233
      %p235 = scmp.ne.s32.totalorder %s226, %s227
      %p236 = scmp.eq.s32.totalorder %s27, 0
      %p237 = por %p235, %p236
      %p238 = scmp.ne.s32.totalorder %s226, %s227
      %p239 = scmp.eq.s32.totalorder %s28, 1
      %p240 = por %p238, %p239
      %p242 = scmp.ne.s32.totalorder %s227, %s241
      %p243 = scmp.eq.s32.totalorder %s28, 0
      %p244 = por %p242, %p243
      %s246 = sadd.s32 %s245, 1
      %p249 = scmp.eq.s32.totalorder %s22, 1
      %p250 = scmp.ne.s32.totalorder %s245, %s247
      %p251 = scmp.eq.s32.totalorder %s22, 0
      %p252 = por %p250, %p251
      %p253 = scmp.ne.s32.totalorder %s245, %s247
      %p254 = scmp.eq.s32.totalorder %s27, 1
      %p255 = por %p253, %p254
      %p256 = scmp.ne.s32.totalorder %s247, %s248
      %p257 = scmp.eq.s32.totalorder %s27, 0
      %p258 = por %p256, %p257
      %p259 = scmp.ne.s32.totalorder %s247, %s248
      %p260 = scmp.eq.s32.totalorder %s28, 1
      %p261 = por %p259, %p260
      %p263 = scmp.ne.s32.totalorder %s248, %s262
      %p264 = scmp.eq.s32.totalorder %s28, 0
      %p265 = por %p263, %p264
      %s267 = sadd.s32 %s266, 1
      %p270 = scmp.eq.s32.totalorder %s22, 1
      %p271 = scmp.ne.s32.totalorder %s266, %s268
      %p272 = scmp.eq.s32.totalorder %s22, 0
      %p273 = por %p271, %p272
      %p274 = scmp.ne.s32.totalorder %s266, %s268
      %p275 = scmp.eq.s32.totalorder %s27, 1
      %p276 = por %p274, %p275
      %p277 = scmp.ne.s32.totalorder %s268, %s269
      %p278 = scmp.eq.s32.totalorder %s27, 0
      %p279 = por %p277, %p278
      %p280 = scmp.ne.s32.totalorder %s268, %s269
      %p281 = scmp.eq.s32.totalorder %s28, 1
      %p282 = por %p280, %p281
      %p284 = scmp.ne.s32.totalorder %s269, %s283
      %p285 = scmp.eq.s32.totalorder %s28, 0
      %p286 = por %p284, %p285
      %s288 = sadd.s32 %s287, 1
      %p291 = scmp.eq.s32.totalorder %s22, 1
      %p292 = scmp.ne.s32.totalorder %s287, %s289
      %p293 = scmp.eq.s32.totalorder %s22, 0
      %p294 = por %p292, %p293
      %p295 = scmp.ne.s32.totalorder %s287, %s289
      %p296 = scmp.eq.s32.totalorder %s27, 1
      %p297 = por %p295, %p296
      %p298 = scmp.ne.s32.totalorder %s289, %s290
      %p299 = scmp.eq.s32.totalorder %s27, 0
      %p300 = por %p298, %p299
      %p301 = scmp.ne.s32.totalorder %s289, %s290
      %p302 = scmp.eq.s32.totalorder %s28, 1
      %p303 = por %p301, %p302
      %p305 = scmp.ne.s32.totalorder %s290, %s304
      %p306 = scmp.eq.s32.totalorder %s28, 0
      %p307 = por %p305, %p306
      %s308 = ssub.s32 %s22, %s29
      %p309 = scmp.eq.s32.totalorder %s308, 0
      %s311 = sadd.s32 %s310, 1
      %s312 = scalar_select %p309, %s310, %s311
      %p315 = pneg %p309
      %p316 = scmp.eq.s32.totalorder %s22, 1
      %p317 = por %p315, %p316
      %p318 = scmp.ne.s32.totalorder %s310, %s313
      %p319 = scmp.eq.s32.totalorder %s22, 0
      %p320 = por %p318, %p319
      %p321 = scmp.ne.s32.totalorder %s310, %s313
      %p322 = scmp.eq.s32.totalorder %s27, 1
      %p323 = por %p321, %p322
      %p324 = scmp.ne.s32.totalorder %s313, %s314
      %p325 = scmp.eq.s32.totalorder %s27, 0
      %p326 = por %p324, %p325
      %p327 = scmp.ne.s32.totalorder %s313, %s314
      %p328 = scmp.eq.s32.totalorder %s28, 1
      %p329 = por %p327, %p328
      %p331 = scmp.ne.s32.totalorder %s314, %s330
      %p332 = scmp.eq.s32.totalorder %s28, 0
      %p333 = por %p331, %p332
      %p334 = scmp.le.s32.totalorder 1, %s22
      %p335 = scmp.lt.s32.totalorder %s22, 3
      %p336 = pnand %p334, %p335
      %p337 = pneg %p336
      // Predicated region
      $region9: #{vgg_forward.1} parent=5 // pred_check
        _
      $region10: #{vgg_forward.1} parent=5 // pred_check_branch
        %339 = sbr.rel (%p336) target = $region12
      $region11: #{vgg_forward.1} parent=5 // pred_region
        %s340 = ssub.s32 %s22, 1
        // Predicated region
        $region13: #{vgg_forward.1} parent=11 // pred_check
          %p341 = pneg %p69
        $region14: #{vgg_forward.1} parent=11 // pred_check_branch
          %343 = sbr.rel (%p341) target = $region16
        $region15: #{vgg_forward.1} parent=11 // pred_region
          _
        $region16: #{vgg_forward.1} parent=11 // pred_fallthru
          _
        // Predicated region
        $region17: #{vgg_forward.1} parent=11 // pred_check
          %p344 = pneg %p90
        $region18: #{vgg_forward.1} parent=11 // pred_check_branch
          %346 = sbr.rel (%p344) target = $region20
        $region19: #{vgg_forward.1} parent=11 // pred_region
          _
        $region20: #{vgg_forward.1} parent=11 // pred_fallthru
          _
        // Predicated region
        $region21: #{vgg_forward.1} parent=11 // pred_check
          %p347 = pneg %p111
        $region22: #{vgg_forward.1} parent=11 // pred_check_branch
          %349 = sbr.rel (%p347) target = $region24
        $region23: #{vgg_forward.1} parent=11 // pred_region
          _
        $region24: #{vgg_forward.1} parent=11 // pred_fallthru
          _
        // Predicated region
        $region25: #{vgg_forward.1} parent=11 // pred_check
          %p350 = pneg %p132
        $region26: #{vgg_forward.1} parent=11 // pred_check_branch
          %352 = sbr.rel (%p350) target = $region28
        $region27: #{vgg_forward.1} parent=11 // pred_region
          _
        $region28: #{vgg_forward.1} parent=11 // pred_fallthru
          _
        // Predicated region
        $region29: #{vgg_forward.1} parent=11 // pred_check
          %p353 = pneg %p153
        $region30: #{vgg_forward.1} parent=11 // pred_check_branch
          %355 = sbr.rel (%p353) target = $region32
        $region31: #{vgg_forward.1} parent=11 // pred_region
          _
        $region32: #{vgg_forward.1} parent=11 // pred_fallthru
          _
        // Predicated region
        $region33: #{vgg_forward.1} parent=11 // pred_check
          %p356 = pneg %p174
        $region34: #{vgg_forward.1} parent=11 // pred_check_branch
          %358 = sbr.rel (%p356) target = $region36
        $region35: #{vgg_forward.1} parent=11 // pred_region
          _
        $region36: #{vgg_forward.1} parent=11 // pred_fallthru
          _
        // Predicated region
        $region37: #{vgg_forward.1} parent=11 // pred_check
          %p359 = pneg %p195
        $region38: #{vgg_forward.1} parent=11 // pred_check_branch
          %361 = sbr.rel (%p359) target = $region40
        $region39: #{vgg_forward.1} parent=11 // pred_region
          _
        $region40: #{vgg_forward.1} parent=11 // pred_fallthru
          _
        // Predicated region
        $region41: #{vgg_forward.1} parent=11 // pred_check
          %p362 = pneg %p216
        $region42: #{vgg_forward.1} parent=11 // pred_check_branch
          %364 = sbr.rel (%p362) target = $region44
        $region43: #{vgg_forward.1} parent=11 // pred_region
          _
        $region44: #{vgg_forward.1} parent=11 // pred_fallthru
          _
        // Predicated region
        $region45: #{vgg_forward.1} parent=11 // pred_check
          %p365 = pneg %p237
        $region46: #{vgg_forward.1} parent=11 // pred_check_branch
          %367 = sbr.rel (%p365) target = $region48
        $region47: #{vgg_forward.1} parent=11 // pred_region
          _
        $region48: #{vgg_forward.1} parent=11 // pred_fallthru
          _
        // Predicated region
        $region49: #{vgg_forward.1} parent=11 // pred_check
          %p368 = pneg %p258
        $region50: #{vgg_forward.1} parent=11 // pred_check_branch
          %370 = sbr.rel (%p368) target = $region52
        $region51: #{vgg_forward.1} parent=11 // pred_region
          _
        $region52: #{vgg_forward.1} parent=11 // pred_fallthru
          _
        // Predicated region
        $region53: #{vgg_forward.1} parent=11 // pred_check
          %p371 = pneg %p279
        $region54: #{vgg_forward.1} parent=11 // pred_check_branch
          %373 = sbr.rel (%p371) target = $region56
        $region55: #{vgg_forward.1} parent=11 // pred_region
          _
        $region56: #{vgg_forward.1} parent=11 // pred_fallthru
          _
        // Predicated region
        $region57: #{vgg_forward.1} parent=11 // pred_check
          %p374 = pneg %p300
        $region58: #{vgg_forward.1} parent=11 // pred_check_branch
          %376 = sbr.rel (%p374) target = $region60
        $region59: #{vgg_forward.1} parent=11 // pred_region
          _
        $region60: #{vgg_forward.1} parent=11 // pred_fallthru
          _
      $region12: #{vgg_forward.1} parent=5 // pred_fallthru
        _
      %p377 = scmp.lt.s32.totalorder %s22, 2
      // Predicated region
      $region61: #{vgg_forward.1} parent=5 // pred_check
        %p378 = pneg %p377
      $region62: #{vgg_forward.1} parent=5 // pred_check_branch
        %380 = sbr.rel (%p378) target = $region64
      $region63: #{vgg_forward.1} parent=5 // pred_region
        // Predicated region
        $region65: #{vgg_forward.1} parent=63 // pred_check
          %p381 = pneg %p42
        $region66: #{vgg_forward.1} parent=63 // pred_check_branch
          %383 = sbr.rel (%p381) target = $region68
        $region67: #{vgg_forward.1} parent=63 // pred_region
          %p384 = scmp.lt.s32.totalorder %s22, 1
          %s385 = scalar_select %p384, %s22, 1
          %s386 = smul.addr %s385, 32
          %s387 = smul.addr %s386, 8
          %s388 = scalar_lea.vmem %s0, %s387
        $region68: #{vgg_forward.1} parent=63 // pred_fallthru
          _
      $region64: #{vgg_forward.1} parent=5 // pred_fallthru
        _
      %p389 = scmp.le.s32.totalorder 1, %s22
      %p390 = scmp.lt.s32.totalorder %s22, 3
      %p391 = pnand %p389, %p390
      %p392 = pneg %p391
      // Predicated region
      $region69: #{vgg_forward.1} parent=5 // pred_check
        _
      $region70: #{vgg_forward.1} parent=5 // pred_check_branch
        %394 = sbr.rel (%p391) target = $region72
      $region71: #{vgg_forward.1} parent=5 // pred_region
        %s395 = ssub.s32 %s22, 1
        %p396 = scmp.lt.s32.totalorder %s27, 1
        %s397 = scalar_select %p396, %s27, 1
        %s398 = smul.addr %s397, 32
        %s399 = smul.addr %s398, 8
        %s400 = scalar_lea.vmem %s0, %s399
        %p401 = pneg %p48
        %p402 = pneg %p45
        %p403 = pneg %p69
        %p404 = pneg %p66
        %p405 = pneg %p90
        %p406 = pneg %p87
        %p407 = pneg %p111
        %p408 = pneg %p108
        %p409 = pneg %p132
        %p410 = pneg %p129
        %p411 = pneg %p153
        %p412 = pneg %p150
        %p413 = pneg %p174
        %p414 = pneg %p171
        %p415 = pneg %p195
        %p416 = pneg %p192
        %p417 = pneg %p216
        %p418 = pneg %p213
        %p419 = pneg %p237
        %p420 = pneg %p234
        %p421 = pneg %p258
        %p422 = pneg %p255
        %p423 = pneg %p279
        %p424 = pneg %p276
        %p425 = pneg %p300
        %p426 = pneg %p297
        %p427 = pneg %p326
        %p428 = pneg %p323
        %s429 = sand.u32 %s313, 1
        %s430 = scalar_lea.sflag [#allocation10], %s429
        %s431 = sand.u32 %s313, 1
        %s432 = scalar_lea.vmem [#allocation9], %s431
        %p433 = scmp.lt.s32.totalorder %s27, 1
        %s434 = scalar_select %p433, %s27, 1
        %s435 = smul.addr %s434, 32
        %s436 = smul.addr %s435, 8
        %s437 = scalar_lea.vmem %s0, %s436
        %v439 = vld [vmem:[%s437] sm:$0xff]
        %v440 = vld [vmem:[%s437 + $0x8] sm:$0xff]
        %v441 = vld [vmem:[%s437 + $0x10] sm:$0xff]
        %v442 = vld [vmem:[%s437 + $0x18] sm:$0xff]
        %v443 = vld [vmem:[%s437 + $0x20] sm:$0xff]
        %v444 = vld [vmem:[%s437 + $0x28] sm:$0xff]
        %v445 = vld [vmem:[%s437 + $0x30] sm:$0xff]
        %v446 = vld [vmem:[%s437 + $0x38] sm:$0xff]
        %v447 = vld [vmem:[%s437 + $0x40] sm:$0xff]
        %v448 = vld [vmem:[%s437 + $0x48] sm:$0xff]
        %v449 = vld [vmem:[%s437 + $0x50] sm:$0xff]
        %v450 = vld [vmem:[%s437 + $0x58] sm:$0xff]
        %v451 = vld [vmem:[%s437 + $0x60] sm:$0xff]
        %v452 = vld [vmem:[%s437 + $0x68] sm:$0xff]
        %v453 = vld [vmem:[%s437 + $0x70] sm:$0xff]
        %v454 = vld [vmem:[%s437 + $0x78] sm:$0xff]
        %v455 = vld [vmem:[%s437 + $0x80] sm:$0xff]
        %v456 = vld [vmem:[%s437 + $0x88] sm:$0xff]
        %v457 = vld [vmem:[%s437 + $0x90] sm:$0xff]
        %v458 = vld [vmem:[%s437 + $0x98] sm:$0xff]
        %v459 = vld [vmem:[%s437 + $0xa0] sm:$0xff]
        %v460 = vld [vmem:[%s437 + $0xa8] sm:$0xff]
        %v461 = vld [vmem:[%s437 + $0xb0] sm:$0xff]
        %v462 = vld [vmem:[%s437 + $0xb8] sm:$0xff]
        %v463 = vld [vmem:[%s437 + $0xc0] sm:$0xff]
        %v464 = vld [vmem:[%s437 + $0xc8] sm:$0xff]
        %v465 = vld [vmem:[%s437 + $0xd0] sm:$0xff]
        %v466 = vld [vmem:[%s437 + $0xd8] sm:$0xff]
        %v467 = vld [vmem:[%s437 + $0xe0] sm:$0xff]
        %v468 = vld [vmem:[%s437 + $0xe8] sm:$0xff]
        %v469 = vld [vmem:[%s437 + $0xf0] sm:$0xff]
        %v470 = vld [vmem:[%s437 + $0xf8] sm:$0xff]
        %vm471 = vcmask 23552
        %472 = vst.msk [vmem:[#allocation2] sm:$0xff] %vm471, 0.0
        %473 = vst.msk [vmem:[#allocation2 + $0x8] sm:$0xff] %vm471, 0.0
        %vm474 = vcmask 17408
        %475 = vst.msk [vmem:[#allocation2 + $0x10] sm:$0x3] %vm474, 0.0
        %476 = vst.msk [vmem:[#allocation2 + $0x18] sm:$0xff] %vm471, 0.0
        %477 = vst.msk [vmem:[#allocation2 + $0x20] sm:$0xff] %vm471, 0.0
        %478 = vst.msk [vmem:[#allocation2 + $0x28] sm:$0x3] %vm474, 0.0
        %479 = vst.msk [vmem:[#allocation2 + $0x30] sm:$0xff] %vm471, 0.0
        %480 = vst.msk [vmem:[#allocation2 + $0x38] sm:$0xff] %vm471, 0.0
        %481 = vst.msk [vmem:[#allocation2 + $0x40] sm:$0x3] %vm474, 0.0
        %482 = vst.msk [vmem:[#allocation2 + $0x48] sm:$0xff] %vm471, 0.0
        %483 = vst.msk [vmem:[#allocation2 + $0x50] sm:$0xff] %vm471, 0.0
        %484 = vst.msk [vmem:[#allocation2 + $0x58] sm:$0x3] %vm474, 0.0
        %485 = vst.msk [vmem:[#allocation2 + $0x60] sm:$0xff] %vm471, 0.0
        %486 = vst.msk [vmem:[#allocation2 + $0x68] sm:$0xff] %vm471, 0.0
        %487 = vst.msk [vmem:[#allocation2 + $0x70] sm:$0x3] %vm474, 0.0
        %488 = vst.msk [vmem:[#allocation2 + $0x78] sm:$0xff] %vm471, 0.0
        %489 = vst.msk [vmem:[#allocation2 + $0x80] sm:$0xff] %vm471, 0.0
        %490 = vst.msk [vmem:[#allocation2 + $0x88] sm:$0x3] %vm474, 0.0
        %491 = vst.msk [vmem:[#allocation2 + $0x90] sm:$0xff] %vm471, 0.0
        %492 = vst.msk [vmem:[#allocation2 + $0x98] sm:$0xff] %vm471, 0.0
        %493 = vst.msk [vmem:[#allocation2 + $0xa0] sm:$0x3] %vm474, 0.0
        %494 = vst.msk [vmem:[#allocation2 + $0xa8] sm:$0xff] %vm471, 0.0
        %495 = vst.msk [vmem:[#allocation2 + $0xb0] sm:$0xff] %vm471, 0.0
        %496 = vst.msk [vmem:[#allocation2 + $0xb8] sm:$0x3] %vm474, 0.0
        %497 = vst.msk [vmem:[#allocation2 + $0xc0] sm:$0xff] %vm471, 0.0
        %498 = vst.msk [vmem:[#allocation2 + $0xc8] sm:$0xff] %vm471, 0.0
        %499 = vst.msk [vmem:[#allocation2 + $0xd0] sm:$0x3] %vm474, 0.0
        %500 = vst.msk [vmem:[#allocation2 + $0xd8] sm:$0xff] %vm471, 0.0
        %501 = vst.msk [vmem:[#allocation2 + $0xe0] sm:$0xff] %vm471, 0.0
        %502 = vst.msk [vmem:[#allocation2 + $0xe8] sm:$0x3] %vm474, 0.0
        %503 = vst.msk [vmem:[#allocation2 + $0xf0] sm:$0xff] %vm471, 0.0
        %504 = vst.msk [vmem:[#allocation2 + $0xf8] sm:$0xff] %vm471, 0.0
        %505 = vst.msk [vmem:[#allocation2 + $0x100] sm:$0x3] %vm474, 0.0
        %506 = vst.msk [vmem:[#allocation2 + $0x108] sm:$0xff] %vm471, 0.0
        %507 = vst.msk [vmem:[#allocation2 + $0x110] sm:$0xff] %vm471, 0.0
        %508 = vst.msk [vmem:[#allocation2 + $0x118] sm:$0x3] %vm474, 0.0
        %509 = vst.msk [vmem:[#allocation2 + $0x120] sm:$0xff] %vm471, 0.0
        %510 = vst.msk [vmem:[#allocation2 + $0x128] sm:$0xff] %vm471, 0.0
        %511 = vst.msk [vmem:[#allocation2 + $0x130] sm:$0x3] %vm474, 0.0
        %512 = vst.msk [vmem:[#allocation2 + $0x138] sm:$0xff] %vm471, 0.0
        %513 = vst.msk [vmem:[#allocation2 + $0x140] sm:$0xff] %vm471, 0.0
        %514 = vst.msk [vmem:[#allocation2 + $0x148] sm:$0x3] %vm474, 0.0
        %515 = vst.msk [vmem:[#allocation2 + $0x150] sm:$0xff] %vm471, 0.0
        %516 = vst.msk [vmem:[#allocation2 + $0x158] sm:$0xff] %vm471, 0.0
        %517 = vst.msk [vmem:[#allocation2 + $0x160] sm:$0x3] %vm474, 0.0
        %518 = vst.msk [vmem:[#allocation2 + $0x168] sm:$0xff] %vm471, 0.0
        %519 = vst.msk [vmem:[#allocation2 + $0x170] sm:$0xff] %vm471, 0.0
        %520 = vst.msk [vmem:[#allocation2 + $0x178] sm:$0x3] %vm474, 0.0
        %521 = vst.msk [vmem:[#allocation2 + $0x180] sm:$0xff] %vm471, 0.0
        %522 = vst.msk [vmem:[#allocation2 + $0x188] sm:$0xff] %vm471, 0.0
        %523 = vst.msk [vmem:[#allocation2 + $0x190] sm:$0x3] %vm474, 0.0
        %524 = vst.msk [vmem:[#allocation2 + $0x198] sm:$0xff] %vm471, 0.0
        %525 = vst.msk [vmem:[#allocation2 + $0x1a0] sm:$0xff] %vm471, 0.0
        %526 = vst.msk [vmem:[#allocation2 + $0x1a8] sm:$0x3] %vm474, 0.0
        %s527 = scalar_lea.vmem [#allocation2], 24
        %528 = vst.msk [vmem:[%s527 + $0x1] sm:$0xff] %vm471, %v439
        %529 = vst.msk [vmem:[%s527 + $0x9] sm:$0xff] %vm471, %v440
        %530 = vst.msk [vmem:[%s527 + $0x19] sm:$0xff] %vm471, %v441
        %531 = vst.msk [vmem:[%s527 + $0x21] sm:$0xff] %vm471, %v442
        %532 = vst.msk [vmem:[%s527 + $0x31] sm:$0xff] %vm471, %v443
        %533 = vst.msk [vmem:[%s527 + $0x39] sm:$0xff] %vm471, %v444
        %534 = vst.msk [vmem:[%s527 + $0x49] sm:$0xff] %vm471, %v445
        %535 = vst.msk [vmem:[%s527 + $0x51] sm:$0xff] %vm471, %v446
        %536 = vst.msk [vmem:[%s527 + $0x61] sm:$0xff] %vm471, %v447
        %537 = vst.msk [vmem:[%s527 + $0x69] sm:$0xff] %vm471, %v448
        %538 = vst.msk [vmem:[%s527 + $0x79] sm:$0xff] %vm471, %v449
        %539 = vst.msk [vmem:[%s527 + $0x81] sm:$0xff] %vm471, %v450
        %540 = vst.msk [vmem:[%s527 + $0x91] sm:$0xff] %vm471, %v451
        %541 = vst.msk [vmem:[%s527 + $0x99] sm:$0xff] %vm471, %v452
        %542 = vst.msk [vmem:[%s527 + $0xa9] sm:$0xff] %vm471, %v453
        %543 = vst.msk [vmem:[%s527 + $0xb1] sm:$0xff] %vm471, %v454
        %544 = vst.msk [vmem:[%s527 + $0xc1] sm:$0xff] %vm471, %v455
        %545 = vst.msk [vmem:[%s527 + $0xc9] sm:$0xff] %vm471, %v456
        %546 = vst.msk [vmem:[%s527 + $0xd9] sm:$0xff] %vm471, %v457
        %547 = vst.msk [vmem:[%s527 + $0xe1] sm:$0xff] %vm471, %v458
        %548 = vst.msk [vmem:[%s527 + $0xf1] sm:$0xff] %vm471, %v459
        %549 = vst.msk [vmem:[%s527 + $0xf9] sm:$0xff] %vm471, %v460
        %550 = vst.msk [vmem:[%s527 + $0x109] sm:$0xff] %vm471, %v461
        %551 = vst.msk [vmem:[%s527 + $0x111] sm:$0xff] %vm471, %v462
        %552 = vst.msk [vmem:[%s527 + $0x121] sm:$0xff] %vm471, %v463
        %553 = vst.msk [vmem:[%s527 + $0x129] sm:$0xff] %vm471, %v464
        %554 = vst.msk [vmem:[%s527 + $0x139] sm:$0xff] %vm471, %v465
        %555 = vst.msk [vmem:[%s527 + $0x141] sm:$0xff] %vm471, %v466
        %556 = vst.msk [vmem:[%s527 + $0x151] sm:$0xff] %vm471, %v467
        %557 = vst.msk [vmem:[%s527 + $0x159] sm:$0xff] %vm471, %v468
        %558 = vst.msk [vmem:[%s527 + $0x169] sm:$0xff] %vm471, %v469
        %559 = vst.msk [vmem:[%s527 + $0x171] sm:$0xff] %vm471, %v470
        %v560 = vld [vmem:[#allocation2] sm:$0xff]
        %v561 = vld [vmem:[#allocation2 + $0x8] sm:$0xff]
        %v562 = vld [vmem:[#allocation2 + $0x18] sm:$0xff]
        %v563 = vld [vmem:[#allocation2 + $0x20] sm:$0xff]
        %v564 = vld [vmem:[#allocation2 + $0x30] sm:$0xff]
        %v565 = vld [vmem:[#allocation2 + $0x38] sm:$0xff]
        %v566 = vld [vmem:[#allocation2 + $0x48] sm:$0xff]
        %v567 = vld [vmem:[#allocation2 + $0x50] sm:$0xff]
        %v568 = vld [vmem:[#allocation2 + $0x60] sm:$0xff]
        %v569 = vld [vmem:[#allocation2 + $0x68] sm:$0xff]
        %v570 = vld [vmem:[#allocation2 + $0x78] sm:$0xff]
        %v571 = vld [vmem:[#allocation2 + $0x80] sm:$0xff]
        %v572 = vld [vmem:[#allocation2 + $0x90] sm:$0xff]
        %v573 = vld [vmem:[#allocation2 + $0x98] sm:$0xff]
        %v574 = vld [vmem:[#allocation2 + $0xa8] sm:$0xff]
        %v575 = vld [vmem:[#allocation2 + $0xb0] sm:$0xff]
        %v576 = vld [vmem:[#allocation2 + $0xc0] sm:$0xff]
        %v577 = vld [vmem:[#allocation2 + $0xc8] sm:$0xff]
        %v578 = vld [vmem:[#allocation2 + $0xd8] sm:$0xff]
        %v579 = vld [vmem:[#allocation2 + $0xe0] sm:$0xff]
        %v580 = vld [vmem:[#allocation2 + $0xf0] sm:$0xff]
        %v581 = vld [vmem:[#allocation2 + $0xf8] sm:$0xff]
        %v582 = vld [vmem:[#allocation2 + $0x108] sm:$0xff]
        %v583 = vld [vmem:[#allocation2 + $0x110] sm:$0xff]
        %v584 = vld [vmem:[#allocation2 + $0x120] sm:$0xff]
        %v585 = vld [vmem:[#allocation2 + $0x128] sm:$0xff]
        %v586 = vld [vmem:[#allocation2 + $0x138] sm:$0xff]
        %v587 = vld [vmem:[#allocation2 + $0x140] sm:$0xff]
        %v588 = vld [vmem:[#allocation2 + $0x150] sm:$0xff]
        %v589 = vld [vmem:[#allocation2 + $0x158] sm:$0xff]
        %v590 = vld [vmem:[#allocation2 + $0x168] sm:$0xff]
        %v591 = vld [vmem:[#allocation2 + $0x170] sm:$0xff]
        %592 = vst.msk [vmem:[#allocation3] sm:$0xff] %vm471, %v560
        %593 = vst.msk [vmem:[#allocation3 + $0x8] sm:$0xff] %vm471, %v561
        %594 = vst.msk [vmem:[#allocation3 + $0x10] sm:$0xff] %vm471, %v562
        %595 = vst.msk [vmem:[#allocation3 + $0x18] sm:$0xff] %vm471, %v563
        %596 = vst.msk [vmem:[#allocation3 + $0x20] sm:$0xff] %vm471, %v564
        %597 = vst.msk [vmem:[#allocation3 + $0x28] sm:$0xff] %vm471, %v565
        %598 = vst.msk [vmem:[#allocation3 + $0x30] sm:$0xff] %vm471, %v566
        %599 = vst.msk [vmem:[#allocation3 + $0x38] sm:$0xff] %vm471, %v567
        %600 = vst.msk [vmem:[#allocation3 + $0x40] sm:$0xff] %vm471, %v568
        %601 = vst.msk [vmem:[#allocation3 + $0x48] sm:$0xff] %vm471, %v569
        %602 = vst.msk [vmem:[#allocation3 + $0x50] sm:$0xff] %vm471, %v570
        %603 = vst.msk [vmem:[#allocation3 + $0x58] sm:$0xff] %vm471, %v571
        %604 = vst.msk [vmem:[#allocation3 + $0x60] sm:$0xff] %vm471, %v572
        %605 = vst.msk [vmem:[#allocation3 + $0x68] sm:$0xff] %vm471, %v573
        %606 = vst.msk [vmem:[#allocation3 + $0x70] sm:$0xff] %vm471, %v574
        %607 = vst.msk [vmem:[#allocation3 + $0x78] sm:$0xff] %vm471, %v575
        %608 = vst.msk [vmem:[#allocation3 + $0x80] sm:$0xff] %vm471, %v576
        %609 = vst.msk [vmem:[#allocation3 + $0x88] sm:$0xff] %vm471, %v577
        %610 = vst.msk [vmem:[#allocation3 + $0x90] sm:$0xff] %vm471, %v578
        %611 = vst.msk [vmem:[#allocation3 + $0x98] sm:$0xff] %vm471, %v579
        %612 = vst.msk [vmem:[#allocation3 + $0xa0] sm:$0xff] %vm471, %v580
        %613 = vst.msk [vmem:[#allocation3 + $0xa8] sm:$0xff] %vm471, %v581
        %614 = vst.msk [vmem:[#allocation3 + $0xb0] sm:$0xff] %vm471, %v582
        %615 = vst.msk [vmem:[#allocation3 + $0xb8] sm:$0xff] %vm471, %v583
        %616 = vst.msk [vmem:[#allocation3 + $0xc0] sm:$0xff] %vm471, %v584
        %617 = vst.msk [vmem:[#allocation3 + $0xc8] sm:$0xff] %vm471, %v585
        %618 = vst.msk [vmem:[#allocation3 + $0xd0] sm:$0xff] %vm471, %v586
        %619 = vst.msk [vmem:[#allocation3 + $0xd8] sm:$0xff] %vm471, %v587
        %620 = vst.msk [vmem:[#allocation3 + $0xe0] sm:$0xff] %vm471, %v588
        %621 = vst.msk [vmem:[#allocation3 + $0xe8] sm:$0xff] %vm471, %v589
        %622 = vst.msk [vmem:[#allocation3 + $0xf0] sm:$0xff] %vm471, %v590
        %623 = vst.msk [vmem:[#allocation3 + $0xf8] sm:$0xff] %vm471, %v591
        %v624 = vld [vmem:[#allocation2 + $0x1] sm:$0xff]
        %v625 = vld [vmem:[#allocation2 + $0x9] sm:$0xff]
        %v626 = vld [vmem:[#allocation2 + $0x19] sm:$0xff]
        %v627 = vld [vmem:[#allocation2 + $0x21] sm:$0xff]
        %v628 = vld [vmem:[#allocation2 + $0x31] sm:$0xff]
        %v629 = vld [vmem:[#allocation2 + $0x39] sm:$0xff]
        %v630 = vld [vmem:[#allocation2 + $0x49] sm:$0xff]
        %v631 = vld [vmem:[#allocation2 + $0x51] sm:$0xff]
        %v632 = vld [vmem:[#allocation2 + $0x61] sm:$0xff]
        %v633 = vld [vmem:[#allocation2 + $0x69] sm:$0xff]
        %v634 = vld [vmem:[#allocation2 + $0x79] sm:$0xff]
        %v635 = vld [vmem:[#allocation2 + $0x81] sm:$0xff]
        %v636 = vld [vmem:[#allocation2 + $0x91] sm:$0xff]
        %v637 = vld [vmem:[#allocation2 + $0x99] sm:$0xff]
        %v638 = vld [vmem:[#allocation2 + $0xa9] sm:$0xff]
        %v639 = vld [vmem:[#allocation2 + $0xb1] sm:$0xff]
        %v640 = vld [vmem:[#allocation2 + $0xc1] sm:$0xff]
        %v641 = vld [vmem:[#allocation2 + $0xc9] sm:$0xff]
        %v642 = vld [vmem:[#allocation2 + $0xd9] sm:$0xff]
        %v643 = vld [vmem:[#allocation2 + $0xe1] sm:$0xff]
        %v644 = vld [vmem:[#allocation2 + $0xf1] sm:$0xff]
        %v645 = vld [vmem:[#allocation2 + $0xf9] sm:$0xff]
        %v646 = vld [vmem:[#allocation2 + $0x109] sm:$0xff]
        %v647 = vld [vmem:[#allocation2 + $0x111] sm:$0xff]
        %v648 = vld [vmem:[#allocation2 + $0x121] sm:$0xff]
        %v649 = vld [vmem:[#allocation2 + $0x129] sm:$0xff]
        %v650 = vld [vmem:[#allocation2 + $0x139] sm:$0xff]
        %v651 = vld [vmem:[#allocation2 + $0x141] sm:$0xff]
        %v652 = vld [vmem:[#allocation2 + $0x151] sm:$0xff]
        %v653 = vld [vmem:[#allocation2 + $0x159] sm:$0xff]
        %v654 = vld [vmem:[#allocation2 + $0x169] sm:$0xff]
        %v655 = vld [vmem:[#allocation2 + $0x171] sm:$0xff]
        %688 = vrot.lane.b32.xlu0 %v624, 3
        %v689 = vpop.permute.xlu0 %688
        %690 = vrot.lane.b32.xlu0 %v625, 3
        %v691 = vpop.permute.xlu0 %690
        %692 = vrot.lane.b32.xlu0 %v626, 3
        %v693 = vpop.permute.xlu0 %692
        %694 = vrot.lane.b32.xlu0 %v627, 3
        %v695 = vpop.permute.xlu0 %694
        %696 = vrot.lane.b32.xlu0 %v628, 3
        %v697 = vpop.permute.xlu0 %696
        %698 = vrot.lane.b32.xlu0 %v629, 3
        %v699 = vpop.permute.xlu0 %698
        %700 = vrot.lane.b32.xlu0 %v630, 3
        %v701 = vpop.permute.xlu0 %700
        %702 = vrot.lane.b32.xlu0 %v631, 3
        %v703 = vpop.permute.xlu0 %702
        %704 = vrot.lane.b32.xlu0 %v632, 3
        %v705 = vpop.permute.xlu0 %704
        %706 = vrot.lane.b32.xlu0 %v633, 3
        %v707 = vpop.permute.xlu0 %706
        %708 = vrot.lane.b32.xlu0 %v634, 3
        %v709 = vpop.permute.xlu0 %708
        %710 = vrot.lane.b32.xlu0 %v635, 3
        %v711 = vpop.permute.xlu0 %710
        %712 = vrot.lane.b32.xlu0 %v636, 3
        %v713 = vpop.permute.xlu0 %712
        %714 = vrot.lane.b32.xlu0 %v637, 3
        %v715 = vpop.permute.xlu0 %714
        %716 = vrot.lane.b32.xlu0 %v638, 3
        %v717 = vpop.permute.xlu0 %716
        %718 = vrot.lane.b32.xlu0 %v639, 3
        %v719 = vpop.permute.xlu0 %718
        %720 = vrot.lane.b32.xlu0 %v640, 3
        %v721 = vpop.permute.xlu0 %720
        %722 = vrot.lane.b32.xlu0 %v641, 3
        %v723 = vpop.permute.xlu0 %722
        %724 = vrot.lane.b32.xlu0 %v642, 3
        %v725 = vpop.permute.xlu0 %724
        %726 = vrot.lane.b32.xlu0 %v643, 3
        %v727 = vpop.permute.xlu0 %726
        %728 = vrot.lane.b32.xlu0 %v644, 3
        %v729 = vpop.permute.xlu0 %728
        %730 = vrot.lane.b32.xlu0 %v645, 3
        %v731 = vpop.permute.xlu0 %730
        %732 = vrot.lane.b32.xlu0 %v646, 3
        %v733 = vpop.permute.xlu0 %732
        %734 = vrot.lane.b32.xlu0 %v647, 3
        %v735 = vpop.permute.xlu0 %734
        %736 = vrot.lane.b32.xlu0 %v648, 3
        %v737 = vpop.permute.xlu0 %736
        %738 = vrot.lane.b32.xlu0 %v649, 3
        %v739 = vpop.permute.xlu0 %738
        %740 = vrot.lane.b32.xlu0 %v650, 3
        %v741 = vpop.permute.xlu0 %740
        %742 = vrot.lane.b32.xlu0 %v651, 3
        %v743 = vpop.permute.xlu0 %742
        %744 = vrot.lane.b32.xlu0 %v652, 3
        %v745 = vpop.permute.xlu0 %744
        %746 = vrot.lane.b32.xlu0 %v653, 3
        %v747 = vpop.permute.xlu0 %746
        %748 = vrot.lane.b32.xlu0 %v654, 3
        %v749 = vpop.permute.xlu0 %748
        %750 = vrot.lane.b32.xlu0 %v655, 3
        %v751 = vpop.permute.xlu0 %750
        %vm784 = vcmask 48152
        %785 = vst.msk [vmem:[#allocation3] sm:$0xff] %vm784, %v689
        %786 = vst.msk [vmem:[#allocation3 + $0x8] sm:$0xff] %vm784, %v691
        %787 = vst.msk [vmem:[#allocation3 + $0x10] sm:$0xff] %vm784, %v693
        %788 = vst.msk [vmem:[#allocation3 + $0x18] sm:$0xff] %vm784, %v695
        %789 = vst.msk [vmem:[#allocation3 + $0x20] sm:$0xff] %vm784, %v697
        %790 = vst.msk [vmem:[#allocation3 + $0x28] sm:$0xff] %vm784, %v699
        %791 = vst.msk [vmem:[#allocation3 + $0x30] sm:$0xff] %vm784, %v701
        %792 = vst.msk [vmem:[#allocation3 + $0x38] sm:$0xff] %vm784, %v703
        %793 = vst.msk [vmem:[#allocation3 + $0x40] sm:$0xff] %vm784, %v705
        %794 = vst.msk [vmem:[#allocation3 + $0x48] sm:$0xff] %vm784, %v707
        %795 = vst.msk [vmem:[#allocation3 + $0x50] sm:$0xff] %vm784, %v709
        %796 = vst.msk [vmem:[#allocation3 + $0x58] sm:$0xff] %vm784, %v711
        %797 = vst.msk [vmem:[#allocation3 + $0x60] sm:$0xff] %vm784, %v713
        %798 = vst.msk [vmem:[#allocation3 + $0x68] sm:$0xff] %vm784, %v715
        %799 = vst.msk [vmem:[#allocation3 + $0x70] sm:$0xff] %vm784, %v717
        %800 = vst.msk [vmem:[#allocation3 + $0x78] sm:$0xff] %vm784, %v719
        %801 = vst.msk [vmem:[#allocation3 + $0x80] sm:$0xff] %vm784, %v721
        %802 = vst.msk [vmem:[#allocation3 + $0x88] sm:$0xff] %vm784, %v723
        %803 = vst.msk [vmem:[#allocation3 + $0x90] sm:$0xff] %vm784, %v725
        %804 = vst.msk [vmem:[#allocation3 + $0x98] sm:$0xff] %vm784, %v727
        %805 = vst.msk [vmem:[#allocation3 + $0xa0] sm:$0xff] %vm784, %v729
        %806 = vst.msk [vmem:[#allocation3 + $0xa8] sm:$0xff] %vm784, %v731
        %807 = vst.msk [vmem:[#allocation3 + $0xb0] sm:$0xff] %vm784, %v733
        %808 = vst.msk [vmem:[#allocation3 + $0xb8] sm:$0xff] %vm784, %v735
        %809 = vst.msk [vmem:[#allocation3 + $0xc0] sm:$0xff] %vm784, %v737
        %810 = vst.msk [vmem:[#allocation3 + $0xc8] sm:$0xff] %vm784, %v739
        %811 = vst.msk [vmem:[#allocation3 + $0xd0] sm:$0xff] %vm784, %v741
        %812 = vst.msk [vmem:[#allocation3 + $0xd8] sm:$0xff] %vm784, %v743
        %813 = vst.msk [vmem:[#allocation3 + $0xe0] sm:$0xff] %vm784, %v745
        %814 = vst.msk [vmem:[#allocation3 + $0xe8] sm:$0xff] %vm784, %v747
        %815 = vst.msk [vmem:[#allocation3 + $0xf0] sm:$0xff] %vm784, %v749
        %816 = vst.msk [vmem:[#allocation3 + $0xf8] sm:$0xff] %vm784, %v751
        %v817 = vld [vmem:[#allocation2 + $0x2] sm:$0xff]
        %v818 = vld [vmem:[#allocation2 + $0xa] sm:$0xff]
        %v819 = vld [vmem:[#allocation2 + $0x1a] sm:$0xff]
        %v820 = vld [vmem:[#allocation2 + $0x22] sm:$0xff]
        %v821 = vld [vmem:[#allocation2 + $0x32] sm:$0xff]
        %v822 = vld [vmem:[#allocation2 + $0x3a] sm:$0xff]
        %v823 = vld [vmem:[#allocation2 + $0x4a] sm:$0xff]
        %v824 = vld [vmem:[#allocation2 + $0x52] sm:$0xff]
        %v825 = vld [vmem:[#allocation2 + $0x62] sm:$0xff]
        %v826 = vld [vmem:[#allocation2 + $0x6a] sm:$0xff]
        %v827 = vld [vmem:[#allocation2 + $0x7a] sm:$0xff]
        %v828 = vld [vmem:[#allocation2 + $0x82] sm:$0xff]
        %v829 = vld [vmem:[#allocation2 + $0x92] sm:$0xff]
        %v830 = vld [vmem:[#allocation2 + $0x9a] sm:$0xff]
        %v831 = vld [vmem:[#allocation2 + $0xaa] sm:$0xff]
        %v832 = vld [vmem:[#allocation2 + $0xb2] sm:$0xff]
        %v833 = vld [vmem:[#allocation2 + $0xc2] sm:$0xff]
        %v834 = vld [vmem:[#allocation2 + $0xca] sm:$0xff]
        %v835 = vld [vmem:[#allocation2 + $0xda] sm:$0xff]
        %v836 = vld [vmem:[#allocation2 + $0xe2] sm:$0xff]
        %v837 = vld [vmem:[#allocation2 + $0xf2] sm:$0xff]
        %v838 = vld [vmem:[#allocation2 + $0xfa] sm:$0xff]
        %v839 = vld [vmem:[#allocation2 + $0x10a] sm:$0xff]
        %v840 = vld [vmem:[#allocation2 + $0x112] sm:$0xff]
        %v841 = vld [vmem:[#allocation2 + $0x122] sm:$0xff]
        %v842 = vld [vmem:[#allocation2 + $0x12a] sm:$0xff]
        %v843 = vld [vmem:[#allocation2 + $0x13a] sm:$0xff]
        %v844 = vld [vmem:[#allocation2 + $0x142] sm:$0xff]
        %v845 = vld [vmem:[#allocation2 + $0x152] sm:$0xff]
        %v846 = vld [vmem:[#allocation2 + $0x15a] sm:$0xff]
        %v847 = vld [vmem:[#allocation2 + $0x16a] sm:$0xff]
        %v848 = vld [vmem:[#allocation2 + $0x172] sm:$0xff]
        %881 = vrot.lane.b32.xlu0 %v817, 6
        %v882 = vpop.permute.xlu0 %881
        %883 = vrot.lane.b32.xlu0 %v818, 6
        %v884 = vpop.permute.xlu0 %883
        %885 = vrot.lane.b32.xlu0 %v819, 6
        %v886 = vpop.permute.xlu0 %885
        %887 = vrot.lane.b32.xlu0 %v820, 6
        %v888 = vpop.permute.xlu0 %887
        %889 = vrot.lane.b32.xlu0 %v821, 6
        %v890 = vpop.permute.xlu0 %889
        %891 = vrot.lane.b32.xlu0 %v822, 6
        %v892 = vpop.permute.xlu0 %891
        %893 = vrot.lane.b32.xlu0 %v823, 6
        %v894 = vpop.permute.xlu0 %893
        %895 = vrot.lane.b32.xlu0 %v824, 6
        %v896 = vpop.permute.xlu0 %895
        %897 = vrot.lane.b32.xlu0 %v825, 6
        %v898 = vpop.permute.xlu0 %897
        %899 = vrot.lane.b32.xlu0 %v826, 6
        %v900 = vpop.permute.xlu0 %899
        %901 = vrot.lane.b32.xlu0 %v827, 6
        %v902 = vpop.permute.xlu0 %901
        %903 = vrot.lane.b32.xlu0 %v828, 6
        %v904 = vpop.permute.xlu0 %903
        %905 = vrot.lane.b32.xlu0 %v829, 6
        %v906 = vpop.permute.xlu0 %905
        %907 = vrot.lane.b32.xlu0 %v830, 6
        %v908 = vpop.permute.xlu0 %907
        %909 = vrot.lane.b32.xlu0 %v831, 6
        %v910 = vpop.permute.xlu0 %909
        %911 = vrot.lane.b32.xlu0 %v832, 6
        %v912 = vpop.permute.xlu0 %911
        %913 = vrot.lane.b32.xlu0 %v833, 6
        %v914 = vpop.permute.xlu0 %913
        %915 = vrot.lane.b32.xlu0 %v834, 6
        %v916 = vpop.permute.xlu0 %915
        %917 = vrot.lane.b32.xlu0 %v835, 6
        %v918 = vpop.permute.xlu0 %917
        %919 = vrot.lane.b32.xlu0 %v836, 6
        %v920 = vpop.permute.xlu0 %919
        %921 = vrot.lane.b32.xlu0 %v837, 6
        %v922 = vpop.permute.xlu0 %921
        %923 = vrot.lane.b32.xlu0 %v838, 6
        %v924 = vpop.permute.xlu0 %923
        %925 = vrot.lane.b32.xlu0 %v839, 6
        %v926 = vpop.permute.xlu0 %925
        %927 = vrot.lane.b32.xlu0 %v840, 6
        %v928 = vpop.permute.xlu0 %927
        %929 = vrot.lane.b32.xlu0 %v841, 6
        %v930 = vpop.permute.xlu0 %929
        %931 = vrot.lane.b32.xlu0 %v842, 6
        %v932 = vpop.permute.xlu0 %931
        %933 = vrot.lane.b32.xlu0 %v843, 6
        %v934 = vpop.permute.xlu0 %933
        %935 = vrot.lane.b32.xlu0 %v844, 6
        %v936 = vpop.permute.xlu0 %935
        %937 = vrot.lane.b32.xlu0 %v845, 6
        %v938 = vpop.permute.xlu0 %937
        %939 = vrot.lane.b32.xlu0 %v846, 6
        %v940 = vpop.permute.xlu0 %939
        %941 = vrot.lane.b32.xlu0 %v847, 6
        %v942 = vpop.permute.xlu0 %941
        %943 = vrot.lane.b32.xlu0 %v848, 6
        %v944 = vpop.permute.xlu0 %943
        %vm977 = vcmask 72752
        %978 = vst.msk [vmem:[#allocation3] sm:$0xff] %vm977, %v882
        %979 = vst.msk [vmem:[#allocation3 + $0x8] sm:$0xff] %vm977, %v884
        %980 = vst.msk [vmem:[#allocation3 + $0x10] sm:$0xff] %vm977, %v886
        %981 = vst.msk [vmem:[#allocation3 + $0x18] sm:$0xff] %vm977, %v888
        %982 = vst.msk [vmem:[#allocation3 + $0x20] sm:$0xff] %vm977, %v890
        %983 = vst.msk [vmem:[#allocation3 + $0x28] sm:$0xff] %vm977, %v892
        %984 = vst.msk [vmem:[#allocation3 + $0x30] sm:$0xff] %vm977, %v894
        %985 = vst.msk [vmem:[#allocation3 + $0x38] sm:$0xff] %vm977, %v896
        %986 = vst.msk [vmem:[#allocation3 + $0x40] sm:$0xff] %vm977, %v898
        %987 = vst.msk [vmem:[#allocation3 + $0x48] sm:$0xff] %vm977, %v900
        %988 = vst.msk [vmem:[#allocation3 + $0x50] sm:$0xff] %vm977, %v902
        %989 = vst.msk [vmem:[#allocation3 + $0x58] sm:$0xff] %vm977, %v904
        %990 = vst.msk [vmem:[#allocation3 + $0x60] sm:$0xff] %vm977, %v906
        %991 = vst.msk [vmem:[#allocation3 + $0x68] sm:$0xff] %vm977, %v908
        %992 = vst.msk [vmem:[#allocation3 + $0x70] sm:$0xff] %vm977, %v910
        %993 = vst.msk [vmem:[#allocation3 + $0x78] sm:$0xff] %vm977, %v912
        %994 = vst.msk [vmem:[#allocation3 + $0x80] sm:$0xff] %vm977, %v914
        %995 = vst.msk [vmem:[#allocation3 + $0x88] sm:$0xff] %vm977, %v916
        %996 = vst.msk [vmem:[#allocation3 + $0x90] sm:$0xff] %vm977, %v918
        %997 = vst.msk [vmem:[#allocation3 + $0x98] sm:$0xff] %vm977, %v920
        %998 = vst.msk [vmem:[#allocation3 + $0xa0] sm:$0xff] %vm977, %v922
        %999 = vst.msk [vmem:[#allocation3 + $0xa8] sm:$0xff] %vm977, %v924
        %1000 = vst.msk [vmem:[#allocation3 + $0xb0] sm:$0xff] %vm977, %v926
        %1001 = vst.msk [vmem:[#allocation3 + $0xb8] sm:$0xff] %vm977, %v928
        %1002 = vst.msk [vmem:[#allocation3 + $0xc0] sm:$0xff] %vm977, %v930
        %1003 = vst.msk [vmem:[#allocation3 + $0xc8] sm:$0xff] %vm977, %v932
        %1004 = vst.msk [vmem:[#allocation3 + $0xd0] sm:$0xff] %vm977, %v934
        %1005 = vst.msk [vmem:[#allocation3 + $0xd8] sm:$0xff] %vm977, %v936
        %1006 = vst.msk [vmem:[#allocation3 + $0xe0] sm:$0xff] %vm977, %v938
        %1007 = vst.msk [vmem:[#allocation3 + $0xe8] sm:$0xff] %vm977, %v940
        %1008 = vst.msk [vmem:[#allocation3 + $0xf0] sm:$0xff] %vm977, %v942
        %1009 = vst.msk [vmem:[#allocation3 + $0xf8] sm:$0xff] %vm977, %v944
        %v1010 = vld [vmem:[%s527] sm:$0xff]
        %v1011 = vld [vmem:[%s527 + $0x8] sm:$0xff]
        %v1012 = vld [vmem:[%s527 + $0x18] sm:$0xff]
        %v1013 = vld [vmem:[%s527 + $0x20] sm:$0xff]
        %v1014 = vld [vmem:[%s527 + $0x30] sm:$0xff]
        %v1015 = vld [vmem:[%s527 + $0x38] sm:$0xff]
        %v1016 = vld [vmem:[%s527 + $0x48] sm:$0xff]
        %v1017 = vld [vmem:[%s527 + $0x50] sm:$0xff]
        %v1018 = vld [vmem:[%s527 + $0x60] sm:$0xff]
        %v1019 = vld [vmem:[%s527 + $0x68] sm:$0xff]
        %v1020 = vld [vmem:[%s527 + $0x78] sm:$0xff]
        %v1021 = vld [vmem:[%s527 + $0x80] sm:$0xff]
        %v1022 = vld [vmem:[%s527 + $0x90] sm:$0xff]
        %v1023 = vld [vmem:[%s527 + $0x98] sm:$0xff]
        %v1024 = vld [vmem:[%s527 + $0xa8] sm:$0xff]
        %v1025 = vld [vmem:[%s527 + $0xb0] sm:$0xff]
        %v1026 = vld [vmem:[%s527 + $0xc0] sm:$0xff]
        %v1027 = vld [vmem:[%s527 + $0xc8] sm:$0xff]
        %v1028 = vld [vmem:[%s527 + $0xd8] sm:$0xff]
        %v1029 = vld [vmem:[%s527 + $0xe0] sm:$0xff]
        %v1030 = vld [vmem:[%s527 + $0xf0] sm:$0xff]
        %v1031 = vld [vmem:[%s527 + $0xf8] sm:$0xff]
        %v1032 = vld [vmem:[%s527 + $0x108] sm:$0xff]
        %v1033 = vld [vmem:[%s527 + $0x110] sm:$0xff]
        %v1034 = vld [vmem:[%s527 + $0x120] sm:$0xff]
        %v1035 = vld [vmem:[%s527 + $0x128] sm:$0xff]
        %v1036 = vld [vmem:[%s527 + $0x138] sm:$0xff]
        %v1037 = vld [vmem:[%s527 + $0x140] sm:$0xff]
        %v1038 = vld [vmem:[%s527 + $0x150] sm:$0xff]
        %v1039 = vld [vmem:[%s527 + $0x158] sm:$0xff]
        %v1040 = vld [vmem:[%s527 + $0x168] sm:$0xff]
        %v1041 = vld [vmem:[%s527 + $0x170] sm:$0xff]
        %1074 = vrot.lane.b32.xlu0 %v1010, 9
        %v1075 = vpop.permute.xlu0 %1074
        %1076 = vrot.lane.b32.xlu0 %v1011, 9
        %v1077 = vpop.permute.xlu0 %1076
        %1078 = vrot.lane.b32.xlu0 %v1012, 9
        %v1079 = vpop.permute.xlu0 %1078
        %1080 = vrot.lane.b32.xlu0 %v1013, 9
        %v1081 = vpop.permute.xlu0 %1080
        %1082 = vrot.lane.b32.xlu0 %v1014, 9
        %v1083 = vpop.permute.xlu0 %1082
        %1084 = vrot.lane.b32.xlu0 %v1015, 9
        %v1085 = vpop.permute.xlu0 %1084
        %1086 = vrot.lane.b32.xlu0 %v1016, 9
        %v1087 = vpop.permute.xlu0 %1086
        %1088 = vrot.lane.b32.xlu0 %v1017, 9
        %v1089 = vpop.permute.xlu0 %1088
        %1090 = vrot.lane.b32.xlu0 %v1018, 9
        %v1091 = vpop.permute.xlu0 %1090
        %1092 = vrot.lane.b32.xlu0 %v1019, 9
        %v1093 = vpop.permute.xlu0 %1092
        %1094 = vrot.lane.b32.xlu0 %v1020, 9
        %v1095 = vpop.permute.xlu0 %1094
        %1096 = vrot.lane.b32.xlu0 %v1021, 9
        %v1097 = vpop.permute.xlu0 %1096
        %1098 = vrot.lane.b32.xlu0 %v1022, 9
        %v1099 = vpop.permute.xlu0 %1098
        %1100 = vrot.lane.b32.xlu0 %v1023, 9
        %v1101 = vpop.permute.xlu0 %1100
        %1102 = vrot.lane.b32.xlu0 %v1024, 9
        %v1103 = vpop.permute.xlu0 %1102
        %1104 = vrot.lane.b32.xlu0 %v1025, 9
        %v1105 = vpop.permute.xlu0 %1104
        %1106 = vrot.lane.b32.xlu0 %v1026, 9
        %v1107 = vpop.permute.xlu0 %1106
        %1108 = vrot.lane.b32.xlu0 %v1027, 9
        %v1109 = vpop.permute.xlu0 %1108
        %1110 = vrot.lane.b32.xlu0 %v1028, 9
        %v1111 = vpop.permute.xlu0 %1110
        %1112 = vrot.lane.b32.xlu0 %v1029, 9
        %v1113 = vpop.permute.xlu0 %1112
        %1114 = vrot.lane.b32.xlu0 %v1030, 9
        %v1115 = vpop.permute.xlu0 %1114
        %1116 = vrot.lane.b32.xlu0 %v1031, 9
        %v1117 = vpop.permute.xlu0 %1116
        %1118 = vrot.lane.b32.xlu0 %v1032, 9
        %v1119 = vpop.permute.xlu0 %1118
        %1120 = vrot.lane.b32.xlu0 %v1033, 9
        %v1121 = vpop.permute.xlu0 %1120
        %1122 = vrot.lane.b32.xlu0 %v1034, 9
        %v1123 = vpop.permute.xlu0 %1122
        %1124 = vrot.lane.b32.xlu0 %v1035, 9
        %v1125 = vpop.permute.xlu0 %1124
        %1126 = vrot.lane.b32.xlu0 %v1036, 9
        %v1127 = vpop.permute.xlu0 %1126
        %1128 = vrot.lane.b32.xlu0 %v1037, 9
        %v1129 = vpop.permute.xlu0 %1128
        %1130 = vrot.lane.b32.xlu0 %v1038, 9
        %v1131 = vpop.permute.xlu0 %1130
        %1132 = vrot.lane.b32.xlu0 %v1039, 9
        %v1133 = vpop.permute.xlu0 %1132
        %1134 = vrot.lane.b32.xlu0 %v1040, 9
        %v1135 = vpop.permute.xlu0 %1134
        %1136 = vrot.lane.b32.xlu0 %v1041, 9
        %v1137 = vpop.permute.xlu0 %1136
        %vm1170 = vcmask 97352
        %1171 = vst.msk [vmem:[#allocation3] sm:$0xff] %vm1170, %v1075
        %1172 = vst.msk [vmem:[#allocation3 + $0x8] sm:$0xff] %vm1170, %v1077
        %1173 = vst.msk [vmem:[#allocation3 + $0x10] sm:$0xff] %vm1170, %v1079
        %1174 = vst.msk [vmem:[#allocation3 + $0x18] sm:$0xff] %vm1170, %v1081
        %1175 = vst.msk [vmem:[#allocation3 + $0x20] sm:$0xff] %vm1170, %v1083
        %1176 = vst.msk [vmem:[#allocation3 + $0x28] sm:$0xff] %vm1170, %v1085
        %1177 = vst.msk [vmem:[#allocation3 + $0x30] sm:$0xff] %vm1170, %v1087
        %1178 = vst.msk [vmem:[#allocation3 + $0x38] sm:$0xff] %vm1170, %v1089
        %1179 = vst.msk [vmem:[#allocation3 + $0x40] sm:$0xff] %vm1170, %v1091
        %1180 = vst.msk [vmem:[#allocation3 + $0x48] sm:$0xff] %vm1170, %v1093
        %1181 = vst.msk [vmem:[#allocation3 + $0x50] sm:$0xff] %vm1170, %v1095
        %1182 = vst.msk [vmem:[#allocation3 + $0x58] sm:$0xff] %vm1170, %v1097
        %1183 = vst.msk [vmem:[#allocation3 + $0x60] sm:$0xff] %vm1170, %v1099
        %1184 = vst.msk [vmem:[#allocation3 + $0x68] sm:$0xff] %vm1170, %v1101
        %1185 = vst.msk [vmem:[#allocation3 + $0x70] sm:$0xff] %vm1170, %v1103
        %1186 = vst.msk [vmem:[#allocation3 + $0x78] sm:$0xff] %vm1170, %v1105
        %1187 = vst.msk [vmem:[#allocation3 + $0x80] sm:$0xff] %vm1170, %v1107
        %1188 = vst.msk [vmem:[#allocation3 + $0x88] sm:$0xff] %vm1170, %v1109
        %1189 = vst.msk [vmem:[#allocation3 + $0x90] sm:$0xff] %vm1170, %v1111
        %1190 = vst.msk [vmem:[#allocation3 + $0x98] sm:$0xff] %vm1170, %v1113
        %1191 = vst.msk [vmem:[#allocation3 + $0xa0] sm:$0xff] %vm1170, %v1115
        %1192 = vst.msk [vmem:[#allocation3 + $0xa8] sm:$0xff] %vm1170, %v1117
        %1193 = vst.msk [vmem:[#allocation3 + $0xb0] sm:$0xff] %vm1170, %v1119
        %1194 = vst.msk [vmem:[#allocation3 + $0xb8] sm:$0xff] %vm1170, %v1121
        %1195 = vst.msk [vmem:[#allocation3 + $0xc0] sm:$0xff] %vm1170, %v1123
        %1196 = vst.msk [vmem:[#allocation3 + $0xc8] sm:$0xff] %vm1170, %v1125
        %1197 = vst.msk [vmem:[#allocation3 + $0xd0] sm:$0xff] %vm1170, %v1127
        %1198 = vst.msk [vmem:[#allocation3 + $0xd8] sm:$0xff] %vm1170, %v1129
        %1199 = vst.msk [vmem:[#allocation3 + $0xe0] sm:$0xff] %vm1170, %v1131
        %1200 = vst.msk [vmem:[#allocation3 + $0xe8] sm:$0xff] %vm1170, %v1133
        %1201 = vst.msk [vmem:[#allocation3 + $0xf0] sm:$0xff] %vm1170, %v1135
        %1202 = vst.msk [vmem:[#allocation3 + $0xf8] sm:$0xff] %vm1170, %v1137
        %v1203 = vld [vmem:[%s527 + $0x1] sm:$0xff]
        %v1204 = vld [vmem:[%s527 + $0x9] sm:$0xff]
        %v1205 = vld [vmem:[%s527 + $0x19] sm:$0xff]
        %v1206 = vld [vmem:[%s527 + $0x21] sm:$0xff]
        %v1207 = vld [vmem:[%s527 + $0x31] sm:$0xff]
        %v1208 = vld [vmem:[%s527 + $0x39] sm:$0xff]
        %v1209 = vld [vmem:[%s527 + $0x49] sm:$0xff]
        %v1210 = vld [vmem:[%s527 + $0x51] sm:$0xff]
        %v1211 = vld [vmem:[%s527 + $0x61] sm:$0xff]
        %v1212 = vld [vmem:[%s527 + $0x69] sm:$0xff]
        %v1213 = vld [vmem:[%s527 + $0x79] sm:$0xff]
        %v1214 = vld [vmem:[%s527 + $0x81] sm:$0xff]
        %v1215 = vld [vmem:[%s527 + $0x91] sm:$0xff]
        %v1216 = vld [vmem:[%s527 + $0x99] sm:$0xff]
        %v1217 = vld [vmem:[%s527 + $0xa9] sm:$0xff]
        %v1218 = vld [vmem:[%s527 + $0xb1] sm:$0xff]
        %v1219 = vld [vmem:[%s527 + $0xc1] sm:$0xff]
        %v1220 = vld [vmem:[%s527 + $0xc9] sm:$0xff]
        %v1221 = vld [vmem:[%s527 + $0xd9] sm:$0xff]
        %v1222 = vld [vmem:[%s527 + $0xe1] sm:$0xff]
        %v1223 = vld [vmem:[%s527 + $0xf1] sm:$0xff]
        %v1224 = vld [vmem:[%s527 + $0xf9] sm:$0xff]
        %v1225 = vld [vmem:[%s527 + $0x109] sm:$0xff]
        %v1226 = vld [vmem:[%s527 + $0x111] sm:$0xff]
        %v1227 = vld [vmem:[%s527 + $0x121] sm:$0xff]
        %v1228 = vld [vmem:[%s527 + $0x129] sm:$0xff]
        %v1229 = vld [vmem:[%s527 + $0x139] sm:$0xff]
        %v1230 = vld [vmem:[%s527 + $0x141] sm:$0xff]
        %v1231 = vld [vmem:[%s527 + $0x151] sm:$0xff]
        %v1232 = vld [vmem:[%s527 + $0x159] sm:$0xff]
        %v1233 = vld [vmem:[%s527 + $0x169] sm:$0xff]
        %v1234 = vld [vmem:[%s527 + $0x171] sm:$0xff]
        %1267 = vrot.lane.b32.xlu0 %v1203, 12
        %v1268 = vpop.permute.xlu0 %1267
        %1269 = vrot.lane.b32.xlu0 %v1204, 12
        %v1270 = vpop.permute.xlu0 %1269
        %1271 = vrot.lane.b32.xlu0 %v1205, 12
        %v1272 = vpop.permute.xlu0 %1271
        %1273 = vrot.lane.b32.xlu0 %v1206, 12
        %v1274 = vpop.permute.xlu0 %1273
        %1275 = vrot.lane.b32.xlu0 %v1207, 12
        %v1276 = vpop.permute.xlu0 %1275
        %1277 = vrot.lane.b32.xlu0 %v1208, 12
        %v1278 = vpop.permute.xlu0 %1277
        %1279 = vrot.lane.b32.xlu0 %v1209, 12
        %v1280 = vpop.permute.xlu0 %1279
        %1281 = vrot.lane.b32.xlu0 %v1210, 12
        %v1282 = vpop.permute.xlu0 %1281
        %1283 = vrot.lane.b32.xlu0 %v1211, 12
        %v1284 = vpop.permute.xlu0 %1283
        %1285 = vrot.lane.b32.xlu0 %v1212, 12
        %v1286 = vpop.permute.xlu0 %1285
        %1287 = vrot.lane.b32.xlu0 %v1213, 12
        %v1288 = vpop.permute.xlu0 %1287
        %1289 = vrot.lane.b32.xlu0 %v1214, 12
        %v1290 = vpop.permute.xlu0 %1289
        %1291 = vrot.lane.b32.xlu0 %v1215, 12
        %v1292 = vpop.permute.xlu0 %1291
        %1293 = vrot.lane.b32.xlu0 %v1216, 12
        %v1294 = vpop.permute.xlu0 %1293
        %1295 = vrot.lane.b32.xlu0 %v1217, 12
        %v1296 = vpop.permute.xlu0 %1295
        %1297 = vrot.lane.b32.xlu0 %v1218, 12
        %v1298 = vpop.permute.xlu0 %1297
        %1299 = vrot.lane.b32.xlu0 %v1219, 12
        %v1300 = vpop.permute.xlu0 %1299
        %1301 = vrot.lane.b32.xlu0 %v1220, 12
        %v1302 = vpop.permute.xlu0 %1301
        %1303 = vrot.lane.b32.xlu0 %v1221, 12
        %v1304 = vpop.permute.xlu0 %1303
        %1305 = vrot.lane.b32.xlu0 %v1222, 12
        %v1306 = vpop.permute.xlu0 %1305
        %1307 = vrot.lane.b32.xlu0 %v1223, 12
        %v1308 = vpop.permute.xlu0 %1307
        %1309 = vrot.lane.b32.xlu0 %v1224, 12
        %v1310 = vpop.permute.xlu0 %1309
        %1311 = vrot.lane.b32.xlu0 %v1225, 12
        %v1312 = vpop.permute.xlu0 %1311
        %1313 = vrot.lane.b32.xlu0 %v1226, 12
        %v1314 = vpop.permute.xlu0 %1313
        %1315 = vrot.lane.b32.xlu0 %v1227, 12
        %v1316 = vpop.permute.xlu0 %1315
        %1317 = vrot.lane.b32.xlu0 %v1228, 12
        %v1318 = vpop.permute.xlu0 %1317
        %1319 = vrot.lane.b32.xlu0 %v1229, 12
        %v1320 = vpop.permute.xlu0 %1319
        %1321 = vrot.lane.b32.xlu0 %v1230, 12
        %v1322 = vpop.permute.xlu0 %1321
        %1323 = vrot.lane.b32.xlu0 %v1231, 12
        %v1324 = vpop.permute.xlu0 %1323
        %1325 = vrot.lane.b32.xlu0 %v1232, 12
        %v1326 = vpop.permute.xlu0 %1325
        %1327 = vrot.lane.b32.xlu0 %v1233, 12
        %v1328 = vpop.permute.xlu0 %1327
        %1329 = vrot.lane.b32.xlu0 %v1234, 12
        %v1330 = vpop.permute.xlu0 %1329
        %vm1363 = vcmask 121952
        %1364 = vst.msk [vmem:[#allocation3] sm:$0xff] %vm1363, %v1268
        %1365 = vst.msk [vmem:[#allocation3 + $0x8] sm:$0xff] %vm1363, %v1270
        %1366 = vst.msk [vmem:[#allocation3 + $0x10] sm:$0xff] %vm1363, %v1272
        %1367 = vst.msk [vmem:[#allocation3 + $0x18] sm:$0xff] %vm1363, %v1274
        %1368 = vst.msk [vmem:[#allocation3 + $0x20] sm:$0xff] %vm1363, %v1276
        %1369 = vst.msk [vmem:[#allocation3 + $0x28] sm:$0xff] %vm1363, %v1278
        %1370 = vst.msk [vmem:[#allocation3 + $0x30] sm:$0xff] %vm1363, %v1280
        %1371 = vst.msk [vmem:[#allocation3 + $0x38] sm:$0xff] %vm1363, %v1282
        %1372 = vst.msk [vmem:[#allocation3 + $0x40] sm:$0xff] %vm1363, %v1284
        %1373 = vst.msk [vmem:[#allocation3 + $0x48] sm:$0xff] %vm1363, %v1286
        %1374 = vst.msk [vmem:[#allocation3 + $0x50] sm:$0xff] %vm1363, %v1288
        %1375 = vst.msk [vmem:[#allocation3 + $0x58] sm:$0xff] %vm1363, %v1290
        %1376 = vst.msk [vmem:[#allocation3 + $0x60] sm:$0xff] %vm1363, %v1292
        %1377 = vst.msk [vmem:[#allocation3 + $0x68] sm:$0xff] %vm1363, %v1294
        %1378 = vst.msk [vmem:[#allocation3 + $0x70] sm:$0xff] %vm1363, %v1296
        %1379 = vst.msk [vmem:[#allocation3 + $0x78] sm:$0xff] %vm1363, %v1298
        %1380 = vst.msk [vmem:[#allocation3 + $0x80] sm:$0xff] %vm1363, %v1300
        %1381 = vst.msk [vmem:[#allocation3 + $0x88] sm:$0xff] %vm1363, %v1302
        %1382 = vst.msk [vmem:[#allocation3 + $0x90] sm:$0xff] %vm1363, %v1304
        %1383 = vst.msk [vmem:[#allocation3 + $0x98] sm:$0xff] %vm1363, %v1306
        %1384 = vst.msk [vmem:[#allocation3 + $0xa0] sm:$0xff] %vm1363, %v1308
        %1385 = vst.msk [vmem:[#allocation3 + $0xa8] sm:$0xff] %vm1363, %v1310
        %1386 = vst.msk [vmem:[#allocation3 + $0xb0] sm:$0xff] %vm1363, %v1312
        %1387 = vst.msk [vmem:[#allocation3 + $0xb8] sm:$0xff] %vm1363, %v1314
        %1388 = vst.msk [vmem:[#allocation3 + $0xc0] sm:$0xff] %vm1363, %v1316
        %1389 = vst.msk [vmem:[#allocation3 + $0xc8] sm:$0xff] %vm1363, %v1318
        %1390 = vst.msk [vmem:[#allocation3 + $0xd0] sm:$0xff] %vm1363, %v1320
        %1391 = vst.msk [vmem:[#allocation3 + $0xd8] sm:$0xff] %vm1363, %v1322
        %1392 = vst.msk [vmem:[#allocation3 + $0xe0] sm:$0xff] %vm1363, %v1324
        %1393 = vst.msk [vmem:[#allocation3 + $0xe8] sm:$0xff] %vm1363, %v1326
        %1394 = vst.msk [vmem:[#allocation3 + $0xf0] sm:$0xff] %vm1363, %v1328
        %1395 = vst.msk [vmem:[#allocation3 + $0xf8] sm:$0xff] %vm1363, %v1330
        %v1396 = vld [vmem:[%s527 + $0x2] sm:$0xff]
        %v1397 = vld [vmem:[%s527 + $0xa] sm:$0xff]
        %v1398 = vld [vmem:[%s527 + $0x1a] sm:$0xff]
        %v1399 = vld [vmem:[%s527 + $0x22] sm:$0xff]
        %v1400 = vld [vmem:[%s527 + $0x32] sm:$0xff]
        %v1401 = vld [vmem:[%s527 + $0x3a] sm:$0xff]
        %v1402 = vld [vmem:[%s527 + $0x4a] sm:$0xff]
        %v1403 = vld [vmem:[%s527 + $0x52] sm:$0xff]
        %v1404 = vld [vmem:[%s527 + $0x62] sm:$0xff]
        %v1405 = vld [vmem:[%s527 + $0x6a] sm:$0xff]
        %v1406 = vld [vmem:[%s527 + $0x7a] sm:$0xff]
        %v1407 = vld [vmem:[%s527 + $0x82] sm:$0xff]
        %v1408 = vld [vmem:[%s527 + $0x92] sm:$0xff]
        %v1409 = vld [vmem:[%s527 + $0x9a] sm:$0xff]
        %v1410 = vld [vmem:[%s527 + $0xaa] sm:$0xff]
        %v1411 = vld [vmem:[%s527 + $0xb2] sm:$0xff]
        %v1412 = vld [vmem:[%s527 + $0xc2] sm:$0xff]
        %v1413 = vld [vmem:[%s527 + $0xca] sm:$0xff]
        %v1414 = vld [vmem:[%s527 + $0xda] sm:$0xff]
        %v1415 = vld [vmem:[%s527 + $0xe2] sm:$0xff]
        %v1416 = vld [vmem:[%s527 + $0xf2] sm:$0xff]
        %v1417 = vld [vmem:[%s527 + $0xfa] sm:$0xff]
        %v1418 = vld [vmem:[%s527 + $0x10a] sm:$0xff]
        %v1419 = vld [vmem:[%s527 + $0x112] sm:$0xff]
        %v1420 = vld [vmem:[%s527 + $0x122] sm:$0xff]
        %v1421 = vld [vmem:[%s527 + $0x12a] sm:$0xff]
        %v1422 = vld [vmem:[%s527 + $0x13a] sm:$0xff]
        %v1423 = vld [vmem:[%s527 + $0x142] sm:$0xff]
        %v1424 = vld [vmem:[%s527 + $0x152] sm:$0xff]
        %v1425 = vld [vmem:[%s527 + $0x15a] sm:$0xff]
        %v1426 = vld [vmem:[%s527 + $0x16a] sm:$0xff]
        %v1427 = vld [vmem:[%s527 + $0x172] sm:$0xff]
        %1460 = vrot.lane.b32.xlu0 %v1396, 15
        %v1461 = vpop.permute.xlu0 %1460
        %1462 = vrot.lane.b32.xlu0 %v1397, 15
        %v1463 = vpop.permute.xlu0 %1462
        %1464 = vrot.lane.b32.xlu0 %v1398, 15
        %v1465 = vpop.permute.xlu0 %1464
        %1466 = vrot.lane.b32.xlu0 %v1399, 15
        %v1467 = vpop.permute.xlu0 %1466
        %1468 = vrot.lane.b32.xlu0 %v1400, 15
        %v1469 = vpop.permute.xlu0 %1468
        %1470 = vrot.lane.b32.xlu0 %v1401, 15
        %v1471 = vpop.permute.xlu0 %1470
        %1472 = vrot.lane.b32.xlu0 %v1402, 15
        %v1473 = vpop.permute.xlu0 %1472
        %1474 = vrot.lane.b32.xlu0 %v1403, 15
        %v1475 = vpop.permute.xlu0 %1474
        %1476 = vrot.lane.b32.xlu0 %v1404, 15
        %v1477 = vpop.permute.xlu0 %1476
        %1478 = vrot.lane.b32.xlu0 %v1405, 15
        %v1479 = vpop.permute.xlu0 %1478
        %1480 = vrot.lane.b32.xlu0 %v1406, 15
        %v1481 = vpop.permute.xlu0 %1480
        %1482 = vrot.lane.b32.xlu0 %v1407, 15
        %v1483 = vpop.permute.xlu0 %1482
        %1484 = vrot.lane.b32.xlu0 %v1408, 15
        %v1485 = vpop.permute.xlu0 %1484
        %1486 = vrot.lane.b32.xlu0 %v1409, 15
        %v1487 = vpop.permute.xlu0 %1486
        %1488 = vrot.lane.b32.xlu0 %v1410, 15
        %v1489 = vpop.permute.xlu0 %1488
        %1490 = vrot.lane.b32.xlu0 %v1411, 15
        %v1491 = vpop.permute.xlu0 %1490
        %1492 = vrot.lane.b32.xlu0 %v1412, 15
        %v1493 = vpop.permute.xlu0 %1492
        %1494 = vrot.lane.b32.xlu0 %v1413, 15
        %v1495 = vpop.permute.xlu0 %1494
        %1496 = vrot.lane.b32.xlu0 %v1414, 15
        %v1497 = vpop.permute.xlu0 %1496
        %1498 = vrot.lane.b32.xlu0 %v1415, 15
        %v1499 = vpop.permute.xlu0 %1498
        %1500 = vrot.lane.b32.xlu0 %v1416, 15
        %v1501 = vpop.permute.xlu0 %1500
        %1502 = vrot.lane.b32.xlu0 %v1417, 15
        %v1503 = vpop.permute.xlu0 %1502
        %1504 = vrot.lane.b32.xlu0 %v1418, 15
        %v1505 = vpop.permute.xlu0 %1504
        %1506 = vrot.lane.b32.xlu0 %v1419, 15
        %v1507 = vpop.permute.xlu0 %1506
        %1508 = vrot.lane.b32.xlu0 %v1420, 15
        %v1509 = vpop.permute.xlu0 %1508
        %1510 = vrot.lane.b32.xlu0 %v1421, 15
        %v1511 = vpop.permute.xlu0 %1510
        %1512 = vrot.lane.b32.xlu0 %v1422, 15
        %v1513 = vpop.permute.xlu0 %1512
        %1514 = vrot.lane.b32.xlu0 %v1423, 15
        %v1515 = vpop.permute.xlu0 %1514
        %1516 = vrot.lane.b32.xlu0 %v1424, 15
        %v1517 = vpop.permute.xlu0 %1516
        %1518 = vrot.lane.b32.xlu0 %v1425, 15
        %v1519 = vpop.permute.xlu0 %1518
        %1520 = vrot.lane.b32.xlu0 %v1426, 15
        %v1521 = vpop.permute.xlu0 %1520
        %1522 = vrot.lane.b32.xlu0 %v1427, 15
        %v1523 = vpop.permute.xlu0 %1522
        %vm1556 = vcmask 146552
        %1557 = vst.msk [vmem:[#allocation3] sm:$0xff] %vm1556, %v1461
        %1558 = vst.msk [vmem:[#allocation3 + $0x8] sm:$0xff] %vm1556, %v1463
        %1559 = vst.msk [vmem:[#allocation3 + $0x10] sm:$0xff] %vm1556, %v1465
        %1560 = vst.msk [vmem:[#allocation3 + $0x18] sm:$0xff] %vm1556, %v1467
        %1561 = vst.msk [vmem:[#allocation3 + $0x20] sm:$0xff] %vm1556, %v1469
        %1562 = vst.msk [vmem:[#allocation3 + $0x28] sm:$0xff] %vm1556, %v1471
        %1563 = vst.msk [vmem:[#allocation3 + $0x30] sm:$0xff] %vm1556, %v1473
        %1564 = vst.msk [vmem:[#allocation3 + $0x38] sm:$0xff] %vm1556, %v1475
        %1565 = vst.msk [vmem:[#allocation3 + $0x40] sm:$0xff] %vm1556, %v1477
        %1566 = vst.msk [vmem:[#allocation3 + $0x48] sm:$0xff] %vm1556, %v1479
        %1567 = vst.msk [vmem:[#allocation3 + $0x50] sm:$0xff] %vm1556, %v1481
        %1568 = vst.msk [vmem:[#allocation3 + $0x58] sm:$0xff] %vm1556, %v1483
        %1569 = vst.msk [vmem:[#allocation3 + $0x60] sm:$0xff] %vm1556, %v1485
        %1570 = vst.msk [vmem:[#allocation3 + $0x68] sm:$0xff] %vm1556, %v1487
        %1571 = vst.msk [vmem:[#allocation3 + $0x70] sm:$0xff] %vm1556, %v1489
        %1572 = vst.msk [vmem:[#allocation3 + $0x78] sm:$0xff] %vm1556, %v1491
        %1573 = vst.msk [vmem:[#allocation3 + $0x80] sm:$0xff] %vm1556, %v1493
        %1574 = vst.msk [vmem:[#allocation3 + $0x88] sm:$0xff] %vm1556, %v1495
        %1575 = vst.msk [vmem:[#allocation3 + $0x90] sm:$0xff] %vm1556, %v1497
        %1576 = vst.msk [vmem:[#allocation3 + $0x98] sm:$0xff] %vm1556, %v1499
        %1577 = vst.msk [vmem:[#allocation3 + $0xa0] sm:$0xff] %vm1556, %v1501
        %1578 = vst.msk [vmem:[#allocation3 + $0xa8] sm:$0xff] %vm1556, %v1503
        %1579 = vst.msk [vmem:[#allocation3 + $0xb0] sm:$0xff] %vm1556, %v1505
        %1580 = vst.msk [vmem:[#allocation3 + $0xb8] sm:$0xff] %vm1556, %v1507
        %1581 = vst.msk [vmem:[#allocation3 + $0xc0] sm:$0xff] %vm1556, %v1509
        %1582 = vst.msk [vmem:[#allocation3 + $0xc8] sm:$0xff] %vm1556, %v1511
        %1583 = vst.msk [vmem:[#allocation3 + $0xd0] sm:$0xff] %vm1556, %v1513
        %1584 = vst.msk [vmem:[#allocation3 + $0xd8] sm:$0xff] %vm1556, %v1515
        %1585 = vst.msk [vmem:[#allocation3 + $0xe0] sm:$0xff] %vm1556, %v1517
        %1586 = vst.msk [vmem:[#allocation3 + $0xe8] sm:$0xff] %vm1556, %v1519
        %1587 = vst.msk [vmem:[#allocation3 + $0xf0] sm:$0xff] %vm1556, %v1521
        %1588 = vst.msk [vmem:[#allocation3 + $0xf8] sm:$0xff] %vm1556, %v1523
        %s1589 = scalar_lea.vmem [#allocation2], 48
        %v1590 = vld [vmem:[%s1589] sm:$0xff]
        %v1591 = vld [vmem:[%s1589 + $0x8] sm:$0xff]
        %v1592 = vld [vmem:[%s1589 + $0x18] sm:$0xff]
        %v1593 = vld [vmem:[%s1589 + $0x20] sm:$0xff]
        %v1594 = vld [vmem:[%s1589 + $0x30] sm:$0xff]
        %v1595 = vld [vmem:[%s1589 + $0x38] sm:$0xff]
        %v1596 = vld [vmem:[%s1589 + $0x48] sm:$0xff]
        %v1597 = vld [vmem:[%s1589 + $0x50] sm:$0xff]
        %v1598 = vld [vmem:[%s1589 + $0x60] sm:$0xff]
        %v1599 = vld [vmem:[%s1589 + $0x68] sm:$0xff]
        %v1600 = vld [vmem:[%s1589 + $0x78] sm:$0xff]
        %v1601 = vld [vmem:[%s1589 + $0x80] sm:$0xff]
        %v1602 = vld [vmem:[%s1589 + $0x90] sm:$0xff]
        %v1603 = vld [vmem:[%s1589 + $0x98] sm:$0xff]
        %v1604 = vld [vmem:[%s1589 + $0xa8] sm:$0xff]
        %v1605 = vld [vmem:[%s1589 + $0xb0] sm:$0xff]
        %v1606 = vld [vmem:[%s1589 + $0xc0] sm:$0xff]
        %v1607 = vld [vmem:[%s1589 + $0xc8] sm:$0xff]
        %v1608 = vld [vmem:[%s1589 + $0xd8] sm:$0xff]
        %v1609 = vld [vmem:[%s1589 + $0xe0] sm:$0xff]
        %v1610 = vld [vmem:[%s1589 + $0xf0] sm:$0xff]
        %v1611 = vld [vmem:[%s1589 + $0xf8] sm:$0xff]
        %v1612 = vld [vmem:[%s1589 + $0x108] sm:$0xff]
        %v1613 = vld [vmem:[%s1589 + $0x110] sm:$0xff]
        %v1614 = vld [vmem:[%s1589 + $0x120] sm:$0xff]
        %v1615 = vld [vmem:[%s1589 + $0x128] sm:$0xff]
        %v1616 = vld [vmem:[%s1589 + $0x138] sm:$0xff]
        %v1617 = vld [vmem:[%s1589 + $0x140] sm:$0xff]
        %v1618 = vld [vmem:[%s1589 + $0x150] sm:$0xff]
        %v1619 = vld [vmem:[%s1589 + $0x158] sm:$0xff]
        %v1620 = vld [vmem:[%s1589 + $0x168] sm:$0xff]
        %v1621 = vld [vmem:[%s1589 + $0x170] sm:$0xff]
        %1654 = vrot.lane.b32.xlu0 %v1590, 18
        %v1655 = vpop.permute.xlu0 %1654
        %1656 = vrot.lane.b32.xlu0 %v1591, 18
        %v1657 = vpop.permute.xlu0 %1656
        %1658 = vrot.lane.b32.xlu0 %v1592, 18
        %v1659 = vpop.permute.xlu0 %1658
        %1660 = vrot.lane.b32.xlu0 %v1593, 18
        %v1661 = vpop.permute.xlu0 %1660
        %1662 = vrot.lane.b32.xlu0 %v1594, 18
        %v1663 = vpop.permute.xlu0 %1662
        %1664 = vrot.lane.b32.xlu0 %v1595, 18
        %v1665 = vpop.permute.xlu0 %1664
        %1666 = vrot.lane.b32.xlu0 %v1596, 18
        %v1667 = vpop.permute.xlu0 %1666
        %1668 = vrot.lane.b32.xlu0 %v1597, 18
        %v1669 = vpop.permute.xlu0 %1668
        %1670 = vrot.lane.b32.xlu0 %v1598, 18
        %v1671 = vpop.permute.xlu0 %1670
        %1672 = vrot.lane.b32.xlu0 %v1599, 18
        %v1673 = vpop.permute.xlu0 %1672
        %1674 = vrot.lane.b32.xlu0 %v1600, 18
        %v1675 = vpop.permute.xlu0 %1674
        %1676 = vrot.lane.b32.xlu0 %v1601, 18
        %v1677 = vpop.permute.xlu0 %1676
        %1678 = vrot.lane.b32.xlu0 %v1602, 18
        %v1679 = vpop.permute.xlu0 %1678
        %1680 = vrot.lane.b32.xlu0 %v1603, 18
        %v1681 = vpop.permute.xlu0 %1680
        %1682 = vrot.lane.b32.xlu0 %v1604, 18
        %v1683 = vpop.permute.xlu0 %1682
        %1684 = vrot.lane.b32.xlu0 %v1605, 18
        %v1685 = vpop.permute.xlu0 %1684
        %1686 = vrot.lane.b32.xlu0 %v1606, 18
        %v1687 = vpop.permute.xlu0 %1686
        %1688 = vrot.lane.b32.xlu0 %v1607, 18
        %v1689 = vpop.permute.xlu0 %1688
        %1690 = vrot.lane.b32.xlu0 %v1608, 18
        %v1691 = vpop.permute.xlu0 %1690
        %1692 = vrot.lane.b32.xlu0 %v1609, 18
        %v1693 = vpop.permute.xlu0 %1692
        %1694 = vrot.lane.b32.xlu0 %v1610, 18
        %v1695 = vpop.permute.xlu0 %1694
        %1696 = vrot.lane.b32.xlu0 %v1611, 18
        %v1697 = vpop.permute.xlu0 %1696
        %1698 = vrot.lane.b32.xlu0 %v1612, 18
        %v1699 = vpop.permute.xlu0 %1698
        %1700 = vrot.lane.b32.xlu0 %v1613, 18
        %v1701 = vpop.permute.xlu0 %1700
        %1702 = vrot.lane.b32.xlu0 %v1614, 18
        %v1703 = vpop.permute.xlu0 %1702
        %1704 = vrot.lane.b32.xlu0 %v1615, 18
        %v1705 = vpop.permute.xlu0 %1704
        %1706 = vrot.lane.b32.xlu0 %v1616, 18
        %v1707 = vpop.permute.xlu0 %1706
        %1708 = vrot.lane.b32.xlu0 %v1617, 18
        %v1709 = vpop.permute.xlu0 %1708
        %1710 = vrot.lane.b32.xlu0 %v1618, 18
        %v1711 = vpop.permute.xlu0 %1710
        %1712 = vrot.lane.b32.xlu0 %v1619, 18
        %v1713 = vpop.permute.xlu0 %1712
        %1714 = vrot.lane.b32.xlu0 %v1620, 18
        %v1715 = vpop.permute.xlu0 %1714
        %1716 = vrot.lane.b32.xlu0 %v1621, 18
        %v1717 = vpop.permute.xlu0 %1716
        %vm1750 = vcmask 171152
        %1751 = vst.msk [vmem:[#allocation3] sm:$0xff] %vm1750, %v1655
        %1752 = vst.msk [vmem:[#allocation3 + $0x8] sm:$0xff] %vm1750, %v1657
        %1753 = vst.msk [vmem:[#allocation3 + $0x10] sm:$0xff] %vm1750, %v1659
        %1754 = vst.msk [vmem:[#allocation3 + $0x18] sm:$0xff] %vm1750, %v1661
        %1755 = vst.msk [vmem:[#allocation3 + $0x20] sm:$0xff] %vm1750, %v1663
        %1756 = vst.msk [vmem:[#allocation3 + $0x28] sm:$0xff] %vm1750, %v1665
        %1757 = vst.msk [vmem:[#allocation3 + $0x30] sm:$0xff] %vm1750, %v1667
        %1758 = vst.msk [vmem:[#allocation3 + $0x38] sm:$0xff] %vm1750, %v1669
        %1759 = vst.msk [vmem:[#allocation3 + $0x40] sm:$0xff] %vm1750, %v1671
        %1760 = vst.msk [vmem:[#allocation3 + $0x48] sm:$0xff] %vm1750, %v1673
        %1761 = vst.msk [vmem:[#allocation3 + $0x50] sm:$0xff] %vm1750, %v1675
        %1762 = vst.msk [vmem:[#allocation3 + $0x58] sm:$0xff] %vm1750, %v1677
        %1763 = vst.msk [vmem:[#allocation3 + $0x60] sm:$0xff] %vm1750, %v1679
        %1764 = vst.msk [vmem:[#allocation3 + $0x68] sm:$0xff] %vm1750, %v1681
        %1765 = vst.msk [vmem:[#allocation3 + $0x70] sm:$0xff] %vm1750, %v1683
        %1766 = vst.msk [vmem:[#allocation3 + $0x78] sm:$0xff] %vm1750, %v1685
        %1767 = vst.msk [vmem:[#allocation3 + $0x80] sm:$0xff] %vm1750, %v1687
        %1768 = vst.msk [vmem:[#allocation3 + $0x88] sm:$0xff] %vm1750, %v1689
        %1769 = vst.msk [vmem:[#allocation3 + $0x90] sm:$0xff] %vm1750, %v1691
        %1770 = vst.msk [vmem:[#allocation3 + $0x98] sm:$0xff] %vm1750, %v1693
        %1771 = vst.msk [vmem:[#allocation3 + $0xa0] sm:$0xff] %vm1750, %v1695
        %1772 = vst.msk [vmem:[#allocation3 + $0xa8] sm:$0xff] %vm1750, %v1697
        %1773 = vst.msk [vmem:[#allocation3 + $0xb0] sm:$0xff] %vm1750, %v1699
        %1774 = vst.msk [vmem:[#allocation3 + $0xb8] sm:$0xff] %vm1750, %v1701
        %1775 = vst.msk [vmem:[#allocation3 + $0xc0] sm:$0xff] %vm1750, %v1703
        %1776 = vst.msk [vmem:[#allocation3 + $0xc8] sm:$0xff] %vm1750, %v1705
        %1777 = vst.msk [vmem:[#allocation3 + $0xd0] sm:$0xff] %vm1750, %v1707
        %1778 = vst.msk [vmem:[#allocation3 + $0xd8] sm:$0xff] %vm1750, %v1709
        %1779 = vst.msk [vmem:[#allocation3 + $0xe0] sm:$0xff] %vm1750, %v1711
        %1780 = vst.msk [vmem:[#allocation3 + $0xe8] sm:$0xff] %vm1750, %v1713
        %1781 = vst.msk [vmem:[#allocation3 + $0xf0] sm:$0xff] %vm1750, %v1715
        %1782 = vst.msk [vmem:[#allocation3 + $0xf8] sm:$0xff] %vm1750, %v1717
        %v1783 = vld [vmem:[%s1589 + $0x1] sm:$0xff]
        %v1784 = vld [vmem:[%s1589 + $0x9] sm:$0xff]
        %v1785 = vld [vmem:[%s1589 + $0x19] sm:$0xff]
        %v1786 = vld [vmem:[%s1589 + $0x21] sm:$0xff]
        %v1787 = vld [vmem:[%s1589 + $0x31] sm:$0xff]
        %v1788 = vld [vmem:[%s1589 + $0x39] sm:$0xff]
        %v1789 = vld [vmem:[%s1589 + $0x49] sm:$0xff]
        %v1790 = vld [vmem:[%s1589 + $0x51] sm:$0xff]
        %v1791 = vld [vmem:[%s1589 + $0x61] sm:$0xff]
        %v1792 = vld [vmem:[%s1589 + $0x69] sm:$0xff]
        %v1793 = vld [vmem:[%s1589 + $0x79] sm:$0xff]
        %v1794 = vld [vmem:[%s1589 + $0x81] sm:$0xff]
        %v1795 = vld [vmem:[%s1589 + $0x91] sm:$0xff]
        %v1796 = vld [vmem:[%s1589 + $0x99] sm:$0xff]
        %v1797 = vld [vmem:[%s1589 + $0xa9] sm:$0xff]
        %v1798 = vld [vmem:[%s1589 + $0xb1] sm:$0xff]
        %v1799 = vld [vmem:[%s1589 + $0xc1] sm:$0xff]
        %v1800 = vld [vmem:[%s1589 + $0xc9] sm:$0xff]
        %v1801 = vld [vmem:[%s1589 + $0xd9] sm:$0xff]
        %v1802 = vld [vmem:[%s1589 + $0xe1] sm:$0xff]
        %v1803 = vld [vmem:[%s1589 + $0xf1] sm:$0xff]
        %v1804 = vld [vmem:[%s1589 + $0xf9] sm:$0xff]
        %v1805 = vld [vmem:[%s1589 + $0x109] sm:$0xff]
        %v1806 = vld [vmem:[%s1589 + $0x111] sm:$0xff]
        %v1807 = vld [vmem:[%s1589 + $0x121] sm:$0xff]
        %v1808 = vld [vmem:[%s1589 + $0x129] sm:$0xff]
        %v1809 = vld [vmem:[%s1589 + $0x139] sm:$0xff]
        %v1810 = vld [vmem:[%s1589 + $0x141] sm:$0xff]
        %v1811 = vld [vmem:[%s1589 + $0x151] sm:$0xff]
        %v1812 = vld [vmem:[%s1589 + $0x159] sm:$0xff]
        %v1813 = vld [vmem:[%s1589 + $0x169] sm:$0xff]
        %v1814 = vld [vmem:[%s1589 + $0x171] sm:$0xff]
        %1847 = vrot.lane.b32.xlu0 %v1783, 21
        %v1848 = vpop.permute.xlu0 %1847
        %1849 = vrot.lane.b32.xlu0 %v1784, 21
        %v1850 = vpop.permute.xlu0 %1849
        %1851 = vrot.lane.b32.xlu0 %v1785, 21
        %v1852 = vpop.permute.xlu0 %1851
        %1853 = vrot.lane.b32.xlu0 %v1786, 21
        %v1854 = vpop.permute.xlu0 %1853
        %1855 = vrot.lane.b32.xlu0 %v1787, 21
        %v1856 = vpop.permute.xlu0 %1855
        %1857 = vrot.lane.b32.xlu0 %v1788, 21
        %v1858 = vpop.permute.xlu0 %1857
        %1859 = vrot.lane.b32.xlu0 %v1789, 21
        %v1860 = vpop.permute.xlu0 %1859
        %1861 = vrot.lane.b32.xlu0 %v1790, 21
        %v1862 = vpop.permute.xlu0 %1861
        %1863 = vrot.lane.b32.xlu0 %v1791, 21
        %v1864 = vpop.permute.xlu0 %1863
        %1865 = vrot.lane.b32.xlu0 %v1792, 21
        %v1866 = vpop.permute.xlu0 %1865
        %1867 = vrot.lane.b32.xlu0 %v1793, 21
        %v1868 = vpop.permute.xlu0 %1867
        %1869 = vrot.lane.b32.xlu0 %v1794, 21
        %v1870 = vpop.permute.xlu0 %1869
        %1871 = vrot.lane.b32.xlu0 %v1795, 21
        %v1872 = vpop.permute.xlu0 %1871
        %1873 = vrot.lane.b32.xlu0 %v1796, 21
        %v1874 = vpop.permute.xlu0 %1873
        %1875 = vrot.lane.b32.xlu0 %v1797, 21
        %v1876 = vpop.permute.xlu0 %1875
        %1877 = vrot.lane.b32.xlu0 %v1798, 21
        %v1878 = vpop.permute.xlu0 %1877
        %1879 = vrot.lane.b32.xlu0 %v1799, 21
        %v1880 = vpop.permute.xlu0 %1879
        %1881 = vrot.lane.b32.xlu0 %v1800, 21
        %v1882 = vpop.permute.xlu0 %1881
        %1883 = vrot.lane.b32.xlu0 %v1801, 21
        %v1884 = vpop.permute.xlu0 %1883
        %1885 = vrot.lane.b32.xlu0 %v1802, 21
        %v1886 = vpop.permute.xlu0 %1885
        %1887 = vrot.lane.b32.xlu0 %v1803, 21
        %v1888 = vpop.permute.xlu0 %1887
        %1889 = vrot.lane.b32.xlu0 %v1804, 21
        %v1890 = vpop.permute.xlu0 %1889
        %1891 = vrot.lane.b32.xlu0 %v1805, 21
        %v1892 = vpop.permute.xlu0 %1891
        %1893 = vrot.lane.b32.xlu0 %v1806, 21
        %v1894 = vpop.permute.xlu0 %1893
        %1895 = vrot.lane.b32.xlu0 %v1807, 21
        %v1896 = vpop.permute.xlu0 %1895
        %1897 = vrot.lane.b32.xlu0 %v1808, 21
        %v1898 = vpop.permute.xlu0 %1897
        %1899 = vrot.lane.b32.xlu0 %v1809, 21
        %v1900 = vpop.permute.xlu0 %1899
        %1901 = vrot.lane.b32.xlu0 %v1810, 21
        %v1902 = vpop.permute.xlu0 %1901
        %1903 = vrot.lane.b32.xlu0 %v1811, 21
        %v1904 = vpop.permute.xlu0 %1903
        %1905 = vrot.lane.b32.xlu0 %v1812, 21
        %v1906 = vpop.permute.xlu0 %1905
        %1907 = vrot.lane.b32.xlu0 %v1813, 21
        %v1908 = vpop.permute.xlu0 %1907
        %1909 = vrot.lane.b32.xlu0 %v1814, 21
        %v1910 = vpop.permute.xlu0 %1909
        %vm1943 = vcmask 195752
        %1944 = vst.msk [vmem:[#allocation3] sm:$0xff] %vm1943, %v1848
        %1945 = vst.msk [vmem:[#allocation3 + $0x8] sm:$0xff] %vm1943, %v1850
        %1946 = vst.msk [vmem:[#allocation3 + $0x10] sm:$0xff] %vm1943, %v1852
        %1947 = vst.msk [vmem:[#allocation3 + $0x18] sm:$0xff] %vm1943, %v1854
        %1948 = vst.msk [vmem:[#allocation3 + $0x20] sm:$0xff] %vm1943, %v1856
        %1949 = vst.msk [vmem:[#allocation3 + $0x28] sm:$0xff] %vm1943, %v1858
        %1950 = vst.msk [vmem:[#allocation3 + $0x30] sm:$0xff] %vm1943, %v1860
        %1951 = vst.msk [vmem:[#allocation3 + $0x38] sm:$0xff] %vm1943, %v1862
        %1952 = vst.msk [vmem:[#allocation3 + $0x40] sm:$0xff] %vm1943, %v1864
        %1953 = vst.msk [vmem:[#allocation3 + $0x48] sm:$0xff] %vm1943, %v1866
        %1954 = vst.msk [vmem:[#allocation3 + $0x50] sm:$0xff] %vm1943, %v1868
        %1955 = vst.msk [vmem:[#allocation3 + $0x58] sm:$0xff] %vm1943, %v1870
        %1956 = vst.msk [vmem:[#allocation3 + $0x60] sm:$0xff] %vm1943, %v1872
        %1957 = vst.msk [vmem:[#allocation3 + $0x68] sm:$0xff] %vm1943, %v1874
        %1958 = vst.msk [vmem:[#allocation3 + $0x70] sm:$0xff] %vm1943, %v1876
        %1959 = vst.msk [vmem:[#allocation3 + $0x78] sm:$0xff] %vm1943, %v1878
        %1960 = vst.msk [vmem:[#allocation3 + $0x80] sm:$0xff] %vm1943, %v1880
        %1961 = vst.msk [vmem:[#allocation3 + $0x88] sm:$0xff] %vm1943, %v1882
        %1962 = vst.msk [vmem:[#allocation3 + $0x90] sm:$0xff] %vm1943, %v1884
        %1963 = vst.msk [vmem:[#allocation3 + $0x98] sm:$0xff] %vm1943, %v1886
        %1964 = vst.msk [vmem:[#allocation3 + $0xa0] sm:$0xff] %vm1943, %v1888
        %1965 = vst.msk [vmem:[#allocation3 + $0xa8] sm:$0xff] %vm1943, %v1890
        %1966 = vst.msk [vmem:[#allocation3 + $0xb0] sm:$0xff] %vm1943, %v1892
        %1967 = vst.msk [vmem:[#allocation3 + $0xb8] sm:$0xff] %vm1943, %v1894
        %1968 = vst.msk [vmem:[#allocation3 + $0xc0] sm:$0xff] %vm1943, %v1896
        %1969 = vst.msk [vmem:[#allocation3 + $0xc8] sm:$0xff] %vm1943, %v1898
        %1970 = vst.msk [vmem:[#allocation3 + $0xd0] sm:$0xff] %vm1943, %v1900
        %1971 = vst.msk [vmem:[#allocation3 + $0xd8] sm:$0xff] %vm1943, %v1902
        %1972 = vst.msk [vmem:[#allocation3 + $0xe0] sm:$0xff] %vm1943, %v1904
        %1973 = vst.msk [vmem:[#allocation3 + $0xe8] sm:$0xff] %vm1943, %v1906
        %1974 = vst.msk [vmem:[#allocation3 + $0xf0] sm:$0xff] %vm1943, %v1908
        %1975 = vst.msk [vmem:[#allocation3 + $0xf8] sm:$0xff] %vm1943, %v1910
        %v1976 = vld [vmem:[%s1589 + $0x2] sm:$0xff]
        %v1977 = vld [vmem:[%s1589 + $0xa] sm:$0xff]
        %v1978 = vld [vmem:[%s1589 + $0x1a] sm:$0xff]
        %v1979 = vld [vmem:[%s1589 + $0x22] sm:$0xff]
        %v1980 = vld [vmem:[%s1589 + $0x32] sm:$0xff]
        %v1981 = vld [vmem:[%s1589 + $0x3a] sm:$0xff]
        %v1982 = vld [vmem:[%s1589 + $0x4a] sm:$0xff]
        %v1983 = vld [vmem:[%s1589 + $0x52] sm:$0xff]
        %v1984 = vld [vmem:[%s1589 + $0x62] sm:$0xff]
        %v1985 = vld [vmem:[%s1589 + $0x6a] sm:$0xff]
        %v1986 = vld [vmem:[%s1589 + $0x7a] sm:$0xff]
        %v1987 = vld [vmem:[%s1589 + $0x82] sm:$0xff]
        %v1988 = vld [vmem:[%s1589 + $0x92] sm:$0xff]
        %v1989 = vld [vmem:[%s1589 + $0x9a] sm:$0xff]
        %v1990 = vld [vmem:[%s1589 + $0xaa] sm:$0xff]
        %v1991 = vld [vmem:[%s1589 + $0xb2] sm:$0xff]
        %v1992 = vld [vmem:[%s1589 + $0xc2] sm:$0xff]
        %v1993 = vld [vmem:[%s1589 + $0xca] sm:$0xff]
        %v1994 = vld [vmem:[%s1589 + $0xda] sm:$0xff]
        %v1995 = vld [vmem:[%s1589 + $0xe2] sm:$0xff]
        %v1996 = vld [vmem:[%s1589 + $0xf2] sm:$0xff]
        %v1997 = vld [vmem:[%s1589 + $0xfa] sm:$0xff]
        %v1998 = vld [vmem:[%s1589 + $0x10a] sm:$0xff]
        %v1999 = vld [vmem:[%s1589 + $0x112] sm:$0xff]
        %v2000 = vld [vmem:[%s1589 + $0x122] sm:$0xff]
        %v2001 = vld [vmem:[%s1589 + $0x12a] sm:$0xff]
        %v2002 = vld [vmem:[%s1589 + $0x13a] sm:$0xff]
        %v2003 = vld [vmem:[%s1589 + $0x142] sm:$0xff]
        %v2004 = vld [vmem:[%s1589 + $0x152] sm:$0xff]
        %v2005 = vld [vmem:[%s1589 + $0x15a] sm:$0xff]
        %v2006 = vld [vmem:[%s1589 + $0x16a] sm:$0xff]
        %v2007 = vld [vmem:[%s1589 + $0x172] sm:$0xff]
        %2040 = vrot.lane.b32.xlu0 %v1976, 24
        %v2041 = vpop.permute.xlu0 %2040
        %2042 = vrot.lane.b32.xlu0 %v1977, 24
        %v2043 = vpop.permute.xlu0 %2042
        %2044 = vrot.lane.b32.xlu0 %v1978, 24
        %v2045 = vpop.permute.xlu0 %2044
        %2046 = vrot.lane.b32.xlu0 %v1979, 24
        %v2047 = vpop.permute.xlu0 %2046
        %2048 = vrot.lane.b32.xlu0 %v1980, 24
        %v2049 = vpop.permute.xlu0 %2048
        %2050 = vrot.lane.b32.xlu0 %v1981, 24
        %v2051 = vpop.permute.xlu0 %2050
        %2052 = vrot.lane.b32.xlu0 %v1982, 24
        %v2053 = vpop.permute.xlu0 %2052
        %2054 = vrot.lane.b32.xlu0 %v1983, 24
        %v2055 = vpop.permute.xlu0 %2054
        %2056 = vrot.lane.b32.xlu0 %v1984, 24
        %v2057 = vpop.permute.xlu0 %2056
        %2058 = vrot.lane.b32.xlu0 %v1985, 24
        %v2059 = vpop.permute.xlu0 %2058
        %2060 = vrot.lane.b32.xlu0 %v1986, 24
        %v2061 = vpop.permute.xlu0 %2060
        %2062 = vrot.lane.b32.xlu0 %v1987, 24
        %v2063 = vpop.permute.xlu0 %2062
        %2064 = vrot.lane.b32.xlu0 %v1988, 24
        %v2065 = vpop.permute.xlu0 %2064
        %2066 = vrot.lane.b32.xlu0 %v1989, 24
        %v2067 = vpop.permute.xlu0 %2066
        %2068 = vrot.lane.b32.xlu0 %v1990, 24
        %v2069 = vpop.permute.xlu0 %2068
        %2070 = vrot.lane.b32.xlu0 %v1991, 24
        %v2071 = vpop.permute.xlu0 %2070
        %2072 = vrot.lane.b32.xlu0 %v1992, 24
        %v2073 = vpop.permute.xlu0 %2072
        %2074 = vrot.lane.b32.xlu0 %v1993, 24
        %v2075 = vpop.permute.xlu0 %2074
        %2076 = vrot.lane.b32.xlu0 %v1994, 24
        %v2077 = vpop.permute.xlu0 %2076
        %2078 = vrot.lane.b32.xlu0 %v1995, 24
        %v2079 = vpop.permute.xlu0 %2078
        %2080 = vrot.lane.b32.xlu0 %v1996, 24
        %v2081 = vpop.permute.xlu0 %2080
        %2082 = vrot.lane.b32.xlu0 %v1997, 24
        %v2083 = vpop.permute.xlu0 %2082
        %2084 = vrot.lane.b32.xlu0 %v1998, 24
        %v2085 = vpop.permute.xlu0 %2084
        %2086 = vrot.lane.b32.xlu0 %v1999, 24
        %v2087 = vpop.permute.xlu0 %2086
        %2088 = vrot.lane.b32.xlu0 %v2000, 24
        %v2089 = vpop.permute.xlu0 %2088
        %2090 = vrot.lane.b32.xlu0 %v2001, 24
        %v2091 = vpop.permute.xlu0 %2090
        %2092 = vrot.lane.b32.xlu0 %v2002, 24
        %v2093 = vpop.permute.xlu0 %2092
        %2094 = vrot.lane.b32.xlu0 %v2003, 24
        %v2095 = vpop.permute.xlu0 %2094
        %2096 = vrot.lane.b32.xlu0 %v2004, 24
        %v2097 = vpop.permute.xlu0 %2096
        %2098 = vrot.lane.b32.xlu0 %v2005, 24
        %v2099 = vpop.permute.xlu0 %2098
        %2100 = vrot.lane.b32.xlu0 %v2006, 24
        %v2101 = vpop.permute.xlu0 %2100
        %2102 = vrot.lane.b32.xlu0 %v2007, 24
        %v2103 = vpop.permute.xlu0 %2102
        %vm2136 = vcmask 220352
        %2137 = vst.msk [vmem:[#allocation3] sm:$0xff] %vm2136, %v2041
        %2138 = vst.msk [vmem:[#allocation3 + $0x8] sm:$0xff] %vm2136, %v2043
        %2139 = vst.msk [vmem:[#allocation3 + $0x10] sm:$0xff] %vm2136, %v2045
        %2140 = vst.msk [vmem:[#allocation3 + $0x18] sm:$0xff] %vm2136, %v2047
        %2141 = vst.msk [vmem:[#allocation3 + $0x20] sm:$0xff] %vm2136, %v2049
        %2142 = vst.msk [vmem:[#allocation3 + $0x28] sm:$0xff] %vm2136, %v2051
        %2143 = vst.msk [vmem:[#allocation3 + $0x30] sm:$0xff] %vm2136, %v2053
        %2144 = vst.msk [vmem:[#allocation3 + $0x38] sm:$0xff] %vm2136, %v2055
        %2145 = vst.msk [vmem:[#allocation3 + $0x40] sm:$0xff] %vm2136, %v2057
        %2146 = vst.msk [vmem:[#allocation3 + $0x48] sm:$0xff] %vm2136, %v2059
        %2147 = vst.msk [vmem:[#allocation3 + $0x50] sm:$0xff] %vm2136, %v2061
        %2148 = vst.msk [vmem:[#allocation3 + $0x58] sm:$0xff] %vm2136, %v2063
        %2149 = vst.msk [vmem:[#allocation3 + $0x60] sm:$0xff] %vm2136, %v2065
        %2150 = vst.msk [vmem:[#allocation3 + $0x68] sm:$0xff] %vm2136, %v2067
        %2151 = vst.msk [vmem:[#allocation3 + $0x70] sm:$0xff] %vm2136, %v2069
        %2152 = vst.msk [vmem:[#allocation3 + $0x78] sm:$0xff] %vm2136, %v2071
        %2153 = vst.msk [vmem:[#allocation3 + $0x80] sm:$0xff] %vm2136, %v2073
        %2154 = vst.msk [vmem:[#allocation3 + $0x88] sm:$0xff] %vm2136, %v2075
        %2155 = vst.msk [vmem:[#allocation3 + $0x90] sm:$0xff] %vm2136, %v2077
        %2156 = vst.msk [vmem:[#allocation3 + $0x98] sm:$0xff] %vm2136, %v2079
        %2157 = vst.msk [vmem:[#allocation3 + $0xa0] sm:$0xff] %vm2136, %v2081
        %2158 = vst.msk [vmem:[#allocation3 + $0xa8] sm:$0xff] %vm2136, %v2083
        %2159 = vst.msk [vmem:[#allocation3 + $0xb0] sm:$0xff] %vm2136, %v2085
        %2160 = vst.msk [vmem:[#allocation3 + $0xb8] sm:$0xff] %vm2136, %v2087
        %2161 = vst.msk [vmem:[#allocation3 + $0xc0] sm:$0xff] %vm2136, %v2089
        %2162 = vst.msk [vmem:[#allocation3 + $0xc8] sm:$0xff] %vm2136, %v2091
        %2163 = vst.msk [vmem:[#allocation3 + $0xd0] sm:$0xff] %vm2136, %v2093
        %2164 = vst.msk [vmem:[#allocation3 + $0xd8] sm:$0xff] %vm2136, %v2095
        %2165 = vst.msk [vmem:[#allocation3 + $0xe0] sm:$0xff] %vm2136, %v2097
        %2166 = vst.msk [vmem:[#allocation3 + $0xe8] sm:$0xff] %vm2136, %v2099
        %2167 = vst.msk [vmem:[#allocation3 + $0xf0] sm:$0xff] %vm2136, %v2101
        %2168 = vst.msk [vmem:[#allocation3 + $0xf8] sm:$0xff] %vm2136, %v2103
        %v2169 = vld [vmem:[#allocation3] sm:$0xff]
        %v2170 = vld [vmem:[#allocation3 + $0x8] sm:$0xff]
        %v2171 = vld [vmem:[#allocation3 + $0x10] sm:$0xff]
        %v2172 = vld [vmem:[#allocation3 + $0x18] sm:$0xff]
        %v2173 = vld [vmem:[#allocation3 + $0x20] sm:$0xff]
        %v2174 = vld [vmem:[#allocation3 + $0x28] sm:$0xff]
        %v2175 = vld [vmem:[#allocation3 + $0x30] sm:$0xff]
        %v2176 = vld [vmem:[#allocation3 + $0x38] sm:$0xff]
        %v2177 = vld [vmem:[#allocation3 + $0x40] sm:$0xff]
        %v2178 = vld [vmem:[#allocation3 + $0x48] sm:$0xff]
        %v2179 = vld [vmem:[#allocation3 + $0x50] sm:$0xff]
        %v2180 = vld [vmem:[#allocation3 + $0x58] sm:$0xff]
        %v2181 = vld [vmem:[#allocation3 + $0x60] sm:$0xff]
        %v2182 = vld [vmem:[#allocation3 + $0x68] sm:$0xff]
        %v2183 = vld [vmem:[#allocation3 + $0x70] sm:$0xff]
        %v2184 = vld [vmem:[#allocation3 + $0x78] sm:$0xff]
        %v2185 = vld [vmem:[#allocation3 + $0x80] sm:$0xff]
        %v2186 = vld [vmem:[#allocation3 + $0x88] sm:$0xff]
        %v2187 = vld [vmem:[#allocation3 + $0x90] sm:$0xff]
        %v2188 = vld [vmem:[#allocation3 + $0x98] sm:$0xff]
        %v2189 = vld [vmem:[#allocation3 + $0xa0] sm:$0xff]
        %v2190 = vld [vmem:[#allocation3 + $0xa8] sm:$0xff]
        %v2191 = vld [vmem:[#allocation3 + $0xb0] sm:$0xff]
        %v2192 = vld [vmem:[#allocation3 + $0xb8] sm:$0xff]
        %v2193 = vld [vmem:[#allocation3 + $0xc0] sm:$0xff]
        %v2194 = vld [vmem:[#allocation3 + $0xc8] sm:$0xff]
        %v2195 = vld [vmem:[#allocation3 + $0xd0] sm:$0xff]
        %v2196 = vld [vmem:[#allocation3 + $0xd8] sm:$0xff]
        %v2197 = vld [vmem:[#allocation3 + $0xe0] sm:$0xff]
        %v2198 = vld [vmem:[#allocation3 + $0xe8] sm:$0xff]
        %v2199 = vld [vmem:[#allocation3 + $0xf0] sm:$0xff]
        %v2200 = vld [vmem:[#allocation3 + $0xf8] sm:$0xff]
        %v2201 = vpack.c.bf16 %v2170, %v2169
        %v2202 = vpack.c.bf16 %v2172, %v2171
        %v2203 = vpack.c.bf16 %v2174, %v2173
        %v2204 = vpack.c.bf16 %v2176, %v2175
        %v2205 = vpack.c.bf16 %v2178, %v2177
        %v2206 = vpack.c.bf16 %v2180, %v2179
        %v2207 = vpack.c.bf16 %v2182, %v2181
        %v2208 = vpack.c.bf16 %v2184, %v2183
        %v2209 = vpack.c.bf16 %v2186, %v2185
        %v2210 = vpack.c.bf16 %v2188, %v2187
        %v2211 = vpack.c.bf16 %v2190, %v2189
        %v2212 = vpack.c.bf16 %v2192, %v2191
        %v2213 = vpack.c.bf16 %v2194, %v2193
        %v2214 = vpack.c.bf16 %v2196, %v2195
        %v2215 = vpack.c.bf16 %v2198, %v2197
        %v2216 = vpack.c.bf16 %v2200, %v2199
        %v2217 = vld [vmem:[%s1] sm:$0xf]
        %v2218 = vld [vmem:[%s1 + $0x4] sm:$0xf]
        %v2219 = vld [vmem:[%s1 + $0x8] sm:$0xf]
        %v2220 = vld [vmem:[%s1 + $0xc] sm:$0x3]
        %v2221 = vld [vmem:[%s2] sm:$0x1]
        %v2223 = vlaneseq
        %v2224 = vshrl.u32 %v2223, 7
        %v2225 = vsub.s32 0, %v2224
        %v2226 = vrot.slane %v2221, %v2225
        %v2232 = vunpack.c.l.b16 %v2217
        %v2233 = vunpack.c.l.b16 %v2218
        %v2234 = vunpack.c.l.b16 %v2219
        %v2235 = vunpack.c.l.b16 %v2220
        %v2236 = vpack.c.b16 %v2233, %v2232
        %v2237 = vpack.c.b16 %v2235, %v2234
        %vm2239 = vcmask 220160
        %v2241 = vsel %vm2239, %v2201, 0
        %v2244 = vsel %vm2239, %v2202, 0
        %v2247 = vsel %vm2239, %v2203, 0
        %v2250 = vsel %vm2239, %v2204, 0
        %v2253 = vsel %vm2239, %v2205, 0
        %v2256 = vsel %vm2239, %v2206, 0
        %v2259 = vsel %vm2239, %v2207, 0
        %v2262 = vsel %vm2239, %v2208, 0
        %v2265 = vsel %vm2239, %v2209, 0
        %v2268 = vsel %vm2239, %v2210, 0
        %v2271 = vsel %vm2239, %v2211, 0
        %v2274 = vsel %vm2239, %v2212, 0
        %v2277 = vsel %vm2239, %v2213, 0
        %v2280 = vsel %vm2239, %v2214, 0
        %v2283 = vsel %vm2239, %v2215, 0
        %v2286 = vsel %vm2239, %v2216, 0
        %vm2288 = vcmask 1044480
        %vm2289 = vcmask 1045504
        %v2290 = vsel %vm2288, 4294967295, 65535
        %v2291 = vsel %vm2289, %v2290, 0
        %v2293 = vand.u32 %v2237, %v2291
        %2295 = vmatprep.subr.bf16.mxu0 0
        %2296 = vmatpush1.bf16.msra.mxu0 %v2236
        %2297 = vmatprep.subr.bf16.mxu0 0
        %2298 = vmatpush1.bf16.msra.mxu0 %v2293
        %2299 = vmatprep.subr.bf16.mxu0 0
        %2300 = vmatpush1.bf16.msra.mxu0 0
        %2301 = vmatprep.subr.bf16.mxu0 0
        %2302 = vmatpush1.bf16.msra.mxu0 0
        %2303 = vmatprep.subr.bf16.mxu0 0
        %2304 = vmatpush1.bf16.msra.mxu0 0
        %2305 = vmatprep.subr.bf16.mxu0 0
        %2306 = vmatpush1.bf16.msra.mxu0 0
        %2307 = vmatprep.subr.bf16.mxu0 0
        %2308 = vmatpush1.bf16.msra.mxu0 0
        %2309 = vmatprep.subr.bf16.mxu0 0
        %2310 = vmatpush1.bf16.msra.mxu0 0
        %2311 = vmatprep.subr.bf16.mxu0 0
        %2312 = vmatpush1.bf16.msra.mxu0 0
        %2313 = vmatprep.subr.bf16.mxu0 0
        %2314 = vmatpush1.bf16.msra.mxu0 0
        %2315 = vmatprep.subr.bf16.mxu0 0
        %2316 = vmatpush1.bf16.msra.mxu0 0
        %2317 = vmatprep.subr.bf16.mxu0 0
        %2318 = vmatpush1.bf16.msra.mxu0 0
        %2319 = vmatprep.subr.bf16.mxu0 0
        %2320 = vmatpush1.bf16.msra.mxu0 0
        %2321 = vmatprep.subr.bf16.mxu0 0
        %2322 = vmatpush1.bf16.msra.mxu0 0
        %2323 = vmatprep.subr.bf16.mxu0 0
        %2324 = vmatpush1.bf16.msra.mxu0 0
        %2325 = vmatprep.subr.bf16.mxu0 0
        %2326 = vmatpush1.bf16.msra.mxu0 0
        %2327 = vmatprep.mubr.bf16.mxu0 0
        %2328 = vmatmul.mubr.bf16.gmra.mrb[0].mxu0 %v2241
        %v2329 = vpop.f32.mrb[0].mxu0
        %v2330 = vadd.f32 %v2226, %v2329
        %v2331 = vpop.f32.mrb[0].mxu0
        %v2332 = vpop.f32.mrb[0].mxu0
        %v2333 = vadd.f32 %v2226, %v2332
        %v2334 = vpop.f32.mrb[0].mxu0
        %2335 = vmatprep.mubr.bf16.mxu0 0
        %2336 = vmatmul.mubr.bf16.gmra.mrb[0].mxu0 %v2244
        %v2337 = vpop.f32.mrb[0].mxu0
        %v2338 = vadd.f32 %v2226, %v2337
        %v2339 = vpop.f32.mrb[0].mxu0
        %v2340 = vpop.f32.mrb[0].mxu0
        %v2341 = vadd.f32 %v2226, %v2340
        %v2342 = vpop.f32.mrb[0].mxu0
        %2343 = vmatprep.mubr.bf16.mxu0 0
        %2344 = vmatmul.mubr.bf16.gmra.mrb[0].mxu0 %v2247
        %v2345 = vpop.f32.mrb[0].mxu0
        %v2346 = vadd.f32 %v2226, %v2345
        %v2347 = vpop.f32.mrb[0].mxu0
        %v2348 = vpop.f32.mrb[0].mxu0
        %v2349 = vadd.f32 %v2226, %v2348
        %v2350 = vpop.f32.mrb[0].mxu0
        %2351 = vmatprep.mubr.bf16.mxu0 0
        %2352 = vmatmul.mubr.bf16.gmra.mrb[0].mxu0 %v2250
        %v2353 = vpop.f32.mrb[0].mxu0
        %v2354 = vadd.f32 %v2226, %v2353
        %v2355 = vpop.f32.mrb[0].mxu0
        %v2356 = vpop.f32.mrb[0].mxu0
        %v2357 = vadd.f32 %v2226, %v2356
        %v2358 = vpop.f32.mrb[0].mxu0
        %2359 = vmatprep.mubr.bf16.mxu0 0
        %2360 = vmatmul.mubr.bf16.gmra.mrb[0].mxu0 %v2253
        %v2361 = vpop.f32.mrb[0].mxu0
        %v2362 = vadd.f32 %v2226, %v2361
        %v2363 = vpop.f32.mrb[0].mxu0
        %v2364 = vpop.f32.mrb[0].mxu0
        %v2365 = vadd.f32 %v2226, %v2364
        %v2366 = vpop.f32.mrb[0].mxu0
        %2367 = vmatprep.mubr.bf16.mxu0 0
        %2368 = vmatmul.mubr.bf16.gmra.mrb[0].mxu0 %v2256
        %v2369 = vpop.f32.mrb[0].mxu0
        %v2370 = vadd.f32 %v2226, %v2369
        %v2371 = vpop.f32.mrb[0].mxu0
        %v2372 = vpop.f32.mrb[0].mxu0
        %v2373 = vadd.f32 %v2226, %v2372
        %v2374 = vpop.f32.mrb[0].mxu0
        %2375 = vmatprep.mubr.bf16.mxu0 0
        %2376 = vmatmul.mubr.bf16.gmra.mrb[0].mxu0 %v2259
        %v2377 = vpop.f32.mrb[0].mxu0
        %v2378 = vadd.f32 %v2226, %v2377
        %v2379 = vpop.f32.mrb[0].mxu0
        %v2380 = vpop.f32.mrb[0].mxu0
        %v2381 = vadd.f32 %v2226, %v2380
        %v2382 = vpop.f32.mrb[0].mxu0
        %2383 = vmatprep.mubr.bf16.mxu0 0
        %2384 = vmatmul.mubr.bf16.gmra.mrb[0].mxu0 %v2262
        %v2385 = vpop.f32.mrb[0].mxu0
        %v2386 = vadd.f32 %v2226, %v2385
        %v2387 = vpop.f32.mrb[0].mxu0
        %v2388 = vpop.f32.mrb[0].mxu0
        %v2389 = vadd.f32 %v2226, %v2388
        %v2390 = vpop.f32.mrb[0].mxu0
        %2391 = vmatprep.mubr.bf16.mxu0 0
        %2392 = vmatmul.mubr.bf16.gmra.mrb[0].mxu0 %v2265
        %v2393 = vpop.f32.mrb[0].mxu0
        %v2394 = vadd.f32 %v2226, %v2393
        %v2395 = vpop.f32.mrb[0].mxu0
        %v2396 = vpop.f32.mrb[0].mxu0
        %v2397 = vadd.f32 %v2226, %v2396
        %v2398 = vpop.f32.mrb[0].mxu0
        %2399 = vmatprep.mubr.bf16.mxu0 0
        %2400 = vmatmul.mubr.bf16.gmra.mrb[0].mxu0 %v2268
        %v2401 = vpop.f32.mrb[0].mxu0
        %v2402 = vadd.f32 %v2226, %v2401
        %v2403 = vpop.f32.mrb[0].mxu0
        %v2404 = vpop.f32.mrb[0].mxu0
        %v2405 = vadd.f32 %v2226, %v2404
        %v2406 = vpop.f32.mrb[0].mxu0
        %2407 = vmatprep.mubr.bf16.mxu0 0
        %2408 = vmatmul.mubr.bf16.gmra.mrb[0].mxu0 %v2271
        %v2409 = vpop.f32.mrb[0].mxu0
        %v2410 = vadd.f32 %v2226, %v2409
        %v2411 = vpop.f32.mrb[0].mxu0
        %v2412 = vpop.f32.mrb[0].mxu0
        %v2413 = vadd.f32 %v2226, %v2412
        %v2414 = vpop.f32.mrb[0].mxu0
        %2415 = vmatprep.mubr.bf16.mxu0 0
        %2416 = vmatmul.mubr.bf16.gmra.mrb[0].mxu0 %v2274
        %v2417 = vpop.f32.mrb[0].mxu0
        %v2418 = vadd.f32 %v2226, %v2417
        %v2419 = vpop.f32.mrb[0].mxu0
        %v2420 = vpop.f32.mrb[0].mxu0
        %v2421 = vadd.f32 %v2226, %v2420
        %v2422 = vpop.f32.mrb[0].mxu0
        %2423 = vmatprep.mubr.bf16.mxu0 0
        %2424 = vmatmul.mubr.bf16.gmra.mrb[0].mxu0 %v2277
        %v2425 = vpop.f32.mrb[0].mxu0
        %v2426 = vadd.f32 %v2226, %v2425
        %v2427 = vpop.f32.mrb[0].mxu0
        %v2428 = vpop.f32.mrb[0].mxu0
        %v2429 = vadd.f32 %v2226, %v2428
        %v2430 = vpop.f32.mrb[0].mxu0
        %2431 = vmatprep.mubr.bf16.mxu0 0
        %2432 = vmatmul.mubr.bf16.gmra.mrb[0].mxu0 %v2280
        %v2433 = vpop.f32.mrb[0].mxu0
        %v2434 = vadd.f32 %v2226, %v2433
        %v2435 = vpop.f32.mrb[0].mxu0
        %v2436 = vpop.f32.mrb[0].mxu0
        %v2437 = vadd.f32 %v2226, %v2436
        %v2438 = vpop.f32.mrb[0].mxu0
        %2439 = vmatprep.mubr.bf16.mxu0 0
        %2440 = vmatmul.mubr.bf16.gmra.mrb[0].mxu0 %v2283
        %v2441 = vpop.f32.mrb[0].mxu0
        %v2442 = vadd.f32 %v2226, %v2441
        %v2443 = vpop.f32.mrb[0].mxu0
        %v2444 = vpop.f32.mrb[0].mxu0
        %v2445 = vadd.f32 %v2226, %v2444
        %v2446 = vpop.f32.mrb[0].mxu0
        %2447 = vmatprep.mubr.bf16.mxu0 0
        %2448 = vmatmul.mubr.bf16.gmra.mrb[0].mxu0 %v2286
        %v2449 = vpop.f32.mrb[0].mxu0
        %v2450 = vadd.f32 %v2226, %v2449
        %v2451 = vpop.f32.mrb[0].mxu0
        %v2452 = vpop.f32.mrb[0].mxu0
        %v2453 = vadd.f32 %v2226, %v2452
        %v2454 = vpop.f32.mrb[0].mxu0
        %2455 = vdwg.mxu0
        %v2456 = vmax.f32 %v2330, 0.0
        %v2457 = vmax.f32 %v2333, 0.0
        %v2458 = vmax.f32 %v2338, 0.0
        %v2459 = vmax.f32 %v2341, 0.0
        %v2460 = vmax.f32 %v2346, 0.0
        %v2461 = vmax.f32 %v2349, 0.0
        %v2462 = vmax.f32 %v2354, 0.0
        %v2463 = vmax.f32 %v2357, 0.0
        %v2464 = vmax.f32 %v2362, 0.0
        %v2465 = vmax.f32 %v2365, 0.0
        %v2466 = vmax.f32 %v2370, 0.0
        %v2467 = vmax.f32 %v2373, 0.0
        %v2468 = vmax.f32 %v2378, 0.0
        %v2469 = vmax.f32 %v2381, 0.0
        %v2470 = vmax.f32 %v2386, 0.0
        %v2471 = vmax.f32 %v2389, 0.0
        %v2472 = vmax.f32 %v2394, 0.0
        %v2473 = vmax.f32 %v2397, 0.0
        %v2474 = vmax.f32 %v2402, 0.0
        %v2475 = vmax.f32 %v2405, 0.0
        %v2476 = vmax.f32 %v2410, 0.0
        %v2477 = vmax.f32 %v2413, 0.0
        %v2478 = vmax.f32 %v2418, 0.0
        %v2479 = vmax.f32 %v2421, 0.0
        %v2480 = vmax.f32 %v2426, 0.0
        %v2481 = vmax.f32 %v2429, 0.0
        %v2482 = vmax.f32 %v2434, 0.0
        %v2483 = vmax.f32 %v2437, 0.0
        %v2484 = vmax.f32 %v2442, 0.0
        %v2485 = vmax.f32 %v2445, 0.0
        %v2486 = vmax.f32 %v2450, 0.0
        %v2487 = vmax.f32 %v2453, 0.0
        %v2520 = vcombine.high %v2456, %v2456
        %v2522 = vunpack.c.l.s4 1983009808
        %v2523 = vunpack.c.0.s8 %v2522
        %v2524 = vlaneseq
        %v2525 = vshrl.u32 %v2524, 7
        %v2526 = vsub.s32 %v2523, %v2525
        %v2527 = vrot.slane %v2456, %v2526
        %v2529 = vunpack.c.l.s4 1983009808
        %v2530 = vunpack.c.0.s8 %v2529
        %v2531 = vlaneseq
        %v2532 = vshrl.u32 %v2531, 7
        %v2533 = vsub.s32 %v2530, %v2532
        %v2534 = vrot.slane %v2520, %v2533
        %v2535 = vcombine.high %v2527, %v2527
        %v2536 = vcombine.high %v2534, %v2534
        %v2537 = vcombine.high %v2457, %v2457
        %v2539 = vunpack.c.l.s4 1983009808
        %v2540 = vunpack.c.0.s8 %v2539
        %v2541 = vlaneseq
        %v2542 = vshrl.u32 %v2541, 7
        %v2543 = vsub.s32 %v2540, %v2542
        %v2544 = vrot.slane %v2457, %v2543
        %v2546 = vunpack.c.l.s4 1983009808
        %v2547 = vunpack.c.0.s8 %v2546
        %v2548 = vlaneseq
        %v2549 = vshrl.u32 %v2548, 7
        %v2550 = vsub.s32 %v2547, %v2549
        %v2551 = vrot.slane %v2537, %v2550
        %v2552 = vcombine.high %v2544, %v2544
        %v2553 = vcombine.high %v2551, %v2551
        %v2554 = vcombine.high %v2458, %v2458
        %v2556 = vunpack.c.l.s4 1983009808
        %v2557 = vunpack.c.0.s8 %v2556
        %v2558 = vlaneseq
        %v2559 = vshrl.u32 %v2558, 7
        %v2560 = vsub.s32 %v2557, %v2559
        %v2561 = vrot.slane %v2458, %v2560
        %v2563 = vunpack.c.l.s4 1983009808
        %v2564 = vunpack.c.0.s8 %v2563
        %v2565 = vlaneseq
        %v2566 = vshrl.u32 %v2565, 7
        %v2567 = vsub.s32 %v2564, %v2566
        %v2568 = vrot.slane %v2554, %v2567
        %v2569 = vcombine.high %v2561, %v2561
        %v2570 = vcombine.high %v2568, %v2568
        %v2571 = vcombine.high %v2459, %v2459
        %v2573 = vunpack.c.l.s4 1983009808
        %v2574 = vunpack.c.0.s8 %v2573
        %v2575 = vlaneseq
        %v2576 = vshrl.u32 %v2575, 7
        %v2577 = vsub.s32 %v2574, %v2576
        %v2578 = vrot.slane %v2459, %v2577
        %v2580 = vunpack.c.l.s4 1983009808
        %v2581 = vunpack.c.0.s8 %v2580
        %v2582 = vlaneseq
        %v2583 = vshrl.u32 %v2582, 7
        %v2584 = vsub.s32 %v2581, %v2583
        %v2585 = vrot.slane %v2571, %v2584
        %v2586 = vcombine.high %v2578, %v2578
        %v2587 = vcombine.high %v2585, %v2585
        %v2588 = vcombine.high %v2460, %v2460
        %v2590 = vunpack.c.l.s4 1983009808
        %v2591 = vunpack.c.0.s8 %v2590
        %v2592 = vlaneseq
        %v2593 = vshrl.u32 %v2592, 7
        %v2594 = vsub.s32 %v2591, %v2593
        %v2595 = vrot.slane %v2460, %v2594
        %v2597 = vunpack.c.l.s4 1983009808
        %v2598 = vunpack.c.0.s8 %v2597
        %v2599 = vlaneseq
        %v2600 = vshrl.u32 %v2599, 7
        %v2601 = vsub.s32 %v2598, %v2600
        %v2602 = vrot.slane %v2588, %v2601
        %v2603 = vcombine.high %v2595, %v2595
        %v2604 = vcombine.high %v2602, %v2602
        %v2605 = vcombine.high %v2461, %v2461
        %v2607 = vunpack.c.l.s4 1983009808
        %v2608 = vunpack.c.0.s8 %v2607
        %v2609 = vlaneseq
        %v2610 = vshrl.u32 %v2609, 7
        %v2611 = vsub.s32 %v2608, %v2610
        %v2612 = vrot.slane %v2461, %v2611
        %v2614 = vunpack.c.l.s4 1983009808
        %v2615 = vunpack.c.0.s8 %v2614
        %v2616 = vlaneseq
        %v2617 = vshrl.u32 %v2616, 7
        %v2618 = vsub.s32 %v2615, %v2617
        %v2619 = vrot.slane %v2605, %v2618
        %v2620 = vcombine.high %v2612, %v2612
        %v2621 = vcombine.high %v2619, %v2619
        %v2622 = vcombine.high %v2462, %v2462
        %v2624 = vunpack.c.l.s4 1983009808
        %v2625 = vunpack.c.0.s8 %v2624
        %v2626 = vlaneseq
        %v2627 = vshrl.u32 %v2626, 7
        %v2628 = vsub.s32 %v2625, %v2627
        %v2629 = vrot.slane %v2462, %v2628
        %v2631 = vunpack.c.l.s4 1983009808
        %v2632 = vunpack.c.0.s8 %v2631
        %v2633 = vlaneseq
        %v2634 = vshrl.u32 %v2633, 7
        %v2635 = vsub.s32 %v2632, %v2634
        %v2636 = vrot.slane %v2622, %v2635
        %v2637 = vcombine.high %v2629, %v2629
        %v2638 = vcombine.high %v2636, %v2636
        %v2639 = vcombine.high %v2463, %v2463
        %v2641 = vunpack.c.l.s4 1983009808
        %v2642 = vunpack.c.0.s8 %v2641
        %v2643 = vlaneseq
        %v2644 = vshrl.u32 %v2643, 7
        %v2645 = vsub.s32 %v2642, %v2644
        %v2646 = vrot.slane %v2463, %v2645
        %v2648 = vunpack.c.l.s4 1983009808
        %v2649 = vunpack.c.0.s8 %v2648
        %v2650 = vlaneseq
        %v2651 = vshrl.u32 %v2650, 7
        %v2652 = vsub.s32 %v2649, %v2651
        %v2653 = vrot.slane %v2639, %v2652
        %v2654 = vcombine.high %v2646, %v2646
        %v2655 = vcombine.high %v2653, %v2653
        %v2656 = vcombine.high %v2464, %v2464
        %v2658 = vunpack.c.l.s4 1983009808
        %v2659 = vunpack.c.0.s8 %v2658
        %v2660 = vlaneseq
        %v2661 = vshrl.u32 %v2660, 7
        %v2662 = vsub.s32 %v2659, %v2661
        %v2663 = vrot.slane %v2464, %v2662
        %v2665 = vunpack.c.l.s4 1983009808
        %v2666 = vunpack.c.0.s8 %v2665
        %v2667 = vlaneseq
        %v2668 = vshrl.u32 %v2667, 7
        %v2669 = vsub.s32 %v2666, %v2668
        %v2670 = vrot.slane %v2656, %v2669
        %v2671 = vcombine.high %v2663, %v2663
        %v2672 = vcombine.high %v2670, %v2670
        %v2673 = vcombine.high %v2465, %v2465
        %v2675 = vunpack.c.l.s4 1983009808
        %v2676 = vunpack.c.0.s8 %v2675
        %v2677 = vlaneseq
        %v2678 = vshrl.u32 %v2677, 7
        %v2679 = vsub.s32 %v2676, %v2678
        %v2680 = vrot.slane %v2465, %v2679
        %v2682 = vunpack.c.l.s4 1983009808
        %v2683 = vunpack.c.0.s8 %v2682
        %v2684 = vlaneseq
        %v2685 = vshrl.u32 %v2684, 7
        %v2686 = vsub.s32 %v2683, %v2685
        %v2687 = vrot.slane %v2673, %v2686
        %v2688 = vcombine.high %v2680, %v2680
        %v2689 = vcombine.high %v2687, %v2687
        %v2690 = vcombine.high %v2466, %v2466
        %v2692 = vunpack.c.l.s4 1983009808
        %v2693 = vunpack.c.0.s8 %v2692
        %v2694 = vlaneseq
        %v2695 = vshrl.u32 %v2694, 7
        %v2696 = vsub.s32 %v2693, %v2695
        %v2697 = vrot.slane %v2466, %v2696
        %v2699 = vunpack.c.l.s4 1983009808
        %v2700 = vunpack.c.0.s8 %v2699
        %v2701 = vlaneseq
        %v2702 = vshrl.u32 %v2701, 7
        %v2703 = vsub.s32 %v2700, %v2702
        %v2704 = vrot.slane %v2690, %v2703
        %v2705 = vcombine.high %v2697, %v2697
        %v2706 = vcombine.high %v2704, %v2704
        %v2707 = vcombine.high %v2467, %v2467
        %v2709 = vunpack.c.l.s4 1983009808
        %v2710 = vunpack.c.0.s8 %v2709
        %v2711 = vlaneseq
        %v2712 = vshrl.u32 %v2711, 7
        %v2713 = vsub.s32 %v2710, %v2712
        %v2714 = vrot.slane %v2467, %v2713
        %v2716 = vunpack.c.l.s4 1983009808
        %v2717 = vunpack.c.0.s8 %v2716
        %v2718 = vlaneseq
        %v2719 = vshrl.u32 %v2718, 7
        %v2720 = vsub.s32 %v2717, %v2719
        %v2721 = vrot.slane %v2707, %v2720
        %v2722 = vcombine.high %v2714, %v2714
        %v2723 = vcombine.high %v2721, %v2721
        %v2724 = vcombine.high %v2468, %v2468
        %v2726 = vunpack.c.l.s4 1983009808
        %v2727 = vunpack.c.0.s8 %v2726
        %v2728 = vlaneseq
        %v2729 = vshrl.u32 %v2728, 7
        %v2730 = vsub.s32 %v2727, %v2729
        %v2731 = vrot.slane %v2468, %v2730
        %v2733 = vunpack.c.l.s4 1983009808
        %v2734 = vunpack.c.0.s8 %v2733
        %v2735 = vlaneseq
        %v2736 = vshrl.u32 %v2735, 7
        %v2737 = vsub.s32 %v2734, %v2736
        %v2738 = vrot.slane %v2724, %v2737
        %v2739 = vcombine.high %v2731, %v2731
        %v2740 = vcombine.high %v2738, %v2738
        %v2741 = vcombine.high %v2469, %v2469
        %v2743 = vunpack.c.l.s4 1983009808
        %v2744 = vunpack.c.0.s8 %v2743
        %v2745 = vlaneseq
        %v2746 = vshrl.u32 %v2745, 7
        %v2747 = vsub.s32 %v2744, %v2746
        %v2748 = vrot.slane %v2469, %v2747
        %v2750 = vunpack.c.l.s4 1983009808
        %v2751 = vunpack.c.0.s8 %v2750
        %v2752 = vlaneseq
        %v2753 = vshrl.u32 %v2752, 7
        %v2754 = vsub.s32 %v2751, %v2753
        %v2755 = vrot.slane %v2741, %v2754
        %v2756 = vcombine.high %v2748, %v2748
        %v2757 = vcombine.high %v2755, %v2755
        %v2758 = vcombine.high %v2470, %v2470
        %v2760 = vunpack.c.l.s4 1983009808
        %v2761 = vunpack.c.0.s8 %v2760
        %v2762 = vlaneseq
        %v2763 = vshrl.u32 %v2762, 7
        %v2764 = vsub.s32 %v2761, %v2763
        %v2765 = vrot.slane %v2470, %v2764
        %v2767 = vunpack.c.l.s4 1983009808
        %v2768 = vunpack.c.0.s8 %v2767
        %v2769 = vlaneseq
        %v2770 = vshrl.u32 %v2769, 7
        %v2771 = vsub.s32 %v2768, %v2770
        %v2772 = vrot.slane %v2758, %v2771
        %v2773 = vcombine.high %v2765, %v2765
        %v2774 = vcombine.high %v2772, %v2772
        %v2775 = vcombine.high %v2471, %v2471
        %v2777 = vunpack.c.l.s4 1983009808
        %v2778 = vunpack.c.0.s8 %v2777
        %v2779 = vlaneseq
        %v2780 = vshrl.u32 %v2779, 7
        %v2781 = vsub.s32 %v2778, %v2780
        %v2782 = vrot.slane %v2471, %v2781
        %v2784 = vunpack.c.l.s4 1983009808
        %v2785 = vunpack.c.0.s8 %v2784
        %v2786 = vlaneseq
        %v2787 = vshrl.u32 %v2786, 7
        %v2788 = vsub.s32 %v2785, %v2787
        %v2789 = vrot.slane %v2775, %v2788
        %v2790 = vcombine.high %v2782, %v2782
        %v2791 = vcombine.high %v2789, %v2789
        %v2792 = vcombine.high %v2472, %v2472
        %v2794 = vunpack.c.l.s4 1983009808
        %v2795 = vunpack.c.0.s8 %v2794
        %v2796 = vlaneseq
        %v2797 = vshrl.u32 %v2796, 7
        %v2798 = vsub.s32 %v2795, %v2797
        %v2799 = vrot.slane %v2472, %v2798
        %v2801 = vunpack.c.l.s4 1983009808
        %v2802 = vunpack.c.0.s8 %v2801
        %v2803 = vlaneseq
        %v2804 = vshrl.u32 %v2803, 7
        %v2805 = vsub.s32 %v2802, %v2804
        %v2806 = vrot.slane %v2792, %v2805
        %v2807 = vcombine.high %v2799, %v2799
        %v2808 = vcombine.high %v2806, %v2806
        %v2809 = vcombine.high %v2473, %v2473
        %v2811 = vunpack.c.l.s4 1983009808
        %v2812 = vunpack.c.0.s8 %v2811
        %v2813 = vlaneseq
        %v2814 = vshrl.u32 %v2813, 7
        %v2815 = vsub.s32 %v2812, %v2814
        %v2816 = vrot.slane %v2473, %v2815
        %v2818 = vunpack.c.l.s4 1983009808
        %v2819 = vunpack.c.0.s8 %v2818
        %v2820 = vlaneseq
        %v2821 = vshrl.u32 %v2820, 7
        %v2822 = vsub.s32 %v2819, %v2821
        %v2823 = vrot.slane %v2809, %v2822
        %v2824 = vcombine.high %v2816, %v2816
        %v2825 = vcombine.high %v2823, %v2823
        %v2826 = vcombine.high %v2474, %v2474
        %v2828 = vunpack.c.l.s4 1983009808
        %v2829 = vunpack.c.0.s8 %v2828
        %v2830 = vlaneseq
        %v2831 = vshrl.u32 %v2830, 7
        %v2832 = vsub.s32 %v2829, %v2831
        %v2833 = vrot.slane %v2474, %v2832
        %v2835 = vunpack.c.l.s4 1983009808
        %v2836 = vunpack.c.0.s8 %v2835
        %v2837 = vlaneseq
        %v2838 = vshrl.u32 %v2837, 7
        %v2839 = vsub.s32 %v2836, %v2838
        %v2840 = vrot.slane %v2826, %v2839
        %v2841 = vcombine.high %v2833, %v2833
        %v2842 = vcombine.high %v2840, %v2840
        %v2843 = vcombine.high %v2475, %v2475
        %v2845 = vunpack.c.l.s4 1983009808
        %v2846 = vunpack.c.0.s8 %v2845
        %v2847 = vlaneseq
        %v2848 = vshrl.u32 %v2847, 7
        %v2849 = vsub.s32 %v2846, %v2848
        %v2850 = vrot.slane %v2475, %v2849
        %v2852 = vunpack.c.l.s4 1983009808
        %v2853 = vunpack.c.0.s8 %v2852
        %v2854 = vlaneseq
        %v2855 = vshrl.u32 %v2854, 7
        %v2856 = vsub.s32 %v2853, %v2855
        %v2857 = vrot.slane %v2843, %v2856
        %v2858 = vcombine.high %v2850, %v2850
        %v2859 = vcombine.high %v2857, %v2857
        %v2860 = vcombine.high %v2476, %v2476
        %v2862 = vunpack.c.l.s4 1983009808
        %v2863 = vunpack.c.0.s8 %v2862
        %v2864 = vlaneseq
        %v2865 = vshrl.u32 %v2864, 7
        %v2866 = vsub.s32 %v2863, %v2865
        %v2867 = vrot.slane %v2476, %v2866
        %v2869 = vunpack.c.l.s4 1983009808
        %v2870 = vunpack.c.0.s8 %v2869
        %v2871 = vlaneseq
        %v2872 = vshrl.u32 %v2871, 7
        %v2873 = vsub.s32 %v2870, %v2872
        %v2874 = vrot.slane %v2860, %v2873
        %v2875 = vcombine.high %v2867, %v2867
        %v2876 = vcombine.high %v2874, %v2874
        %v2877 = vcombine.high %v2477, %v2477
        %v2879 = vunpack.c.l.s4 1983009808
        %v2880 = vunpack.c.0.s8 %v2879
        %v2881 = vlaneseq
        %v2882 = vshrl.u32 %v2881, 7
        %v2883 = vsub.s32 %v2880, %v2882
        %v2884 = vrot.slane %v2477, %v2883
        %v2886 = vunpack.c.l.s4 1983009808
        %v2887 = vunpack.c.0.s8 %v2886
        %v2888 = vlaneseq
        %v2889 = vshrl.u32 %v2888, 7
        %v2890 = vsub.s32 %v2887, %v2889
        %v2891 = vrot.slane %v2877, %v2890
        %v2892 = vcombine.high %v2884, %v2884
        %v2893 = vcombine.high %v2891, %v2891
        %v2894 = vcombine.high %v2478, %v2478
        %v2896 = vunpack.c.l.s4 1983009808
        %v2897 = vunpack.c.0.s8 %v2896
        %v2898 = vlaneseq
        %v2899 = vshrl.u32 %v2898, 7
        %v2900 = vsub.s32 %v2897, %v2899
        %v2901 = vrot.slane %v2478, %v2900
        %v2903 = vunpack.c.l.s4 1983009808
        %v2904 = vunpack.c.0.s8 %v2903
        %v2905 = vlaneseq
        %v2906 = vshrl.u32 %v2905, 7
        %v2907 = vsub.s32 %v2904, %v2906
        %v2908 = vrot.slane %v2894, %v2907
        %v2909 = vcombine.high %v2901, %v2901
        %v2910 = vcombine.high %v2908, %v2908
        %v2911 = vcombine.high %v2479, %v2479
        %v2913 = vunpack.c.l.s4 1983009808
        %v2914 = vunpack.c.0.s8 %v2913
        %v2915 = vlaneseq
        %v2916 = vshrl.u32 %v2915, 7
        %v2917 = vsub.s32 %v2914, %v2916
        %v2918 = vrot.slane %v2479, %v2917
        %v2920 = vunpack.c.l.s4 1983009808
        %v2921 = vunpack.c.0.s8 %v2920
        %v2922 = vlaneseq
        %v2923 = vshrl.u32 %v2922, 7
        %v2924 = vsub.s32 %v2921, %v2923
        %v2925 = vrot.slane %v2911, %v2924
        %v2926 = vcombine.high %v2918, %v2918
        %v2927 = vcombine.high %v2925, %v2925
        %v2928 = vcombine.high %v2480, %v2480
        %v2930 = vunpack.c.l.s4 1983009808
        %v2931 = vunpack.c.0.s8 %v2930
        %v2932 = vlaneseq
        %v2933 = vshrl.u32 %v2932, 7
        %v2934 = vsub.s32 %v2931, %v2933
        %v2935 = vrot.slane %v2480, %v2934
        %v2937 = vunpack.c.l.s4 1983009808
        %v2938 = vunpack.c.0.s8 %v2937
        %v2939 = vlaneseq
        %v2940 = vshrl.u32 %v2939, 7
        %v2941 = vsub.s32 %v2938, %v2940
        %v2942 = vrot.slane %v2928, %v2941
        %v2943 = vcombine.high %v2935, %v2935
        %v2944 = vcombine.high %v2942, %v2942
        %v2945 = vcombine.high %v2481, %v2481
        %v2947 = vunpack.c.l.s4 1983009808
        %v2948 = vunpack.c.0.s8 %v2947
        %v2949 = vlaneseq
        %v2950 = vshrl.u32 %v2949, 7
        %v2951 = vsub.s32 %v2948, %v2950
        %v2952 = vrot.slane %v2481, %v2951
        %v2954 = vunpack.c.l.s4 1983009808
        %v2955 = vunpack.c.0.s8 %v2954
        %v2956 = vlaneseq
        %v2957 = vshrl.u32 %v2956, 7
        %v2958 = vsub.s32 %v2955, %v2957
        %v2959 = vrot.slane %v2945, %v2958
        %v2960 = vcombine.high %v2952, %v2952
        %v2961 = vcombine.high %v2959, %v2959
        %v2962 = vcombine.high %v2482, %v2482
        %v2964 = vunpack.c.l.s4 1983009808
        %v2965 = vunpack.c.0.s8 %v2964
        %v2966 = vlaneseq
        %v2967 = vshrl.u32 %v2966, 7
        %v2968 = vsub.s32 %v2965, %v2967
        %v2969 = vrot.slane %v2482, %v2968
        %v2971 = vunpack.c.l.s4 1983009808
        %v2972 = vunpack.c.0.s8 %v2971
        %v2973 = vlaneseq
        %v2974 = vshrl.u32 %v2973, 7
        %v2975 = vsub.s32 %v2972, %v2974
        %v2976 = vrot.slane %v2962, %v2975
        %v2977 = vcombine.high %v2969, %v2969
        %v2978 = vcombine.high %v2976, %v2976
        %v2979 = vcombine.high %v2483, %v2483
        %v2981 = vunpack.c.l.s4 1983009808
        %v2982 = vunpack.c.0.s8 %v2981
        %v2983 = vlaneseq
        %v2984 = vshrl.u32 %v2983, 7
        %v2985 = vsub.s32 %v2982, %v2984
        %v2986 = vrot.slane %v2483, %v2985
        %v2988 = vunpack.c.l.s4 1983009808
        %v2989 = vunpack.c.0.s8 %v2988
        %v2990 = vlaneseq
        %v2991 = vshrl.u32 %v2990, 7
        %v2992 = vsub.s32 %v2989, %v2991
        %v2993 = vrot.slane %v2979, %v2992
        %v2994 = vcombine.high %v2986, %v2986
        %v2995 = vcombine.high %v2993, %v2993
        %v2996 = vcombine.high %v2484, %v2484
        %v2998 = vunpack.c.l.s4 1983009808
        %v2999 = vunpack.c.0.s8 %v2998
        %v3000 = vlaneseq
        %v3001 = vshrl.u32 %v3000, 7
        %v3002 = vsub.s32 %v2999, %v3001
        %v3003 = vrot.slane %v2484, %v3002
        %v3005 = vunpack.c.l.s4 1983009808
        %v3006 = vunpack.c.0.s8 %v3005
        %v3007 = vlaneseq
        %v3008 = vshrl.u32 %v3007, 7
        %v3009 = vsub.s32 %v3006, %v3008
        %v3010 = vrot.slane %v2996, %v3009
        %v3011 = vcombine.high %v3003, %v3003
        %v3012 = vcombine.high %v3010, %v3010
        %v3013 = vcombine.high %v2485, %v2485
        %v3015 = vunpack.c.l.s4 1983009808
        %v3016 = vunpack.c.0.s8 %v3015
        %v3017 = vlaneseq
        %v3018 = vshrl.u32 %v3017, 7
        %v3019 = vsub.s32 %v3016, %v3018
        %v3020 = vrot.slane %v2485, %v3019
        %v3022 = vunpack.c.l.s4 1983009808
        %v3023 = vunpack.c.0.s8 %v3022
        %v3024 = vlaneseq
        %v3025 = vshrl.u32 %v3024, 7
        %v3026 = vsub.s32 %v3023, %v3025
        %v3027 = vrot.slane %v3013, %v3026
        %v3028 = vcombine.high %v3020, %v3020
        %v3029 = vcombine.high %v3027, %v3027
        %v3030 = vcombine.high %v2486, %v2486
        %v3032 = vunpack.c.l.s4 1983009808
        %v3033 = vunpack.c.0.s8 %v3032
        %v3034 = vlaneseq
        %v3035 = vshrl.u32 %v3034, 7
        %v3036 = vsub.s32 %v3033, %v3035
        %v3037 = vrot.slane %v2486, %v3036
        %v3039 = vunpack.c.l.s4 1983009808
        %v3040 = vunpack.c.0.s8 %v3039
        %v3041 = vlaneseq
        %v3042 = vshrl.u32 %v3041, 7
        %v3043 = vsub.s32 %v3040, %v3042
        %v3044 = vrot.slane %v3030, %v3043
        %v3045 = vcombine.high %v3037, %v3037
        %v3046 = vcombine.high %v3044, %v3044
        %v3047 = vcombine.high %v2487, %v2487
        %v3049 = vunpack.c.l.s4 1983009808
        %v3050 = vunpack.c.0.s8 %v3049
        %v3051 = vlaneseq
        %v3052 = vshrl.u32 %v3051, 7
        %v3053 = vsub.s32 %v3050, %v3052
        %v3054 = vrot.slane %v2487, %v3053
        %v3056 = vunpack.c.l.s4 1983009808
        %v3057 = vunpack.c.0.s8 %v3056
        %v3058 = vlaneseq
        %v3059 = vshrl.u32 %v3058, 7
        %v3060 = vsub.s32 %v3057, %v3059
        %v3061 = vrot.slane %v3047, %v3060
        %v3062 = vcombine.high %v3054, %v3054
        %v3063 = vcombine.high %v3061, %v3061
        %vm3192 = vcmask 123904
        %v3193 = vsel %vm3192, %v2527, -inf
        %v3194 = vrot.slane %v3193, 4
        %v3195 = vmax.f32 %v3193, %v3194
        %v3196 = vrot.slane %v3195, 2
        %v3197 = vmax.f32 %v3195, %v3196
        %v3198 = vrot.slane %v3197, 1
        %v3199 = vmax.f32 %v3197, %v3198
        %v3200 = vsel %vm3192, %v2535, -inf
        %v3201 = vrot.slane %v3200, 4
        %v3202 = vmax.f32 %v3200, %v3201
        %v3203 = vrot.slane %v3202, 2
        %v3204 = vmax.f32 %v3202, %v3203
        %v3205 = vrot.slane %v3204, 1
        %v3206 = vmax.f32 %v3204, %v3205
        %v3207 = vsel %vm3192, %v2534, -inf
        %v3208 = vrot.slane %v3207, 4
        %v3209 = vmax.f32 %v3207, %v3208
        %v3210 = vrot.slane %v3209, 2
        %v3211 = vmax.f32 %v3209, %v3210
        %v3212 = vrot.slane %v3211, 1
        %v3213 = vmax.f32 %v3211, %v3212
        %v3214 = vsel %vm3192, %v2536, -inf
        %v3215 = vrot.slane %v3214, 4
        %v3216 = vmax.f32 %v3214, %v3215
        %v3217 = vrot.slane %v3216, 2
        %v3218 = vmax.f32 %v3216, %v3217
        %v3219 = vrot.slane %v3218, 1
        %v3220 = vmax.f32 %v3218, %v3219
        %v3221 = vsel %vm3192, %v2544, -inf
        %v3222 = vrot.slane %v3221, 4
        %v3223 = vmax.f32 %v3221, %v3222
        %v3224 = vrot.slane %v3223, 2
        %v3225 = vmax.f32 %v3223, %v3224
        %v3226 = vrot.slane %v3225, 1
        %v3227 = vmax.f32 %v3225, %v3226
        %v3228 = vsel %vm3192, %v2552, -inf
        %v3229 = vrot.slane %v3228, 4
        %v3230 = vmax.f32 %v3228, %v3229
        %v3231 = vrot.slane %v3230, 2
        %v3232 = vmax.f32 %v3230, %v3231
        %v3233 = vrot.slane %v3232, 1
        %v3234 = vmax.f32 %v3232, %v3233
        %v3235 = vsel %vm3192, %v2551, -inf
        %v3236 = vrot.slane %v3235, 4
        %v3237 = vmax.f32 %v3235, %v3236
        %v3238 = vrot.slane %v3237, 2
        %v3239 = vmax.f32 %v3237, %v3238
        %v3240 = vrot.slane %v3239, 1
        %v3241 = vmax.f32 %v3239, %v3240
        %v3242 = vsel %vm3192, %v2553, -inf
        %v3243 = vrot.slane %v3242, 4
        %v3244 = vmax.f32 %v3242, %v3243
        %v3245 = vrot.slane %v3244, 2
        %v3246 = vmax.f32 %v3244, %v3245
        %v3247 = vrot.slane %v3246, 1
        %v3248 = vmax.f32 %v3246, %v3247
        %v3249 = vsel %vm3192, %v2561, -inf
        %v3250 = vrot.slane %v3249, 4
        %v3251 = vmax.f32 %v3249, %v3250
        %v3252 = vrot.slane %v3251, 2
        %v3253 = vmax.f32 %v3251, %v3252
        %v3254 = vrot.slane %v3253, 1
        %v3255 = vmax.f32 %v3253, %v3254
        %v3256 = vsel %vm3192, %v2569, -inf
        %v3257 = vrot.slane %v3256, 4
        %v3258 = vmax.f32 %v3256, %v3257
        %v3259 = vrot.slane %v3258, 2
        %v3260 = vmax.f32 %v3258, %v3259
        %v3261 = vrot.slane %v3260, 1
        %v3262 = vmax.f32 %v3260, %v3261
        %v3263 = vsel %vm3192, %v2568, -inf
        %v3264 = vrot.slane %v3263, 4
        %v3265 = vmax.f32 %v3263, %v3264
        %v3266 = vrot.slane %v3265, 2
        %v3267 = vmax.f32 %v3265, %v3266
        %v3268 = vrot.slane %v3267, 1
        %v3269 = vmax.f32 %v3267, %v3268
        %v3270 = vsel %vm3192, %v2570, -inf
        %v3271 = vrot.slane %v3270, 4
        %v3272 = vmax.f32 %v3270, %v3271
        %v3273 = vrot.slane %v3272, 2
        %v3274 = vmax.f32 %v3272, %v3273
        %v3275 = vrot.slane %v3274, 1
        %v3276 = vmax.f32 %v3274, %v3275
        %v3277 = vsel %vm3192, %v2578, -inf
        %v3278 = vrot.slane %v3277, 4
        %v3279 = vmax.f32 %v3277, %v3278
        %v3280 = vrot.slane %v3279, 2
        %v3281 = vmax.f32 %v3279, %v3280
        %v3282 = vrot.slane %v3281, 1
        %v3283 = vmax.f32 %v3281, %v3282
        %v3284 = vsel %vm3192, %v2586, -inf
        %v3285 = vrot.slane %v3284, 4
        %v3286 = vmax.f32 %v3284, %v3285
        %v3287 = vrot.slane %v3286, 2
        %v3288 = vmax.f32 %v3286, %v3287
        %v3289 = vrot.slane %v3288, 1
        %v3290 = vmax.f32 %v3288, %v3289
        %v3291 = vsel %vm3192, %v2585, -inf
        %v3292 = vrot.slane %v3291, 4
        %v3293 = vmax.f32 %v3291, %v3292
        %v3294 = vrot.slane %v3293, 2
        %v3295 = vmax.f32 %v3293, %v3294
        %v3296 = vrot.slane %v3295, 1
        %v3297 = vmax.f32 %v3295, %v3296
        %v3298 = vsel %vm3192, %v2587, -inf
        %v3299 = vrot.slane %v3298, 4
        %v3300 = vmax.f32 %v3298, %v3299
        %v3301 = vrot.slane %v3300, 2
        %v3302 = vmax.f32 %v3300, %v3301
        %v3303 = vrot.slane %v3302, 1
        %v3304 = vmax.f32 %v3302, %v3303
        %v3305 = vsel %vm3192, %v2595, -inf
        %v3306 = vrot.slane %v3305, 4
        %v3307 = vmax.f32 %v3305, %v3306
        %v3308 = vrot.slane %v3307, 2
        %v3309 = vmax.f32 %v3307, %v3308
        %v3310 = vrot.slane %v3309, 1
        %v3311 = vmax.f32 %v3309, %v3310
        %v3312 = vsel %vm3192, %v2603, -inf
        %v3313 = vrot.slane %v3312, 4
        %v3314 = vmax.f32 %v3312, %v3313
        %v3315 = vrot.slane %v3314, 2
        %v3316 = vmax.f32 %v3314, %v3315
        %v3317 = vrot.slane %v3316, 1
        %v3318 = vmax.f32 %v3316, %v3317
        %v3319 = vsel %vm3192, %v2602, -inf
        %v3320 = vrot.slane %v3319, 4
        %v3321 = vmax.f32 %v3319, %v3320
        %v3322 = vrot.slane %v3321, 2
        %v3323 = vmax.f32 %v3321, %v3322
        %v3324 = vrot.slane %v3323, 1
        %v3325 = vmax.f32 %v3323, %v3324
        %v3326 = vsel %vm3192, %v2604, -inf
        %v3327 = vrot.slane %v3326, 4
        %v3328 = vmax.f32 %v3326, %v3327
        %v3329 = vrot.slane %v3328, 2
        %v3330 = vmax.f32 %v3328, %v3329
        %v3331 = vrot.slane %v3330, 1
        %v3332 = vmax.f32 %v3330, %v3331
        %v3333 = vsel %vm3192, %v2612, -inf
        %v3334 = vrot.slane %v3333, 4
        %v3335 = vmax.f32 %v3333, %v3334
        %v3336 = vrot.slane %v3335, 2
        %v3337 = vmax.f32 %v3335, %v3336
        %v3338 = vrot.slane %v3337, 1
        %v3339 = vmax.f32 %v3337, %v3338
        %v3340 = vsel %vm3192, %v2620, -inf
        %v3341 = vrot.slane %v3340, 4
        %v3342 = vmax.f32 %v3340, %v3341
        %v3343 = vrot.slane %v3342, 2
        %v3344 = vmax.f32 %v3342, %v3343
        %v3345 = vrot.slane %v3344, 1
        %v3346 = vmax.f32 %v3344, %v3345
        %v3347 = vsel %vm3192, %v2619, -inf
        %v3348 = vrot.slane %v3347, 4
        %v3349 = vmax.f32 %v3347, %v3348
        %v3350 = vrot.slane %v3349, 2
        %v3351 = vmax.f32 %v3349, %v3350
        %v3352 = vrot.slane %v3351, 1
        %v3353 = vmax.f32 %v3351, %v3352
        %v3354 = vsel %vm3192, %v2621, -inf
        %v3355 = vrot.slane %v3354, 4
        %v3356 = vmax.f32 %v3354, %v3355
        %v3357 = vrot.slane %v3356, 2
        %v3358 = vmax.f32 %v3356, %v3357
        %v3359 = vrot.slane %v3358, 1
        %v3360 = vmax.f32 %v3358, %v3359
        %v3361 = vsel %vm3192, %v2629, -inf
        %v3362 = vrot.slane %v3361, 4
        %v3363 = vmax.f32 %v3361, %v3362
        %v3364 = vrot.slane %v3363, 2
        %v3365 = vmax.f32 %v3363, %v3364
        %v3366 = vrot.slane %v3365, 1
        %v3367 = vmax.f32 %v3365, %v3366
        %v3368 = vsel %vm3192, %v2637, -inf
        %v3369 = vrot.slane %v3368, 4
        %v3370 = vmax.f32 %v3368, %v3369
        %v3371 = vrot.slane %v3370, 2
        %v3372 = vmax.f32 %v3370, %v3371
        %v3373 = vrot.slane %v3372, 1
        %v3374 = vmax.f32 %v3372, %v3373
        %v3375 = vsel %vm3192, %v2636, -inf
        %v3376 = vrot.slane %v3375, 4
        %v3377 = vmax.f32 %v3375, %v3376
        %v3378 = vrot.slane %v3377, 2
        %v3379 = vmax.f32 %v3377, %v3378
        %v3380 = vrot.slane %v3379, 1
        %v3381 = vmax.f32 %v3379, %v3380
        %v3382 = vsel %vm3192, %v2638, -inf
        %v3383 = vrot.slane %v3382, 4
        %v3384 = vmax.f32 %v3382, %v3383
        %v3385 = vrot.slane %v3384, 2
        %v3386 = vmax.f32 %v3384, %v3385
        %v3387 = vrot.slane %v3386, 1
        %v3388 = vmax.f32 %v3386, %v3387
        %v3389 = vsel %vm3192, %v2646, -inf
        %v3390 = vrot.slane %v3389, 4
        %v3391 = vmax.f32 %v3389, %v3390
        %v3392 = vrot.slane %v3391, 2
        %v3393 = vmax.f32 %v3391, %v3392
        %v3394 = vrot.slane %v3393, 1
        %v3395 = vmax.f32 %v3393, %v3394
        %v3396 = vsel %vm3192, %v2654, -inf
        %v3397 = vrot.slane %v3396, 4
        %v3398 = vmax.f32 %v3396, %v3397
        %v3399 = vrot.slane %v3398, 2
        %v3400 = vmax.f32 %v3398, %v3399
        %v3401 = vrot.slane %v3400, 1
        %v3402 = vmax.f32 %v3400, %v3401
        %v3403 = vsel %vm3192, %v2653, -inf
        %v3404 = vrot.slane %v3403, 4
        %v3405 = vmax.f32 %v3403, %v3404
        %v3406 = vrot.slane %v3405, 2
        %v3407 = vmax.f32 %v3405, %v3406
        %v3408 = vrot.slane %v3407, 1
        %v3409 = vmax.f32 %v3407, %v3408
        %v3410 = vsel %vm3192, %v2655, -inf
        %v3411 = vrot.slane %v3410, 4
        %v3412 = vmax.f32 %v3410, %v3411
        %v3413 = vrot.slane %v3412, 2
        %v3414 = vmax.f32 %v3412, %v3413
        %v3415 = vrot.slane %v3414, 1
        %v3416 = vmax.f32 %v3414, %v3415
        %v3417 = vsel %vm3192, %v2663, -inf
        %v3418 = vrot.slane %v3417, 4
        %v3419 = vmax.f32 %v3417, %v3418
        %v3420 = vrot.slane %v3419, 2
        %v3421 = vmax.f32 %v3419, %v3420
        %v3422 = vrot.slane %v3421, 1
        %v3423 = vmax.f32 %v3421, %v3422
        %v3424 = vsel %vm3192, %v2671, -inf
        %v3425 = vrot.slane %v3424, 4
        %v3426 = vmax.f32 %v3424, %v3425
        %v3427 = vrot.slane %v3426, 2
        %v3428 = vmax.f32 %v3426, %v3427
        %v3429 = vrot.slane %v3428, 1
        %v3430 = vmax.f32 %v3428, %v3429
        %v3431 = vsel %vm3192, %v2670, -inf
        %v3432 = vrot.slane %v3431, 4
        %v3433 = vmax.f32 %v3431, %v3432
        %v3434 = vrot.slane %v3433, 2
        %v3435 = vmax.f32 %v3433, %v3434
        %v3436 = vrot.slane %v3435, 1
        %v3437 = vmax.f32 %v3435, %v3436
        %v3438 = vsel %vm3192, %v2672, -inf
        %v3439 = vrot.slane %v3438, 4
        %v3440 = vmax.f32 %v3438, %v3439
        %v3441 = vrot.slane %v3440, 2
        %v3442 = vmax.f32 %v3440, %v3441
        %v3443 = vrot.slane %v3442, 1
        %v3444 = vmax.f32 %v3442, %v3443
        %v3445 = vsel %vm3192, %v2680, -inf
        %v3446 = vrot.slane %v3445, 4
        %v3447 = vmax.f32 %v3445, %v3446
        %v3448 = vrot.slane %v3447, 2
        %v3449 = vmax.f32 %v3447, %v3448
        %v3450 = vrot.slane %v3449, 1
        %v3451 = vmax.f32 %v3449, %v3450
        %v3452 = vsel %vm3192, %v2688, -inf
        %v3453 = vrot.slane %v3452, 4
        %v3454 = vmax.f32 %v3452, %v3453
        %v3455 = vrot.slane %v3454, 2
        %v3456 = vmax.f32 %v3454, %v3455
        %v3457 = vrot.slane %v3456, 1
        %v3458 = vmax.f32 %v3456, %v3457
        %v3459 = vsel %vm3192, %v2687, -inf
        %v3460 = vrot.slane %v3459, 4
        %v3461 = vmax.f32 %v3459, %v3460
        %v3462 = vrot.slane %v3461, 2
        %v3463 = vmax.f32 %v3461, %v3462
        %v3464 = vrot.slane %v3463, 1
        %v3465 = vmax.f32 %v3463, %v3464
        %v3466 = vsel %vm3192, %v2689, -inf
        %v3467 = vrot.slane %v3466, 4
        %v3468 = vmax.f32 %v3466, %v3467
        %v3469 = vrot.slane %v3468, 2
        %v3470 = vmax.f32 %v3468, %v3469
        %v3471 = vrot.slane %v3470, 1
        %v3472 = vmax.f32 %v3470, %v3471
        %v3473 = vsel %vm3192, %v2697, -inf
        %v3474 = vrot.slane %v3473, 4
        %v3475 = vmax.f32 %v3473, %v3474
        %v3476 = vrot.slane %v3475, 2
        %v3477 = vmax.f32 %v3475, %v3476
        %v3478 = vrot.slane %v3477, 1
        %v3479 = vmax.f32 %v3477, %v3478
        %v3480 = vsel %vm3192, %v2705, -inf
        %v3481 = vrot.slane %v3480, 4
        %v3482 = vmax.f32 %v3480, %v3481
        %v3483 = vrot.slane %v3482, 2
        %v3484 = vmax.f32 %v3482, %v3483
        %v3485 = vrot.slane %v3484, 1
        %v3486 = vmax.f32 %v3484, %v3485
        %v3487 = vsel %vm3192, %v2704, -inf
        %v3488 = vrot.slane %v3487, 4
        %v3489 = vmax.f32 %v3487, %v3488
        %v3490 = vrot.slane %v3489, 2
        %v3491 = vmax.f32 %v3489, %v3490
        %v3492 = vrot.slane %v3491, 1
        %v3493 = vmax.f32 %v3491, %v3492
        %v3494 = vsel %vm3192, %v2706, -inf
        %v3495 = vrot.slane %v3494, 4
        %v3496 = vmax.f32 %v3494, %v3495
        %v3497 = vrot.slane %v3496, 2
        %v3498 = vmax.f32 %v3496, %v3497
        %v3499 = vrot.slane %v3498, 1
        %v3500 = vmax.f32 %v3498, %v3499
        %v3501 = vsel %vm3192, %v2714, -inf
        %v3502 = vrot.slane %v3501, 4
        %v3503 = vmax.f32 %v3501, %v3502
        %v3504 = vrot.slane %v3503, 2
        %v3505 = vmax.f32 %v3503, %v3504
        %v3506 = vrot.slane %v3505, 1
        %v3507 = vmax.f32 %v3505, %v3506
        %v3508 = vsel %vm3192, %v2722, -inf
        %v3509 = vrot.slane %v3508, 4
        %v3510 = vmax.f32 %v3508, %v3509
        %v3511 = vrot.slane %v3510, 2
        %v3512 = vmax.f32 %v3510, %v3511
        %v3513 = vrot.slane %v3512, 1
        %v3514 = vmax.f32 %v3512, %v3513
        %v3515 = vsel %vm3192, %v2721, -inf
        %v3516 = vrot.slane %v3515, 4
        %v3517 = vmax.f32 %v3515, %v3516
        %v3518 = vrot.slane %v3517, 2
        %v3519 = vmax.f32 %v3517, %v3518
        %v3520 = vrot.slane %v3519, 1
        %v3521 = vmax.f32 %v3519, %v3520
        %v3522 = vsel %vm3192, %v2723, -inf
        %v3523 = vrot.slane %v3522, 4
        %v3524 = vmax.f32 %v3522, %v3523
        %v3525 = vrot.slane %v3524, 2
        %v3526 = vmax.f32 %v3524, %v3525
        %v3527 = vrot.slane %v3526, 1
        %v3528 = vmax.f32 %v3526, %v3527
        %v3529 = vsel %vm3192, %v2731, -inf
        %v3530 = vrot.slane %v3529, 4
        %v3531 = vmax.f32 %v3529, %v3530
        %v3532 = vrot.slane %v3531, 2
        %v3533 = vmax.f32 %v3531, %v3532
        %v3534 = vrot.slane %v3533, 1
        %v3535 = vmax.f32 %v3533, %v3534
        %v3536 = vsel %vm3192, %v2739, -inf
        %v3537 = vrot.slane %v3536, 4
        %v3538 = vmax.f32 %v3536, %v3537
        %v3539 = vrot.slane %v3538, 2
        %v3540 = vmax.f32 %v3538, %v3539
        %v3541 = vrot.slane %v3540, 1
        %v3542 = vmax.f32 %v3540, %v3541
        %v3543 = vsel %vm3192, %v2738, -inf
        %v3544 = vrot.slane %v3543, 4
        %v3545 = vmax.f32 %v3543, %v3544
        %v3546 = vrot.slane %v3545, 2
        %v3547 = vmax.f32 %v3545, %v3546
        %v3548 = vrot.slane %v3547, 1
        %v3549 = vmax.f32 %v3547, %v3548
        %v3550 = vsel %vm3192, %v2740, -inf
        %v3551 = vrot.slane %v3550, 4
        %v3552 = vmax.f32 %v3550, %v3551
        %v3553 = vrot.slane %v3552, 2
        %v3554 = vmax.f32 %v3552, %v3553
        %v3555 = vrot.slane %v3554, 1
        %v3556 = vmax.f32 %v3554, %v3555
        %v3557 = vsel %vm3192, %v2748, -inf
        %v3558 = vrot.slane %v3557, 4
        %v3559 = vmax.f32 %v3557, %v3558
        %v3560 = vrot.slane %v3559, 2
        %v3561 = vmax.f32 %v3559, %v3560
        %v3562 = vrot.slane %v3561, 1
        %v3563 = vmax.f32 %v3561, %v3562
        %v3564 = vsel %vm3192, %v2756, -inf
        %v3565 = vrot.slane %v3564, 4
        %v3566 = vmax.f32 %v3564, %v3565
        %v3567 = vrot.slane %v3566, 2
        %v3568 = vmax.f32 %v3566, %v3567
        %v3569 = vrot.slane %v3568, 1
        %v3570 = vmax.f32 %v3568, %v3569
        %v3571 = vsel %vm3192, %v2755, -inf
        %v3572 = vrot.slane %v3571, 4
        %v3573 = vmax.f32 %v3571, %v3572
        %v3574 = vrot.slane %v3573, 2
        %v3575 = vmax.f32 %v3573, %v3574
        %v3576 = vrot.slane %v3575, 1
        %v3577 = vmax.f32 %v3575, %v3576
        %v3578 = vsel %vm3192, %v2757, -inf
        %v3579 = vrot.slane %v3578, 4
        %v3580 = vmax.f32 %v3578, %v3579
        %v3581 = vrot.slane %v3580, 2
        %v3582 = vmax.f32 %v3580, %v3581
        %v3583 = vrot.slane %v3582, 1
        %v3584 = vmax.f32 %v3582, %v3583
        %v3585 = vsel %vm3192, %v2765, -inf
        %v3586 = vrot.slane %v3585, 4
        %v3587 = vmax.f32 %v3585, %v3586
        %v3588 = vrot.slane %v3587, 2
        %v3589 = vmax.f32 %v3587, %v3588
        %v3590 = vrot.slane %v3589, 1
        %v3591 = vmax.f32 %v3589, %v3590
        %v3592 = vsel %vm3192, %v2773, -inf
        %v3593 = vrot.slane %v3592, 4
        %v3594 = vmax.f32 %v3592, %v3593
        %v3595 = vrot.slane %v3594, 2
        %v3596 = vmax.f32 %v3594, %v3595
        %v3597 = vrot.slane %v3596, 1
        %v3598 = vmax.f32 %v3596, %v3597
        %v3599 = vsel %vm3192, %v2772, -inf
        %v3600 = vrot.slane %v3599, 4
        %v3601 = vmax.f32 %v3599, %v3600
        %v3602 = vrot.slane %v3601, 2
        %v3603 = vmax.f32 %v3601, %v3602
        %v3604 = vrot.slane %v3603, 1
        %v3605 = vmax.f32 %v3603, %v3604
        %v3606 = vsel %vm3192, %v2774, -inf
        %v3607 = vrot.slane %v3606, 4
        %v3608 = vmax.f32 %v3606, %v3607
        %v3609 = vrot.slane %v3608, 2
        %v3610 = vmax.f32 %v3608, %v3609
        %v3611 = vrot.slane %v3610, 1
        %v3612 = vmax.f32 %v3610, %v3611
        %v3613 = vsel %vm3192, %v2782, -inf
        %v3614 = vrot.slane %v3613, 4
        %v3615 = vmax.f32 %v3613, %v3614
        %v3616 = vrot.slane %v3615, 2
        %v3617 = vmax.f32 %v3615, %v3616
        %v3618 = vrot.slane %v3617, 1
        %v3619 = vmax.f32 %v3617, %v3618
        %v3620 = vsel %vm3192, %v2790, -inf
        %v3621 = vrot.slane %v3620, 4
        %v3622 = vmax.f32 %v3620, %v3621
        %v3623 = vrot.slane %v3622, 2
        %v3624 = vmax.f32 %v3622, %v3623
        %v3625 = vrot.slane %v3624, 1
        %v3626 = vmax.f32 %v3624, %v3625
        %v3627 = vsel %vm3192, %v2789, -inf
        %v3628 = vrot.slane %v3627, 4
        %v3629 = vmax.f32 %v3627, %v3628
        %v3630 = vrot.slane %v3629, 2
        %v3631 = vmax.f32 %v3629, %v3630
        %v3632 = vrot.slane %v3631, 1
        %v3633 = vmax.f32 %v3631, %v3632
        %v3634 = vsel %vm3192, %v2791, -inf
        %v3635 = vrot.slane %v3634, 4
        %v3636 = vmax.f32 %v3634, %v3635
        %v3637 = vrot.slane %v3636, 2
        %v3638 = vmax.f32 %v3636, %v3637
        %v3639 = vrot.slane %v3638, 1
        %v3640 = vmax.f32 %v3638, %v3639
        %v3641 = vsel %vm3192, %v2799, -inf
        %v3642 = vrot.slane %v3641, 4
        %v3643 = vmax.f32 %v3641, %v3642
        %v3644 = vrot.slane %v3643, 2
        %v3645 = vmax.f32 %v3643, %v3644
        %v3646 = vrot.slane %v3645, 1
        %v3647 = vmax.f32 %v3645, %v3646
        %v3648 = vsel %vm3192, %v2807, -inf
        %v3649 = vrot.slane %v3648, 4
        %v3650 = vmax.f32 %v3648, %v3649
        %v3651 = vrot.slane %v3650, 2
        %v3652 = vmax.f32 %v3650, %v3651
        %v3653 = vrot.slane %v3652, 1
        %v3654 = vmax.f32 %v3652, %v3653
        %v3655 = vsel %vm3192, %v2806, -inf
        %v3656 = vrot.slane %v3655, 4
        %v3657 = vmax.f32 %v3655, %v3656
        %v3658 = vrot.slane %v3657, 2
        %v3659 = vmax.f32 %v3657, %v3658
        %v3660 = vrot.slane %v3659, 1
        %v3661 = vmax.f32 %v3659, %v3660
        %v3662 = vsel %vm3192, %v2808, -inf
        %v3663 = vrot.slane %v3662, 4
        %v3664 = vmax.f32 %v3662, %v3663
        %v3665 = vrot.slane %v3664, 2
        %v3666 = vmax.f32 %v3664, %v3665
        %v3667 = vrot.slane %v3666, 1
        %v3668 = vmax.f32 %v3666, %v3667
        %v3669 = vsel %vm3192, %v2816, -inf
        %v3670 = vrot.slane %v3669, 4
        %v3671 = vmax.f32 %v3669, %v3670
        %v3672 = vrot.slane %v3671, 2
        %v3673 = vmax.f32 %v3671, %v3672
        %v3674 = vrot.slane %v3673, 1
        %v3675 = vmax.f32 %v3673, %v3674
        %v3676 = vsel %vm3192, %v2824, -inf
        %v3677 = vrot.slane %v3676, 4
        %v3678 = vmax.f32 %v3676, %v3677
        %v3679 = vrot.slane %v3678, 2
        %v3680 = vmax.f32 %v3678, %v3679
        %v3681 = vrot.slane %v3680, 1
        %v3682 = vmax.f32 %v3680, %v3681
        %v3683 = vsel %vm3192, %v2823, -inf
        %v3684 = vrot.slane %v3683, 4
        %v3685 = vmax.f32 %v3683, %v3684
        %v3686 = vrot.slane %v3685, 2
        %v3687 = vmax.f32 %v3685, %v3686
        %v3688 = vrot.slane %v3687, 1
        %v3689 = vmax.f32 %v3687, %v3688
        %v3690 = vsel %vm3192, %v2825, -inf
        %v3691 = vrot.slane %v3690, 4
        %v3692 = vmax.f32 %v3690, %v3691
        %v3693 = vrot.slane %v3692, 2
        %v3694 = vmax.f32 %v3692, %v3693
        %v3695 = vrot.slane %v3694, 1
        %v3696 = vmax.f32 %v3694, %v3695
        %v3697 = vsel %vm3192, %v2833, -inf
        %v3698 = vrot.slane %v3697, 4
        %v3699 = vmax.f32 %v3697, %v3698
        %v3700 = vrot.slane %v3699, 2
        %v3701 = vmax.f32 %v3699, %v3700
        %v3702 = vrot.slane %v3701, 1
        %v3703 = vmax.f32 %v3701, %v3702
        %v3704 = vsel %vm3192, %v2841, -inf
        %v3705 = vrot.slane %v3704, 4
        %v3706 = vmax.f32 %v3704, %v3705
        %v3707 = vrot.slane %v3706, 2
        %v3708 = vmax.f32 %v3706, %v3707
        %v3709 = vrot.slane %v3708, 1
        %v3710 = vmax.f32 %v3708, %v3709
        %v3711 = vsel %vm3192, %v2840, -inf
        %v3712 = vrot.slane %v3711, 4
        %v3713 = vmax.f32 %v3711, %v3712
        %v3714 = vrot.slane %v3713, 2
        %v3715 = vmax.f32 %v3713, %v3714
        %v3716 = vrot.slane %v3715, 1
        %v3717 = vmax.f32 %v3715, %v3716
        %v3718 = vsel %vm3192, %v2842, -inf
        %v3719 = vrot.slane %v3718, 4
        %v3720 = vmax.f32 %v3718, %v3719
        %v3721 = vrot.slane %v3720, 2
        %v3722 = vmax.f32 %v3720, %v3721
        %v3723 = vrot.slane %v3722, 1
        %v3724 = vmax.f32 %v3722, %v3723
        %v3725 = vsel %vm3192, %v2850, -inf
        %v3726 = vrot.slane %v3725, 4
        %v3727 = vmax.f32 %v3725, %v3726
        %v3728 = vrot.slane %v3727, 2
        %v3729 = vmax.f32 %v3727, %v3728
        %v3730 = vrot.slane %v3729, 1
        %v3731 = vmax.f32 %v3729, %v3730
        %v3732 = vsel %vm3192, %v2858, -inf
        %v3733 = vrot.slane %v3732, 4
        %v3734 = vmax.f32 %v3732, %v3733
        %v3735 = vrot.slane %v3734, 2
        %v3736 = vmax.f32 %v3734, %v3735
        %v3737 = vrot.slane %v3736, 1
        %v3738 = vmax.f32 %v3736, %v3737
        %v3739 = vsel %vm3192, %v2857, -inf
        %v3740 = vrot.slane %v3739, 4
        %v3741 = vmax.f32 %v3739, %v3740
        %v3742 = vrot.slane %v3741, 2
        %v3743 = vmax.f32 %v3741, %v3742
        %v3744 = vrot.slane %v3743, 1
        %v3745 = vmax.f32 %v3743, %v3744
        %v3746 = vsel %vm3192, %v2859, -inf
        %v3747 = vrot.slane %v3746, 4
        %v3748 = vmax.f32 %v3746, %v3747
        %v3749 = vrot.slane %v3748, 2
        %v3750 = vmax.f32 %v3748, %v3749
        %v3751 = vrot.slane %v3750, 1
        %v3752 = vmax.f32 %v3750, %v3751
        %v3753 = vsel %vm3192, %v2867, -inf
        %v3754 = vrot.slane %v3753, 4
        %v3755 = vmax.f32 %v3753, %v3754
        %v3756 = vrot.slane %v3755, 2
        %v3757 = vmax.f32 %v3755, %v3756
        %v3758 = vrot.slane %v3757, 1
        %v3759 = vmax.f32 %v3757, %v3758
        %v3760 = vsel %vm3192, %v2875, -inf
        %v3761 = vrot.slane %v3760, 4
        %v3762 = vmax.f32 %v3760, %v3761
        %v3763 = vrot.slane %v3762, 2
        %v3764 = vmax.f32 %v3762, %v3763
        %v3765 = vrot.slane %v3764, 1
        %v3766 = vmax.f32 %v3764, %v3765
        %v3767 = vsel %vm3192, %v2874, -inf
        %v3768 = vrot.slane %v3767, 4
        %v3769 = vmax.f32 %v3767, %v3768
        %v3770 = vrot.slane %v3769, 2
        %v3771 = vmax.f32 %v3769, %v3770
        %v3772 = vrot.slane %v3771, 1
        %v3773 = vmax.f32 %v3771, %v3772
        %v3774 = vsel %vm3192, %v2876, -inf
        %v3775 = vrot.slane %v3774, 4
        %v3776 = vmax.f32 %v3774, %v3775
        %v3777 = vrot.slane %v3776, 2
        %v3778 = vmax.f32 %v3776, %v3777
        %v3779 = vrot.slane %v3778, 1
        %v3780 = vmax.f32 %v3778, %v3779
        %v3781 = vsel %vm3192, %v2884, -inf
        %v3782 = vrot.slane %v3781, 4
        %v3783 = vmax.f32 %v3781, %v3782
        %v3784 = vrot.slane %v3783, 2
        %v3785 = vmax.f32 %v3783, %v3784
        %v3786 = vrot.slane %v3785, 1
        %v3787 = vmax.f32 %v3785, %v3786
        %v3788 = vsel %vm3192, %v2892, -inf
        %v3789 = vrot.slane %v3788, 4
        %v3790 = vmax.f32 %v3788, %v3789
        %v3791 = vrot.slane %v3790, 2
        %v3792 = vmax.f32 %v3790, %v3791
        %v3793 = vrot.slane %v3792, 1
        %v3794 = vmax.f32 %v3792, %v3793
        %v3795 = vsel %vm3192, %v2891, -inf
        %v3796 = vrot.slane %v3795, 4
        %v3797 = vmax.f32 %v3795, %v3796
        %v3798 = vrot.slane %v3797, 2
        %v3799 = vmax.f32 %v3797, %v3798
        %v3800 = vrot.slane %v3799, 1
        %v3801 = vmax.f32 %v3799, %v3800
        %v3802 = vsel %vm3192, %v2893, -inf
        %v3803 = vrot.slane %v3802, 4
        %v3804 = vmax.f32 %v3802, %v3803
        %v3805 = vrot.slane %v3804, 2
        %v3806 = vmax.f32 %v3804, %v3805
        %v3807 = vrot.slane %v3806, 1
        %v3808 = vmax.f32 %v3806, %v3807
        %v3809 = vsel %vm3192, %v2901, -inf
        %v3810 = vrot.slane %v3809, 4
        %v3811 = vmax.f32 %v3809, %v3810
        %v3812 = vrot.slane %v3811, 2
        %v3813 = vmax.f32 %v3811, %v3812
        %v3814 = vrot.slane %v3813, 1
        %v3815 = vmax.f32 %v3813, %v3814
        %v3816 = vsel %vm3192, %v2909, -inf
        %v3817 = vrot.slane %v3816, 4
        %v3818 = vmax.f32 %v3816, %v3817
        %v3819 = vrot.slane %v3818, 2
        %v3820 = vmax.f32 %v3818, %v3819
        %v3821 = vrot.slane %v3820, 1
        %v3822 = vmax.f32 %v3820, %v3821
        %v3823 = vsel %vm3192, %v2908, -inf
        %v3824 = vrot.slane %v3823, 4
        %v3825 = vmax.f32 %v3823, %v3824
        %v3826 = vrot.slane %v3825, 2
        %v3827 = vmax.f32 %v3825, %v3826
        %v3828 = vrot.slane %v3827, 1
        %v3829 = vmax.f32 %v3827, %v3828
        %v3830 = vsel %vm3192, %v2910, -inf
        %v3831 = vrot.slane %v3830, 4
        %v3832 = vmax.f32 %v3830, %v3831
        %v3833 = vrot.slane %v3832, 2
        %v3834 = vmax.f32 %v3832, %v3833
        %v3835 = vrot.slane %v3834, 1
        %v3836 = vmax.f32 %v3834, %v3835
        %v3837 = vsel %vm3192, %v2918, -inf
        %v3838 = vrot.slane %v3837, 4
        %v3839 = vmax.f32 %v3837, %v3838
        %v3840 = vrot.slane %v3839, 2
        %v3841 = vmax.f32 %v3839, %v3840
        %v3842 = vrot.slane %v3841, 1
        %v3843 = vmax.f32 %v3841, %v3842
        %v3844 = vsel %vm3192, %v2926, -inf
        %v3845 = vrot.slane %v3844, 4
        %v3846 = vmax.f32 %v3844, %v3845
        %v3847 = vrot.slane %v3846, 2
        %v3848 = vmax.f32 %v3846, %v3847
        %v3849 = vrot.slane %v3848, 1
        %v3850 = vmax.f32 %v3848, %v3849
        %v3851 = vsel %vm3192, %v2925, -inf
        %v3852 = vrot.slane %v3851, 4
        %v3853 = vmax.f32 %v3851, %v3852
        %v3854 = vrot.slane %v3853, 2
        %v3855 = vmax.f32 %v3853, %v3854
        %v3856 = vrot.slane %v3855, 1
        %v3857 = vmax.f32 %v3855, %v3856
        %v3858 = vsel %vm3192, %v2927, -inf
        %v3859 = vrot.slane %v3858, 4
        %v3860 = vmax.f32 %v3858, %v3859
        %v3861 = vrot.slane %v3860, 2
        %v3862 = vmax.f32 %v3860, %v3861
        %v3863 = vrot.slane %v3862, 1
        %v3864 = vmax.f32 %v3862, %v3863
        %v3865 = vsel %vm3192, %v2935, -inf
        %v3866 = vrot.slane %v3865, 4
        %v3867 = vmax.f32 %v3865, %v3866
        %v3868 = vrot.slane %v3867, 2
        %v3869 = vmax.f32 %v3867, %v3868
        %v3870 = vrot.slane %v3869, 1
        %v3871 = vmax.f32 %v3869, %v3870
        %v3872 = vsel %vm3192, %v2943, -inf
        %v3873 = vrot.slane %v3872, 4
        %v3874 = vmax.f32 %v3872, %v3873
        %v3875 = vrot.slane %v3874, 2
        %v3876 = vmax.f32 %v3874, %v3875
        %v3877 = vrot.slane %v3876, 1
        %v3878 = vmax.f32 %v3876, %v3877
        %v3879 = vsel %vm3192, %v2942, -inf
        %v3880 = vrot.slane %v3879, 4
        %v3881 = vmax.f32 %v3879, %v3880
        %v3882 = vrot.slane %v3881, 2
        %v3883 = vmax.f32 %v3881, %v3882
        %v3884 = vrot.slane %v3883, 1
        %v3885 = vmax.f32 %v3883, %v3884
        %v3886 = vsel %vm3192, %v2944, -inf
        %v3887 = vrot.slane %v3886, 4
        %v3888 = vmax.f32 %v3886, %v3887
        %v3889 = vrot.slane %v3888, 2
        %v3890 = vmax.f32 %v3888, %v3889
        %v3891 = vrot.slane %v3890, 1
        %v3892 = vmax.f32 %v3890, %v3891
        %v3893 = vsel %vm3192, %v2952, -inf
        %v3894 = vrot.slane %v3893, 4
        %v3895 = vmax.f32 %v3893, %v3894
        %v3896 = vrot.slane %v3895, 2
        %v3897 = vmax.f32 %v3895, %v3896
        %v3898 = vrot.slane %v3897, 1
        %v3899 = vmax.f32 %v3897, %v3898
        %v3900 = vsel %vm3192, %v2960, -inf
        %v3901 = vrot.slane %v3900, 4
        %v3902 = vmax.f32 %v3900, %v3901
        %v3903 = vrot.slane %v3902, 2
        %v3904 = vmax.f32 %v3902, %v3903
        %v3905 = vrot.slane %v3904, 1
        %v3906 = vmax.f32 %v3904, %v3905
        %v3907 = vsel %vm3192, %v2959, -inf
        %v3908 = vrot.slane %v3907, 4
        %v3909 = vmax.f32 %v3907, %v3908
        %v3910 = vrot.slane %v3909, 2
        %v3911 = vmax.f32 %v3909, %v3910
        %v3912 = vrot.slane %v3911, 1
        %v3913 = vmax.f32 %v3911, %v3912
        %v3914 = vsel %vm3192, %v2961, -inf
        %v3915 = vrot.slane %v3914, 4
        %v3916 = vmax.f32 %v3914, %v3915
        %v3917 = vrot.slane %v3916, 2
        %v3918 = vmax.f32 %v3916, %v3917
        %v3919 = vrot.slane %v3918, 1
        %v3920 = vmax.f32 %v3918, %v3919
        %v3921 = vsel %vm3192, %v2969, -inf
        %v3922 = vrot.slane %v3921, 4
        %v3923 = vmax.f32 %v3921, %v3922
        %v3924 = vrot.slane %v3923, 2
        %v3925 = vmax.f32 %v3923, %v3924
        %v3926 = vrot.slane %v3925, 1
        %v3927 = vmax.f32 %v3925, %v3926
        %v3928 = vsel %vm3192, %v2977, -inf
        %v3929 = vrot.slane %v3928, 4
        %v3930 = vmax.f32 %v3928, %v3929
        %v3931 = vrot.slane %v3930, 2
        %v3932 = vmax.f32 %v3930, %v3931
        %v3933 = vrot.slane %v3932, 1
        %v3934 = vmax.f32 %v3932, %v3933
        %v3935 = vsel %vm3192, %v2976, -inf
        %v3936 = vrot.slane %v3935, 4
        %v3937 = vmax.f32 %v3935, %v3936
        %v3938 = vrot.slane %v3937, 2
        %v3939 = vmax.f32 %v3937, %v3938
        %v3940 = vrot.slane %v3939, 1
        %v3941 = vmax.f32 %v3939, %v3940
        %v3942 = vsel %vm3192, %v2978, -inf
        %v3943 = vrot.slane %v3942, 4
        %v3944 = vmax.f32 %v3942, %v3943
        %v3945 = vrot.slane %v3944, 2
        %v3946 = vmax.f32 %v3944, %v3945
        %v3947 = vrot.slane %v3946, 1
        %v3948 = vmax.f32 %v3946, %v3947
        %v3949 = vsel %vm3192, %v2986, -inf
        %v3950 = vrot.slane %v3949, 4
        %v3951 = vmax.f32 %v3949, %v3950
        %v3952 = vrot.slane %v3951, 2
        %v3953 = vmax.f32 %v3951, %v3952
        %v3954 = vrot.slane %v3953, 1
        %v3955 = vmax.f32 %v3953, %v3954
        %v3956 = vsel %vm3192, %v2994, -inf
        %v3957 = vrot.slane %v3956, 4
        %v3958 = vmax.f32 %v3956, %v3957
        %v3959 = vrot.slane %v3958, 2
        %v3960 = vmax.f32 %v3958, %v3959
        %v3961 = vrot.slane %v3960, 1
        %v3962 = vmax.f32 %v3960, %v3961
        %v3963 = vsel %vm3192, %v2993, -inf
        %v3964 = vrot.slane %v3963, 4
        %v3965 = vmax.f32 %v3963, %v3964
        %v3966 = vrot.slane %v3965, 2
        %v3967 = vmax.f32 %v3965, %v3966
        %v3968 = vrot.slane %v3967, 1
        %v3969 = vmax.f32 %v3967, %v3968
        %v3970 = vsel %vm3192, %v2995, -inf
        %v3971 = vrot.slane %v3970, 4
        %v3972 = vmax.f32 %v3970, %v3971
        %v3973 = vrot.slane %v3972, 2
        %v3974 = vmax.f32 %v3972, %v3973
        %v3975 = vrot.slane %v3974, 1
        %v3976 = vmax.f32 %v3974, %v3975
        %v3977 = vsel %vm3192, %v3003, -inf
        %v3978 = vrot.slane %v3977, 4
        %v3979 = vmax.f32 %v3977, %v3978
        %v3980 = vrot.slane %v3979, 2
        %v3981 = vmax.f32 %v3979, %v3980
        %v3982 = vrot.slane %v3981, 1
        %v3983 = vmax.f32 %v3981, %v3982
        %v3984 = vsel %vm3192, %v3011, -inf
        %v3985 = vrot.slane %v3984, 4
        %v3986 = vmax.f32 %v3984, %v3985
        %v3987 = vrot.slane %v3986, 2
        %v3988 = vmax.f32 %v3986, %v3987
        %v3989 = vrot.slane %v3988, 1
        %v3990 = vmax.f32 %v3988, %v3989
        %v3991 = vsel %vm3192, %v3010, -inf
        %v3992 = vrot.slane %v3991, 4
        %v3993 = vmax.f32 %v3991, %v3992
        %v3994 = vrot.slane %v3993, 2
        %v3995 = vmax.f32 %v3993, %v3994
        %v3996 = vrot.slane %v3995, 1
        %v3997 = vmax.f32 %v3995, %v3996
        %v3998 = vsel %vm3192, %v3012, -inf
        %v3999 = vrot.slane %v3998, 4
        %v4000 = vmax.f32 %v3998, %v3999
        %v4001 = vrot.slane %v4000, 2
        %v4002 = vmax.f32 %v4000, %v4001
        %v4003 = vrot.slane %v4002, 1
        %v4004 = vmax.f32 %v4002, %v4003
        %v4005 = vsel %vm3192, %v3020, -inf
        %v4006 = vrot.slane %v4005, 4
        %v4007 = vmax.f32 %v4005, %v4006
        %v4008 = vrot.slane %v4007, 2
        %v4009 = vmax.f32 %v4007, %v4008
        %v4010 = vrot.slane %v4009, 1
        %v4011 = vmax.f32 %v4009, %v4010
        %v4012 = vsel %vm3192, %v3028, -inf
        %v4013 = vrot.slane %v4012, 4
        %v4014 = vmax.f32 %v4012, %v4013
        %v4015 = vrot.slane %v4014, 2
        %v4016 = vmax.f32 %v4014, %v4015
        %v4017 = vrot.slane %v4016, 1
        %v4018 = vmax.f32 %v4016, %v4017
        %v4019 = vsel %vm3192, %v3027, -inf
        %v4020 = vrot.slane %v4019, 4
        %v4021 = vmax.f32 %v4019, %v4020
        %v4022 = vrot.slane %v4021, 2
        %v4023 = vmax.f32 %v4021, %v4022
        %v4024 = vrot.slane %v4023, 1
        %v4025 = vmax.f32 %v4023, %v4024
        %v4026 = vsel %vm3192, %v3029, -inf
        %v4027 = vrot.slane %v4026, 4
        %v4028 = vmax.f32 %v4026, %v4027
        %v4029 = vrot.slane %v4028, 2
        %v4030 = vmax.f32 %v4028, %v4029
        %v4031 = vrot.slane %v4030, 1
        %v4032 = vmax.f32 %v4030, %v4031
        %v4033 = vsel %vm3192, %v3037, -inf
        %v4034 = vrot.slane %v4033, 4
        %v4035 = vmax.f32 %v4033, %v4034
        %v4036 = vrot.slane %v4035, 2
        %v4037 = vmax.f32 %v4035, %v4036
        %v4038 = vrot.slane %v4037, 1
        %v4039 = vmax.f32 %v4037, %v4038
        %v4040 = vsel %vm3192, %v3045, -inf
        %v4041 = vrot.slane %v4040, 4
        %v4042 = vmax.f32 %v4040, %v4041
        %v4043 = vrot.slane %v4042, 2
        %v4044 = vmax.f32 %v4042, %v4043
        %v4045 = vrot.slane %v4044, 1
        %v4046 = vmax.f32 %v4044, %v4045
        %v4047 = vsel %vm3192, %v3044, -inf
        %v4048 = vrot.slane %v4047, 4
        %v4049 = vmax.f32 %v4047, %v4048
        %v4050 = vrot.slane %v4049, 2
        %v4051 = vmax.f32 %v4049, %v4050
        %v4052 = vrot.slane %v4051, 1
        %v4053 = vmax.f32 %v4051, %v4052
        %v4054 = vsel %vm3192, %v3046, -inf
        %v4055 = vrot.slane %v4054, 4
        %v4056 = vmax.f32 %v4054, %v4055
        %v4057 = vrot.slane %v4056, 2
        %v4058 = vmax.f32 %v4056, %v4057
        %v4059 = vrot.slane %v4058, 1
        %v4060 = vmax.f32 %v4058, %v4059
        %v4061 = vsel %vm3192, %v3054, -inf
        %v4062 = vrot.slane %v4061, 4
        %v4063 = vmax.f32 %v4061, %v4062
        %v4064 = vrot.slane %v4063, 2
        %v4065 = vmax.f32 %v4063, %v4064
        %v4066 = vrot.slane %v4065, 1
        %v4067 = vmax.f32 %v4065, %v4066
        %v4068 = vsel %vm3192, %v3062, -inf
        %v4069 = vrot.slane %v4068, 4
        %v4070 = vmax.f32 %v4068, %v4069
        %v4071 = vrot.slane %v4070, 2
        %v4072 = vmax.f32 %v4070, %v4071
        %v4073 = vrot.slane %v4072, 1
        %v4074 = vmax.f32 %v4072, %v4073
        %v4075 = vsel %vm3192, %v3061, -inf
        %v4076 = vrot.slane %v4075, 4
        %v4077 = vmax.f32 %v4075, %v4076
        %v4078 = vrot.slane %v4077, 2
        %v4079 = vmax.f32 %v4077, %v4078
        %v4080 = vrot.slane %v4079, 1
        %v4081 = vmax.f32 %v4079, %v4080
        %v4082 = vsel %vm3192, %v3063, -inf
        %v4083 = vrot.slane %v4082, 4
        %v4084 = vmax.f32 %v4082, %v4083
        %v4085 = vrot.slane %v4084, 2
        %v4086 = vmax.f32 %v4084, %v4085
        %v4087 = vrot.slane %v4086, 1
        %v4088 = vmax.f32 %v4086, %v4087
        %vm4089 = vcmask 130048
        %v4090 = vsel %vm4089, %v3199, -inf
        %v4091 = vsel %vm4089, %v3255, -inf
        %v4092 = vmax.f32 %v4090, %v4091
        %v4093 = vsel %vm4089, %v3206, -inf
        %v4094 = vsel %vm4089, %v3262, -inf
        %v4095 = vmax.f32 %v4093, %v4094
        %v4096 = vsel %vm4089, %v3213, -inf
        %v4097 = vsel %vm4089, %v3269, -inf
        %v4098 = vmax.f32 %v4096, %v4097
        %v4099 = vsel %vm4089, %v3220, -inf
        %v4100 = vsel %vm4089, %v3276, -inf
        %v4101 = vmax.f32 %v4099, %v4100
        %v4102 = vsel %vm4089, %v3227, -inf
        %v4103 = vsel %vm4089, %v3283, -inf
        %v4104 = vmax.f32 %v4102, %v4103
        %v4105 = vsel %vm4089, %v3234, -inf
        %v4106 = vsel %vm4089, %v3290, -inf
        %v4107 = vmax.f32 %v4105, %v4106
        %v4108 = vsel %vm4089, %v3241, -inf
        %v4109 = vsel %vm4089, %v3297, -inf
        %v4110 = vmax.f32 %v4108, %v4109
        %v4111 = vsel %vm4089, %v3248, -inf
        %v4112 = vsel %vm4089, %v3304, -inf
        %v4113 = vmax.f32 %v4111, %v4112
        %v4114 = vsel %vm4089, %v3311, -inf
        %v4115 = vsel %vm4089, %v3367, -inf
        %v4116 = vmax.f32 %v4114, %v4115
        %v4117 = vsel %vm4089, %v3318, -inf
        %v4118 = vsel %vm4089, %v3374, -inf
        %v4119 = vmax.f32 %v4117, %v4118
        %v4120 = vsel %vm4089, %v3325, -inf
        %v4121 = vsel %vm4089, %v3381, -inf
        %v4122 = vmax.f32 %v4120, %v4121
        %v4123 = vsel %vm4089, %v3332, -inf
        %v4124 = vsel %vm4089, %v3388, -inf
        %v4125 = vmax.f32 %v4123, %v4124
        %v4126 = vsel %vm4089, %v3339, -inf
        %v4127 = vsel %vm4089, %v3395, -inf
        %v4128 = vmax.f32 %v4126, %v4127
        %v4129 = vsel %vm4089, %v3346, -inf
        %v4130 = vsel %vm4089, %v3402, -inf
        %v4131 = vmax.f32 %v4129, %v4130
        %v4132 = vsel %vm4089, %v3353, -inf
        %v4133 = vsel %vm4089, %v3409, -inf
        %v4134 = vmax.f32 %v4132, %v4133
        %v4135 = vsel %vm4089, %v3360, -inf
        %v4136 = vsel %vm4089, %v3416, -inf
        %v4137 = vmax.f32 %v4135, %v4136
        %v4138 = vsel %vm4089, %v3423, -inf
        %v4139 = vsel %vm4089, %v3479, -inf
        %v4140 = vmax.f32 %v4138, %v4139
        %v4141 = vsel %vm4089, %v3430, -inf
        %v4142 = vsel %vm4089, %v3486, -inf
        %v4143 = vmax.f32 %v4141, %v4142
        %v4144 = vsel %vm4089, %v3437, -inf
        %v4145 = vsel %vm4089, %v3493, -inf
        %v4146 = vmax.f32 %v4144, %v4145
        %v4147 = vsel %vm4089, %v3444, -inf
        %v4148 = vsel %vm4089, %v3500, -inf
        %v4149 = vmax.f32 %v4147, %v4148
        %v4150 = vsel %vm4089, %v3451, -inf
        %v4151 = vsel %vm4089, %v3507, -inf
        %v4152 = vmax.f32 %v4150, %v4151
        %v4153 = vsel %vm4089, %v3458, -inf
        %v4154 = vsel %vm4089, %v3514, -inf
        %v4155 = vmax.f32 %v4153, %v4154
        %v4156 = vsel %vm4089, %v3465, -inf
        %v4157 = vsel %vm4089, %v3521, -inf
        %v4158 = vmax.f32 %v4156, %v4157
        %v4159 = vsel %vm4089, %v3472, -inf
        %v4160 = vsel %vm4089, %v3528, -inf
        %v4161 = vmax.f32 %v4159, %v4160
        %v4162 = vsel %vm4089, %v3535, -inf
        %v4163 = vsel %vm4089, %v3591, -inf
        %v4164 = vmax.f32 %v4162, %v4163
        %v4165 = vsel %vm4089, %v3542, -inf
        %v4166 = vsel %vm4089, %v3598, -inf
        %v4167 = vmax.f32 %v4165, %v4166
        %v4168 = vsel %vm4089, %v3549, -inf
        %v4169 = vsel %vm4089, %v3605, -inf
        %v4170 = vmax.f32 %v4168, %v4169
        %v4171 = vsel %vm4089, %v3556, -inf
        %v4172 = vsel %vm4089, %v3612, -inf
        %v4173 = vmax.f32 %v4171, %v4172
        %v4174 = vsel %vm4089, %v3563, -inf
        %v4175 = vsel %vm4089, %v3619, -inf
        %v4176 = vmax.f32 %v4174, %v4175
        %v4177 = vsel %vm4089, %v3570, -inf
        %v4178 = vsel %vm4089, %v3626, -inf
        %v4179 = vmax.f32 %v4177, %v4178
        %v4180 = vsel %vm4089, %v3577, -inf
        %v4181 = vsel %vm4089, %v3633, -inf
        %v4182 = vmax.f32 %v4180, %v4181
        %v4183 = vsel %vm4089, %v3584, -inf
        %v4184 = vsel %vm4089, %v3640, -inf
        %v4185 = vmax.f32 %v4183, %v4184
        %v4186 = vsel %vm4089, %v3647, -inf
        %v4187 = vsel %vm4089, %v3703, -inf
        %v4188 = vmax.f32 %v4186, %v4187
        %v4189 = vsel %vm4089, %v3654, -inf
        %v4190 = vsel %vm4089, %v3710, -inf
        %v4191 = vmax.f32 %v4189, %v4190
        %v4192 = vsel %vm4089, %v3661, -inf
        %v4193 = vsel %vm4089, %v3717, -inf
        %v4194 = vmax.f32 %v4192, %v4193
        %v4195 = vsel %vm4089, %v3668, -inf
        %v4196 = vsel %vm4089, %v3724, -inf
        %v4197 = vmax.f32 %v4195, %v4196
        %v4198 = vsel %vm4089, %v3675, -inf
        %v4199 = vsel %vm4089, %v3731, -inf
        %v4200 = vmax.f32 %v4198, %v4199
        %v4201 = vsel %vm4089, %v3682, -inf
        %v4202 = vsel %vm4089, %v3738, -inf
        %v4203 = vmax.f32 %v4201, %v4202
        %v4204 = vsel %vm4089, %v3689, -inf
        %v4205 = vsel %vm4089, %v3745, -inf
        %v4206 = vmax.f32 %v4204, %v4205
        %v4207 = vsel %vm4089, %v3696, -inf
        %v4208 = vsel %vm4089, %v3752, -inf
        %v4209 = vmax.f32 %v4207, %v4208
        %v4210 = vsel %vm4089, %v3759, -inf
        %v4211 = vsel %vm4089, %v3815, -inf
        %v4212 = vmax.f32 %v4210, %v4211
        %v4213 = vsel %vm4089, %v3766, -inf
        %v4214 = vsel %vm4089, %v3822, -inf
        %v4215 = vmax.f32 %v4213, %v4214
        %v4216 = vsel %vm4089, %v3773, -inf
        %v4217 = vsel %vm4089, %v3829, -inf
        %v4218 = vmax.f32 %v4216, %v4217
        %v4219 = vsel %vm4089, %v3780, -inf
        %v4220 = vsel %vm4089, %v3836, -inf
        %v4221 = vmax.f32 %v4219, %v4220
        %v4222 = vsel %vm4089, %v3787, -inf
        %v4223 = vsel %vm4089, %v3843, -inf
        %v4224 = vmax.f32 %v4222, %v4223
        %v4225 = vsel %vm4089, %v3794, -inf
        %v4226 = vsel %vm4089, %v3850, -inf
        %v4227 = vmax.f32 %v4225, %v4226
        %v4228 = vsel %vm4089, %v3801, -inf
        %v4229 = vsel %vm4089, %v3857, -inf
        %v4230 = vmax.f32 %v4228, %v4229
        %v4231 = vsel %vm4089, %v3808, -inf
        %v4232 = vsel %vm4089, %v3864, -inf
        %v4233 = vmax.f32 %v4231, %v4232
        %v4234 = vsel %vm4089, %v3871, -inf
        %v4235 = vsel %vm4089, %v3927, -inf
        %v4236 = vmax.f32 %v4234, %v4235
        %v4237 = vsel %vm4089, %v3878, -inf
        %v4238 = vsel %vm4089, %v3934, -inf
        %v4239 = vmax.f32 %v4237, %v4238
        %v4240 = vsel %vm4089, %v3885, -inf
        %v4241 = vsel %vm4089, %v3941, -inf
        %v4242 = vmax.f32 %v4240, %v4241
        %v4243 = vsel %vm4089, %v3892, -inf
        %v4244 = vsel %vm4089, %v3948, -inf
        %v4245 = vmax.f32 %v4243, %v4244
        %v4246 = vsel %vm4089, %v3899, -inf
        %v4247 = vsel %vm4089, %v3955, -inf
        %v4248 = vmax.f32 %v4246, %v4247
        %v4249 = vsel %vm4089, %v3906, -inf
        %v4250 = vsel %vm4089, %v3962, -inf
        %v4251 = vmax.f32 %v4249, %v4250
        %v4252 = vsel %vm4089, %v3913, -inf
        %v4253 = vsel %vm4089, %v3969, -inf
        %v4254 = vmax.f32 %v4252, %v4253
        %v4255 = vsel %vm4089, %v3920, -inf
        %v4256 = vsel %vm4089, %v3976, -inf
        %v4257 = vmax.f32 %v4255, %v4256
        %v4258 = vsel %vm4089, %v3983, -inf
        %v4259 = vsel %vm4089, %v4039, -inf
        %v4260 = vmax.f32 %v4258, %v4259
        %v4261 = vsel %vm4089, %v3990, -inf
        %v4262 = vsel %vm4089, %v4046, -inf
        %v4263 = vmax.f32 %v4261, %v4262
        %v4264 = vsel %vm4089, %v3997, -inf
        %v4265 = vsel %vm4089, %v4053, -inf
        %v4266 = vmax.f32 %v4264, %v4265
        %v4267 = vsel %vm4089, %v4004, -inf
        %v4268 = vsel %vm4089, %v4060, -inf
        %v4269 = vmax.f32 %v4267, %v4268
        %v4270 = vsel %vm4089, %v4011, -inf
        %v4271 = vsel %vm4089, %v4067, -inf
        %v4272 = vmax.f32 %v4270, %v4271
        %v4273 = vsel %vm4089, %v4018, -inf
        %v4274 = vsel %vm4089, %v4074, -inf
        %v4275 = vmax.f32 %v4273, %v4274
        %v4276 = vsel %vm4089, %v4025, -inf
        %v4277 = vsel %vm4089, %v4081, -inf
        %v4278 = vmax.f32 %v4276, %v4277
        %v4279 = vsel %vm4089, %v4032, -inf
        %v4280 = vsel %vm4089, %v4088, -inf
        %v4281 = vmax.f32 %v4279, %v4280
        %4282 = vst.msk [vmem:[#allocation4] sm:$0xff] %vm4089, 0.0
        %4283 = vst.msk [vmem:[#allocation4 + $0x8] sm:$0x3] %vm3192, 0.0
        %4284 = vst.msk [vmem:[#allocation4 + $0x10] sm:$0xff] %vm4089, 0.0
        %4285 = vst.msk [vmem:[#allocation4 + $0x18] sm:$0x3] %vm3192, 0.0
        %4286 = vst.msk [vmem:[#allocation4 + $0x20] sm:$0xff] %vm4089, 0.0
        %4287 = vst.msk [vmem:[#allocation4 + $0x28] sm:$0x3] %vm3192, 0.0
        %4288 = vst.msk [vmem:[#allocation4 + $0x30] sm:$0xff] %vm4089, 0.0
        %4289 = vst.msk [vmem:[#allocation4 + $0x38] sm:$0x3] %vm3192, 0.0
        %4290 = vst.msk [vmem:[#allocation4 + $0x40] sm:$0xff] %vm4089, 0.0
        %4291 = vst.msk [vmem:[#allocation4 + $0x48] sm:$0x3] %vm3192, 0.0
        %4292 = vst.msk [vmem:[#allocation4 + $0x50] sm:$0xff] %vm4089, 0.0
        %4293 = vst.msk [vmem:[#allocation4 + $0x58] sm:$0x3] %vm3192, 0.0
        %4294 = vst.msk [vmem:[#allocation4 + $0x60] sm:$0xff] %vm4089, 0.0
        %4295 = vst.msk [vmem:[#allocation4 + $0x68] sm:$0x3] %vm3192, 0.0
        %4296 = vst.msk [vmem:[#allocation4 + $0x70] sm:$0xff] %vm4089, 0.0
        %4297 = vst.msk [vmem:[#allocation4 + $0x78] sm:$0x3] %vm3192, 0.0
        %4298 = vst.msk [vmem:[#allocation4 + $0x80] sm:$0xff] %vm4089, 0.0
        %4299 = vst.msk [vmem:[#allocation4 + $0x88] sm:$0x3] %vm3192, 0.0
        %4300 = vst.msk [vmem:[#allocation4 + $0x90] sm:$0xff] %vm4089, 0.0
        %4301 = vst.msk [vmem:[#allocation4 + $0x98] sm:$0x3] %vm3192, 0.0
        %vm4366 = vcmask 1041409
        %v4367 = vsel %vm4366, %v4095, %v4092
        %vm4368 = vcmask 1042434
        %v4369 = vsel %vm4368, %v4098, %v4367
        %vm4370 = vcmask 1043459
        %v4371 = vsel %vm4370, %v4101, %v4369
        %vm4372 = vcmask 1044484
        %v4373 = vsel %vm4372, %v4104, %v4371
        %vm4374 = vcmask 1045509
        %v4375 = vsel %vm4374, %v4107, %v4373
        %vm4376 = vcmask 1046534
        %v4377 = vsel %vm4376, %v4110, %v4375
        %vm4378 = vcmask 1047559
        %v4379 = vsel %vm4378, %v4113, %v4377
        %v4380 = vsel %vm4366, %v4119, %v4116
        %v4381 = vsel %vm4368, %v4122, %v4380
        %v4382 = vsel %vm4370, %v4125, %v4381
        %v4383 = vsel %vm4372, %v4128, %v4382
        %v4384 = vsel %vm4374, %v4131, %v4383
        %v4385 = vsel %vm4376, %v4134, %v4384
        %v4386 = vsel %vm4378, %v4137, %v4385
        %v4387 = vsel %vm4366, %v4143, %v4140
        %v4388 = vsel %vm4368, %v4146, %v4387
        %v4389 = vsel %vm4370, %v4149, %v4388
        %v4390 = vsel %vm4372, %v4152, %v4389
        %v4391 = vsel %vm4374, %v4155, %v4390
        %v4392 = vsel %vm4376, %v4158, %v4391
        %v4393 = vsel %vm4378, %v4161, %v4392
        %v4394 = vsel %vm4366, %v4167, %v4164
        %v4395 = vsel %vm4368, %v4170, %v4394
        %v4396 = vsel %vm4370, %v4173, %v4395
        %v4397 = vsel %vm4372, %v4176, %v4396
        %v4398 = vsel %vm4374, %v4179, %v4397
        %v4399 = vsel %vm4376, %v4182, %v4398
        %v4400 = vsel %vm4378, %v4185, %v4399
        %v4401 = vsel %vm4366, %v4191, %v4188
        %v4402 = vsel %vm4368, %v4194, %v4401
        %v4403 = vsel %vm4370, %v4197, %v4402
        %v4404 = vsel %vm4372, %v4200, %v4403
        %v4405 = vsel %vm4374, %v4203, %v4404
        %v4406 = vsel %vm4376, %v4206, %v4405
        %v4407 = vsel %vm4378, %v4209, %v4406
        %v4408 = vsel %vm4366, %v4215, %v4212
        %v4409 = vsel %vm4368, %v4218, %v4408
        %v4410 = vsel %vm4370, %v4221, %v4409
        %v4411 = vsel %vm4372, %v4224, %v4410
        %v4412 = vsel %vm4374, %v4227, %v4411
        %v4413 = vsel %vm4376, %v4230, %v4412
        %v4414 = vsel %vm4378, %v4233, %v4413
        %v4415 = vsel %vm4366, %v4239, %v4236
        %v4416 = vsel %vm4368, %v4242, %v4415
        %v4417 = vsel %vm4370, %v4245, %v4416
        %v4418 = vsel %vm4372, %v4248, %v4417
        %v4419 = vsel %vm4374, %v4251, %v4418
        %v4420 = vsel %vm4376, %v4254, %v4419
        %v4421 = vsel %vm4378, %v4257, %v4420
        %v4422 = vsel %vm4366, %v4263, %v4260
        %v4423 = vsel %vm4368, %v4266, %v4422
        %v4424 = vsel %vm4370, %v4269, %v4423
        %v4425 = vsel %vm4372, %v4272, %v4424
        %v4426 = vsel %vm4374, %v4275, %v4425
        %v4427 = vsel %vm4376, %v4278, %v4426
        %v4428 = vsel %vm4378, %v4281, %v4427
        %s4437 = scalar_lea.vmem [#allocation4], 16
        %4438 = vst.msk [vmem:[%s4437 + $0x1] sm:$0xff] %vm4089, %v4379
        %4439 = vst.msk [vmem:[%s4437 + $0x11] sm:$0xff] %vm4089, %v4386
        %4440 = vst.msk [vmem:[%s4437 + $0x21] sm:$0xff] %vm4089, %v4393
        %4441 = vst.msk [vmem:[%s4437 + $0x31] sm:$0xff] %vm4089, %v4400
        %4442 = vst.msk [vmem:[%s4437 + $0x41] sm:$0xff] %vm4089, %v4407
        %4443 = vst.msk [vmem:[%s4437 + $0x51] sm:$0xff] %vm4089, %v4414
        %4444 = vst.msk [vmem:[%s4437 + $0x61] sm:$0xff] %vm4089, %v4421
        %4445 = vst.msk [vmem:[%s4437 + $0x71] sm:$0xff] %vm4089, %v4428
        %v4446 = vld [vmem:[#allocation4] sm:$0xff]
        %v4447 = vld [vmem:[#allocation4 + $0x10] sm:$0xff]
        %v4448 = vld [vmem:[#allocation4 + $0x20] sm:$0xff]
        %v4449 = vld [vmem:[#allocation4 + $0x30] sm:$0xff]
        %v4450 = vld [vmem:[#allocation4 + $0x40] sm:$0xff]
        %v4451 = vld [vmem:[#allocation4 + $0x50] sm:$0xff]
        %v4452 = vld [vmem:[#allocation4 + $0x60] sm:$0xff]
        %v4453 = vld [vmem:[#allocation4 + $0x70] sm:$0xff]
        %4454 = vst.msk [vmem:[#allocation5] sm:$0xff] %vm4089, %v4446
        %4455 = vst.msk [vmem:[#allocation5 + $0x10] sm:$0xff] %vm4089, %v4447
        %4456 = vst.msk [vmem:[#allocation5 + $0x20] sm:$0xff] %vm4089, %v4448
        %4457 = vst.msk [vmem:[#allocation5 + $0x30] sm:$0xff] %vm4089, %v4449
        %4458 = vst.msk [vmem:[#allocation5 + $0x40] sm:$0xff] %vm4089, %v4450
        %4459 = vst.msk [vmem:[#allocation5 + $0x50] sm:$0xff] %vm4089, %v4451
        %4460 = vst.msk [vmem:[#allocation5 + $0x60] sm:$0xff] %vm4089, %v4452
        %4461 = vst.msk [vmem:[#allocation5 + $0x70] sm:$0xff] %vm4089, %v4453
        %v4462 = vld [vmem:[#allocation4 + $0x1] sm:$0xff]
        %v4463 = vld [vmem:[#allocation4 + $0x11] sm:$0xff]
        %v4464 = vld [vmem:[#allocation4 + $0x21] sm:$0xff]
        %v4465 = vld [vmem:[#allocation4 + $0x31] sm:$0xff]
        %v4466 = vld [vmem:[#allocation4 + $0x41] sm:$0xff]
        %v4467 = vld [vmem:[#allocation4 + $0x51] sm:$0xff]
        %v4468 = vld [vmem:[#allocation4 + $0x61] sm:$0xff]
        %v4469 = vld [vmem:[#allocation4 + $0x71] sm:$0xff]
        %4478 = vrot.lane.b32.xlu0 %v4462, 16
        %v4479 = vpop.permute.xlu0 %4478
        %4480 = vrot.lane.b32.xlu0 %v4463, 16
        %v4481 = vpop.permute.xlu0 %4480
        %4482 = vrot.lane.b32.xlu0 %v4464, 16
        %v4483 = vpop.permute.xlu0 %4482
        %4484 = vrot.lane.b32.xlu0 %v4465, 16
        %v4485 = vpop.permute.xlu0 %4484
        %4486 = vrot.lane.b32.xlu0 %v4466, 16
        %v4487 = vpop.permute.xlu0 %4486
        %4488 = vrot.lane.b32.xlu0 %v4467, 16
        %v4489 = vpop.permute.xlu0 %4488
        %4490 = vrot.lane.b32.xlu0 %v4468, 16
        %v4491 = vpop.permute.xlu0 %4490
        %4492 = vrot.lane.b32.xlu0 %v4469, 16
        %v4493 = vpop.permute.xlu0 %4492
        %vm4502 = vcmask 261248
        %4503 = vst.msk [vmem:[#allocation5] sm:$0xff] %vm4502, %v4479
        %4504 = vst.msk [vmem:[#allocation5 + $0x10] sm:$0xff] %vm4502, %v4481
        %4505 = vst.msk [vmem:[#allocation5 + $0x20] sm:$0xff] %vm4502, %v4483
        %4506 = vst.msk [vmem:[#allocation5 + $0x30] sm:$0xff] %vm4502, %v4485
        %4507 = vst.msk [vmem:[#allocation5 + $0x40] sm:$0xff] %vm4502, %v4487
        %4508 = vst.msk [vmem:[#allocation5 + $0x50] sm:$0xff] %vm4502, %v4489
        %4509 = vst.msk [vmem:[#allocation5 + $0x60] sm:$0xff] %vm4502, %v4491
        %4510 = vst.msk [vmem:[#allocation5 + $0x70] sm:$0xff] %vm4502, %v4493
        %v4511 = vld [vmem:[#allocation4 + $0x2] sm:$0xff]
        %v4512 = vld [vmem:[#allocation4 + $0x12] sm:$0xff]
        %v4513 = vld [vmem:[#allocation4 + $0x22] sm:$0xff]
        %v4514 = vld [vmem:[#allocation4 + $0x32] sm:$0xff]
        %v4515 = vld [vmem:[#allocation4 + $0x42] sm:$0xff]
        %v4516 = vld [vmem:[#allocation4 + $0x52] sm:$0xff]
        %v4517 = vld [vmem:[#allocation4 + $0x62] sm:$0xff]
        %v4518 = vld [vmem:[#allocation4 + $0x72] sm:$0xff]
        %4527 = vrot.lane.b32.xlu0 %v4511, 32
        %v4528 = vpop.permute.xlu0 %4527
        %4529 = vrot.lane.b32.xlu0 %v4512, 32
        %v4530 = vpop.permute.xlu0 %4529
        %4531 = vrot.lane.b32.xlu0 %v4513, 32
        %v4532 = vpop.permute.xlu0 %4531
        %4533 = vrot.lane.b32.xlu0 %v4514, 32
        %v4534 = vpop.permute.xlu0 %4533
        %4535 = vrot.lane.b32.xlu0 %v4515, 32
        %v4536 = vpop.permute.xlu0 %4535
        %4537 = vrot.lane.b32.xlu0 %v4516, 32
        %v4538 = vpop.permute.xlu0 %4537
        %4539 = vrot.lane.b32.xlu0 %v4517, 32
        %v4540 = vpop.permute.xlu0 %4539
        %4541 = vrot.lane.b32.xlu0 %v4518, 32
        %v4542 = vpop.permute.xlu0 %4541
        %vm4551 = vcmask 392448
        %4552 = vst.msk [vmem:[#allocation5] sm:$0xff] %vm4551, %v4528
        %4553 = vst.msk [vmem:[#allocation5 + $0x10] sm:$0xff] %vm4551, %v4530
        %4554 = vst.msk [vmem:[#allocation5 + $0x20] sm:$0xff] %vm4551, %v4532
        %4555 = vst.msk [vmem:[#allocation5 + $0x30] sm:$0xff] %vm4551, %v4534
        %4556 = vst.msk [vmem:[#allocation5 + $0x40] sm:$0xff] %vm4551, %v4536
        %4557 = vst.msk [vmem:[#allocation5 + $0x50] sm:$0xff] %vm4551, %v4538
        %4558 = vst.msk [vmem:[#allocation5 + $0x60] sm:$0xff] %vm4551, %v4540
        %4559 = vst.msk [vmem:[#allocation5 + $0x70] sm:$0xff] %vm4551, %v4542
        %v4560 = vld [vmem:[%s4437] sm:$0xff]
        %v4561 = vld [vmem:[%s4437 + $0x10] sm:$0xff]
        %v4562 = vld [vmem:[%s4437 + $0x20] sm:$0xff]
        %v4563 = vld [vmem:[%s4437 + $0x30] sm:$0xff]
        %v4564 = vld [vmem:[%s4437 + $0x40] sm:$0xff]
        %v4565 = vld [vmem:[%s4437 + $0x50] sm:$0xff]
        %v4566 = vld [vmem:[%s4437 + $0x60] sm:$0xff]
        %v4567 = vld [vmem:[%s4437 + $0x70] sm:$0xff]
        %4576 = vrot.lane.b32.xlu0 %v4560, 48
        %v4577 = vpop.permute.xlu0 %4576
        %4578 = vrot.lane.b32.xlu0 %v4561, 48
        %v4579 = vpop.permute.xlu0 %4578
        %4580 = vrot.lane.b32.xlu0 %v4562, 48
        %v4581 = vpop.permute.xlu0 %4580
        %4582 = vrot.lane.b32.xlu0 %v4563, 48
        %v4583 = vpop.permute.xlu0 %4582
        %4584 = vrot.lane.b32.xlu0 %v4564, 48
        %v4585 = vpop.permute.xlu0 %4584
        %4586 = vrot.lane.b32.xlu0 %v4565, 48
        %v4587 = vpop.permute.xlu0 %4586
        %4588 = vrot.lane.b32.xlu0 %v4566, 48
        %v4589 = vpop.permute.xlu0 %4588
        %4590 = vrot.lane.b32.xlu0 %v4567, 48
        %v4591 = vpop.permute.xlu0 %4590
        %vm4600 = vcmask 523648
        %4601 = vst.msk [vmem:[#allocation5] sm:$0xff] %vm4600, %v4577
        %4602 = vst.msk [vmem:[#allocation5 + $0x10] sm:$0xff] %vm4600, %v4579
        %4603 = vst.msk [vmem:[#allocation5 + $0x20] sm:$0xff] %vm4600, %v4581
        %4604 = vst.msk [vmem:[#allocation5 + $0x30] sm:$0xff] %vm4600, %v4583
        %4605 = vst.msk [vmem:[#allocation5 + $0x40] sm:$0xff] %vm4600, %v4585
        %4606 = vst.msk [vmem:[#allocation5 + $0x50] sm:$0xff] %vm4600, %v4587
        %4607 = vst.msk [vmem:[#allocation5 + $0x60] sm:$0xff] %vm4600, %v4589
        %4608 = vst.msk [vmem:[#allocation5 + $0x70] sm:$0xff] %vm4600, %v4591
        %v4609 = vld [vmem:[%s4437 + $0x1] sm:$0xff]
        %v4610 = vld [vmem:[%s4437 + $0x11] sm:$0xff]
        %v4611 = vld [vmem:[%s4437 + $0x21] sm:$0xff]
        %v4612 = vld [vmem:[%s4437 + $0x31] sm:$0xff]
        %v4613 = vld [vmem:[%s4437 + $0x41] sm:$0xff]
        %v4614 = vld [vmem:[%s4437 + $0x51] sm:$0xff]
        %v4615 = vld [vmem:[%s4437 + $0x61] sm:$0xff]
        %v4616 = vld [vmem:[%s4437 + $0x71] sm:$0xff]
        %4625 = vrot.lane.b32.xlu0 %v4609, 64
        %v4626 = vpop.permute.xlu0 %4625
        %4627 = vrot.lane.b32.xlu0 %v4610, 64
        %v4628 = vpop.permute.xlu0 %4627
        %4629 = vrot.lane.b32.xlu0 %v4611, 64
        %v4630 = vpop.permute.xlu0 %4629
        %4631 = vrot.lane.b32.xlu0 %v4612, 64
        %v4632 = vpop.permute.xlu0 %4631
        %4633 = vrot.lane.b32.xlu0 %v4613, 64
        %v4634 = vpop.permute.xlu0 %4633
        %4635 = vrot.lane.b32.xlu0 %v4614, 64
        %v4636 = vpop.permute.xlu0 %4635
        %4637 = vrot.lane.b32.xlu0 %v4615, 64
        %v4638 = vpop.permute.xlu0 %4637
        %4639 = vrot.lane.b32.xlu0 %v4616, 64
        %v4640 = vpop.permute.xlu0 %4639
        %vm4649 = vcmask 654848
        %4650 = vst.msk [vmem:[#allocation5] sm:$0xff] %vm4649, %v4626
        %4651 = vst.msk [vmem:[#allocation5 + $0x10] sm:$0xff] %vm4649, %v4628
        %4652 = vst.msk [vmem:[#allocation5 + $0x20] sm:$0xff] %vm4649, %v4630
        %4653 = vst.msk [vmem:[#allocation5 + $0x30] sm:$0xff] %vm4649, %v4632
        %4654 = vst.msk [vmem:[#allocation5 + $0x40] sm:$0xff] %vm4649, %v4634
        %4655 = vst.msk [vmem:[#allocation5 + $0x50] sm:$0xff] %vm4649, %v4636
        %4656 = vst.msk [vmem:[#allocation5 + $0x60] sm:$0xff] %vm4649, %v4638
        %4657 = vst.msk [vmem:[#allocation5 + $0x70] sm:$0xff] %vm4649, %v4640
        %v4658 = vld [vmem:[%s4437 + $0x2] sm:$0xff]
        %v4659 = vld [vmem:[%s4437 + $0x12] sm:$0xff]
        %v4660 = vld [vmem:[%s4437 + $0x22] sm:$0xff]
        %v4661 = vld [vmem:[%s4437 + $0x32] sm:$0xff]
        %v4662 = vld [vmem:[%s4437 + $0x42] sm:$0xff]
        %v4663 = vld [vmem:[%s4437 + $0x52] sm:$0xff]
        %v4664 = vld [vmem:[%s4437 + $0x62] sm:$0xff]
        %v4665 = vld [vmem:[%s4437 + $0x72] sm:$0xff]
        %4674 = vrot.lane.b32.xlu0 %v4658, 80
        %v4675 = vpop.permute.xlu0 %4674
        %4676 = vrot.lane.b32.xlu0 %v4659, 80
        %v4677 = vpop.permute.xlu0 %4676
        %4678 = vrot.lane.b32.xlu0 %v4660, 80
        %v4679 = vpop.permute.xlu0 %4678
        %4680 = vrot.lane.b32.xlu0 %v4661, 80
        %v4681 = vpop.permute.xlu0 %4680
        %4682 = vrot.lane.b32.xlu0 %v4662, 80
        %v4683 = vpop.permute.xlu0 %4682
        %4684 = vrot.lane.b32.xlu0 %v4663, 80
        %v4685 = vpop.permute.xlu0 %4684
        %4686 = vrot.lane.b32.xlu0 %v4664, 80
        %v4687 = vpop.permute.xlu0 %4686
        %4688 = vrot.lane.b32.xlu0 %v4665, 80
        %v4689 = vpop.permute.xlu0 %4688
        %vm4698 = vcmask 786048
        %4699 = vst.msk [vmem:[#allocation5] sm:$0xff] %vm4698, %v4675
        %4700 = vst.msk [vmem:[#allocation5 + $0x10] sm:$0xff] %vm4698, %v4677
        %4701 = vst.msk [vmem:[#allocation5 + $0x20] sm:$0xff] %vm4698, %v4679
        %4702 = vst.msk [vmem:[#allocation5 + $0x30] sm:$0xff] %vm4698, %v4681
        %4703 = vst.msk [vmem:[#allocation5 + $0x40] sm:$0xff] %vm4698, %v4683
        %4704 = vst.msk [vmem:[#allocation5 + $0x50] sm:$0xff] %vm4698, %v4685
        %4705 = vst.msk [vmem:[#allocation5 + $0x60] sm:$0xff] %vm4698, %v4687
        %4706 = vst.msk [vmem:[#allocation5 + $0x70] sm:$0xff] %vm4698, %v4689
        %s4707 = scalar_lea.vmem [#allocation4], 32
        %v4708 = vld [vmem:[%s4707] sm:$0xff]
        %v4709 = vld [vmem:[%s4707 + $0x10] sm:$0xff]
        %v4710 = vld [vmem:[%s4707 + $0x20] sm:$0xff]
        %v4711 = vld [vmem:[%s4707 + $0x30] sm:$0xff]
        %v4712 = vld [vmem:[%s4707 + $0x40] sm:$0xff]
        %v4713 = vld [vmem:[%s4707 + $0x50] sm:$0xff]
        %v4714 = vld [vmem:[%s4707 + $0x60] sm:$0xff]
        %v4715 = vld [vmem:[%s4707 + $0x70] sm:$0xff]
        %4724 = vrot.lane.b32.xlu0 %v4708, 96
        %v4725 = vpop.permute.xlu0 %4724
        %4726 = vrot.lane.b32.xlu0 %v4709, 96
        %v4727 = vpop.permute.xlu0 %4726
        %4728 = vrot.lane.b32.xlu0 %v4710, 96
        %v4729 = vpop.permute.xlu0 %4728
        %4730 = vrot.lane.b32.xlu0 %v4711, 96
        %v4731 = vpop.permute.xlu0 %4730
        %4732 = vrot.lane.b32.xlu0 %v4712, 96
        %v4733 = vpop.permute.xlu0 %4732
        %4734 = vrot.lane.b32.xlu0 %v4713, 96
        %v4735 = vpop.permute.xlu0 %4734
        %4736 = vrot.lane.b32.xlu0 %v4714, 96
        %v4737 = vpop.permute.xlu0 %4736
        %4738 = vrot.lane.b32.xlu0 %v4715, 96
        %v4739 = vpop.permute.xlu0 %4738
        %vm4748 = vcmask 917248
        %4749 = vst.msk [vmem:[#allocation5] sm:$0xff] %vm4748, %v4725
        %4750 = vst.msk [vmem:[#allocation5 + $0x10] sm:$0xff] %vm4748, %v4727
        %4751 = vst.msk [vmem:[#allocation5 + $0x20] sm:$0xff] %vm4748, %v4729
        %4752 = vst.msk [vmem:[#allocation5 + $0x30] sm:$0xff] %vm4748, %v4731
        %4753 = vst.msk [vmem:[#allocation5 + $0x40] sm:$0xff] %vm4748, %v4733
        %4754 = vst.msk [vmem:[#allocation5 + $0x50] sm:$0xff] %vm4748, %v4735
        %4755 = vst.msk [vmem:[#allocation5 + $0x60] sm:$0xff] %vm4748, %v4737
        %4756 = vst.msk [vmem:[#allocation5 + $0x70] sm:$0xff] %vm4748, %v4739
        %v4757 = vld [vmem:[%s4707 + $0x1] sm:$0xff]
        %v4758 = vld [vmem:[%s4707 + $0x11] sm:$0xff]
        %v4759 = vld [vmem:[%s4707 + $0x21] sm:$0xff]
        %v4760 = vld [vmem:[%s4707 + $0x31] sm:$0xff]
        %v4761 = vld [vmem:[%s4707 + $0x41] sm:$0xff]
        %v4762 = vld [vmem:[%s4707 + $0x51] sm:$0xff]
        %v4763 = vld [vmem:[%s4707 + $0x61] sm:$0xff]
        %v4764 = vld [vmem:[%s4707 + $0x71] sm:$0xff]
        %4773 = vrot.lane.b32.xlu0 %v4757, 112
        %v4774 = vpop.permute.xlu0 %4773
        %4775 = vrot.lane.b32.xlu0 %v4758, 112
        %v4776 = vpop.permute.xlu0 %4775
        %4777 = vrot.lane.b32.xlu0 %v4759, 112
        %v4778 = vpop.permute.xlu0 %4777
        %4779 = vrot.lane.b32.xlu0 %v4760, 112
        %v4780 = vpop.permute.xlu0 %4779
        %4781 = vrot.lane.b32.xlu0 %v4761, 112
        %v4782 = vpop.permute.xlu0 %4781
        %4783 = vrot.lane.b32.xlu0 %v4762, 112
        %v4784 = vpop.permute.xlu0 %4783
        %4785 = vrot.lane.b32.xlu0 %v4763, 112
        %v4786 = vpop.permute.xlu0 %4785
        %4787 = vrot.lane.b32.xlu0 %v4764, 112
        %v4788 = vpop.permute.xlu0 %4787
        %vm4797 = vcmask 1048448
        %4798 = vst.msk [vmem:[#allocation5] sm:$0xff] %vm4797, %v4774
        %4799 = vst.msk [vmem:[#allocation5 + $0x10] sm:$0xff] %vm4797, %v4776
        %4800 = vst.msk [vmem:[#allocation5 + $0x20] sm:$0xff] %vm4797, %v4778
        %4801 = vst.msk [vmem:[#allocation5 + $0x30] sm:$0xff] %vm4797, %v4780
        %4802 = vst.msk [vmem:[#allocation5 + $0x40] sm:$0xff] %vm4797, %v4782
        %4803 = vst.msk [vmem:[#allocation5 + $0x50] sm:$0xff] %vm4797, %v4784
        %4804 = vst.msk [vmem:[#allocation5 + $0x60] sm:$0xff] %vm4797, %v4786
        %4805 = vst.msk [vmem:[#allocation5 + $0x70] sm:$0xff] %vm4797, %v4788
        %v4806 = vld [vmem:[%s4707 + $0x2] sm:$0xff]
        %v4807 = vld [vmem:[%s4707 + $0x12] sm:$0xff]
        %v4808 = vld [vmem:[%s4707 + $0x22] sm:$0xff]
        %v4809 = vld [vmem:[%s4707 + $0x32] sm:$0xff]
        %v4810 = vld [vmem:[%s4707 + $0x42] sm:$0xff]
        %v4811 = vld [vmem:[%s4707 + $0x52] sm:$0xff]
        %v4812 = vld [vmem:[%s4707 + $0x62] sm:$0xff]
        %v4813 = vld [vmem:[%s4707 + $0x72] sm:$0xff]
        %4814 = vst.msk [vmem:[#allocation5 + $0x8] sm:$0xff] %vm4089, %v4806
        %4815 = vst.msk [vmem:[#allocation5 + $0x18] sm:$0xff] %vm4089, %v4807
        %4816 = vst.msk [vmem:[#allocation5 + $0x28] sm:$0xff] %vm4089, %v4808
        %4817 = vst.msk [vmem:[#allocation5 + $0x38] sm:$0xff] %vm4089, %v4809
        %4818 = vst.msk [vmem:[#allocation5 + $0x48] sm:$0xff] %vm4089, %v4810
        %4819 = vst.msk [vmem:[#allocation5 + $0x58] sm:$0xff] %vm4089, %v4811
        %4820 = vst.msk [vmem:[#allocation5 + $0x68] sm:$0xff] %vm4089, %v4812
        %4821 = vst.msk [vmem:[#allocation5 + $0x78] sm:$0xff] %vm4089, %v4813
        %v4822 = vld [vmem:[#allocation5] sm:$0xff]
        %v4823 = vld [vmem:[#allocation5 + $0x8] sm:$0xff]
        %v4824 = vld [vmem:[#allocation5 + $0x10] sm:$0xff]
        %v4825 = vld [vmem:[#allocation5 + $0x18] sm:$0xff]
        %v4826 = vld [vmem:[#allocation5 + $0x20] sm:$0xff]
        %v4827 = vld [vmem:[#allocation5 + $0x28] sm:$0xff]
        %v4828 = vld [vmem:[#allocation5 + $0x30] sm:$0xff]
        %v4829 = vld [vmem:[#allocation5 + $0x38] sm:$0xff]
        %v4830 = vld [vmem:[#allocation5 + $0x40] sm:$0xff]
        %v4831 = vld [vmem:[#allocation5 + $0x48] sm:$0xff]
        %v4832 = vld [vmem:[#allocation5 + $0x50] sm:$0xff]
        %v4833 = vld [vmem:[#allocation5 + $0x58] sm:$0xff]
        %v4834 = vld [vmem:[#allocation5 + $0x60] sm:$0xff]
        %v4835 = vld [vmem:[#allocation5 + $0x68] sm:$0xff]
        %v4836 = vld [vmem:[#allocation5 + $0x70] sm:$0xff]
        %v4837 = vld [vmem:[#allocation5 + $0x78] sm:$0xff]
        %v4838 = vpack.c.bf16 %v4824, %v4822
        %v4839 = vpack.c.bf16 %v4825, %v4823
        %v4840 = vpack.c.bf16 %v4828, %v4826
        %v4841 = vpack.c.bf16 %v4829, %v4827
        %v4842 = vpack.c.bf16 %v4832, %v4830
        %v4843 = vpack.c.bf16 %v4833, %v4831
        %v4844 = vpack.c.bf16 %v4836, %v4834
        %v4845 = vpack.c.bf16 %v4837, %v4835
        %v4846 = vld [vmem:[%s3] sm:$0xf]
        %v4847 = vld [vmem:[%s3 + $0x4] sm:$0xf]
        %v4848 = vld [vmem:[%s3 + $0x8] sm:$0xf]
        %v4849 = vld [vmem:[%s3 + $0xc] sm:$0xf]
        %v4850 = vld [vmem:[%s3 + $0x10] sm:$0xf]
        %v4851 = vld [vmem:[%s3 + $0x14] sm:$0xf]
        %v4852 = vld [vmem:[%s3 + $0x18] sm:$0xf]
        %v4853 = vld [vmem:[%s3 + $0x1c] sm:$0xf]
        %v4854 = vld [vmem:[%s3 + $0x20] sm:$0xf]
        %v4855 = vld [vmem:[%s3 + $0x24] sm:$0xf]
        %v4856 = vld [vmem:[%s3 + $0x28] sm:$0xf]
        %v4857 = vld [vmem:[%s3 + $0x2c] sm:$0xf]
        %v4858 = vld [vmem:[%s3 + $0x30] sm:$0xf]
        %v4859 = vld [vmem:[%s3 + $0x34] sm:$0xf]
        %v4860 = vld [vmem:[%s3 + $0x38] sm:$0xf]
        %v4861 = vld [vmem:[%s3 + $0x3c] sm:$0xf]
        %v4862 = vld [vmem:[%s3 + $0x40] sm:$0xf]
        %v4863 = vld [vmem:[%s3 + $0x44] sm:$0xf]
        %v4864 = vld [vmem:[%s4] sm:$0x1]
        %v4866 = vlaneseq
        %v4867 = vshrl.u32 %v4866, 7
        %v4868 = vsub.s32 0, %v4867
        %v4869 = vrot.slane %v4864, %v4868
        %v4889 = vunpack.c.l.b16 %v4846
        %v4890 = vunpack.c.l.b16 %v4847
        %v4891 = vunpack.c.l.b16 %v4848
        %v4892 = vunpack.c.l.b16 %v4849
        %v4893 = vunpack.c.l.b16 %v4850
        %v4894 = vunpack.c.l.b16 %v4851
        %v4895 = vunpack.c.l.b16 %v4852
        %v4896 = vunpack.c.l.b16 %v4853
        %v4897 = vunpack.c.l.b16 %v4854
        %v4898 = vunpack.c.l.b16 %v4855
        %v4899 = vunpack.c.l.b16 %v4856
        %v4900 = vunpack.c.l.b16 %v4857
        %v4901 = vunpack.c.l.b16 %v4858
        %v4902 = vunpack.c.l.b16 %v4859
        %v4903 = vunpack.c.l.b16 %v4860
        %v4904 = vunpack.c.l.b16 %v4861
        %v4905 = vunpack.c.l.b16 %v4862
        %v4906 = vunpack.c.l.b16 %v4863
        %v4907 = vpack.c.b16 %v4890, %v4889
        %v4908 = vpack.c.b16 %v4892, %v4891
        %v4909 = vpack.c.b16 %v4894, %v4893
        %v4910 = vpack.c.b16 %v4896, %v4895
        %v4911 = vpack.c.b16 %v4898, %v4897
        %v4912 = vpack.c.b16 %v4900, %v4899
        %v4913 = vpack.c.b16 %v4902, %v4901
        %v4914 = vpack.c.b16 %v4904, %v4903
        %v4915 = vpack.c.b16 %v4906, %v4905
        %v4926 = vsel %vm4089, %v4839, 0
        %v4929 = vsel %vm4089, %v4841, 0
        %v4932 = vsel %vm4089, %v4843, 0
        %v4935 = vsel %vm4089, %v4845, 0
        %4937 = vmatprep.subr.bf16.mxu0 0
        %4938 = vmatpush1.bf16.msra.mxu0 %v4907
        %4939 = vmatprep.subr.bf16.mxu0 0
        %4940 = vmatpush1.bf16.msra.mxu0 %v4908
        %4941 = vmatprep.subr.bf16.mxu0 0
        %4942 = vmatpush1.bf16.msra.mxu0 %v4909
        %4943 = vmatprep.subr.bf16.mxu0 0
        %4944 = vmatpush1.bf16.msra.mxu0 %v4910
        %4945 = vmatprep.subr.bf16.mxu0 0
        %4946 = vmatpush1.bf16.msra.mxu0 %v4911
        %4947 = vmatprep.subr.bf16.mxu0 0
        %4948 = vmatpush1.bf16.msra.mxu0 %v4912
        %4949 = vmatprep.subr.bf16.mxu0 0
        %4950 = vmatpush1.bf16.msra.mxu0 %v4913
        %4951 = vmatprep.subr.bf16.mxu0 0
        %4952 = vmatpush1.bf16.msra.mxu0 %v4914
        %4953 = vmatprep.subr.bf16.mxu0 0
        %4954 = vmatpush1.bf16.msra.mxu0 %v4915
        %4955 = vmatprep.subr.bf16.mxu0 0
        %4956 = vmatpush1.bf16.msra.mxu0 0
        %4957 = vmatprep.subr.bf16.mxu0 0
        %4958 = vmatpush1.bf16.msra.mxu0 0
        %4959 = vmatprep.subr.bf16.mxu0 0
        %4960 = vmatpush1.bf16.msra.mxu0 0
        %4961 = vmatprep.subr.bf16.mxu0 0
        %4962 = vmatpush1.bf16.msra.mxu0 0
        %4963 = vmatprep.subr.bf16.mxu0 0
        %4964 = vmatpush1.bf16.msra.mxu0 0
        %4965 = vmatprep.subr.bf16.mxu0 0
        %4966 = vmatpush1.bf16.msra.mxu0 0
        %4967 = vmatprep.subr.bf16.mxu0 0
        %4968 = vmatpush1.bf16.msra.mxu0 0
        %4969 = vmatprep.mubr.bf16.mxu0 %v4926
        %4970 = vmatmul.mubr.bf16.gmra.mrb[0].mxu0 %v4838
        %v4971 = vpop.f32.mrb[0].mxu0
        %v4972 = vadd.f32 %v4869, %v4971
        %v4973 = vpop.f32.mrb[0].mxu0
        %v4974 = vpop.f32.mrb[0].mxu0
        %v4975 = vadd.f32 %v4869, %v4974
        %v4976 = vpop.f32.mrb[0].mxu0
        %4977 = vmatprep.mubr.bf16.mxu0 %v4929
        %4978 = vmatmul.mubr.bf16.gmra.mrb[0].mxu0 %v4840
        %v4979 = vpop.f32.mrb[0].mxu0
        %v4980 = vadd.f32 %v4869, %v4979
        %v4981 = vpop.f32.mrb[0].mxu0
        %v4982 = vpop.f32.mrb[0].mxu0
        %v4983 = vadd.f32 %v4869, %v4982
        %v4984 = vpop.f32.mrb[0].mxu0
        %4985 = vmatprep.mubr.bf16.mxu0 %v4932
        %4986 = vmatmul.mubr.bf16.gmra.mrb[0].mxu0 %v4842
        %v4987 = vpop.f32.mrb[0].mxu0
        %v4988 = vadd.f32 %v4869, %v4987
        %v4989 = vpop.f32.mrb[0].mxu0
        %v4990 = vpop.f32.mrb[0].mxu0
        %v4991 = vadd.f32 %v4869, %v4990
        %v4992 = vpop.f32.mrb[0].mxu0
        %4993 = vmatprep.mubr.bf16.mxu0 %v4935
        %4994 = vmatmul.mubr.bf16.gmra.mrb[0].mxu0 %v4844
        %v4995 = vpop.f32.mrb[0].mxu0
        %v4996 = vadd.f32 %v4869, %v4995
        %v4997 = vpop.f32.mrb[0].mxu0
        %v4998 = vpop.f32.mrb[0].mxu0
        %v4999 = vadd.f32 %v4869, %v4998
        %v5000 = vpop.f32.mrb[0].mxu0
        %5001 = vdwg.mxu0
        %v5002 = vmax.f32 %v4972, 0.0
        %v5003 = vmax.f32 %v4975, 0.0
        %v5004 = vmax.f32 %v4980, 0.0
        %v5005 = vmax.f32 %v4983, 0.0
        %v5006 = vmax.f32 %v4988, 0.0
        %v5007 = vmax.f32 %v4991, 0.0
        %v5008 = vmax.f32 %v4996, 0.0
        %v5009 = vmax.f32 %v4999, 0.0
        %vm5010 = vcmask 261120
        %5011 = vst.msk [vmem:[#allocation6] sm:$0xff] %vm5010, 0.0
        %vm5012 = vcmask 254976
        %5013 = vst.msk [vmem:[#allocation6 + $0x8] sm:$0x3] %vm5012, 0.0
        %5014 = vst.msk [vmem:[#allocation6 + $0x10] sm:$0xff] %vm5010, 0.0
        %5015 = vst.msk [vmem:[#allocation6 + $0x18] sm:$0x3] %vm5012, 0.0
        %5016 = vst.msk [vmem:[#allocation6 + $0x20] sm:$0xff] %vm5010, 0.0
        %5017 = vst.msk [vmem:[#allocation6 + $0x28] sm:$0x3] %vm5012, 0.0
        %5018 = vst.msk [vmem:[#allocation6 + $0x30] sm:$0xff] %vm5010, 0.0
        %5019 = vst.msk [vmem:[#allocation6 + $0x38] sm:$0x3] %vm5012, 0.0
        %5020 = vst.msk [vmem:[#allocation6 + $0x40] sm:$0xff] %vm5010, 0.0
        %5021 = vst.msk [vmem:[#allocation6 + $0x48] sm:$0x3] %vm5012, 0.0
        %5022 = vst.msk [vmem:[#allocation6 + $0x50] sm:$0xff] %vm5010, 0.0
        %5023 = vst.msk [vmem:[#allocation6 + $0x58] sm:$0x3] %vm5012, 0.0
        %5024 = vst.msk [vmem:[#allocation6 + $0x60] sm:$0xff] %vm5010, 0.0
        %5025 = vst.msk [vmem:[#allocation6 + $0x68] sm:$0x3] %vm5012, 0.0
        %5026 = vst.msk [vmem:[#allocation6 + $0x70] sm:$0xff] %vm5010, 0.0
        %5027 = vst.msk [vmem:[#allocation6 + $0x78] sm:$0x3] %vm5012, 0.0
        %5028 = vst.msk [vmem:[#allocation6 + $0x80] sm:$0xff] %vm5010, 0.0
        %5029 = vst.msk [vmem:[#allocation6 + $0x88] sm:$0x3] %vm5012, 0.0
        %5030 = vst.msk [vmem:[#allocation6 + $0x90] sm:$0xff] %vm5010, 0.0
        %5031 = vst.msk [vmem:[#allocation6 + $0x98] sm:$0x3] %vm5012, 0.0
        %s5032 = scalar_lea.vmem [#allocation6], 16
        %5033 = vst.msk [vmem:[%s5032 + $0x1] sm:$0xff] %vm5010, %v5002
        %5034 = vst.msk [vmem:[%s5032 + $0x11] sm:$0xff] %vm5010, %v5003
        %5035 = vst.msk [vmem:[%s5032 + $0x21] sm:$0xff] %vm5010, %v5004
        %5036 = vst.msk [vmem:[%s5032 + $0x31] sm:$0xff] %vm5010, %v5005
        %5037 = vst.msk [vmem:[%s5032 + $0x41] sm:$0xff] %vm5010, %v5006
        %5038 = vst.msk [vmem:[%s5032 + $0x51] sm:$0xff] %vm5010, %v5007
        %5039 = vst.msk [vmem:[%s5032 + $0x61] sm:$0xff] %vm5010, %v5008
        %5040 = vst.msk [vmem:[%s5032 + $0x71] sm:$0xff] %vm5010, %v5009
        %v5041 = vld [vmem:[#allocation6] sm:$0xff]
        %v5042 = vld [vmem:[#allocation6 + $0x10] sm:$0xff]
        %v5043 = vld [vmem:[#allocation6 + $0x20] sm:$0xff]
        %v5044 = vld [vmem:[#allocation6 + $0x30] sm:$0xff]
        %v5045 = vld [vmem:[#allocation6 + $0x40] sm:$0xff]
        %v5046 = vld [vmem:[#allocation6 + $0x50] sm:$0xff]
        %v5047 = vld [vmem:[#allocation6 + $0x60] sm:$0xff]
        %v5048 = vld [vmem:[#allocation6 + $0x70] sm:$0xff]
        %5049 = vst.msk [vmem:[#allocation7] sm:$0xff] %vm5010, %v5041
        %5050 = vst.msk [vmem:[#allocation7 + $0x18] sm:$0xff] %vm5010, %v5042
        %5051 = vst.msk [vmem:[#allocation7 + $0x30] sm:$0xff] %vm5010, %v5043
        %5052 = vst.msk [vmem:[#allocation7 + $0x48] sm:$0xff] %vm5010, %v5044
        %5053 = vst.msk [vmem:[#allocation7 + $0x60] sm:$0xff] %vm5010, %v5045
        %5054 = vst.msk [vmem:[#allocation7 + $0x78] sm:$0xff] %vm5010, %v5046
        %5055 = vst.msk [vmem:[#allocation7 + $0x90] sm:$0xff] %vm5010, %v5047
        %5056 = vst.msk [vmem:[#allocation7 + $0xa8] sm:$0xff] %vm5010, %v5048
        %v5057 = vld [vmem:[#allocation6 + $0x1] sm:$0xff]
        %v5058 = vld [vmem:[#allocation6 + $0x11] sm:$0xff]
        %v5059 = vld [vmem:[#allocation6 + $0x21] sm:$0xff]
        %v5060 = vld [vmem:[#allocation6 + $0x31] sm:$0xff]
        %v5061 = vld [vmem:[#allocation6 + $0x41] sm:$0xff]
        %v5062 = vld [vmem:[#allocation6 + $0x51] sm:$0xff]
        %v5063 = vld [vmem:[#allocation6 + $0x61] sm:$0xff]
        %v5064 = vld [vmem:[#allocation6 + $0x71] sm:$0xff]
        %5073 = vrot.lane.b32.xlu0 %v5057, 32
        %v5074 = vpop.permute.xlu0 %5073
        %5075 = vrot.lane.b32.xlu0 %v5058, 32
        %v5076 = vpop.permute.xlu0 %5075
        %5077 = vrot.lane.b32.xlu0 %v5059, 32
        %v5078 = vpop.permute.xlu0 %5077
        %5079 = vrot.lane.b32.xlu0 %v5060, 32
        %v5080 = vpop.permute.xlu0 %5079
        %5081 = vrot.lane.b32.xlu0 %v5061, 32
        %v5082 = vpop.permute.xlu0 %5081
        %5083 = vrot.lane.b32.xlu0 %v5062, 32
        %v5084 = vpop.permute.xlu0 %5083
        %5085 = vrot.lane.b32.xlu0 %v5063, 32
        %v5086 = vpop.permute.xlu0 %5085
        %5087 = vrot.lane.b32.xlu0 %v5064, 32
        %v5088 = vpop.permute.xlu0 %5087
        %vm5097 = vcmask 523520
        %5098 = vst.msk [vmem:[#allocation7] sm:$0xff] %vm5097, %v5074
        %5099 = vst.msk [vmem:[#allocation7 + $0x18] sm:$0xff] %vm5097, %v5076
        %5100 = vst.msk [vmem:[#allocation7 + $0x30] sm:$0xff] %vm5097, %v5078
        %5101 = vst.msk [vmem:[#allocation7 + $0x48] sm:$0xff] %vm5097, %v5080
        %5102 = vst.msk [vmem:[#allocation7 + $0x60] sm:$0xff] %vm5097, %v5082
        %5103 = vst.msk [vmem:[#allocation7 + $0x78] sm:$0xff] %vm5097, %v5084
        %5104 = vst.msk [vmem:[#allocation7 + $0x90] sm:$0xff] %vm5097, %v5086
        %5105 = vst.msk [vmem:[#allocation7 + $0xa8] sm:$0xff] %vm5097, %v5088
        %v5106 = vld [vmem:[#allocation6 + $0x2] sm:$0xff]
        %v5107 = vld [vmem:[#allocation6 + $0x12] sm:$0xff]
        %v5108 = vld [vmem:[#allocation6 + $0x22] sm:$0xff]
        %v5109 = vld [vmem:[#allocation6 + $0x32] sm:$0xff]
        %v5110 = vld [vmem:[#allocation6 + $0x42] sm:$0xff]
        %v5111 = vld [vmem:[#allocation6 + $0x52] sm:$0xff]
        %v5112 = vld [vmem:[#allocation6 + $0x62] sm:$0xff]
        %v5113 = vld [vmem:[#allocation6 + $0x72] sm:$0xff]
        %5122 = vrot.lane.b32.xlu0 %v5106, 64
        %v5123 = vpop.permute.xlu0 %5122
        %5124 = vrot.lane.b32.xlu0 %v5107, 64
        %v5125 = vpop.permute.xlu0 %5124
        %5126 = vrot.lane.b32.xlu0 %v5108, 64
        %v5127 = vpop.permute.xlu0 %5126
        %5128 = vrot.lane.b32.xlu0 %v5109, 64
        %v5129 = vpop.permute.xlu0 %5128
        %5130 = vrot.lane.b32.xlu0 %v5110, 64
        %v5131 = vpop.permute.xlu0 %5130
        %5132 = vrot.lane.b32.xlu0 %v5111, 64
        %v5133 = vpop.permute.xlu0 %5132
        %5134 = vrot.lane.b32.xlu0 %v5112, 64
        %v5135 = vpop.permute.xlu0 %5134
        %5136 = vrot.lane.b32.xlu0 %v5113, 64
        %v5137 = vpop.permute.xlu0 %5136
        %vm5146 = vcmask 785920
        %5147 = vst.msk [vmem:[#allocation7] sm:$0xff] %vm5146, %v5123
        %5148 = vst.msk [vmem:[#allocation7 + $0x18] sm:$0xff] %vm5146, %v5125
        %5149 = vst.msk [vmem:[#allocation7 + $0x30] sm:$0xff] %vm5146, %v5127
        %5150 = vst.msk [vmem:[#allocation7 + $0x48] sm:$0xff] %vm5146, %v5129
        %5151 = vst.msk [vmem:[#allocation7 + $0x60] sm:$0xff] %vm5146, %v5131
        %5152 = vst.msk [vmem:[#allocation7 + $0x78] sm:$0xff] %vm5146, %v5133
        %5153 = vst.msk [vmem:[#allocation7 + $0x90] sm:$0xff] %vm5146, %v5135
        %5154 = vst.msk [vmem:[#allocation7 + $0xa8] sm:$0xff] %vm5146, %v5137
        %v5155 = vld [vmem:[%s5032] sm:$0xff]
        %v5156 = vld [vmem:[%s5032 + $0x10] sm:$0xff]
        %v5157 = vld [vmem:[%s5032 + $0x20] sm:$0xff]
        %v5158 = vld [vmem:[%s5032 + $0x30] sm:$0xff]
        %v5159 = vld [vmem:[%s5032 + $0x40] sm:$0xff]
        %v5160 = vld [vmem:[%s5032 + $0x50] sm:$0xff]
        %v5161 = vld [vmem:[%s5032 + $0x60] sm:$0xff]
        %v5162 = vld [vmem:[%s5032 + $0x70] sm:$0xff]
        %5171 = vrot.lane.b32.xlu0 %v5155, 96
        %v5172 = vpop.permute.xlu0 %5171
        %5173 = vrot.lane.b32.xlu0 %v5156, 96
        %v5174 = vpop.permute.xlu0 %5173
        %5175 = vrot.lane.b32.xlu0 %v5157, 96
        %v5176 = vpop.permute.xlu0 %5175
        %5177 = vrot.lane.b32.xlu0 %v5158, 96
        %v5178 = vpop.permute.xlu0 %5177
        %5179 = vrot.lane.b32.xlu0 %v5159, 96
        %v5180 = vpop.permute.xlu0 %5179
        %5181 = vrot.lane.b32.xlu0 %v5160, 96
        %v5182 = vpop.permute.xlu0 %5181
        %5183 = vrot.lane.b32.xlu0 %v5161, 96
        %v5184 = vpop.permute.xlu0 %5183
        %5185 = vrot.lane.b32.xlu0 %v5162, 96
        %v5186 = vpop.permute.xlu0 %5185
        %vm5195 = vcmask 1048320
        %5196 = vst.msk [vmem:[#allocation7] sm:$0xff] %vm5195, %v5172
        %5197 = vst.msk [vmem:[#allocation7 + $0x18] sm:$0xff] %vm5195, %v5174
        %5198 = vst.msk [vmem:[#allocation7 + $0x30] sm:$0xff] %vm5195, %v5176
        %5199 = vst.msk [vmem:[#allocation7 + $0x48] sm:$0xff] %vm5195, %v5178
        %5200 = vst.msk [vmem:[#allocation7 + $0x60] sm:$0xff] %vm5195, %v5180
        %5201 = vst.msk [vmem:[#allocation7 + $0x78] sm:$0xff] %vm5195, %v5182
        %5202 = vst.msk [vmem:[#allocation7 + $0x90] sm:$0xff] %vm5195, %v5184
        %5203 = vst.msk [vmem:[#allocation7 + $0xa8] sm:$0xff] %vm5195, %v5186
        %v5204 = vld [vmem:[%s5032 + $0x1] sm:$0xff]
        %v5205 = vld [vmem:[%s5032 + $0x11] sm:$0xff]
        %v5206 = vld [vmem:[%s5032 + $0x21] sm:$0xff]
        %v5207 = vld [vmem:[%s5032 + $0x31] sm:$0xff]
        %v5208 = vld [vmem:[%s5032 + $0x41] sm:$0xff]
        %v5209 = vld [vmem:[%s5032 + $0x51] sm:$0xff]
        %v5210 = vld [vmem:[%s5032 + $0x61] sm:$0xff]
        %v5211 = vld [vmem:[%s5032 + $0x71] sm:$0xff]
        %5212 = vst.msk [vmem:[#allocation7 + $0x8] sm:$0xff] %vm5010, %v5204
        %5213 = vst.msk [vmem:[#allocation7 + $0x20] sm:$0xff] %vm5010, %v5205
        %5214 = vst.msk [vmem:[#allocation7 + $0x38] sm:$0xff] %vm5010, %v5206
        %5215 = vst.msk [vmem:[#allocation7 + $0x50] sm:$0xff] %vm5010, %v5207
        %5216 = vst.msk [vmem:[#allocation7 + $0x68] sm:$0xff] %vm5010, %v5208
        %5217 = vst.msk [vmem:[#allocation7 + $0x80] sm:$0xff] %vm5010, %v5209
        %5218 = vst.msk [vmem:[#allocation7 + $0x98] sm:$0xff] %vm5010, %v5210
        %5219 = vst.msk [vmem:[#allocation7 + $0xb0] sm:$0xff] %vm5010, %v5211
        %v5220 = vld [vmem:[%s5032 + $0x2] sm:$0xff]
        %v5221 = vld [vmem:[%s5032 + $0x12] sm:$0xff]
        %v5222 = vld [vmem:[%s5032 + $0x22] sm:$0xff]
        %v5223 = vld [vmem:[%s5032 + $0x32] sm:$0xff]
        %v5224 = vld [vmem:[%s5032 + $0x42] sm:$0xff]
        %v5225 = vld [vmem:[%s5032 + $0x52] sm:$0xff]
        %v5226 = vld [vmem:[%s5032 + $0x62] sm:$0xff]
        %v5227 = vld [vmem:[%s5032 + $0x72] sm:$0xff]
        %5236 = vrot.lane.b32.xlu0 %v5220, 32
        %v5237 = vpop.permute.xlu0 %5236
        %5238 = vrot.lane.b32.xlu0 %v5221, 32
        %v5239 = vpop.permute.xlu0 %5238
        %5240 = vrot.lane.b32.xlu0 %v5222, 32
        %v5241 = vpop.permute.xlu0 %5240
        %5242 = vrot.lane.b32.xlu0 %v5223, 32
        %v5243 = vpop.permute.xlu0 %5242
        %5244 = vrot.lane.b32.xlu0 %v5224, 32
        %v5245 = vpop.permute.xlu0 %5244
        %5246 = vrot.lane.b32.xlu0 %v5225, 32
        %v5247 = vpop.permute.xlu0 %5246
        %5248 = vrot.lane.b32.xlu0 %v5226, 32
        %v5249 = vpop.permute.xlu0 %5248
        %5250 = vrot.lane.b32.xlu0 %v5227, 32
        %v5251 = vpop.permute.xlu0 %5250
        %5260 = vst.msk [vmem:[#allocation7 + $0x8] sm:$0xff] %vm5097, %v5237
        %5261 = vst.msk [vmem:[#allocation7 + $0x20] sm:$0xff] %vm5097, %v5239
        %5262 = vst.msk [vmem:[#allocation7 + $0x38] sm:$0xff] %vm5097, %v5241
        %5263 = vst.msk [vmem:[#allocation7 + $0x50] sm:$0xff] %vm5097, %v5243
        %5264 = vst.msk [vmem:[#allocation7 + $0x68] sm:$0xff] %vm5097, %v5245
        %5265 = vst.msk [vmem:[#allocation7 + $0x80] sm:$0xff] %vm5097, %v5247
        %5266 = vst.msk [vmem:[#allocation7 + $0x98] sm:$0xff] %vm5097, %v5249
        %5267 = vst.msk [vmem:[#allocation7 + $0xb0] sm:$0xff] %vm5097, %v5251
        %s5268 = scalar_lea.vmem [#allocation6], 32
        %v5269 = vld [vmem:[%s5268] sm:$0xff]
        %v5270 = vld [vmem:[%s5268 + $0x10] sm:$0xff]
        %v5271 = vld [vmem:[%s5268 + $0x20] sm:$0xff]
        %v5272 = vld [vmem:[%s5268 + $0x30] sm:$0xff]
        %v5273 = vld [vmem:[%s5268 + $0x40] sm:$0xff]
        %v5274 = vld [vmem:[%s5268 + $0x50] sm:$0xff]
        %v5275 = vld [vmem:[%s5268 + $0x60] sm:$0xff]
        %v5276 = vld [vmem:[%s5268 + $0x70] sm:$0xff]
        %5285 = vrot.lane.b32.xlu0 %v5269, 64
        %v5286 = vpop.permute.xlu0 %5285
        %5287 = vrot.lane.b32.xlu0 %v5270, 64
        %v5288 = vpop.permute.xlu0 %5287
        %5289 = vrot.lane.b32.xlu0 %v5271, 64
        %v5290 = vpop.permute.xlu0 %5289
        %5291 = vrot.lane.b32.xlu0 %v5272, 64
        %v5292 = vpop.permute.xlu0 %5291
        %5293 = vrot.lane.b32.xlu0 %v5273, 64
        %v5294 = vpop.permute.xlu0 %5293
        %5295 = vrot.lane.b32.xlu0 %v5274, 64
        %v5296 = vpop.permute.xlu0 %5295
        %5297 = vrot.lane.b32.xlu0 %v5275, 64
        %v5298 = vpop.permute.xlu0 %5297
        %5299 = vrot.lane.b32.xlu0 %v5276, 64
        %v5300 = vpop.permute.xlu0 %5299
        %5309 = vst.msk [vmem:[#allocation7 + $0x8] sm:$0xff] %vm5146, %v5286
        %5310 = vst.msk [vmem:[#allocation7 + $0x20] sm:$0xff] %vm5146, %v5288
        %5311 = vst.msk [vmem:[#allocation7 + $0x38] sm:$0xff] %vm5146, %v5290
        %5312 = vst.msk [vmem:[#allocation7 + $0x50] sm:$0xff] %vm5146, %v5292
        %5313 = vst.msk [vmem:[#allocation7 + $0x68] sm:$0xff] %vm5146, %v5294
        %5314 = vst.msk [vmem:[#allocation7 + $0x80] sm:$0xff] %vm5146, %v5296
        %5315 = vst.msk [vmem:[#allocation7 + $0x98] sm:$0xff] %vm5146, %v5298
        %5316 = vst.msk [vmem:[#allocation7 + $0xb0] sm:$0xff] %vm5146, %v5300
        %v5317 = vld [vmem:[%s5268 + $0x1] sm:$0xff]
        %v5318 = vld [vmem:[%s5268 + $0x11] sm:$0xff]
        %v5319 = vld [vmem:[%s5268 + $0x21] sm:$0xff]
        %v5320 = vld [vmem:[%s5268 + $0x31] sm:$0xff]
        %v5321 = vld [vmem:[%s5268 + $0x41] sm:$0xff]
        %v5322 = vld [vmem:[%s5268 + $0x51] sm:$0xff]
        %v5323 = vld [vmem:[%s5268 + $0x61] sm:$0xff]
        %v5324 = vld [vmem:[%s5268 + $0x71] sm:$0xff]
        %5333 = vrot.lane.b32.xlu0 %v5317, 96
        %v5334 = vpop.permute.xlu0 %5333
        %5335 = vrot.lane.b32.xlu0 %v5318, 96
        %v5336 = vpop.permute.xlu0 %5335
        %5337 = vrot.lane.b32.xlu0 %v5319, 96
        %v5338 = vpop.permute.xlu0 %5337
        %5339 = vrot.lane.b32.xlu0 %v5320, 96
        %v5340 = vpop.permute.xlu0 %5339
        %5341 = vrot.lane.b32.xlu0 %v5321, 96
        %v5342 = vpop.permute.xlu0 %5341
        %5343 = vrot.lane.b32.xlu0 %v5322, 96
        %v5344 = vpop.permute.xlu0 %5343
        %5345 = vrot.lane.b32.xlu0 %v5323, 96
        %v5346 = vpop.permute.xlu0 %5345
        %5347 = vrot.lane.b32.xlu0 %v5324, 96
        %v5348 = vpop.permute.xlu0 %5347
        %5357 = vst.msk [vmem:[#allocation7 + $0x8] sm:$0xff] %vm5195, %v5334
        %5358 = vst.msk [vmem:[#allocation7 + $0x20] sm:$0xff] %vm5195, %v5336
        %5359 = vst.msk [vmem:[#allocation7 + $0x38] sm:$0xff] %vm5195, %v5338
        %5360 = vst.msk [vmem:[#allocation7 + $0x50] sm:$0xff] %vm5195, %v5340
        %5361 = vst.msk [vmem:[#allocation7 + $0x68] sm:$0xff] %vm5195, %v5342
        %5362 = vst.msk [vmem:[#allocation7 + $0x80] sm:$0xff] %vm5195, %v5344
        %5363 = vst.msk [vmem:[#allocation7 + $0x98] sm:$0xff] %vm5195, %v5346
        %5364 = vst.msk [vmem:[#allocation7 + $0xb0] sm:$0xff] %vm5195, %v5348
        %v5365 = vld [vmem:[%s5268 + $0x2] sm:$0xff]
        %v5366 = vld [vmem:[%s5268 + $0x12] sm:$0xff]
        %v5367 = vld [vmem:[%s5268 + $0x22] sm:$0xff]
        %v5368 = vld [vmem:[%s5268 + $0x32] sm:$0xff]
        %v5369 = vld [vmem:[%s5268 + $0x42] sm:$0xff]
        %v5370 = vld [vmem:[%s5268 + $0x52] sm:$0xff]
        %v5371 = vld [vmem:[%s5268 + $0x62] sm:$0xff]
        %v5372 = vld [vmem:[%s5268 + $0x72] sm:$0xff]
        %5373 = vst.msk [vmem:[#allocation7 + $0x10] sm:$0xff] %vm5010, %v5365
        %5374 = vst.msk [vmem:[#allocation7 + $0x28] sm:$0xff] %vm5010, %v5366
        %5375 = vst.msk [vmem:[#allocation7 + $0x40] sm:$0xff] %vm5010, %v5367
        %5376 = vst.msk [vmem:[#allocation7 + $0x58] sm:$0xff] %vm5010, %v5368
        %5377 = vst.msk [vmem:[#allocation7 + $0x70] sm:$0xff] %vm5010, %v5369
        %5378 = vst.msk [vmem:[#allocation7 + $0x88] sm:$0xff] %vm5010, %v5370
        %5379 = vst.msk [vmem:[#allocation7 + $0xa0] sm:$0xff] %vm5010, %v5371
        %5380 = vst.msk [vmem:[#allocation7 + $0xb8] sm:$0xff] %vm5010, %v5372
        %v5381 = vld [vmem:[#allocation7] sm:$0xff]
        %v5382 = vld [vmem:[#allocation7 + $0x8] sm:$0xff]
        %v5383 = vld [vmem:[#allocation7 + $0x10] sm:$0xff]
        %v5384 = vld [vmem:[#allocation7 + $0x18] sm:$0xff]
        %v5385 = vld [vmem:[#allocation7 + $0x20] sm:$0xff]
        %v5386 = vld [vmem:[#allocation7 + $0x28] sm:$0xff]
        %v5387 = vld [vmem:[#allocation7 + $0x30] sm:$0xff]
        %v5388 = vld [vmem:[#allocation7 + $0x38] sm:$0xff]
        %v5389 = vld [vmem:[#allocation7 + $0x40] sm:$0xff]
        %v5390 = vld [vmem:[#allocation7 + $0x48] sm:$0xff]
        %v5391 = vld [vmem:[#allocation7 + $0x50] sm:$0xff]
        %v5392 = vld [vmem:[#allocation7 + $0x58] sm:$0xff]
        %v5393 = vld [vmem:[#allocation7 + $0x60] sm:$0xff]
        %v5394 = vld [vmem:[#allocation7 + $0x68] sm:$0xff]
        %v5395 = vld [vmem:[#allocation7 + $0x70] sm:$0xff]
        %v5396 = vld [vmem:[#allocation7 + $0x78] sm:$0xff]
        %v5397 = vld [vmem:[#allocation7 + $0x80] sm:$0xff]
        %v5398 = vld [vmem:[#allocation7 + $0x88] sm:$0xff]
        %v5399 = vld [vmem:[#allocation7 + $0x90] sm:$0xff]
        %v5400 = vld [vmem:[#allocation7 + $0x98] sm:$0xff]
        %v5401 = vld [vmem:[#allocation7 + $0xa0] sm:$0xff]
        %v5402 = vld [vmem:[#allocation7 + $0xa8] sm:$0xff]
        %v5403 = vld [vmem:[#allocation7 + $0xb0] sm:$0xff]
        %v5404 = vld [vmem:[#allocation7 + $0xb8] sm:$0xff]
        %v5405 = vpack.c.bf16 %v5384, %v5381
        %v5406 = vpack.c.bf16 %v5385, %v5382
        %v5407 = vpack.c.bf16 %v5386, %v5383
        %v5408 = vpack.c.bf16 %v5390, %v5387
        %v5409 = vpack.c.bf16 %v5391, %v5388
        %v5410 = vpack.c.bf16 %v5392, %v5389
        %v5411 = vpack.c.bf16 %v5396, %v5393
        %v5412 = vpack.c.bf16 %v5397, %v5394
        %v5413 = vpack.c.bf16 %v5398, %v5395
        %v5414 = vpack.c.bf16 %v5402, %v5399
        %v5415 = vpack.c.bf16 %v5403, %v5400
        %v5416 = vpack.c.bf16 %v5404, %v5401
        %v5417 = vld [vmem:[%s5] sm:$0xf]
        %v5418 = vld [vmem:[%s5 + $0x4] sm:$0xf]
        %v5419 = vld [vmem:[%s5 + $0x8] sm:$0xf]
        %v5420 = vld [vmem:[%s5 + $0xc] sm:$0xf]
        %v5421 = vld [vmem:[%s5 + $0x10] sm:$0xf]
        %v5422 = vld [vmem:[%s5 + $0x14] sm:$0xf]
        %v5423 = vld [vmem:[%s5 + $0x18] sm:$0xf]
        %v5424 = vld [vmem:[%s5 + $0x1c] sm:$0xf]
        %v5425 = vld [vmem:[%s5 + $0x20] sm:$0xf]
        %v5426 = vld [vmem:[%s5 + $0x24] sm:$0xf]
        %v5427 = vld [vmem:[%s5 + $0x28] sm:$0xf]
        %v5428 = vld [vmem:[%s5 + $0x2c] sm:$0xf]
        %v5429 = vld [vmem:[%s5 + $0x30] sm:$0xf]
        %v5430 = vld [vmem:[%s5 + $0x34] sm:$0xf]
        %v5431 = vld [vmem:[%s5 + $0x38] sm:$0xf]
        %v5432 = vld [vmem:[%s5 + $0x3c] sm:$0xf]
        %v5433 = vld [vmem:[%s5 + $0x40] sm:$0xf]
        %v5434 = vld [vmem:[%s5 + $0x44] sm:$0xf]
        %v5435 = vld [vmem:[%s5 + $0x48] sm:$0xf]
        %v5436 = vld [vmem:[%s5 + $0x4c] sm:$0xf]
        %v5437 = vld [vmem:[%s5 + $0x50] sm:$0xf]
        %v5438 = vld [vmem:[%s5 + $0x54] sm:$0xf]
        %v5439 = vld [vmem:[%s5 + $0x58] sm:$0xf]
        %v5440 = vld [vmem:[%s5 + $0x5c] sm:$0xf]
        %v5441 = vld [vmem:[%s5 + $0x60] sm:$0xf]
        %v5442 = vld [vmem:[%s5 + $0x64] sm:$0xf]
        %v5443 = vld [vmem:[%s5 + $0x68] sm:$0xf]
        %v5444 = vld [vmem:[%s5 + $0x6c] sm:$0xf]
        %v5445 = vld [vmem:[%s5 + $0x70] sm:$0xf]
        %v5446 = vld [vmem:[%s5 + $0x74] sm:$0xf]
        %v5447 = vld [vmem:[%s5 + $0x78] sm:$0xf]
        %v5448 = vld [vmem:[%s5 + $0x7c] sm:$0xf]
        %v5449 = vld [vmem:[%s5 + $0x80] sm:$0xf]
        %v5450 = vld [vmem:[%s5 + $0x84] sm:$0xf]
        %v5451 = vld [vmem:[%s5 + $0x88] sm:$0xf]
        %v5452 = vld [vmem:[%s5 + $0x8c] sm:$0xf]
        %v5453 = vld [vmem:[%s6] sm:$0x1]
        %v5455 = vlaneseq
        %v5456 = vshrl.u32 %v5455, 7
        %v5457 = vsub.s32 0, %v5456
        %v5458 = vrot.slane %v5453, %v5457
        %v5496 = vunpack.c.l.b16 %v5417
        %v5497 = vunpack.c.l.b16 %v5418
        %v5498 = vunpack.c.l.b16 %v5419
        %v5499 = vunpack.c.l.b16 %v5420
        %v5500 = vunpack.c.l.b16 %v5421
        %v5501 = vunpack.c.l.b16 %v5422
        %v5502 = vunpack.c.l.b16 %v5423
        %v5503 = vunpack.c.l.b16 %v5424
        %v5504 = vunpack.c.l.b16 %v5425
        %v5505 = vunpack.c.l.b16 %v5426
        %v5506 = vunpack.c.l.b16 %v5427
        %v5507 = vunpack.c.l.b16 %v5428
        %v5508 = vunpack.c.l.b16 %v5429
        %v5509 = vunpack.c.l.b16 %v5430
        %v5510 = vunpack.c.l.b16 %v5431
        %v5511 = vunpack.c.l.b16 %v5432
        %v5512 = vunpack.c.l.b16 %v5433
        %v5513 = vunpack.c.l.b16 %v5434
        %v5514 = vunpack.c.l.b16 %v5435
        %v5515 = vunpack.c.l.b16 %v5436
        %v5516 = vunpack.c.l.b16 %v5437
        %v5517 = vunpack.c.l.b16 %v5438
        %v5518 = vunpack.c.l.b16 %v5439
        %v5519 = vunpack.c.l.b16 %v5440
        %v5520 = vunpack.c.l.b16 %v5441
        %v5521 = vunpack.c.l.b16 %v5442
        %v5522 = vunpack.c.l.b16 %v5443
        %v5523 = vunpack.c.l.b16 %v5444
        %v5524 = vunpack.c.l.b16 %v5445
        %v5525 = vunpack.c.l.b16 %v5446
        %v5526 = vunpack.c.l.b16 %v5447
        %v5527 = vunpack.c.l.b16 %v5448
        %v5528 = vunpack.c.l.b16 %v5449
        %v5529 = vunpack.c.l.b16 %v5450
        %v5530 = vunpack.c.l.b16 %v5451
        %v5531 = vunpack.c.l.b16 %v5452
        %v5532 = vpack.c.b16 %v5497, %v5496
        %v5533 = vpack.c.b16 %v5499, %v5498
        %v5534 = vpack.c.b16 %v5501, %v5500
        %v5535 = vpack.c.b16 %v5503, %v5502
        %v5536 = vpack.c.b16 %v5505, %v5504
        %v5537 = vpack.c.b16 %v5507, %v5506
        %v5538 = vpack.c.b16 %v5509, %v5508
        %v5539 = vpack.c.b16 %v5511, %v5510
        %v5540 = vpack.c.b16 %v5513, %v5512
        %v5541 = vpack.c.b16 %v5515, %v5514
        %v5542 = vpack.c.b16 %v5517, %v5516
        %v5543 = vpack.c.b16 %v5519, %v5518
        %v5544 = vpack.c.b16 %v5521, %v5520
        %v5545 = vpack.c.b16 %v5523, %v5522
        %v5546 = vpack.c.b16 %v5525, %v5524
        %v5547 = vpack.c.b16 %v5527, %v5526
        %v5548 = vpack.c.b16 %v5529, %v5528
        %v5549 = vpack.c.b16 %v5531, %v5530
        %v5569 = vsel %vm5010, %v5407, 0
        %v5572 = vsel %vm5010, %v5410, 0
        %v5575 = vsel %vm5010, %v5413, 0
        %v5578 = vsel %vm5010, %v5416, 0
        %5580 = vmatprep.subr.bf16.mxu0 0
        %5581 = vmatpush1.bf16.msra.mxu0 %v5532
        %5582 = vmatprep.subr.bf16.mxu0 0
        %5583 = vmatpush1.bf16.msra.mxu0 %v5533
        %5584 = vmatprep.subr.bf16.mxu0 0
        %5585 = vmatpush1.bf16.msra.mxu0 %v5534
        %5586 = vmatprep.subr.bf16.mxu0 0
        %5587 = vmatpush1.bf16.msra.mxu0 %v5535
        %5588 = vmatprep.subr.bf16.mxu0 0
        %5589 = vmatpush1.bf16.msra.mxu0 %v5536
        %5590 = vmatprep.subr.bf16.mxu0 0
        %5591 = vmatpush1.bf16.msra.mxu0 %v5537
        %5592 = vmatprep.subr.bf16.mxu0 0
        %5593 = vmatpush1.bf16.msra.mxu0 %v5538
        %5594 = vmatprep.subr.bf16.mxu0 0
        %5595 = vmatpush1.bf16.msra.mxu0 %v5539
        %5596 = vmatprep.subr.bf16.mxu0 0
        %5597 = vmatpush1.bf16.msra.mxu0 %v5540
        %5598 = vmatprep.subr.bf16.mxu0 0
        %5599 = vmatpush1.bf16.msra.mxu0 %v5541
        %5600 = vmatprep.subr.bf16.mxu0 0
        %5601 = vmatpush1.bf16.msra.mxu0 %v5542
        %5602 = vmatprep.subr.bf16.mxu0 0
        %5603 = vmatpush1.bf16.msra.mxu0 %v5543
        %5604 = vmatprep.subr.bf16.mxu0 0
        %5605 = vmatpush1.bf16.msra.mxu0 %v5544
        %5606 = vmatprep.subr.bf16.mxu0 0
        %5607 = vmatpush1.bf16.msra.mxu0 %v5545
        %5608 = vmatprep.subr.bf16.mxu0 0
        %5609 = vmatpush1.bf16.msra.mxu0 %v5546
        %5610 = vmatprep.subr.bf16.mxu0 0
        %5611 = vmatpush1.bf16.msra.mxu0 %v5547
        %5612 = vmatprep.mubr.bf16.mxu0 %v5406
        %5613 = vmatmul.mubr.bf16.gmra.mrb[0].mxu0 %v5405
        %v5614 = vpop.f32.mrb[0].mxu0
        %v5615 = vadd.f32 %v5458, %v5614
        %v5616 = vpop.f32.mrb[0].mxu0
        %v5617 = vpop.f32.mrb[0].mxu0
        %v5618 = vadd.f32 %v5458, %v5617
        %v5619 = vpop.f32.mrb[0].mxu0
        %5620 = vmatprep.mubr.bf16.mxu0 %v5409
        %5621 = vmatmul.mubr.bf16.gmra.mrb[0].mxu0 %v5408
        %v5622 = vpop.f32.mrb[0].mxu0
        %v5623 = vadd.f32 %v5458, %v5622
        %v5624 = vpop.f32.mrb[0].mxu0
        %v5625 = vpop.f32.mrb[0].mxu0
        %v5626 = vadd.f32 %v5458, %v5625
        %v5627 = vpop.f32.mrb[0].mxu0
        %5628 = vmatprep.mubr.bf16.mxu0 %v5412
        %5629 = vmatmul.mubr.bf16.gmra.mrb[0].mxu0 %v5411
        %v5630 = vpop.f32.mrb[0].mxu0
        %v5631 = vadd.f32 %v5458, %v5630
        %v5632 = vpop.f32.mrb[0].mxu0
        %v5633 = vpop.f32.mrb[0].mxu0
        %v5634 = vadd.f32 %v5458, %v5633
        %v5635 = vpop.f32.mrb[0].mxu0
        %5636 = vmatprep.mubr.bf16.mxu0 %v5415
        %5637 = vmatmul.mubr.bf16.gmra.mrb[0].mxu0 %v5414
        %v5638 = vpop.f32.mrb[0].mxu0
        %v5639 = vadd.f32 %v5458, %v5638
        %v5640 = vpop.f32.mrb[0].mxu0
        %v5641 = vpop.f32.mrb[0].mxu0
        %v5642 = vadd.f32 %v5458, %v5641
        %v5643 = vpop.f32.mrb[0].mxu0
        %5644 = vdwg.mxu0
        %5645 = vmatprep.subr.bf16.mxu0 0
        %5646 = vmatpush1.bf16.msra.mxu0 %v5548
        %5647 = vmatprep.subr.bf16.mxu0 0
        %5648 = vmatpush1.bf16.msra.mxu0 %v5549
        %5649 = vmatprep.subr.bf16.mxu0 0
        %5650 = vmatpush1.bf16.msra.mxu0 0
        %5651 = vmatprep.subr.bf16.mxu0 0
        %5652 = vmatpush1.bf16.msra.mxu0 0
        %5653 = vmatprep.subr.bf16.mxu0 0
        %5654 = vmatpush1.bf16.msra.mxu0 0
        %5655 = vmatprep.subr.bf16.mxu0 0
        %5656 = vmatpush1.bf16.msra.mxu0 0
        %5657 = vmatprep.subr.bf16.mxu0 0
        %5658 = vmatpush1.bf16.msra.mxu0 0
        %5659 = vmatprep.subr.bf16.mxu0 0
        %5660 = vmatpush1.bf16.msra.mxu0 0
        %5661 = vmatprep.subr.bf16.mxu0 0
        %5662 = vmatpush1.bf16.msra.mxu0 0
        %5663 = vmatprep.subr.bf16.mxu0 0
        %5664 = vmatpush1.bf16.msra.mxu0 0
        %5665 = vmatprep.subr.bf16.mxu0 0
        %5666 = vmatpush1.bf16.msra.mxu0 0
        %5667 = vmatprep.subr.bf16.mxu0 0
        %5668 = vmatpush1.bf16.msra.mxu0 0
        %5669 = vmatprep.subr.bf16.mxu0 0
        %5670 = vmatpush1.bf16.msra.mxu0 0
        %5671 = vmatprep.subr.bf16.mxu0 0
        %5672 = vmatpush1.bf16.msra.mxu0 0
        %5673 = vmatprep.subr.bf16.mxu0 0
        %5674 = vmatpush1.bf16.msra.mxu0 0
        %5675 = vmatprep.subr.bf16.mxu0 0
        %5676 = vmatpush1.bf16.msra.mxu0 0
        %5677 = vmatprep.mubr.bf16.mxu0 0
        %5678 = vmatmul.mubr.bf16.gmra.mrb[0].mxu0 %v5569
        %v5679 = vpop.f32.mrb[0].mxu0
        %v5680 = vadd.f32 %v5615, %v5679
        %v5681 = vpop.f32.mrb[0].mxu0
        %v5682 = vpop.f32.mrb[0].mxu0
        %v5683 = vadd.f32 %v5618, %v5682
        %v5684 = vpop.f32.mrb[0].mxu0
        %5685 = vmatprep.mubr.bf16.mxu0 0
        %5686 = vmatmul.mubr.bf16.gmra.mrb[0].mxu0 %v5572
        %v5687 = vpop.f32.mrb[0].mxu0
        %v5688 = vadd.f32 %v5623, %v5687
        %v5689 = vpop.f32.mrb[0].mxu0
        %v5690 = vpop.f32.mrb[0].mxu0
        %v5691 = vadd.f32 %v5626, %v5690
        %v5692 = vpop.f32.mrb[0].mxu0
        %5693 = vmatprep.mubr.bf16.mxu0 0
        %5694 = vmatmul.mubr.bf16.gmra.mrb[0].mxu0 %v5575
        %v5695 = vpop.f32.mrb[0].mxu0
        %v5696 = vadd.f32 %v5631, %v5695
        %v5697 = vpop.f32.mrb[0].mxu0
        %v5698 = vpop.f32.mrb[0].mxu0
        %v5699 = vadd.f32 %v5634, %v5698
        %v5700 = vpop.f32.mrb[0].mxu0
        %5701 = vmatprep.mubr.bf16.mxu0 0
        %5702 = vmatmul.mubr.bf16.gmra.mrb[0].mxu0 %v5578
        %v5703 = vpop.f32.mrb[0].mxu0
        %v5704 = vadd.f32 %v5639, %v5703
        %v5705 = vpop.f32.mrb[0].mxu0
        %v5706 = vpop.f32.mrb[0].mxu0
        %v5707 = vadd.f32 %v5642, %v5706
        %v5708 = vpop.f32.mrb[0].mxu0
        %5709 = vdwg.mxu0
        %v5710 = vmax.f32 %v5680, 0.0
        %v5711 = vmax.f32 %v5683, 0.0
        %v5712 = vmax.f32 %v5688, 0.0
        %v5713 = vmax.f32 %v5691, 0.0
        %v5714 = vmax.f32 %v5696, 0.0
        %v5715 = vmax.f32 %v5699, 0.0
        %v5716 = vmax.f32 %v5704, 0.0
        %v5717 = vmax.f32 %v5707, 0.0
        %v5726 = vcombine.high %v5710, %v5710
        %v5728 = vunpack.c.l.s4 1983009808
        %v5729 = vunpack.c.0.s8 %v5728
        %v5730 = vlaneseq
        %v5731 = vshrl.u32 %v5730, 7
        %v5732 = vsub.s32 %v5729, %v5731
        %v5733 = vrot.slane %v5710, %v5732
        %v5735 = vunpack.c.l.s4 1983009808
        %v5736 = vunpack.c.0.s8 %v5735
        %v5737 = vlaneseq
        %v5738 = vshrl.u32 %v5737, 7
        %v5739 = vsub.s32 %v5736, %v5738
        %v5740 = vrot.slane %v5726, %v5739
        %v5741 = vcombine.high %v5733, %v5733
        %v5742 = vcombine.high %v5740, %v5740
        %v5743 = vcombine.high %v5711, %v5711
        %v5745 = vunpack.c.l.s4 1983009808
        %v5746 = vunpack.c.0.s8 %v5745
        %v5747 = vlaneseq
        %v5748 = vshrl.u32 %v5747, 7
        %v5749 = vsub.s32 %v5746, %v5748
        %v5750 = vrot.slane %v5711, %v5749
        %v5752 = vunpack.c.l.s4 1983009808
        %v5753 = vunpack.c.0.s8 %v5752
        %v5754 = vlaneseq
        %v5755 = vshrl.u32 %v5754, 7
        %v5756 = vsub.s32 %v5753, %v5755
        %v5757 = vrot.slane %v5743, %v5756
        %v5758 = vcombine.high %v5750, %v5750
        %v5759 = vcombine.high %v5757, %v5757
        %v5760 = vcombine.high %v5712, %v5712
        %v5762 = vunpack.c.l.s4 1983009808
        %v5763 = vunpack.c.0.s8 %v5762
        %v5764 = vlaneseq
        %v5765 = vshrl.u32 %v5764, 7
        %v5766 = vsub.s32 %v5763, %v5765
        %v5767 = vrot.slane %v5712, %v5766
        %v5769 = vunpack.c.l.s4 1983009808
        %v5770 = vunpack.c.0.s8 %v5769
        %v5771 = vlaneseq
        %v5772 = vshrl.u32 %v5771, 7
        %v5773 = vsub.s32 %v5770, %v5772
        %v5774 = vrot.slane %v5760, %v5773
        %v5775 = vcombine.high %v5767, %v5767
        %v5776 = vcombine.high %v5774, %v5774
        %v5777 = vcombine.high %v5713, %v5713
        %v5779 = vunpack.c.l.s4 1983009808
        %v5780 = vunpack.c.0.s8 %v5779
        %v5781 = vlaneseq
        %v5782 = vshrl.u32 %v5781, 7
        %v5783 = vsub.s32 %v5780, %v5782
        %v5784 = vrot.slane %v5713, %v5783
        %v5786 = vunpack.c.l.s4 1983009808
        %v5787 = vunpack.c.0.s8 %v5786
        %v5788 = vlaneseq
        %v5789 = vshrl.u32 %v5788, 7
        %v5790 = vsub.s32 %v5787, %v5789
        %v5791 = vrot.slane %v5777, %v5790
        %v5792 = vcombine.high %v5784, %v5784
        %v5793 = vcombine.high %v5791, %v5791
        %v5794 = vcombine.high %v5714, %v5714
        %v5796 = vunpack.c.l.s4 1983009808
        %v5797 = vunpack.c.0.s8 %v5796
        %v5798 = vlaneseq
        %v5799 = vshrl.u32 %v5798, 7
        %v5800 = vsub.s32 %v5797, %v5799
        %v5801 = vrot.slane %v5714, %v5800
        %v5803 = vunpack.c.l.s4 1983009808
        %v5804 = vunpack.c.0.s8 %v5803
        %v5805 = vlaneseq
        %v5806 = vshrl.u32 %v5805, 7
        %v5807 = vsub.s32 %v5804, %v5806
        %v5808 = vrot.slane %v5794, %v5807
        %v5809 = vcombine.high %v5801, %v5801
        %v5810 = vcombine.high %v5808, %v5808
        %v5811 = vcombine.high %v5715, %v5715
        %v5813 = vunpack.c.l.s4 1983009808
        %v5814 = vunpack.c.0.s8 %v5813
        %v5815 = vlaneseq
        %v5816 = vshrl.u32 %v5815, 7
        %v5817 = vsub.s32 %v5814, %v5816
        %v5818 = vrot.slane %v5715, %v5817
        %v5820 = vunpack.c.l.s4 1983009808
        %v5821 = vunpack.c.0.s8 %v5820
        %v5822 = vlaneseq
        %v5823 = vshrl.u32 %v5822, 7
        %v5824 = vsub.s32 %v5821, %v5823
        %v5825 = vrot.slane %v5811, %v5824
        %v5826 = vcombine.high %v5818, %v5818
        %v5827 = vcombine.high %v5825, %v5825
        %v5828 = vcombine.high %v5716, %v5716
        %v5830 = vunpack.c.l.s4 1983009808
        %v5831 = vunpack.c.0.s8 %v5830
        %v5832 = vlaneseq
        %v5833 = vshrl.u32 %v5832, 7
        %v5834 = vsub.s32 %v5831, %v5833
        %v5835 = vrot.slane %v5716, %v5834
        %v5837 = vunpack.c.l.s4 1983009808
        %v5838 = vunpack.c.0.s8 %v5837
        %v5839 = vlaneseq
        %v5840 = vshrl.u32 %v5839, 7
        %v5841 = vsub.s32 %v5838, %v5840
        %v5842 = vrot.slane %v5828, %v5841
        %v5843 = vcombine.high %v5835, %v5835
        %v5844 = vcombine.high %v5842, %v5842
        %v5845 = vcombine.high %v5717, %v5717
        %v5847 = vunpack.c.l.s4 1983009808
        %v5848 = vunpack.c.0.s8 %v5847
        %v5849 = vlaneseq
        %v5850 = vshrl.u32 %v5849, 7
        %v5851 = vsub.s32 %v5848, %v5850
        %v5852 = vrot.slane %v5717, %v5851
        %v5854 = vunpack.c.l.s4 1983009808
        %v5855 = vunpack.c.0.s8 %v5854
        %v5856 = vlaneseq
        %v5857 = vshrl.u32 %v5856, 7
        %v5858 = vsub.s32 %v5855, %v5857
        %v5859 = vrot.slane %v5845, %v5858
        %v5860 = vcombine.high %v5852, %v5852
        %v5861 = vcombine.high %v5859, %v5859
        %v5894 = vsel %vm5012, %v5733, -inf
        %v5895 = vrot.slane %v5894, 4
        %v5896 = vmax.f32 %v5894, %v5895
        %v5897 = vrot.slane %v5896, 2
        %v5898 = vmax.f32 %v5896, %v5897
        %v5899 = vrot.slane %v5898, 1
        %v5900 = vmax.f32 %v5898, %v5899
        %v5901 = vsel %vm5012, %v5741, -inf
        %v5902 = vrot.slane %v5901, 4
        %v5903 = vmax.f32 %v5901, %v5902
        %v5904 = vrot.slane %v5903, 2
        %v5905 = vmax.f32 %v5903, %v5904
        %v5906 = vrot.slane %v5905, 1
        %v5907 = vmax.f32 %v5905, %v5906
        %v5908 = vsel %vm5012, %v5740, -inf
        %v5909 = vrot.slane %v5908, 4
        %v5910 = vmax.f32 %v5908, %v5909
        %v5911 = vrot.slane %v5910, 2
        %v5912 = vmax.f32 %v5910, %v5911
        %v5913 = vrot.slane %v5912, 1
        %v5914 = vmax.f32 %v5912, %v5913
        %v5915 = vsel %vm5012, %v5742, -inf
        %v5916 = vrot.slane %v5915, 4
        %v5917 = vmax.f32 %v5915, %v5916
        %v5918 = vrot.slane %v5917, 2
        %v5919 = vmax.f32 %v5917, %v5918
        %v5920 = vrot.slane %v5919, 1
        %v5921 = vmax.f32 %v5919, %v5920
        %v5922 = vsel %vm5012, %v5750, -inf
        %v5923 = vrot.slane %v5922, 4
        %v5924 = vmax.f32 %v5922, %v5923
        %v5925 = vrot.slane %v5924, 2
        %v5926 = vmax.f32 %v5924, %v5925
        %v5927 = vrot.slane %v5926, 1
        %v5928 = vmax.f32 %v5926, %v5927
        %v5929 = vsel %vm5012, %v5758, -inf
        %v5930 = vrot.slane %v5929, 4
        %v5931 = vmax.f32 %v5929, %v5930
        %v5932 = vrot.slane %v5931, 2
        %v5933 = vmax.f32 %v5931, %v5932
        %v5934 = vrot.slane %v5933, 1
        %v5935 = vmax.f32 %v5933, %v5934
        %v5936 = vsel %vm5012, %v5757, -inf
        %v5937 = vrot.slane %v5936, 4
        %v5938 = vmax.f32 %v5936, %v5937
        %v5939 = vrot.slane %v5938, 2
        %v5940 = vmax.f32 %v5938, %v5939
        %v5941 = vrot.slane %v5940, 1
        %v5942 = vmax.f32 %v5940, %v5941
        %v5943 = vsel %vm5012, %v5759, -inf
        %v5944 = vrot.slane %v5943, 4
        %v5945 = vmax.f32 %v5943, %v5944
        %v5946 = vrot.slane %v5945, 2
        %v5947 = vmax.f32 %v5945, %v5946
        %v5948 = vrot.slane %v5947, 1
        %v5949 = vmax.f32 %v5947, %v5948
        %v5950 = vsel %vm5012, %v5767, -inf
        %v5951 = vrot.slane %v5950, 4
        %v5952 = vmax.f32 %v5950, %v5951
        %v5953 = vrot.slane %v5952, 2
        %v5954 = vmax.f32 %v5952, %v5953
        %v5955 = vrot.slane %v5954, 1
        %v5956 = vmax.f32 %v5954, %v5955
        %v5957 = vsel %vm5012, %v5775, -inf
        %v5958 = vrot.slane %v5957, 4
        %v5959 = vmax.f32 %v5957, %v5958
        %v5960 = vrot.slane %v5959, 2
        %v5961 = vmax.f32 %v5959, %v5960
        %v5962 = vrot.slane %v5961, 1
        %v5963 = vmax.f32 %v5961, %v5962
        %v5964 = vsel %vm5012, %v5774, -inf
        %v5965 = vrot.slane %v5964, 4
        %v5966 = vmax.f32 %v5964, %v5965
        %v5967 = vrot.slane %v5966, 2
        %v5968 = vmax.f32 %v5966, %v5967
        %v5969 = vrot.slane %v5968, 1
        %v5970 = vmax.f32 %v5968, %v5969
        %v5971 = vsel %vm5012, %v5776, -inf
        %v5972 = vrot.slane %v5971, 4
        %v5973 = vmax.f32 %v5971, %v5972
        %v5974 = vrot.slane %v5973, 2
        %v5975 = vmax.f32 %v5973, %v5974
        %v5976 = vrot.slane %v5975, 1
        %v5977 = vmax.f32 %v5975, %v5976
        %v5978 = vsel %vm5012, %v5784, -inf
        %v5979 = vrot.slane %v5978, 4
        %v5980 = vmax.f32 %v5978, %v5979
        %v5981 = vrot.slane %v5980, 2
        %v5982 = vmax.f32 %v5980, %v5981
        %v5983 = vrot.slane %v5982, 1
        %v5984 = vmax.f32 %v5982, %v5983
        %v5985 = vsel %vm5012, %v5792, -inf
        %v5986 = vrot.slane %v5985, 4
        %v5987 = vmax.f32 %v5985, %v5986
        %v5988 = vrot.slane %v5987, 2
        %v5989 = vmax.f32 %v5987, %v5988
        %v5990 = vrot.slane %v5989, 1
        %v5991 = vmax.f32 %v5989, %v5990
        %v5992 = vsel %vm5012, %v5791, -inf
        %v5993 = vrot.slane %v5992, 4
        %v5994 = vmax.f32 %v5992, %v5993
        %v5995 = vrot.slane %v5994, 2
        %v5996 = vmax.f32 %v5994, %v5995
        %v5997 = vrot.slane %v5996, 1
        %v5998 = vmax.f32 %v5996, %v5997
        %v5999 = vsel %vm5012, %v5793, -inf
        %v6000 = vrot.slane %v5999, 4
        %v6001 = vmax.f32 %v5999, %v6000
        %v6002 = vrot.slane %v6001, 2
        %v6003 = vmax.f32 %v6001, %v6002
        %v6004 = vrot.slane %v6003, 1
        %v6005 = vmax.f32 %v6003, %v6004
        %v6006 = vsel %vm5012, %v5801, -inf
        %v6007 = vrot.slane %v6006, 4
        %v6008 = vmax.f32 %v6006, %v6007
        %v6009 = vrot.slane %v6008, 2
        %v6010 = vmax.f32 %v6008, %v6009
        %v6011 = vrot.slane %v6010, 1
        %v6012 = vmax.f32 %v6010, %v6011
        %v6013 = vsel %vm5012, %v5809, -inf
        %v6014 = vrot.slane %v6013, 4
        %v6015 = vmax.f32 %v6013, %v6014
        %v6016 = vrot.slane %v6015, 2
        %v6017 = vmax.f32 %v6015, %v6016
        %v6018 = vrot.slane %v6017, 1
        %v6019 = vmax.f32 %v6017, %v6018
        %v6020 = vsel %vm5012, %v5808, -inf
        %v6021 = vrot.slane %v6020, 4
        %v6022 = vmax.f32 %v6020, %v6021
        %v6023 = vrot.slane %v6022, 2
        %v6024 = vmax.f32 %v6022, %v6023
        %v6025 = vrot.slane %v6024, 1
        %v6026 = vmax.f32 %v6024, %v6025
        %v6027 = vsel %vm5012, %v5810, -inf
        %v6028 = vrot.slane %v6027, 4
        %v6029 = vmax.f32 %v6027, %v6028
        %v6030 = vrot.slane %v6029, 2
        %v6031 = vmax.f32 %v6029, %v6030
        %v6032 = vrot.slane %v6031, 1
        %v6033 = vmax.f32 %v6031, %v6032
        %v6034 = vsel %vm5012, %v5818, -inf
        %v6035 = vrot.slane %v6034, 4
        %v6036 = vmax.f32 %v6034, %v6035
        %v6037 = vrot.slane %v6036, 2
        %v6038 = vmax.f32 %v6036, %v6037
        %v6039 = vrot.slane %v6038, 1
        %v6040 = vmax.f32 %v6038, %v6039
        %v6041 = vsel %vm5012, %v5826, -inf
        %v6042 = vrot.slane %v6041, 4
        %v6043 = vmax.f32 %v6041, %v6042
        %v6044 = vrot.slane %v6043, 2
        %v6045 = vmax.f32 %v6043, %v6044
        %v6046 = vrot.slane %v6045, 1
        %v6047 = vmax.f32 %v6045, %v6046
        %v6048 = vsel %vm5012, %v5825, -inf
        %v6049 = vrot.slane %v6048, 4
        %v6050 = vmax.f32 %v6048, %v6049
        %v6051 = vrot.slane %v6050, 2
        %v6052 = vmax.f32 %v6050, %v6051
        %v6053 = vrot.slane %v6052, 1
        %v6054 = vmax.f32 %v6052, %v6053
        %v6055 = vsel %vm5012, %v5827, -inf
        %v6056 = vrot.slane %v6055, 4
        %v6057 = vmax.f32 %v6055, %v6056
        %v6058 = vrot.slane %v6057, 2
        %v6059 = vmax.f32 %v6057, %v6058
        %v6060 = vrot.slane %v6059, 1
        %v6061 = vmax.f32 %v6059, %v6060
        %v6062 = vsel %vm5012, %v5835, -inf
        %v6063 = vrot.slane %v6062, 4
        %v6064 = vmax.f32 %v6062, %v6063
        %v6065 = vrot.slane %v6064, 2
        %v6066 = vmax.f32 %v6064, %v6065
        %v6067 = vrot.slane %v6066, 1
        %v6068 = vmax.f32 %v6066, %v6067
        %v6069 = vsel %vm5012, %v5843, -inf
        %v6070 = vrot.slane %v6069, 4
        %v6071 = vmax.f32 %v6069, %v6070
        %v6072 = vrot.slane %v6071, 2
        %v6073 = vmax.f32 %v6071, %v6072
        %v6074 = vrot.slane %v6073, 1
        %v6075 = vmax.f32 %v6073, %v6074
        %v6076 = vsel %vm5012, %v5842, -inf
        %v6077 = vrot.slane %v6076, 4
        %v6078 = vmax.f32 %v6076, %v6077
        %v6079 = vrot.slane %v6078, 2
        %v6080 = vmax.f32 %v6078, %v6079
        %v6081 = vrot.slane %v6080, 1
        %v6082 = vmax.f32 %v6080, %v6081
        %v6083 = vsel %vm5012, %v5844, -inf
        %v6084 = vrot.slane %v6083, 4
        %v6085 = vmax.f32 %v6083, %v6084
        %v6086 = vrot.slane %v6085, 2
        %v6087 = vmax.f32 %v6085, %v6086
        %v6088 = vrot.slane %v6087, 1
        %v6089 = vmax.f32 %v6087, %v6088
        %v6090 = vsel %vm5012, %v5852, -inf
        %v6091 = vrot.slane %v6090, 4
        %v6092 = vmax.f32 %v6090, %v6091
        %v6093 = vrot.slane %v6092, 2
        %v6094 = vmax.f32 %v6092, %v6093
        %v6095 = vrot.slane %v6094, 1
        %v6096 = vmax.f32 %v6094, %v6095
        %v6097 = vsel %vm5012, %v5860, -inf
        %v6098 = vrot.slane %v6097, 4
        %v6099 = vmax.f32 %v6097, %v6098
        %v6100 = vrot.slane %v6099, 2
        %v6101 = vmax.f32 %v6099, %v6100
        %v6102 = vrot.slane %v6101, 1
        %v6103 = vmax.f32 %v6101, %v6102
        %v6104 = vsel %vm5012, %v5859, -inf
        %v6105 = vrot.slane %v6104, 4
        %v6106 = vmax.f32 %v6104, %v6105
        %v6107 = vrot.slane %v6106, 2
        %v6108 = vmax.f32 %v6106, %v6107
        %v6109 = vrot.slane %v6108, 1
        %v6110 = vmax.f32 %v6108, %v6109
        %v6111 = vsel %vm5012, %v5861, -inf
        %v6112 = vrot.slane %v6111, 4
        %v6113 = vmax.f32 %v6111, %v6112
        %v6114 = vrot.slane %v6113, 2
        %v6115 = vmax.f32 %v6113, %v6114
        %v6116 = vrot.slane %v6115, 1
        %v6117 = vmax.f32 %v6115, %v6116
        %v6118 = vsel %vm5010, %v5900, -inf
        %v6119 = vsel %vm5010, %v5928, -inf
        %v6120 = vmax.f32 %v6118, %v6119
        %v6121 = vsel %vm5010, %v5907, -inf
        %v6122 = vsel %vm5010, %v5935, -inf
        %v6123 = vmax.f32 %v6121, %v6122
        %v6124 = vsel %vm5010, %v5914, -inf
        %v6125 = vsel %vm5010, %v5942, -inf
        %v6126 = vmax.f32 %v6124, %v6125
        %v6127 = vsel %vm5010, %v5921, -inf
        %v6128 = vsel %vm5010, %v5949, -inf
        %v6129 = vmax.f32 %v6127, %v6128
        %v6130 = vsel %vm5010, %v5956, -inf
        %v6131 = vsel %vm5010, %v5984, -inf
        %v6132 = vmax.f32 %v6130, %v6131
        %v6133 = vsel %vm5010, %v5963, -inf
        %v6134 = vsel %vm5010, %v5991, -inf
        %v6135 = vmax.f32 %v6133, %v6134
        %v6136 = vsel %vm5010, %v5970, -inf
        %v6137 = vsel %vm5010, %v5998, -inf
        %v6138 = vmax.f32 %v6136, %v6137
        %v6139 = vsel %vm5010, %v5977, -inf
        %v6140 = vsel %vm5010, %v6005, -inf
        %v6141 = vmax.f32 %v6139, %v6140
        %v6142 = vsel %vm5010, %v6012, -inf
        %v6143 = vsel %vm5010, %v6040, -inf
        %v6144 = vmax.f32 %v6142, %v6143
        %v6145 = vsel %vm5010, %v6019, -inf
        %v6146 = vsel %vm5010, %v6047, -inf
        %v6147 = vmax.f32 %v6145, %v6146
        %v6148 = vsel %vm5010, %v6026, -inf
        %v6149 = vsel %vm5010, %v6054, -inf
        %v6150 = vmax.f32 %v6148, %v6149
        %v6151 = vsel %vm5010, %v6033, -inf
        %v6152 = vsel %vm5010, %v6061, -inf
        %v6153 = vmax.f32 %v6151, %v6152
        %v6154 = vsel %vm5010, %v6068, -inf
        %v6155 = vsel %vm5010, %v6096, -inf
        %v6156 = vmax.f32 %v6154, %v6155
        %v6157 = vsel %vm5010, %v6075, -inf
        %v6158 = vsel %vm5010, %v6103, -inf
        %v6159 = vmax.f32 %v6157, %v6158
        %v6160 = vsel %vm5010, %v6082, -inf
        %v6161 = vsel %vm5010, %v6110, -inf
        %v6162 = vmax.f32 %v6160, %v6161
        %v6163 = vsel %vm5010, %v6089, -inf
        %v6164 = vsel %vm5010, %v6117, -inf
        %v6165 = vmax.f32 %v6163, %v6164
        %v6166 = vlaneseq
        %vm6167 = vcmp.ge.s32.totalorder %v6166, 0
        %vm6168 = vcmp.lt.s32.totalorder %v6166, 32
        %vm6169 = vmand %vm6167, %vm6168
        %6170 = vst.msk [vmem:[#allocation8] sm:$0x1] %vm6169, %v6120
        %v6173 = vunpack.c.l.s4 1966171168
        %v6174 = vunpack.c.0.s8 %v6173
        %v6175 = vlaneseq
        %v6176 = vshrl.u32 %v6175, 7
        %v6177 = vsub.s32 %v6174, %v6176
        %v6178 = vrot.slane %v6123, %v6177
        %v6180 = vunpack.c.l.s4 1966171168
        %v6181 = vunpack.c.0.s8 %v6180
        %v6182 = vlaneseq
        %v6183 = vshrl.u32 %v6182, 7
        %v6184 = vsub.s32 %v6181, %v6183
        %v6185 = vrot.slane %v6178, %v6184
        %6186 = vrot.lane.b32.xlu0 %v6185, 32
        %v6187 = vpop.permute.xlu0 %6186
        %vm6189 = vcmp.ge.s32.totalorder %v6166, 32
        %vm6190 = vcmp.lt.s32.totalorder %v6166, 64
        %vm6191 = vmand %vm6189, %vm6190
        %6192 = vst.msk [vmem:[#allocation8] sm:$0x1] %vm6191, %v6187
        %v6195 = vunpack.c.l.s4 1966171168
        %v6196 = vunpack.c.0.s8 %v6195
        %v6197 = vlaneseq
        %v6198 = vshrl.u32 %v6197, 7
        %v6199 = vsub.s32 %v6196, %v6198
        %v6200 = vrot.slane %v6126, %v6199
        %v6202 = vunpack.c.l.s4 1966171168
        %v6203 = vunpack.c.0.s8 %v6202
        %v6204 = vlaneseq
        %v6205 = vshrl.u32 %v6204, 7
        %v6206 = vsub.s32 %v6203, %v6205
        %v6207 = vrot.slane %v6200, %v6206
        %6208 = vrot.lane.b32.xlu0 %v6207, 64
        %v6209 = vpop.permute.xlu0 %6208
        %vm6211 = vcmp.ge.s32.totalorder %v6166, 64
        %vm6212 = vcmp.lt.s32.totalorder %v6166, 96
        %vm6213 = vmand %vm6211, %vm6212
        %6214 = vst.msk [vmem:[#allocation8] sm:$0x1] %vm6213, %v6209
        %v6217 = vunpack.c.l.s4 1966171168
        %v6218 = vunpack.c.0.s8 %v6217
        %v6219 = vlaneseq
        %v6220 = vshrl.u32 %v6219, 7
        %v6221 = vsub.s32 %v6218, %v6220
        %v6222 = vrot.slane %v6129, %v6221
        %v6224 = vunpack.c.l.s4 1966171168
        %v6225 = vunpack.c.0.s8 %v6224
        %v6226 = vlaneseq
        %v6227 = vshrl.u32 %v6226, 7
        %v6228 = vsub.s32 %v6225, %v6227
        %v6229 = vrot.slane %v6222, %v6228
        %6230 = vrot.lane.b32.xlu0 %v6229, 96
        %v6231 = vpop.permute.xlu0 %6230
        %vm6233 = vcmp.ge.s32.totalorder %v6166, 96
        %vm6234 = vcmp.lt.s32.totalorder %v6166, 128
        %vm6235 = vmand %vm6233, %vm6234
        %6236 = vst.msk [vmem:[#allocation8] sm:$0x1] %vm6235, %v6231
        %6237 = vst.msk [vmem:[#allocation8 + $0x1] sm:$0x1] %vm6169, %v6132
        %v6240 = vunpack.c.l.s4 1966171168
        %v6241 = vunpack.c.0.s8 %v6240
        %v6242 = vlaneseq
        %v6243 = vshrl.u32 %v6242, 7
        %v6244 = vsub.s32 %v6241, %v6243
        %v6245 = vrot.slane %v6135, %v6244
        %v6247 = vunpack.c.l.s4 1966171168
        %v6248 = vunpack.c.0.s8 %v6247
        %v6249 = vlaneseq
        %v6250 = vshrl.u32 %v6249, 7
        %v6251 = vsub.s32 %v6248, %v6250
        %v6252 = vrot.slane %v6245, %v6251
        %6253 = vrot.lane.b32.xlu0 %v6252, 32
        %v6254 = vpop.permute.xlu0 %6253
        %6256 = vst.msk [vmem:[#allocation8 + $0x1] sm:$0x1] %vm6191, %v6254
        %v6259 = vunpack.c.l.s4 1966171168
        %v6260 = vunpack.c.0.s8 %v6259
        %v6261 = vlaneseq
        %v6262 = vshrl.u32 %v6261, 7
        %v6263 = vsub.s32 %v6260, %v6262
        %v6264 = vrot.slane %v6138, %v6263
        %v6266 = vunpack.c.l.s4 1966171168
        %v6267 = vunpack.c.0.s8 %v6266
        %v6268 = vlaneseq
        %v6269 = vshrl.u32 %v6268, 7
        %v6270 = vsub.s32 %v6267, %v6269
        %v6271 = vrot.slane %v6264, %v6270
        %6272 = vrot.lane.b32.xlu0 %v6271, 64
        %v6273 = vpop.permute.xlu0 %6272
        %6275 = vst.msk [vmem:[#allocation8 + $0x1] sm:$0x1] %vm6213, %v6273
        %v6278 = vunpack.c.l.s4 1966171168
        %v6279 = vunpack.c.0.s8 %v6278
        %v6280 = vlaneseq
        %v6281 = vshrl.u32 %v6280, 7
        %v6282 = vsub.s32 %v6279, %v6281
        %v6283 = vrot.slane %v6141, %v6282
        %v6285 = vunpack.c.l.s4 1966171168
        %v6286 = vunpack.c.0.s8 %v6285
        %v6287 = vlaneseq
        %v6288 = vshrl.u32 %v6287, 7
        %v6289 = vsub.s32 %v6286, %v6288
        %v6290 = vrot.slane %v6283, %v6289
        %6291 = vrot.lane.b32.xlu0 %v6290, 96
        %v6292 = vpop.permute.xlu0 %6291
        %6294 = vst.msk [vmem:[#allocation8 + $0x1] sm:$0x1] %vm6235, %v6292
        %6295 = vst.msk [vmem:[#allocation8 + $0x2] sm:$0x1] %vm6169, %v6144
        %v6298 = vunpack.c.l.s4 1966171168
        %v6299 = vunpack.c.0.s8 %v6298
        %v6300 = vlaneseq
        %v6301 = vshrl.u32 %v6300, 7
        %v6302 = vsub.s32 %v6299, %v6301
        %v6303 = vrot.slane %v6147, %v6302
        %v6305 = vunpack.c.l.s4 1966171168
        %v6306 = vunpack.c.0.s8 %v6305
        %v6307 = vlaneseq
        %v6308 = vshrl.u32 %v6307, 7
        %v6309 = vsub.s32 %v6306, %v6308
        %v6310 = vrot.slane %v6303, %v6309
        %6311 = vrot.lane.b32.xlu0 %v6310, 32
        %v6312 = vpop.permute.xlu0 %6311
        %6314 = vst.msk [vmem:[#allocation8 + $0x2] sm:$0x1] %vm6191, %v6312
        %v6317 = vunpack.c.l.s4 1966171168
        %v6318 = vunpack.c.0.s8 %v6317
        %v6319 = vlaneseq
        %v6320 = vshrl.u32 %v6319, 7
        %v6321 = vsub.s32 %v6318, %v6320
        %v6322 = vrot.slane %v6150, %v6321
        %v6324 = vunpack.c.l.s4 1966171168
        %v6325 = vunpack.c.0.s8 %v6324
        %v6326 = vlaneseq
        %v6327 = vshrl.u32 %v6326, 7
        %v6328 = vsub.s32 %v6325, %v6327
        %v6329 = vrot.slane %v6322, %v6328
        %6330 = vrot.lane.b32.xlu0 %v6329, 64
        %v6331 = vpop.permute.xlu0 %6330
        %6333 = vst.msk [vmem:[#allocation8 + $0x2] sm:$0x1] %vm6213, %v6331
        %v6336 = vunpack.c.l.s4 1966171168
        %v6337 = vunpack.c.0.s8 %v6336
        %v6338 = vlaneseq
        %v6339 = vshrl.u32 %v6338, 7
        %v6340 = vsub.s32 %v6337, %v6339
        %v6341 = vrot.slane %v6153, %v6340
        %v6343 = vunpack.c.l.s4 1966171168
        %v6344 = vunpack.c.0.s8 %v6343
        %v6345 = vlaneseq
        %v6346 = vshrl.u32 %v6345, 7
        %v6347 = vsub.s32 %v6344, %v6346
        %v6348 = vrot.slane %v6341, %v6347
        %6349 = vrot.lane.b32.xlu0 %v6348, 96
        %v6350 = vpop.permute.xlu0 %6349
        %6352 = vst.msk [vmem:[#allocation8 + $0x2] sm:$0x1] %vm6235, %v6350
        %6353 = vst.msk [vmem:[#allocation8 + $0x3] sm:$0x1] %vm6169, %v6156
        %v6356 = vunpack.c.l.s4 1966171168
        %v6357 = vunpack.c.0.s8 %v6356
        %v6358 = vlaneseq
        %v6359 = vshrl.u32 %v6358, 7
        %v6360 = vsub.s32 %v6357, %v6359
        %v6361 = vrot.slane %v6159, %v6360
        %v6363 = vunpack.c.l.s4 1966171168
        %v6364 = vunpack.c.0.s8 %v6363
        %v6365 = vlaneseq
        %v6366 = vshrl.u32 %v6365, 7
        %v6367 = vsub.s32 %v6364, %v6366
        %v6368 = vrot.slane %v6361, %v6367
        %6369 = vrot.lane.b32.xlu0 %v6368, 32
        %v6370 = vpop.permute.xlu0 %6369
        %6372 = vst.msk [vmem:[#allocation8 + $0x3] sm:$0x1] %vm6191, %v6370
        %v6375 = vunpack.c.l.s4 1966171168
        %v6376 = vunpack.c.0.s8 %v6375
        %v6377 = vlaneseq
        %v6378 = vshrl.u32 %v6377, 7
        %v6379 = vsub.s32 %v6376, %v6378
        %v6380 = vrot.slane %v6162, %v6379
        %v6382 = vunpack.c.l.s4 1966171168
        %v6383 = vunpack.c.0.s8 %v6382
        %v6384 = vlaneseq
        %v6385 = vshrl.u32 %v6384, 7
        %v6386 = vsub.s32 %v6383, %v6385
        %v6387 = vrot.slane %v6380, %v6386
        %6388 = vrot.lane.b32.xlu0 %v6387, 64
        %v6389 = vpop.permute.xlu0 %6388
        %6391 = vst.msk [vmem:[#allocation8 + $0x3] sm:$0x1] %vm6213, %v6389
        %v6394 = vunpack.c.l.s4 1966171168
        %v6395 = vunpack.c.0.s8 %v6394
        %v6396 = vlaneseq
        %v6397 = vshrl.u32 %v6396, 7
        %v6398 = vsub.s32 %v6395, %v6397
        %v6399 = vrot.slane %v6165, %v6398
        %v6401 = vunpack.c.l.s4 1966171168
        %v6402 = vunpack.c.0.s8 %v6401
        %v6403 = vlaneseq
        %v6404 = vshrl.u32 %v6403, 7
        %v6405 = vsub.s32 %v6402, %v6404
        %v6406 = vrot.slane %v6399, %v6405
        %6407 = vrot.lane.b32.xlu0 %v6406, 96
        %v6408 = vpop.permute.xlu0 %6407
        %6410 = vst.msk [vmem:[#allocation8 + $0x3] sm:$0x1] %vm6235, %v6408
        %v6411 = vld [vmem:[#allocation8] sm:$0xf]
        %v6413 = vlaneseq
        %v6414 = vshrl.u32 %v6413, 7
        %v6415 = vsub.s32 0, %v6414
        %v6416 = vrot.slane %v6411, %v6415
        %v6417 = vlaneseq
        %v6418 = vshrl.u32 %v6417, 7
        %v6419 = vsub.s32 1, %v6418
        %v6420 = vrot.slane %v6411, %v6419
        %v6421 = vlaneseq
        %v6422 = vshrl.u32 %v6421, 7
        %v6423 = vsub.s32 2, %v6422
        %v6424 = vrot.slane %v6411, %v6423
        %v6425 = vlaneseq
        %v6426 = vshrl.u32 %v6425, 7
        %v6427 = vsub.s32 3, %v6426
        %v6428 = vrot.slane %v6411, %v6427
        %v6433 = vpack.c.bf16 %v6416, %v6416
        %v6434 = vpack.c.bf16 %v6420, %v6420
        %v6435 = vpack.c.bf16 %v6424, %v6424
        %v6436 = vpack.c.bf16 %v6428, %v6428
        %v6437 = vld [vmem:[%s7] sm:$0xf]
        %v6438 = vld [vmem:[%s7 + $0x4] sm:$0xf]
        %v6439 = vld [vmem:[%s7 + $0x8] sm:$0xf]
        %v6440 = vld [vmem:[%s7 + $0xc] sm:$0xf]
        %v6441 = vld [vmem:[%s7 + $0x10] sm:$0xf]
        %v6442 = vld [vmem:[%s7 + $0x14] sm:$0xf]
        %v6443 = vld [vmem:[%s7 + $0x18] sm:$0xf]
        %v6444 = vld [vmem:[%s7 + $0x1c] sm:$0xf]
        %v6445 = vld [vmem:[%s7 + $0x20] sm:$0xf]
        %v6446 = vld [vmem:[%s7 + $0x24] sm:$0xf]
        %v6447 = vld [vmem:[%s7 + $0x28] sm:$0xf]
        %v6448 = vld [vmem:[%s7 + $0x2c] sm:$0xf]
        %v6449 = vld [vmem:[%s7 + $0x30] sm:$0xf]
        %v6450 = vld [vmem:[%s7 + $0x34] sm:$0xf]
        %v6451 = vld [vmem:[%s7 + $0x38] sm:$0xf]
        %v6452 = vld [vmem:[%s7 + $0x3c] sm:$0xf]
        %v6453 = vld [vmem:[%s7 + $0x40] sm:$0xf]
        %v6454 = vld [vmem:[%s7 + $0x44] sm:$0xf]
        %v6455 = vld [vmem:[%s7 + $0x48] sm:$0xf]
        %v6456 = vld [vmem:[%s7 + $0x4c] sm:$0xf]
        %v6457 = vld [vmem:[%s7 + $0x50] sm:$0xf]
        %v6458 = vld [vmem:[%s7 + $0x54] sm:$0xf]
        %v6459 = vld [vmem:[%s7 + $0x58] sm:$0xf]
        %v6460 = vld [vmem:[%s7 + $0x5c] sm:$0xf]
        %v6461 = vld [vmem:[%s7 + $0x60] sm:$0xf]
        %v6462 = vld [vmem:[%s7 + $0x64] sm:$0xf]
        %v6463 = vld [vmem:[%s7 + $0x68] sm:$0xf]
        %v6464 = vld [vmem:[%s7 + $0x6c] sm:$0xf]
        %v6465 = vld [vmem:[%s7 + $0x70] sm:$0xf]
        %v6466 = vld [vmem:[%s7 + $0x74] sm:$0xf]
        %v6467 = vld [vmem:[%s7 + $0x78] sm:$0xf]
        %v6468 = vld [vmem:[%s7 + $0x7c] sm:$0xf]
        %v6469 = vld [vmem:[%s7 + $0x80] sm:$0xf]
        %v6470 = vld [vmem:[%s7 + $0x84] sm:$0xf]
        %v6471 = vld [vmem:[%s7 + $0x88] sm:$0xf]
        %v6472 = vld [vmem:[%s7 + $0x8c] sm:$0xf]
        %v6473 = vld [vmem:[%s7 + $0x90] sm:$0xf]
        %v6474 = vld [vmem:[%s7 + $0x94] sm:$0xf]
        %v6475 = vld [vmem:[%s7 + $0x98] sm:$0xf]
        %v6476 = vld [vmem:[%s7 + $0x9c] sm:$0xf]
        %v6477 = vld [vmem:[%s7 + $0xa0] sm:$0xf]
        %v6478 = vld [vmem:[%s7 + $0xa4] sm:$0xf]
        %v6479 = vld [vmem:[%s7 + $0xa8] sm:$0xf]
        %v6480 = vld [vmem:[%s7 + $0xac] sm:$0xf]
        %v6481 = vld [vmem:[%s7 + $0xb0] sm:$0xf]
        %v6482 = vld [vmem:[%s7 + $0xb4] sm:$0xf]
        %v6483 = vld [vmem:[%s7 + $0xb8] sm:$0xf]
        %v6484 = vld [vmem:[%s7 + $0xbc] sm:$0xf]
        %v6485 = vld [vmem:[%s7 + $0xc0] sm:$0xf]
        %v6486 = vld [vmem:[%s7 + $0xc4] sm:$0xf]
        %v6487 = vld [vmem:[%s7 + $0xc8] sm:$0xf]
        %v6488 = vld [vmem:[%s7 + $0xcc] sm:$0xf]
        %v6489 = vld [vmem:[%s7 + $0xd0] sm:$0xf]
        %v6490 = vld [vmem:[%s7 + $0xd4] sm:$0xf]
        %v6491 = vld [vmem:[%s7 + $0xd8] sm:$0xf]
        %v6492 = vld [vmem:[%s7 + $0xdc] sm:$0xf]
        %v6493 = vld [vmem:[%s7 + $0xe0] sm:$0xf]
        %v6494 = vld [vmem:[%s7 + $0xe4] sm:$0xf]
        %v6495 = vld [vmem:[%s7 + $0xe8] sm:$0xf]
        %v6496 = vld [vmem:[%s7 + $0xec] sm:$0xf]
        %v6497 = vld [vmem:[%s7 + $0xf0] sm:$0xf]
        %v6498 = vld [vmem:[%s7 + $0xf4] sm:$0xf]
        %v6499 = vld [vmem:[%s7 + $0xf8] sm:$0xf]
        %v6500 = vld [vmem:[%s7 + $0xfc] sm:$0xf]
        %v6501 = vld [vmem:[%s8] sm:$0x1]
        %v6566 = vunpack.c.l.b16 %v6437
        %v6567 = vunpack.c.l.b16 %v6438
        %v6568 = vunpack.c.l.b16 %v6439
        %v6569 = vunpack.c.l.b16 %v6440
        %v6570 = vunpack.c.l.b16 %v6441
        %v6571 = vunpack.c.l.b16 %v6442
        %v6572 = vunpack.c.l.b16 %v6443
        %v6573 = vunpack.c.l.b16 %v6444
        %v6574 = vunpack.c.l.b16 %v6445
        %v6575 = vunpack.c.l.b16 %v6446
        %v6576 = vunpack.c.l.b16 %v6447
        %v6577 = vunpack.c.l.b16 %v6448
        %v6578 = vunpack.c.l.b16 %v6449
        %v6579 = vunpack.c.l.b16 %v6450
        %v6580 = vunpack.c.l.b16 %v6451
        %v6581 = vunpack.c.l.b16 %v6452
        %v6582 = vunpack.c.l.b16 %v6453
        %v6583 = vunpack.c.l.b16 %v6454
        %v6584 = vunpack.c.l.b16 %v6455
        %v6585 = vunpack.c.l.b16 %v6456
        %v6586 = vunpack.c.l.b16 %v6457
        %v6587 = vunpack.c.l.b16 %v6458
        %v6588 = vunpack.c.l.b16 %v6459
        %v6589 = vunpack.c.l.b16 %v6460
        %v6590 = vunpack.c.l.b16 %v6461
        %v6591 = vunpack.c.l.b16 %v6462
        %v6592 = vunpack.c.l.b16 %v6463
        %v6593 = vunpack.c.l.b16 %v6464
        %v6594 = vunpack.c.l.b16 %v6465
        %v6595 = vunpack.c.l.b16 %v6466
        %v6596 = vunpack.c.l.b16 %v6467
        %v6597 = vunpack.c.l.b16 %v6468
        %v6598 = vunpack.c.l.b16 %v6469
        %v6599 = vunpack.c.l.b16 %v6470
        %v6600 = vunpack.c.l.b16 %v6471
        %v6601 = vunpack.c.l.b16 %v6472
        %v6602 = vunpack.c.l.b16 %v6473
        %v6603 = vunpack.c.l.b16 %v6474
        %v6604 = vunpack.c.l.b16 %v6475
        %v6605 = vunpack.c.l.b16 %v6476
        %v6606 = vunpack.c.l.b16 %v6477
        %v6607 = vunpack.c.l.b16 %v6478
        %v6608 = vunpack.c.l.b16 %v6479
        %v6609 = vunpack.c.l.b16 %v6480
        %v6610 = vunpack.c.l.b16 %v6481
        %v6611 = vunpack.c.l.b16 %v6482
        %v6612 = vunpack.c.l.b16 %v6483
        %v6613 = vunpack.c.l.b16 %v6484
        %v6614 = vunpack.c.l.b16 %v6485
        %v6615 = vunpack.c.l.b16 %v6486
        %v6616 = vunpack.c.l.b16 %v6487
        %v6617 = vunpack.c.l.b16 %v6488
        %v6618 = vunpack.c.l.b16 %v6489
        %v6619 = vunpack.c.l.b16 %v6490
        %v6620 = vunpack.c.l.b16 %v6491
        %v6621 = vunpack.c.l.b16 %v6492
        %v6622 = vunpack.c.l.b16 %v6493
        %v6623 = vunpack.c.l.b16 %v6494
        %v6624 = vunpack.c.l.b16 %v6495
        %v6625 = vunpack.c.l.b16 %v6496
        %v6626 = vunpack.c.l.b16 %v6497
        %v6627 = vunpack.c.l.b16 %v6498
        %v6628 = vunpack.c.l.b16 %v6499
        %v6629 = vunpack.c.l.b16 %v6500
        %v6630 = vpack.c.b16 %v6567, %v6566
        %v6631 = vpack.c.b16 %v6569, %v6568
        %v6632 = vpack.c.b16 %v6571, %v6570
        %v6633 = vpack.c.b16 %v6573, %v6572
        %v6634 = vpack.c.b16 %v6575, %v6574
        %v6635 = vpack.c.b16 %v6577, %v6576
        %v6636 = vpack.c.b16 %v6579, %v6578
        %v6637 = vpack.c.b16 %v6581, %v6580
        %v6638 = vpack.c.b16 %v6583, %v6582
        %v6639 = vpack.c.b16 %v6585, %v6584
        %v6640 = vpack.c.b16 %v6587, %v6586
        %v6641 = vpack.c.b16 %v6589, %v6588
        %v6642 = vpack.c.b16 %v6591, %v6590
        %v6643 = vpack.c.b16 %v6593, %v6592
        %v6644 = vpack.c.b16 %v6595, %v6594
        %v6645 = vpack.c.b16 %v6597, %v6596
        %v6646 = vpack.c.b16 %v6599, %v6598
        %v6647 = vpack.c.b16 %v6601, %v6600
        %v6648 = vpack.c.b16 %v6603, %v6602
        %v6649 = vpack.c.b16 %v6605, %v6604
        %v6650 = vpack.c.b16 %v6607, %v6606
        %v6651 = vpack.c.b16 %v6609, %v6608
        %v6652 = vpack.c.b16 %v6611, %v6610
        %v6653 = vpack.c.b16 %v6613, %v6612
        %v6654 = vpack.c.b16 %v6615, %v6614
        %v6655 = vpack.c.b16 %v6617, %v6616
        %v6656 = vpack.c.b16 %v6619, %v6618
        %v6657 = vpack.c.b16 %v6621, %v6620
        %v6658 = vpack.c.b16 %v6623, %v6622
        %v6659 = vpack.c.b16 %v6625, %v6624
        %v6660 = vpack.c.b16 %v6627, %v6626
        %v6661 = vpack.c.b16 %v6629, %v6628
        %6694 = vmatprep.subr.bf16.mxu0 0
        %6695 = vmatpush1.bf16.msra.mxu0 %v6630
        %6696 = vmatprep.subr.bf16.mxu0 0
        %6697 = vmatpush1.bf16.msra.mxu0 %v6631
        %6698 = vmatprep.subr.bf16.mxu0 0
        %6699 = vmatpush1.bf16.msra.mxu0 %v6632
        %6700 = vmatprep.subr.bf16.mxu0 0
        %6701 = vmatpush1.bf16.msra.mxu0 %v6633
        %6702 = vmatprep.subr.bf16.mxu0 0
        %6703 = vmatpush1.bf16.msra.mxu0 %v6634
        %6704 = vmatprep.subr.bf16.mxu0 0
        %6705 = vmatpush1.bf16.msra.mxu0 %v6635
        %6706 = vmatprep.subr.bf16.mxu0 0
        %6707 = vmatpush1.bf16.msra.mxu0 %v6636
        %6708 = vmatprep.subr.bf16.mxu0 0
        %6709 = vmatpush1.bf16.msra.mxu0 %v6637
        %6710 = vmatprep.subr.bf16.mxu0 0
        %6711 = vmatpush1.bf16.msra.mxu0 %v6638
        %6712 = vmatprep.subr.bf16.mxu0 0
        %6713 = vmatpush1.bf16.msra.mxu0 %v6639
        %6714 = vmatprep.subr.bf16.mxu0 0
        %6715 = vmatpush1.bf16.msra.mxu0 %v6640
        %6716 = vmatprep.subr.bf16.mxu0 0
        %6717 = vmatpush1.bf16.msra.mxu0 %v6641
        %6718 = vmatprep.subr.bf16.mxu0 0
        %6719 = vmatpush1.bf16.msra.mxu0 %v6642
        %6720 = vmatprep.subr.bf16.mxu0 0
        %6721 = vmatpush1.bf16.msra.mxu0 %v6643
        %6722 = vmatprep.subr.bf16.mxu0 0
        %6723 = vmatpush1.bf16.msra.mxu0 %v6644
        %6724 = vmatprep.subr.bf16.mxu0 0
        %6725 = vmatpush1.bf16.msra.mxu0 %v6645
        %6726 = vmatprep.mubr.bf16.mxu0 %v6434
        %6727 = vmatmul.mubr.bf16.gmra.mrb[0].mxu0 %v6433
        %v6728 = vpop.f32.mrb[0].mxu0
        %v6729 = vadd.f32 %v6501, %v6728
        %v6730 = vpop.f32.mrb[0].mxu0
        %v6731 = vpop.f32.mrb[0].mxu0
        %v6732 = vpop.f32.mrb[0].mxu0
        %6733 = vdwg.mxu0
        %6734 = vmatprep.subr.bf16.mxu0 0
        %6735 = vmatpush1.bf16.msra.mxu0 %v6646
        %6736 = vmatprep.subr.bf16.mxu0 0
        %6737 = vmatpush1.bf16.msra.mxu0 %v6647
        %6738 = vmatprep.subr.bf16.mxu0 0
        %6739 = vmatpush1.bf16.msra.mxu0 %v6648
        %6740 = vmatprep.subr.bf16.mxu0 0
        %6741 = vmatpush1.bf16.msra.mxu0 %v6649
        %6742 = vmatprep.subr.bf16.mxu0 0
        %6743 = vmatpush1.bf16.msra.mxu0 %v6650
        %6744 = vmatprep.subr.bf16.mxu0 0
        %6745 = vmatpush1.bf16.msra.mxu0 %v6651
        %6746 = vmatprep.subr.bf16.mxu0 0
        %6747 = vmatpush1.bf16.msra.mxu0 %v6652
        %6748 = vmatprep.subr.bf16.mxu0 0
        %6749 = vmatpush1.bf16.msra.mxu0 %v6653
        %6750 = vmatprep.subr.bf16.mxu0 0
        %6751 = vmatpush1.bf16.msra.mxu0 %v6654
        %6752 = vmatprep.subr.bf16.mxu0 0
        %6753 = vmatpush1.bf16.msra.mxu0 %v6655
        %6754 = vmatprep.subr.bf16.mxu0 0
        %6755 = vmatpush1.bf16.msra.mxu0 %v6656
        %6756 = vmatprep.subr.bf16.mxu0 0
        %6757 = vmatpush1.bf16.msra.mxu0 %v6657
        %6758 = vmatprep.subr.bf16.mxu0 0
        %6759 = vmatpush1.bf16.msra.mxu0 %v6658
        %6760 = vmatprep.subr.bf16.mxu0 0
        %6761 = vmatpush1.bf16.msra.mxu0 %v6659
        %6762 = vmatprep.subr.bf16.mxu0 0
        %6763 = vmatpush1.bf16.msra.mxu0 %v6660
        %6764 = vmatprep.subr.bf16.mxu0 0
        %6765 = vmatpush1.bf16.msra.mxu0 %v6661
        %6766 = vmatprep.mubr.bf16.mxu0 %v6436
        %6767 = vmatmul.mubr.bf16.gmra.mrb[0].mxu0 %v6435
        %v6768 = vpop.f32.mrb[0].mxu0
        %v6769 = vadd.f32 %v6729, %v6768
        %v6770 = vpop.f32.mrb[0].mxu0
        %v6771 = vpop.f32.mrb[0].mxu0
        %v6772 = vpop.f32.mrb[0].mxu0
        %6773 = vdwg.mxu0
        %v6774 = vmax.f32 %v6769, 0.0
        %v6775 = vpack.c.bf16 %v6774, %v6774
        %v6776 = vld [vmem:[%s9] sm:$0xf]
        %v6777 = vld [vmem:[%s9 + $0x4] sm:$0xf]
        %v6778 = vld [vmem:[%s9 + $0x8] sm:$0xf]
        %v6779 = vld [vmem:[%s9 + $0xc] sm:$0xf]
        %v6780 = vld [vmem:[%s9 + $0x10] sm:$0xf]
        %v6781 = vld [vmem:[%s9 + $0x14] sm:$0xf]
        %v6782 = vld [vmem:[%s9 + $0x18] sm:$0xf]
        %v6783 = vld [vmem:[%s9 + $0x1c] sm:$0xf]
        %v6784 = vld [vmem:[%s9 + $0x20] sm:$0xf]
        %v6785 = vld [vmem:[%s9 + $0x24] sm:$0xf]
        %v6786 = vld [vmem:[%s9 + $0x28] sm:$0xf]
        %v6787 = vld [vmem:[%s9 + $0x2c] sm:$0xf]
        %v6788 = vld [vmem:[%s9 + $0x30] sm:$0xf]
        %v6789 = vld [vmem:[%s9 + $0x34] sm:$0xf]
        %v6790 = vld [vmem:[%s9 + $0x38] sm:$0xf]
        %v6791 = vld [vmem:[%s9 + $0x3c] sm:$0xf]
        %v6792 = vld [vmem:[%s10] sm:$0x1]
        %v6809 = vunpack.c.l.b16 %v6776
        %v6810 = vunpack.c.l.b16 %v6777
        %v6811 = vunpack.c.l.b16 %v6778
        %v6812 = vunpack.c.l.b16 %v6779
        %v6813 = vunpack.c.l.b16 %v6780
        %v6814 = vunpack.c.l.b16 %v6781
        %v6815 = vunpack.c.l.b16 %v6782
        %v6816 = vunpack.c.l.b16 %v6783
        %v6817 = vunpack.c.l.b16 %v6784
        %v6818 = vunpack.c.l.b16 %v6785
        %v6819 = vunpack.c.l.b16 %v6786
        %v6820 = vunpack.c.l.b16 %v6787
        %v6821 = vunpack.c.l.b16 %v6788
        %v6822 = vunpack.c.l.b16 %v6789
        %v6823 = vunpack.c.l.b16 %v6790
        %v6824 = vunpack.c.l.b16 %v6791
        %v6825 = vpack.c.b16 %v6810, %v6809
        %v6826 = vpack.c.b16 %v6812, %v6811
        %v6827 = vpack.c.b16 %v6814, %v6813
        %v6828 = vpack.c.b16 %v6816, %v6815
        %v6829 = vpack.c.b16 %v6818, %v6817
        %v6830 = vpack.c.b16 %v6820, %v6819
        %v6831 = vpack.c.b16 %v6822, %v6821
        %v6832 = vpack.c.b16 %v6824, %v6823
        %6841 = vmatprep.subr.bf16.mxu0 0
        %6842 = vmatpush1.bf16.msra.mxu0 %v6825
        %6843 = vmatprep.subr.bf16.mxu0 0
        %6844 = vmatpush1.bf16.msra.mxu0 %v6826
        %6845 = vmatprep.subr.bf16.mxu0 0
        %6846 = vmatpush1.bf16.msra.mxu0 %v6827
        %6847 = vmatprep.subr.bf16.mxu0 0
        %6848 = vmatpush1.bf16.msra.mxu0 %v6828
        %6849 = vmatprep.subr.bf16.mxu0 0
        %6850 = vmatpush1.bf16.msra.mxu0 %v6829
        %6851 = vmatprep.subr.bf16.mxu0 0
        %6852 = vmatpush1.bf16.msra.mxu0 %v6830
        %6853 = vmatprep.subr.bf16.mxu0 0
        %6854 = vmatpush1.bf16.msra.mxu0 %v6831
        %6855 = vmatprep.subr.bf16.mxu0 0
        %6856 = vmatpush1.bf16.msra.mxu0 %v6832
        %6857 = vmatprep.subr.bf16.mxu0 0
        %6858 = vmatpush1.bf16.msra.mxu0 0
        %6859 = vmatprep.subr.bf16.mxu0 0
        %6860 = vmatpush1.bf16.msra.mxu0 0
        %6861 = vmatprep.subr.bf16.mxu0 0
        %6862 = vmatpush1.bf16.msra.mxu0 0
        %6863 = vmatprep.subr.bf16.mxu0 0
        %6864 = vmatpush1.bf16.msra.mxu0 0
        %6865 = vmatprep.subr.bf16.mxu0 0
        %6866 = vmatpush1.bf16.msra.mxu0 0
        %6867 = vmatprep.subr.bf16.mxu0 0
        %6868 = vmatpush1.bf16.msra.mxu0 0
        %6869 = vmatprep.subr.bf16.mxu0 0
        %6870 = vmatpush1.bf16.msra.mxu0 0
        %6871 = vmatprep.subr.bf16.mxu0 0
        %6872 = vmatpush1.bf16.msra.mxu0 0
        %6873 = vmatprep.mubr.bf16.mxu0 0
        %6874 = vmatmul.mubr.bf16.gmra.mrb[0].mxu0 %v6775
        %v6875 = vpop.f32.mrb[0].mxu0
        %v6876 = vadd.f32 %v6792, %v6875
        %v6877 = vpop.f32.mrb[0].mxu0
        %v6878 = vpop.f32.mrb[0].mxu0
        %v6879 = vpop.f32.mrb[0].mxu0
        %6880 = vdwg.mxu0
        %v6881 = vmax.f32 %v6876, 0.0
        %v6882 = vpack.c.bf16 %v6881, %v6881
        %v6883 = vld [vmem:[%s11] sm:$0xf]
        %v6884 = vld [vmem:[%s11 + $0x4] sm:$0xf]
        %v6885 = vld [vmem:[%s11 + $0x8] sm:$0xf]
        %v6886 = vld [vmem:[%s11 + $0xc] sm:$0xf]
        %v6887 = vld [vmem:[%s11 + $0x10] sm:$0xf]
        %v6888 = vld [vmem:[%s11 + $0x14] sm:$0xf]
        %v6889 = vld [vmem:[%s11 + $0x18] sm:$0xf]
        %v6890 = vld [vmem:[%s11 + $0x1c] sm:$0xf]
        %v6891 = vld [vmem:[%s11 + $0x20] sm:$0xf]
        %v6892 = vld [vmem:[%s11 + $0x24] sm:$0xf]
        %v6893 = vld [vmem:[%s11 + $0x28] sm:$0xf]
        %v6894 = vld [vmem:[%s11 + $0x2c] sm:$0xf]
        %v6895 = vld [vmem:[%s11 + $0x30] sm:$0xf]
        %v6896 = vld [vmem:[%s11 + $0x34] sm:$0xf]
        %v6897 = vld [vmem:[%s11 + $0x38] sm:$0xf]
        %v6898 = vld [vmem:[%s11 + $0x3c] sm:$0xf]
        %v6899 = vld [vmem:[%s12] sm:$0x1]
        %v6916 = vunpack.c.l.b16 %v6883
        %v6917 = vunpack.c.l.b16 %v6884
        %v6918 = vunpack.c.l.b16 %v6885
        %v6919 = vunpack.c.l.b16 %v6886
        %v6920 = vunpack.c.l.b16 %v6887
        %v6921 = vunpack.c.l.b16 %v6888
        %v6922 = vunpack.c.l.b16 %v6889
        %v6923 = vunpack.c.l.b16 %v6890
        %v6924 = vunpack.c.l.b16 %v6891
        %v6925 = vunpack.c.l.b16 %v6892
        %v6926 = vunpack.c.l.b16 %v6893
        %v6927 = vunpack.c.l.b16 %v6894
        %v6928 = vunpack.c.l.b16 %v6895
        %v6929 = vunpack.c.l.b16 %v6896
        %v6930 = vunpack.c.l.b16 %v6897
        %v6931 = vunpack.c.l.b16 %v6898
        %v6932 = vpack.c.b16 %v6917, %v6916
        %v6933 = vpack.c.b16 %v6919, %v6918
        %v6934 = vpack.c.b16 %v6921, %v6920
        %v6935 = vpack.c.b16 %v6923, %v6922
        %v6936 = vpack.c.b16 %v6925, %v6924
        %v6937 = vpack.c.b16 %v6927, %v6926
        %v6938 = vpack.c.b16 %v6929, %v6928
        %v6939 = vpack.c.b16 %v6931, %v6930
        %6948 = vmatprep.subr.bf16.mxu0 0
        %6949 = vmatpush1.bf16.msra.mxu0 %v6932
        %6950 = vmatprep.subr.bf16.mxu0 0
        %6951 = vmatpush1.bf16.msra.mxu0 %v6933
        %6952 = vmatprep.subr.bf16.mxu0 0
        %6953 = vmatpush1.bf16.msra.mxu0 %v6934
        %6954 = vmatprep.subr.bf16.mxu0 0
        %6955 = vmatpush1.bf16.msra.mxu0 %v6935
        %6956 = vmatprep.subr.bf16.mxu0 0
        %6957 = vmatpush1.bf16.msra.mxu0 %v6936
        %6958 = vmatprep.subr.bf16.mxu0 0
        %6959 = vmatpush1.bf16.msra.mxu0 %v6937
        %6960 = vmatprep.subr.bf16.mxu0 0
        %6961 = vmatpush1.bf16.msra.mxu0 %v6938
        %6962 = vmatprep.subr.bf16.mxu0 0
        %6963 = vmatpush1.bf16.msra.mxu0 %v6939
        %6964 = vmatprep.subr.bf16.mxu0 0
        %6965 = vmatpush1.bf16.msra.mxu0 0
        %6966 = vmatprep.subr.bf16.mxu0 0
        %6967 = vmatpush1.bf16.msra.mxu0 0
        %6968 = vmatprep.subr.bf16.mxu0 0
        %6969 = vmatpush1.bf16.msra.mxu0 0
        %6970 = vmatprep.subr.bf16.mxu0 0
        %6971 = vmatpush1.bf16.msra.mxu0 0
        %6972 = vmatprep.subr.bf16.mxu0 0
        %6973 = vmatpush1.bf16.msra.mxu0 0
        %6974 = vmatprep.subr.bf16.mxu0 0
        %6975 = vmatpush1.bf16.msra.mxu0 0
        %6976 = vmatprep.subr.bf16.mxu0 0
        %6977 = vmatpush1.bf16.msra.mxu0 0
        %6978 = vmatprep.subr.bf16.mxu0 0
        %6979 = vmatpush1.bf16.msra.mxu0 0
        %6980 = vmatprep.mubr.bf16.mxu0 0
        %6981 = vmatmul.mubr.bf16.gmra.mrb[0].mxu0 %v6882
        %v6982 = vpop.f32.mrb[0].mxu0
        %v6983 = vadd.f32 %v6899, %v6982
        %v6984 = vpop.f32.mrb[0].mxu0
        %v6985 = vpop.f32.mrb[0].mxu0
        %v6986 = vpop.f32.mrb[0].mxu0
        %6987 = vdwg.mxu0
        %vm6988 = vcmask 73728
        %6989 = vst.msk [vmem:[%s432] sm:$0x1] %vm6988, %v6983
        %s6990 = sand.u32 %s313, 1
        %s6991 = scalar_lea.sflag [#allocation10], %s6990
        %s6992 = sand.u32 %s313, 1
        %s6993 = scalar_lea.vmem [#allocation9], %s6992
        // Predicated region
        $region73: #{vgg_forward.1} parent=71 // pred_check
          %p6994 = pneg %p323
        $region74: #{vgg_forward.1} parent=71 // pred_check_branch
          %6996 = sbr.rel (%p6994) target = $region76
        $region75: #{vgg_forward.1} parent=71 // pred_region
          %s6998 = ssub.s32 16, 16
          %6999 = vsyncadd %s6991, %s6998
          %s7000 = smul.addr %s27, 16
          %s7001 = scalar_lea.hbm %s13, %s7000
          %s7003 = sshll.u32 %s6993, 4
          %s7004 = int_to_ptr.vmem [resolvable:$true] %s7003
          %7006 = dma.vmem_to_hbm [thread:$0]  %s7004, 16, %s7001, %s6991
        $region76: #{vgg_forward.1} parent=71 // pred_fallthru
          _
      $region72: #{vgg_forward.1} parent=5 // pred_fallthru
        _
      %p7007 = scmp.le.s32.totalorder 2, %s22
      // Predicated region
      $region77: #{vgg_forward.1} parent=5 // pred_check
        %p7008 = pneg %p7007
      $region78: #{vgg_forward.1} parent=5 // pred_check_branch
        %7010 = sbr.rel (%p7008) target = $region80
      $region79: #{vgg_forward.1} parent=5 // pred_region
        %s7011 = ssub.s32 %s22, 2
        // Predicated region
        $region81: #{vgg_forward.1} parent=79 // pred_check
          %p7012 = pneg %p329
        $region82: #{vgg_forward.1} parent=79 // pred_check_branch
          %7014 = sbr.rel (%p7012) target = $region84
        $region83: #{vgg_forward.1} parent=79 // pred_region
          %s7015 = sand.u32 %s314, 1
          %s7016 = scalar_lea.sflag [#allocation10], %s7015
          %s7017 = sand.u32 %s314, 1
          %s7018 = scalar_lea.vmem [#allocation9], %s7017
          %7019 = dma.done %s7016, 16
        $region84: #{vgg_forward.1} parent=79 // pred_fallthru
          _
      $region80: #{vgg_forward.1} parent=5 // pred_fallthru
        _
    $region6: #{vgg_forward.1} parent=1 // loop_footer
      %s26 = sadd.s32 1, %s22
    $region7: #{vgg_forward.1} parent=1 // loop_footer_branch
      %21 = sbr.rel target = $region3
    $region8: #{vgg_forward.1} parent=1 // loop_exit
      _
    %7020 = vsyncpa [#allocation10], 1
    %s7021 = scalar_lea.sflag [#allocation10], 1
    %7022 = vsyncpa %s7021, 1

</llo_original>
